<compile_context>
chip_gen: v5e
topology: v5e:2x2
jax: 0.10.0
libtpu: 0.0.40
codegen_flags: <defaults>
</compile_context>

<pallas_src>
import jax
import jax.numpy as jnp
from jax.experimental import pallas as pl
from jax.experimental.pallas import tpu as pltpu

BN_EPS = 1e-5
_VMEM_LIMIT = 32 * 1024 * 1024   # explicit scoped-VMEM cap, safe on v5e/v6e/v7x


# ---------------------------------------------------------------------------
# Host-side (tiny) weight-folding helpers
# ---------------------------------------------------------------------------
def _pw_mat(w):
    """(1, cin, cout) pointwise conv weight -> (cout, cin) matrix."""
    return w[0].T


def _compose_pointwise(conv_list):
    """Compose a chain of 1x1x1 convs into a single affine (W, b)."""
    W, b = None, None
    for (w, bb, _ks, _pd) in conv_list:
        Wc = _pw_mat(w)
        if W is None:
            W, b = Wc, bb
        else:
            W = Wc @ W
            b = Wc @ b + bb
    return W, b


def _bn_scale_shift(bn):
    gamma, beta, mean, var = bn
    s = gamma / jnp.sqrt(var + BN_EPS)
    return s, beta - mean * s


def _fold_spatial_block(blk):
    """Mini-block  pw* -> spatial conv -> pw* -> BN(eval) -> ReLU.

    Returns (W1, b1, W2, b2, ksize):
      W1 (cmid, cin), b1 (cmid,)     : leading pointwise prologue
      W2 (cout, T*cmid), b2 (cout,)  : spatial conv with trailing pointwise
                                       conv(s) + BatchNorm folded in
      ksize                          : (kd, kh, kw) of the spatial conv
    """
    convs = blk["convs"]
    s, shift = _bn_scale_shift(blk["bn"])
    si = None
    for i, (_w, _b, ks, _pd) in enumerate(convs):
        if tuple(ks) != (1, 1, 1):
            si = i
            break
    assert si is not None, "fully-pointwise block: use _fold_pointwise_block"
    w2, b2, ks2, pad2 = convs[si]
    assert tuple(pad2) == tuple(k // 2 for k in ks2), (ks2, pad2)
    T, cin2, cout2 = w2.shape
    pre = convs[:si]
    if pre:
        W1, b1 = _compose_pointwise(pre)
    else:
        W1 = jnp.eye(cin2, dtype=jnp.float32)
        b1 = jnp.zeros((cin2,), jnp.float32)
    W_eff = jnp.transpose(w2, (2, 0, 1)).reshape(cout2, T * cin2)
    b_eff = b2
    for (w, bb, _ks, _pd) in convs[si + 1:]:
        Wc = _pw_mat(w)
        W_eff = Wc @ W_eff
        b_eff = Wc @ b_eff + bb
    return (W1.astype(jnp.float32), b1.astype(jnp.float32),
            (s[:, None] * W_eff).astype(jnp.float32),
            (s * b_eff + shift).astype(jnp.float32),
            tuple(int(k) for k in ks2))


def _fold_pointwise_block(blk):
    """Fully-pointwise mini-block -> single affine (W, b) with BN folded."""
    convs = blk["convs"]
    for (_w, _b, ks, _p) in convs:
        assert tuple(ks) == (1, 1, 1)
    s, shift = _bn_scale_shift(blk["bn"])
    Wc, bc = _compose_pointwise(convs)
    return ((s[:, None] * Wc).astype(jnp.float32),
            (s * bc + shift).astype(jnp.float32))


# ---------------------------------------------------------------------------
# Fused spatial mini-block kernel (in-kernel im2col, prologue/epilogue fusion)
# ---------------------------------------------------------------------------
def fused_spatial_blocks(src, branch_cfgs, *, out_dtype):
    """One pallas_call evaluating several spatial mini-blocks sharing `src`.

    src: (N, cin, D, H, W) activation (NCDHW; no host-side padding/transpose).
    Each cfg: {"w1","b1","w2","b2","ksize", optional "epi": (wr, br)}.
    Returns a list: per cfg either x1 or (x1, x2), each (N, cout, D, H, W).
    """
    N, cin, D, H, W = (int(v) for v in src.shape)
    for cfg in branch_cfgs:
        assert cfg["w1"].shape[1] == cin

    kds = [cfg["ksize"][0] for cfg in branch_cfgs]
    pd_max = max(kds) // 2
    n_slabs = 2 * pd_max + 1

    # SMEM parameter arrays (scalar-read weights for VPU FMAs).
    smem_arrays = []
    for cfg in branch_cfgs:
        smem_arrays += [cfg["w1"], cfg["b1"], cfg["w2"], cfg["b2"]]
        if cfg.get("epi") is not None:
            smem_arrays += [cfg["epi"][0], cfg["epi"][1]]
    n_smem = len(smem_arrays)

    out_shapes, out_specs, scratch_shapes = [], [], []
    for cfg in branch_cfgs:
        cout = cfg["w2"].shape[0]
        out_shapes.append(jax.ShapeDtypeStruct((N, cout, D, H, W), out_dtype))
        out_specs.append(pl.BlockSpec((None, cout, None, H, W),
                                      lambda n, d: (n, 0, d, 0, 0)))
        if cfg.get("epi") is not None:
            ce = cfg["epi"][0].shape[0]
            out_shapes.append(jax.ShapeDtypeStruct((N, ce, D, H, W), out_dtype))
            out_specs.append(pl.BlockSpec((None, ce, None, H, W),
                                          lambda n, d: (n, 0, d, 0, 0)))
        _kd, kh, kw = cfg["ksize"]
        scratch_shapes.append(
            pltpu.VMEM((cfg["w1"].shape[0], H + 2 * (kh // 2), W + 2 * (kw // 2)),
                       jnp.float32))
    n_out = len(out_shapes)

    def kernel(*refs):
        smem_refs = refs[:n_smem]
        slab_refs = refs[n_smem:n_smem + n_slabs]
        out_refs = refs[n_smem + n_slabs:n_smem + n_slabs + n_out]
        scr_refs = refs[n_smem + n_slabs + n_out:]

        d = pl.program_id(1)
        smem_i, out_i = 0, 0
        for bi, cfg in enumerate(branch_cfgs):
            kd, kh, kw = cfg["ksize"]
            pd, ph, pw = kd // 2, kh // 2, kw // 2
            cmid, cin_b = cfg["w1"].shape
            cout = cfg["w2"].shape[0]
            has_epi = cfg.get("epi") is not None
            w1_ref, b1_ref, w2_ref, b2_ref = smem_refs[smem_i:smem_i + 4]
            smem_i += 4
            if has_epi:
                wr_ref, br_ref = smem_refs[smem_i:smem_i + 2]
                smem_i += 2
            o1_ref = out_refs[out_i]
            out_i += 1
            if has_epi:
                o2_ref = out_refs[out_i]
                out_i += 1
            u_scr = scr_refs[bi]

            # Zero-halo padding ring (H/W "same" padding lives in VMEM only).
            u_scr[...] = jnp.zeros_like(u_scr)
            acc = [jnp.zeros((H, W), jnp.float32) for _ in range(cout)]

            for j in range(kd):
                off = j - pd
                slab = slab_refs[off + pd_max]      # (cin, H, W) block
                if kd > 1:
                    # zero the contribution of clamped (out-of-range) depth taps
                    valid = jnp.where((d + off >= 0) & (d + off <= D - 1),
                                      1.0, 0.0)
                else:
                    valid = None
                zc = [slab[ci, :, :].astype(jnp.float32) for ci in range(cin_b)]

                # Prologue 1x1x1 conv (cin -> cmid) into the zero-halo scratch.
                for m in range(cmid):
                    plane = None
                    for ci in range(cin_b):
                        t = w1_ref[m, ci] * zc[ci]
                        plane = t if plane is None else plane + t
                    u_scr[m, ph:ph + H, pw:pw + W] = plane + b1_ref[m]

                # Spatial taps: scalar-weight VPU FMAs (cmid/cout are tiny, so
                # the MXU would be <2% occupied — per the perf review).
                for dy in range(kh):
                    for dx in range(kw):
                        t_idx = j * kh * kw + dy * kw + dx
                        for m in range(cmid):
                            k = t_idx * cmid + m
                            sl = u_scr[m, dy:dy + H, dx:dx + W]
                            for co in range(cout):
                                wsc = w2_ref[co, k]
                                if valid is not None:
                                    wsc = wsc * valid
                                acc[co] = acc[co] + wsc * sl

            # trailing pointwise + BN already folded into w2/b2; ReLU epilogue
            x1 = [jnp.maximum(acc[co] + b2_ref[co], 0.0) for co in range(cout)]
            for co in range(cout):
                o1_ref[co, :, :] = x1[co].astype(o1_ref.dtype)

            if has_epi:   # fused fully-pointwise follow-up mini-block
                ce = cfg["epi"][0].shape[0]
                for c2 in range(ce):
                    plane = None
                    for co in range(cout):
                        t = wr_ref[c2, co] * x1[co]
                        plane = t if plane is None else plane + t
                    o2_ref[c2, :, :] = jnp.maximum(
                        plane + br_ref[c2], 0.0).astype(o2_ref.dtype)

    smem_spec = pl.BlockSpec(memory_space=pltpu.MemorySpace.SMEM)

    def slab_spec(off):
        def idx(n, d, _off=off):
            dd = jnp.minimum(jnp.maximum(d + _off, 0), D - 1)
            return (n, 0, dd, 0, 0)
        return pl.BlockSpec((None, cin, None, H, W), idx)

    in_specs = ([smem_spec] * n_smem
                + [slab_spec(j - pd_max) for j in range(n_slabs)])

    outs = pl.pallas_call(
        kernel,
        out_shape=tuple(out_shapes),
        grid=(N, D),
        in_specs=in_specs,
        out_specs=tuple(out_specs),
        scratch_shapes=scratch_shapes,
        compiler_params=pltpu.CompilerParams(
            dimension_semantics=("parallel", "parallel"),
            vmem_limit_bytes=_VMEM_LIMIT),
    )(*smem_arrays, *([src] * n_slabs))

    if not isinstance(outs, (tuple, list)):
        outs = (outs,)
    results, k = [], 0
    for cfg in branch_cfgs:
        if cfg.get("epi") is not None:
            results.append((outs[k], outs[k + 1]))
            k += 2
        else:
            results.append(outs[k])
            k += 1
    return results


# ---------------------------------------------------------------------------
# Final cell-residual / concat / softmax(alpha) combine
# ---------------------------------------------------------------------------
def combine_call(alpha, x, branch_pairs):
    """out = x + sum_i softmax(alpha)_i * concat(x1_i, x2_i)   (channel concat).

    Uses sum(softmax) == 1 so the residual is added once.  Reads branch
    outputs in their storage dtype, accumulates in f32 and writes the final
    NCDHW f32 output directly (no host-side transpose / slicing).
    """
    N, C, D, H, W = (int(v) for v in x.shape)
    c = C // 2

    def kernel(a_ref, x_ref, l1, r1, l2, r2, l3, r3, o_ref):
        lrefs = (l1, l2, l3)
        rrefs = (r1, r2, r3)
        a = [a_ref[i] for i in range(3)]
        for co in range(c):
            top = x_ref[co, :, :].astype(jnp.float32)
            bot = x_ref[c + co, :, :].astype(jnp.float32)
            for i in range(3):
                top = top + a[i] * lrefs[i][co, :, :].astype(jnp.float32)
                bot = bot + a[i] * rrefs[i][co, :, :].astype(jnp.float32)
            o_ref[co, :, :] = top.astype(o_ref.dtype)
            o_ref[c + co, :, :] = bot.astype(o_ref.dtype)

    xspec = pl.BlockSpec((None, C, None, H, W), lambda n, d: (n, 0, d, 0, 0))
    bspec = pl.BlockSpec((None, c, None, H, W), lambda n, d: (n, 0, d, 0, 0))
    ins = [alpha.astype(jnp.float32), x]
    for (x1, x2) in branch_pairs:
        ins += [x1, x2]

    return pl.pallas_call(
        kernel,
        out_shape=jax.ShapeDtypeStruct((N, C, D, H, W), jnp.float32),
        grid=(N, D),
        in_specs=[pl.BlockSpec(memory_space=pltpu.MemorySpace.SMEM), xspec]
                 + [bspec] * 6,
        out_specs=xspec,
        compiler_params=pltpu.CompilerParams(
            dimension_semantics=("parallel", "parallel"),
            vmem_limit_bytes=_VMEM_LIMIT),
    )(*ins)


# ---------------------------------------------------------------------------
# Decoder forward
# ---------------------------------------------------------------------------
def decoder_forward(x_ncdhw, params, *, storage_dtype=jnp.bfloat16):
    """Forward pass of V_NAS.Decoder (eval-mode BatchNorm).

    x_ncdhw: (N, C, D, H, W) float32.  Intermediate activations stream in
    `storage_dtype` (bf16 by default), all in-kernel accumulation is f32,
    output is f32 NCDHW.
    """
    x = x_ncdhw.astype(jnp.float32)
    xs = x.astype(storage_dtype)

    def left_cfg(name):
        right = params[name + "_right"]
        r_spatial = any(tuple(ks) != (1, 1, 1)
                        for (_w, _b, ks, _p) in right["convs"])
        W1, b1, W2, b2, ks = _fold_spatial_block(params[name + "_left"])
        cfg = {"w1": W1, "b1": b1, "w2": W2, "b2": b2, "ksize": ks}
        if not r_spatial:
            # fully-pointwise right block -> fuse as epilogue of the left block
            cfg["epi"] = _fold_pointwise_block(right)
        return cfg, r_spatial

    names = ("2d", "3d", "p3d")
    cfgs, right_is_spatial = zip(*(left_cfg(n) for n in names))

    # All three left mini-blocks share the input -> ONE pallas_call.
    left_results = fused_spatial_blocks(xs, list(cfgs), out_dtype=storage_dtype)

    branch_pairs = []
    for name, res, r_spatial in zip(names, left_results, right_is_spatial):
        if not r_spatial:
            x1, x2 = res
        else:
            x1 = res
            W1, b1, W2, b2, ks = _fold_spatial_block(params[name + "_right"])
            x2 = fused_spatial_blocks(
                x1, [{"w1": W1, "b1": b1, "w2": W2, "b2": b2, "ksize": ks}],
                out_dtype=storage_dtype)[0]
        branch_pairs.append((x1, x2))

    alpha = jax.nn.softmax(params["alpha"])
    return combine_call(alpha, x, branch_pairs)


# ---------------------------------------------------------------------------
# Deterministic parameter construction (matches module __init__ shapes)
# ---------------------------------------------------------------------------
def init_decoder_params(key, in_c):
    c = in_c // 2
    specs = {
        "2d_left":  [(in_c, c, (1, 1, 1), (0, 0, 0)),
                     (c, c, (3, 3, 1), (1, 1, 0)),
                     (c, c, (1, 1, 1), (0, 0, 0))],
        "2d_right": [(c, c, (1, 1, 1), (0, 0, 0))] * 3,
        "3d_left":  [(in_c, c, (1, 1, 1), (0, 0, 0)),
                     (c, c, (3, 3, 3), (1, 1, 1)),
                     (c, c, (1, 1, 1), (0, 0, 0))],
        "3d_right": [(c, c, (1, 1, 1), (0, 0, 0)),
                     (c, c, (3, 3, 3), (1, 1, 1)),
                     (c, c, (1, 1, 1), (0, 0, 0))],
        "p3d_left": [(in_c, c, (1, 1, 1), (0, 0, 0)),
                     (c, c, (3, 3, 1), (1, 1, 0)),
                     (c, c, (1, 1, 1), (0, 0, 0))],
        "p3d_right": [(c, c, (1, 1, 1), (0, 0, 0)),
                      (c, c, (1, 1, 3), (0, 0, 1)),
                      (c, c, (1, 1, 1), (0, 0, 0))],
    }
    params = {"alpha": jnp.zeros((3,), jnp.float32)}  # matches nn.Parameter(zeros(3))
    for bi, (name, convs) in enumerate(specs.items()):
        bkey = jax.random.fold_in(key, bi)
        conv_params = []
        for ci, (cin, cout, ks, pd) in enumerate(convs):
            ckey = jax.random.fold_in(bkey, ci)
            kw_, kb_ = jax.random.split(ckey)
            T = ks[0] * ks[1] * ks[2]
            w = jax.random.normal(kw_, (T, cin, cout), jnp.float32) / jnp.sqrt(cin * T)
            b = jax.random.normal(kb_, (cout,), jnp.float32) * 0.1
            conv_params.append((w, b, ks, pd))
        bnkey = jax.random.fold_in(bkey, 100)
        k1, k2, k3, k4 = jax.random.split(bnkey, 4)
        bn = (jax.random.uniform(k1, (c,), jnp.float32, 0.5, 1.5),   # gamma
              jax.random.normal(k2, (c,), jnp.float32) * 0.1,        # beta
              jax.random.normal(k3, (c,), jnp.float32) * 0.1,        # running_mean
              jax.random.uniform(k4, (c,), jnp.float32, 0.5, 1.5))   # running_var
        params[name] = {"convs": conv_params, "bn": bn}
    return params


# ---------------------------------------------------------------------------
# Pure-JAX reference (for correctness check)
# ---------------------------------------------------------------------------
def _conv3d_ref(x, w, b, ksize, pad):
    kd, kh, kw = ksize
    T, cin, cout = w.shape
    wf = w.reshape(kd, kh, kw, cin, cout)
    y = jax.lax.conv_general_dilated(
        x, wf, window_strides=(1, 1, 1),
        padding=[(pad[0], pad[0]), (pad[1], pad[1]), (pad[2], pad[2])],
        dimension_numbers=("NDHWC", "DHWIO", "NDHWC"))
    return y + b


def _mini_block_ref(x, bp):
    y = x
    for (w, b, ks, pd) in bp["convs"]:
        y = _conv3d_ref(y, w, b, ks, pd)
    gamma, beta, mean, var = bp["bn"]
    y = (y - mean) / jnp.sqrt(var + BN_EPS) * gamma + beta
    return jnp.maximum(y, 0.0)


def decoder_forward_ref(x_ncdhw, params):
    x = jnp.transpose(x_ncdhw, (0, 2, 3, 4, 1)).astype(jnp.float32)  # NDHWC
    a = jax.nn.softmax(params["alpha"])
    outs = []
    for name in ("2d", "3d", "p3d"):
        x1 = _mini_block_ref(x, params[name + "_left"])
        x2 = _mini_block_ref(x1, params[name + "_right"])
        outs.append(x + jnp.concatenate([x1, x2], axis=-1))
    y = a[0] * outs[0] + a[1] * outs[1] + a[2] * outs[2]
    return jnp.transpose(y, (0, 4, 1, 2, 3))


# ---------------------------------------------------------------------------
if __name__ == "__main__":
    N, in_c, D, H, W = 2, 4, 8, 8, 8          # NCDHW input, in_c == out_c
    key = jax.random.PRNGKey(0)
    params = init_decoder_params(key, in_c)
    x = jax.random.normal(jax.random.fold_in(key, 999),
                          (N, in_c, D, H, W), jnp.float32)

    ref = jax.block_until_ready(decoder_forward_ref(x, params))

    # Exact-math check: f32 storage path must match the XLA reference tightly.
    out_f32 = jax.block_until_ready(
        decoder_forward(x, params, storage_dtype=jnp.float32))
    assert out_f32.shape == x.shape and out_f32.dtype == jnp.float32
    err_f32 = float(jnp.max(jnp.abs(out_f32 - ref)))
    assert err_f32 < 1e-3, f"f32 path mismatch vs reference: {err_f32}"

    # Performance path: bf16 activation storage with f32 in-kernel accumulation.
    out_bf16 = jax.block_until_ready(
        decoder_forward(x, params, storage_dtype=jnp.bfloat16))
    assert out_bf16.shape == x.shape and out_bf16.dtype == jnp.float32
    err_bf16 = float(jnp.max(jnp.abs(out_bf16 - ref)))
    tol_bf16 = 5e-2 * (1.0 + float(jnp.max(jnp.abs(ref))))
    assert err_bf16 < tol_bf16, f"bf16 path drift too large: {err_bf16} > {tol_bf16}"

    print("KERNEL_OK")
</pallas_src>

<mosaic_0001>
module attributes {stable_mosaic.version = 11 : i64} {
  func.func @kernel(%arg0: i32, %arg1: i32, %arg2: memref<2x4xf32, #tpu.memory_space<smem>>, %arg3: memref<2xf32, #tpu.memory_space<smem>>, %arg4: memref<2x18xf32, #tpu.memory_space<smem>>, %arg5: memref<2xf32, #tpu.memory_space<smem>>, %arg6: memref<2x2xf32, #tpu.memory_space<smem>>, %arg7: memref<2xf32, #tpu.memory_space<smem>>, %arg8: memref<2x4xf32, #tpu.memory_space<smem>>, %arg9: memref<2xf32, #tpu.memory_space<smem>>, %arg10: memref<2x54xf32, #tpu.memory_space<smem>>, %arg11: memref<2xf32, #tpu.memory_space<smem>>, %arg12: memref<2x4xf32, #tpu.memory_space<smem>>, %arg13: memref<2xf32, #tpu.memory_space<smem>>, %arg14: memref<2x18xf32, #tpu.memory_space<smem>>, %arg15: memref<2xf32, #tpu.memory_space<smem>>, %arg16: memref<1x4x1x8x8xf32, #tpu.memory_space<vmem>>, %arg17: memref<1x4x1x8x8xf32, #tpu.memory_space<vmem>>, %arg18: memref<1x4x1x8x8xf32, #tpu.memory_space<vmem>>, %arg19: memref<1x2x1x8x8xf32, #tpu.memory_space<vmem>>, %arg20: memref<1x2x1x8x8xf32, #tpu.memory_space<vmem>>, %arg21: memref<1x2x1x8x8xf32, #tpu.memory_space<vmem>>, %arg22: memref<1x2x1x8x8xf32, #tpu.memory_space<vmem>>, %arg23: memref<2x10x8xf32, #tpu.memory_space<vmem>>, %arg24: memref<2x10x10xf32, #tpu.memory_space<vmem>>, %arg25: memref<2x10x8xf32, #tpu.memory_space<vmem>>) attributes {dimension_semantics = [#tpu.dimension_semantics<parallel>, #tpu.dimension_semantics<parallel>], iteration_bounds = array<i64: 2, 8>, scalar_prefetch = 0 : i64, scratch_operands = 3 : i64, tpu.core_type = #tpu.core_type<tc>, window_params = [{transform_indices = @transform_0, window_bounds = array<i64: 2, 4>}, {transform_indices = @transform_1, window_bounds = array<i64: 2>}, {transform_indices = @transform_2, window_bounds = array<i64: 2, 18>}, {transform_indices = @transform_3, window_bounds = array<i64: 2>}, {transform_indices = @transform_4, window_bounds = array<i64: 2, 2>}, {transform_indices = @transform_5, window_bounds = array<i64: 2>}, {transform_indices = @transform_6, window_bounds = array<i64: 2, 4>}, {transform_indices = @transform_7, window_bounds = array<i64: 2>}, {transform_indices = @transform_8, window_bounds = array<i64: 2, 54>}, {transform_indices = @transform_9, window_bounds = array<i64: 2>}, {transform_indices = @transform_10, window_bounds = array<i64: 2, 4>}, {transform_indices = @transform_11, window_bounds = array<i64: 2>}, {transform_indices = @transform_12, window_bounds = array<i64: 2, 18>}, {transform_indices = @transform_13, window_bounds = array<i64: 2>}, {transform_indices = @transform_14, window_bounds = array<i64: 1, 4, 1, 8, 8>}, {transform_indices = @transform_15, window_bounds = array<i64: 1, 4, 1, 8, 8>}, {transform_indices = @transform_16, window_bounds = array<i64: 1, 4, 1, 8, 8>}, {transform_indices = @transform_17, window_bounds = array<i64: 1, 2, 1, 8, 8>}, {transform_indices = @transform_18, window_bounds = array<i64: 1, 2, 1, 8, 8>}, {transform_indices = @transform_19, window_bounds = array<i64: 1, 2, 1, 8, 8>}, {transform_indices = @transform_20, window_bounds = array<i64: 1, 2, 1, 8, 8>}]} {
    %cst = arith.constant 0.000000e+00 : f32
    %0 = vector.broadcast %cst : f32 to vector<2x10x8xf32>
    %c0 = arith.constant 0 : index
    %c0_0 = arith.constant 0 : index
    %c0_1 = arith.constant 0 : index
    %1 = vector.load %arg23[%c0, %c0_0, %c0_1] : memref<2x10x8xf32, #tpu.memory_space<vmem>>, vector<2x10x8xf32>
    tpu.vector_store %arg23[%c0, %c0_0, %c0_1], %0 {strides = array<i32>} : memref<2x10x8xf32, #tpu.memory_space<vmem>>, vector<2x10x8xf32>,
    %cst_2 = arith.constant 0.000000e+00 : f32
    %2 = vector.broadcast %cst_2 : f32 to vector<8x8xf32>
    %cst_3 = arith.constant 0.000000e+00 : f32
    %3 = vector.broadcast %cst_3 : f32 to vector<8x8xf32>
    %c-1_i32 = arith.constant -1 : i32
    %4 = arith.addi %arg1, %c-1_i32 : i32
    %c0_i32 = arith.constant 0 : i32
    %5 = arith.cmpi sge, %4, %c0_i32 : i32
    %c-1_i32_4 = arith.constant -1 : i32
    %6 = arith.addi %arg1, %c-1_i32_4 : i32
    %c7_i32 = arith.constant 7 : i32
    %7 = arith.cmpi sle, %6, %c7_i32 : i32
    %8 = arith.andi %5, %7 : i1
    %cst_5 = arith.constant 1.000000e+00 : f32
    %cst_6 = arith.constant 0.000000e+00 : f32
    %9 = arith.select %8, %cst_5, %cst_6 : f32
    %c0_7 = arith.constant 0 : index
    %c0_8 = arith.constant 0 : index
    %c0_9 = arith.constant 0 : index
    %c0_10 = arith.constant 0 : index
    %c0_11 = arith.constant 0 : index
    %10 = vector.load %arg16[%c0_7, %c0_8, %c0_9, %c0_10, %c0_11] : memref<1x4x1x8x8xf32, #tpu.memory_space<vmem>>, vector<1x1x1x8x8xf32>
    %11 = vector.shape_cast %10 : vector<1x1x1x8x8xf32> to vector<8x8xf32>
    %c0_12 = arith.constant 0 : index
    %c1 = arith.constant 1 : index
    %c0_13 = arith.constant 0 : index
    %c0_14 = arith.constant 0 : index
    %c0_15 = arith.constant 0 : index
    %12 = vector.load %arg16[%c0_12, %c1, %c0_13, %c0_14, %c0_15] : memref<1x4x1x8x8xf32, #tpu.memory_space<vmem>>, vector<1x1x1x8x8xf32>
    %13 = vector.shape_cast %12 : vector<1x1x1x8x8xf32> to vector<8x8xf32>
    %c0_16 = arith.constant 0 : index
    %c2 = arith.constant 2 : index
    %c0_17 = arith.constant 0 : index
    %c0_18 = arith.constant 0 : index
    %c0_19 = arith.constant 0 : index
    %14 = vector.load %arg16[%c0_16, %c2, %c0_17, %c0_18, %c0_19] : memref<1x4x1x8x8xf32, #tpu.memory_space<vmem>>, vector<1x1x1x8x8xf32>
    %15 = vector.shape_cast %14 : vector<1x1x1x8x8xf32> to vector<8x8xf32>
    %c0_20 = arith.constant 0 : index
    %c3 = arith.constant 3 : index
    %c0_21 = arith.constant 0 : index
    %c0_22 = arith.constant 0 : index
    %c0_23 = arith.constant 0 : index
    %16 = vector.load %arg16[%c0_20, %c3, %c0_21, %c0_22, %c0_23] : memref<1x4x1x8x8xf32, #tpu.memory_space<vmem>>, vector<1x1x1x8x8xf32>
    %17 = vector.shape_cast %16 : vector<1x1x1x8x8xf32> to vector<8x8xf32>
    %c0_24 = arith.constant 0 : index
    %c0_25 = arith.constant 0 : index
    %18 = memref.load %arg2[%c0_24, %c0_25] : memref<2x4xf32, #tpu.memory_space<smem>>
    %19 = vector.broadcast %18 : f32 to vector<8x8xf32>
    %20 = arith.mulf %19, %11 : vector<8x8xf32>
    %c0_26 = arith.constant 0 : index
    %c1_27 = arith.constant 1 : index
    %21 = memref.load %arg2[%c0_26, %c1_27] : memref<2x4xf32, #tpu.memory_space<smem>>
    %22 = vector.broadcast %21 : f32 to vector<8x8xf32>
    %23 = arith.mulf %22, %13 : vector<8x8xf32>
    %24 = arith.addf %20, %23 : vector<8x8xf32>
    %c0_28 = arith.constant 0 : index
    %c2_29 = arith.constant 2 : index
    %25 = memref.load %arg2[%c0_28, %c2_29] : memref<2x4xf32, #tpu.memory_space<smem>>
    %26 = vector.broadcast %25 : f32 to vector<8x8xf32>
    %27 = arith.mulf %26, %15 : vector<8x8xf32>
    %28 = arith.addf %24, %27 : vector<8x8xf32>
    %c0_30 = arith.constant 0 : index
    %c3_31 = arith.constant 3 : index
    %29 = memref.load %arg2[%c0_30, %c3_31] : memref<2x4xf32, #tpu.memory_space<smem>>
    %30 = vector.broadcast %29 : f32 to vector<8x8xf32>
    %31 = arith.mulf %30, %17 : vector<8x8xf32>
    %32 = arith.addf %28, %31 : vector<8x8xf32>
    %c0_32 = arith.constant 0 : index
    %33 = memref.load %arg3[%c0_32] : memref<2xf32, #tpu.memory_space<smem>>
    %34 = vector.broadcast %33 : f32 to vector<8x8xf32>
    %35 = arith.addf %32, %34 : vector<8x8xf32>
    %c0_33 = arith.constant 0 : index
    %c1_34 = arith.constant 1 : index
    %c0_35 = arith.constant 0 : index
    %36 = vector.load %arg23[%c0_33, %c1_34, %c0_35] : memref<2x10x8xf32, #tpu.memory_space<vmem>>, vector<1x8x8xf32>
    %37 = vector.shape_cast %36 : vector<1x8x8xf32> to vector<8x8xf32>
    %38 = vector.shape_cast %35 : vector<8x8xf32> to vector<1x8x8xf32>
    tpu.vector_store %arg23[%c0_33, %c1_34, %c0_35], %38 {strides = array<i32>} : memref<2x10x8xf32, #tpu.memory_space<vmem>>, vector<1x8x8xf32>,
    %c1_36 = arith.constant 1 : index
    %c0_37 = arith.constant 0 : index
    %39 = memref.load %arg2[%c1_36, %c0_37] : memref<2x4xf32, #tpu.memory_space<smem>>
    %40 = vector.broadcast %39 : f32 to vector<8x8xf32>
    %41 = arith.mulf %40, %11 : vector<8x8xf32>
    %c1_38 = arith.constant 1 : index
    %c1_39 = arith.constant 1 : index
    %42 = memref.load %arg2[%c1_38, %c1_39] : memref<2x4xf32, #tpu.memory_space<smem>>
    %43 = vector.broadcast %42 : f32 to vector<8x8xf32>
    %44 = arith.mulf %43, %13 : vector<8x8xf32>
    %45 = arith.addf %41, %44 : vector<8x8xf32>
    %c1_40 = arith.constant 1 : index
    %c2_41 = arith.constant 2 : index
    %46 = memref.load %arg2[%c1_40, %c2_41] : memref<2x4xf32, #tpu.memory_space<smem>>
    %47 = vector.broadcast %46 : f32 to vector<8x8xf32>
    %48 = arith.mulf %47, %15 : vector<8x8xf32>
    %49 = arith.addf %45, %48 : vector<8x8xf32>
    %c1_42 = arith.constant 1 : index
    %c3_43 = arith.constant 3 : index
    %50 = memref.load %arg2[%c1_42, %c3_43] : memref<2x4xf32, #tpu.memory_space<smem>>
    %51 = vector.broadcast %50 : f32 to vector<8x8xf32>
    %52 = arith.mulf %51, %17 : vector<8x8xf32>
    %53 = arith.addf %49, %52 : vector<8x8xf32>
    %c1_44 = arith.constant 1 : index
    %54 = memref.load %arg3[%c1_44] : memref<2xf32, #tpu.memory_space<smem>>
    %55 = vector.broadcast %54 : f32 to vector<8x8xf32>
    %56 = arith.addf %53, %55 : vector<8x8xf32>
    %c1_45 = arith.constant 1 : index
    %c1_46 = arith.constant 1 : index
    %c0_47 = arith.constant 0 : index
    %57 = vector.load %arg23[%c1_45, %c1_46, %c0_47] : memref<2x10x8xf32, #tpu.memory_space<vmem>>, vector<1x8x8xf32>
    %58 = vector.shape_cast %57 : vector<1x8x8xf32> to vector<8x8xf32>
    %59 = vector.shape_cast %56 : vector<8x8xf32> to vector<1x8x8xf32>
    tpu.vector_store %arg23[%c1_45, %c1_46, %c0_47], %59 {strides = array<i32>} : memref<2x10x8xf32, #tpu.memory_space<vmem>>, vector<1x8x8xf32>,
    %c0_48 = arith.constant 0 : index
    %c0_49 = arith.constant 0 : index
    %c0_50 = arith.constant 0 : index
    %60 = vector.load %arg23[%c0_48, %c0_49, %c0_50] : memref<2x10x8xf32, #tpu.memory_space<vmem>>, vector<1x8x8xf32>
    %61 = vector.shape_cast %60 : vector<1x8x8xf32> to vector<8x8xf32>
    %c0_51 = arith.constant 0 : index
    %c0_52 = arith.constant 0 : index
    %62 = memref.load %arg4[%c0_51, %c0_52] : memref<2x18xf32, #tpu.memory_space<smem>>
    %63 = arith.mulf %62, %9 : f32
    %64 = vector.broadcast %63 : f32 to vector<8x8xf32>
    %65 = arith.mulf %64, %61 : vector<8x8xf32>
    %66 = arith.addf %2, %65 : vector<8x8xf32>
    %c1_53 = arith.constant 1 : index
    %c0_54 = arith.constant 0 : index
    %67 = memref.load %arg4[%c1_53, %c0_54] : memref<2x18xf32, #tpu.memory_space<smem>>
    %68 = arith.mulf %67, %9 : f32
    %69 = vector.broadcast %68 : f32 to vector<8x8xf32>
    %70 = arith.mulf %69, %61 : vector<8x8xf32>
    %71 = arith.addf %3, %70 : vector<8x8xf32>
    %c1_55 = arith.constant 1 : index
    %c0_56 = arith.constant 0 : index
    %c0_57 = arith.constant 0 : index
    %72 = vector.load %arg23[%c1_55, %c0_56, %c0_57] : memref<2x10x8xf32, #tpu.memory_space<vmem>>, vector<1x8x8xf32>
    %73 = vector.shape_cast %72 : vector<1x8x8xf32> to vector<8x8xf32>
    %c0_58 = arith.constant 0 : index
    %c1_59 = arith.constant 1 : index
    %74 = memref.load %arg4[%c0_58, %c1_59] : memref<2x18xf32, #tpu.memory_space<smem>>
    %75 = arith.mulf %74, %9 : f32
    %76 = vector.broadcast %75 : f32 to vector<8x8xf32>
    %77 = arith.mulf %76, %73 : vector<8x8xf32>
    %78 = arith.addf %66, %77 : vector<8x8xf32>
    %c1_60 = arith.constant 1 : index
    %c1_61 = arith.constant 1 : index
    %79 = memref.load %arg4[%c1_60, %c1_61] : memref<2x18xf32, #tpu.memory_space<smem>>
    %80 = arith.mulf %79, %9 : f32
    %81 = vector.broadcast %80 : f32 to vector<8x8xf32>
    %82 = arith.mulf %81, %73 : vector<8x8xf32>
    %83 = arith.addf %71, %82 : vector<8x8xf32>
    %c0_62 = arith.constant 0 : index
    %c1_63 = arith.constant 1 : index
    %c0_64 = arith.constant 0 : index
    %84 = vector.load %arg23[%c0_62, %c1_63, %c0_64] : memref<2x10x8xf32, #tpu.memory_space<vmem>>, vector<1x8x8xf32>
    %85 = vector.shape_cast %84 : vector<1x8x8xf32> to vector<8x8xf32>
    %c0_65 = arith.constant 0 : index
    %c2_66 = arith.constant 2 : index
    %86 = memref.load %arg4[%c0_65, %c2_66] : memref<2x18xf32, #tpu.memory_space<smem>>
    %87 = arith.mulf %86, %9 : f32
    %88 = vector.broadcast %87 : f32 to vector<8x8xf32>
    %89 = arith.mulf %88, %85 : vector<8x8xf32>
    %90 = arith.addf %78, %89 : vector<8x8xf32>
    %c1_67 = arith.constant 1 : index
    %c2_68 = arith.constant 2 : index
    %91 = memref.load %arg4[%c1_67, %c2_68] : memref<2x18xf32, #tpu.memory_space<smem>>
    %92 = arith.mulf %91, %9 : f32
    %93 = vector.broadcast %92 : f32 to vector<8x8xf32>
    %94 = arith.mulf %93, %85 : vector<8x8xf32>
    %95 = arith.addf %83, %94 : vector<8x8xf32>
    %c1_69 = arith.constant 1 : index
    %c1_70 = arith.constant 1 : index
    %c0_71 = arith.constant 0 : index
    %96 = vector.load %arg23[%c1_69, %c1_70, %c0_71] : memref<2x10x8xf32, #tpu.memory_space<vmem>>, vector<1x8x8xf32>
    %97 = vector.shape_cast %96 : vector<1x8x8xf32> to vector<8x8xf32>
    %c0_72 = arith.constant 0 : index
    %c3_73 = arith.constant 3 : index
    %98 = memref.load %arg4[%c0_72, %c3_73] : memref<2x18xf32, #tpu.memory_space<smem>>
    %99 = arith.mulf %98, %9 : f32
    %100 = vector.broadcast %99 : f32 to vector<8x8xf32>
    %101 = arith.mulf %100, %97 : vector<8x8xf32>
    %102 = arith.addf %90, %101 : vector<8x8xf32>
    %c1_74 = arith.constant 1 : index
    %c3_75 = arith.constant 3 : index
    %103 = memref.load %arg4[%c1_74, %c3_75] : memref<2x18xf32, #tpu.memory_space<smem>>
    %104 = arith.mulf %103, %9 : f32
    %105 = vector.broadcast %104 : f32 to vector<8x8xf32>
    %106 = arith.mulf %105, %97 : vector<8x8xf32>
    %107 = arith.addf %95, %106 : vector<8x8xf32>
    %c0_76 = arith.constant 0 : index
    %c2_77 = arith.constant 2 : index
    %c0_78 = arith.constant 0 : index
    %108 = vector.load %arg23[%c0_76, %c2_77, %c0_78] : memref<2x10x8xf32, #tpu.memory_space<vmem>>, vector<1x8x8xf32>
    %109 = vector.shape_cast %108 : vector<1x8x8xf32> to vector<8x8xf32>
    %c0_79 = arith.constant 0 : index
    %c4 = arith.constant 4 : index
    %110 = memref.load %arg4[%c0_79, %c4] : memref<2x18xf32, #tpu.memory_space<smem>>
    %111 = arith.mulf %110, %9 : f32
    %112 = vector.broadcast %111 : f32 to vector<8x8xf32>
    %113 = arith.mulf %112, %109 : vector<8x8xf32>
    %114 = arith.addf %102, %113 : vector<8x8xf32>
    %c1_80 = arith.constant 1 : index
    %c4_81 = arith.constant 4 : index
    %115 = memref.load %arg4[%c1_80, %c4_81] : memref<2x18xf32, #tpu.memory_space<smem>>
    %116 = arith.mulf %115, %9 : f32
    %117 = vector.broadcast %116 : f32 to vector<8x8xf32>
    %118 = arith.mulf %117, %109 : vector<8x8xf32>
    %119 = arith.addf %107, %118 : vector<8x8xf32>
    %c1_82 = arith.constant 1 : index
    %c2_83 = arith.constant 2 : index
    %c0_84 = arith.constant 0 : index
    %120 = vector.load %arg23[%c1_82, %c2_83, %c0_84] : memref<2x10x8xf32, #tpu.memory_space<vmem>>, vector<1x8x8xf32>
    %121 = vector.shape_cast %120 : vector<1x8x8xf32> to vector<8x8xf32>
    %c0_85 = arith.constant 0 : index
    %c5 = arith.constant 5 : index
    %122 = memref.load %arg4[%c0_85, %c5] : memref<2x18xf32, #tpu.memory_space<smem>>
    %123 = arith.mulf %122, %9 : f32
    %124 = vector.broadcast %123 : f32 to vector<8x8xf32>
    %125 = arith.mulf %124, %121 : vector<8x8xf32>
    %126 = arith.addf %114, %125 : vector<8x8xf32>
    %c1_86 = arith.constant 1 : index
    %c5_87 = arith.constant 5 : index
    %127 = memref.load %arg4[%c1_86, %c5_87] : memref<2x18xf32, #tpu.memory_space<smem>>
    %128 = arith.mulf %127, %9 : f32
    %129 = vector.broadcast %128 : f32 to vector<8x8xf32>
    %130 = arith.mulf %129, %121 : vector<8x8xf32>
    %131 = arith.addf %119, %130 : vector<8x8xf32>
    %c0_i32_88 = arith.constant 0 : i32
    %132 = arith.addi %arg1, %c0_i32_88 : i32
    %c0_i32_89 = arith.constant 0 : i32
    %133 = arith.cmpi sge, %132, %c0_i32_89 : i32
    %c0_i32_90 = arith.constant 0 : i32
    %134 = arith.addi %arg1, %c0_i32_90 : i32
    %c7_i32_91 = arith.constant 7 : i32
    %135 = arith.cmpi sle, %134, %c7_i32_91 : i32
    %136 = arith.andi %133, %135 : i1
    %cst_92 = arith.constant 1.000000e+00 : f32
    %cst_93 = arith.constant 0.000000e+00 : f32
    %137 = arith.select %136, %cst_92, %cst_93 : f32
    %c0_94 = arith.constant 0 : index
    %c0_95 = arith.constant 0 : index
    %c0_96 = arith.constant 0 : index
    %c0_97 = arith.constant 0 : index
    %c0_98 = arith.constant 0 : index
    %138 = vector.load %arg17[%c0_94, %c0_95, %c0_96, %c0_97, %c0_98] : memref<1x4x1x8x8xf32, #tpu.memory_space<vmem>>, vector<1x1x1x8x8xf32>
    %139 = vector.shape_cast %138 : vector<1x1x1x8x8xf32> to vector<8x8xf32>
    %c0_99 = arith.constant 0 : index
    %c1_100 = arith.constant 1 : index
    %c0_101 = arith.constant 0 : index
    %c0_102 = arith.constant 0 : index
    %c0_103 = arith.constant 0 : index
    %140 = vector.load %arg17[%c0_99, %c1_100, %c0_101, %c0_102, %c0_103] : memref<1x4x1x8x8xf32, #tpu.memory_space<vmem>>, vector<1x1x1x8x8xf32>
    %141 = vector.shape_cast %140 : vector<1x1x1x8x8xf32> to vector<8x8xf32>
    %c0_104 = arith.constant 0 : index
    %c2_105 = arith.constant 2 : index
    %c0_106 = arith.constant 0 : index
    %c0_107 = arith.constant 0 : index
    %c0_108 = arith.constant 0 : index
    %142 = vector.load %arg17[%c0_104, %c2_105, %c0_106, %c0_107, %c0_108] : memref<1x4x1x8x8xf32, #tpu.memory_space<vmem>>, vector<1x1x1x8x8xf32>
    %143 = vector.shape_cast %142 : vector<1x1x1x8x8xf32> to vector<8x8xf32>
    %c0_109 = arith.constant 0 : index
    %c3_110 = arith.constant 3 : index
    %c0_111 = arith.constant 0 : index
    %c0_112 = arith.constant 0 : index
    %c0_113 = arith.constant 0 : index
    %144 = vector.load %arg17[%c0_109, %c3_110, %c0_111, %c0_112, %c0_113] : memref<1x4x1x8x8xf32, #tpu.memory_space<vmem>>, vector<1x1x1x8x8xf32>
    %145 = vector.shape_cast %144 : vector<1x1x1x8x8xf32> to vector<8x8xf32>
    %c0_114 = arith.constant 0 : index
    %c0_115 = arith.constant 0 : index
    %146 = memref.load %arg2[%c0_114, %c0_115] : memref<2x4xf32, #tpu.memory_space<smem>>
    %147 = vector.broadcast %146 : f32 to vector<8x8xf32>
    %148 = arith.mulf %147, %139 : vector<8x8xf32>
    %c0_116 = arith.constant 0 : index
    %c1_117 = arith.constant 1 : index
    %149 = memref.load %arg2[%c0_116, %c1_117] : memref<2x4xf32, #tpu.memory_space<smem>>
    %150 = vector.broadcast %149 : f32 to vector<8x8xf32>
    %151 = arith.mulf %150, %141 : vector<8x8xf32>
    %152 = arith.addf %148, %151 : vector<8x8xf32>
    %c0_118 = arith.constant 0 : index
    %c2_119 = arith.constant 2 : index
    %153 = memref.load %arg2[%c0_118, %c2_119] : memref<2x4xf32, #tpu.memory_space<smem>>
    %154 = vector.broadcast %153 : f32 to vector<8x8xf32>
    %155 = arith.mulf %154, %143 : vector<8x8xf32>
    %156 = arith.addf %152, %155 : vector<8x8xf32>
    %c0_120 = arith.constant 0 : index
    %c3_121 = arith.constant 3 : index
    %157 = memref.load %arg2[%c0_120, %c3_121] : memref<2x4xf32, #tpu.memory_space<smem>>
    %158 = vector.broadcast %157 : f32 to vector<8x8xf32>
    %159 = arith.mulf %158, %145 : vector<8x8xf32>
    %160 = arith.addf %156, %159 : vector<8x8xf32>
    %c0_122 = arith.constant 0 : index
    %161 = memref.load %arg3[%c0_122] : memref<2xf32, #tpu.memory_space<smem>>
    %162 = vector.broadcast %161 : f32 to vector<8x8xf32>
    %163 = arith.addf %160, %162 : vector<8x8xf32>
    %c0_123 = arith.constant 0 : index
    %c1_124 = arith.constant 1 : index
    %c0_125 = arith.constant 0 : index
    %164 = vector.load %arg23[%c0_123, %c1_124, %c0_125] : memref<2x10x8xf32, #tpu.memory_space<vmem>>, vector<1x8x8xf32>
    %165 = vector.shape_cast %164 : vector<1x8x8xf32> to vector<8x8xf32>
    %166 = vector.shape_cast %163 : vector<8x8xf32> to vector<1x8x8xf32>
    tpu.vector_store %arg23[%c0_123, %c1_124, %c0_125], %166 {strides = array<i32>} : memref<2x10x8xf32, #tpu.memory_space<vmem>>, vector<1x8x8xf32>,
    %c1_126 = arith.constant 1 : index
    %c0_127 = arith.constant 0 : index
    %167 = memref.load %arg2[%c1_126, %c0_127] : memref<2x4xf32, #tpu.memory_space<smem>>
    %168 = vector.broadcast %167 : f32 to vector<8x8xf32>
    %169 = arith.mulf %168, %139 : vector<8x8xf32>
    %c1_128 = arith.constant 1 : index
    %c1_129 = arith.constant 1 : index
    %170 = memref.load %arg2[%c1_128, %c1_129] : memref<2x4xf32, #tpu.memory_space<smem>>
    %171 = vector.broadcast %170 : f32 to vector<8x8xf32>
    %172 = arith.mulf %171, %141 : vector<8x8xf32>
    %173 = arith.addf %169, %172 : vector<8x8xf32>
    %c1_130 = arith.constant 1 : index
    %c2_131 = arith.constant 2 : index
    %174 = memref.load %arg2[%c1_130, %c2_131] : memref<2x4xf32, #tpu.memory_space<smem>>
    %175 = vector.broadcast %174 : f32 to vector<8x8xf32>
    %176 = arith.mulf %175, %143 : vector<8x8xf32>
    %177 = arith.addf %173, %176 : vector<8x8xf32>
    %c1_132 = arith.constant 1 : index
    %c3_133 = arith.constant 3 : index
    %178 = memref.load %arg2[%c1_132, %c3_133] : memref<2x4xf32, #tpu.memory_space<smem>>
    %179 = vector.broadcast %178 : f32 to vector<8x8xf32>
    %180 = arith.mulf %179, %145 : vector<8x8xf32>
    %181 = arith.addf %177, %180 : vector<8x8xf32>
    %c1_134 = arith.constant 1 : index
    %182 = memref.load %arg3[%c1_134] : memref<2xf32, #tpu.memory_space<smem>>
    %183 = vector.broadcast %182 : f32 to vector<8x8xf32>
    %184 = arith.addf %181, %183 : vector<8x8xf32>
    %c1_135 = arith.constant 1 : index
    %c1_136 = arith.constant 1 : index
    %c0_137 = arith.constant 0 : index
    %185 = vector.load %arg23[%c1_135, %c1_136, %c0_137] : memref<2x10x8xf32, #tpu.memory_space<vmem>>, vector<1x8x8xf32>
    %186 = vector.shape_cast %185 : vector<1x8x8xf32> to vector<8x8xf32>
    %187 = vector.shape_cast %184 : vector<8x8xf32> to vector<1x8x8xf32>
    tpu.vector_store %arg23[%c1_135, %c1_136, %c0_137], %187 {strides = array<i32>} : memref<2x10x8xf32, #tpu.memory_space<vmem>>, vector<1x8x8xf32>,
    %c0_138 = arith.constant 0 : index
    %c0_139 = arith.constant 0 : index
    %c0_140 = arith.constant 0 : index
    %188 = vector.load %arg23[%c0_138, %c0_139, %c0_140] : memref<2x10x8xf32, #tpu.memory_space<vmem>>, vector<1x8x8xf32>
    %189 = vector.shape_cast %188 : vector<1x8x8xf32> to vector<8x8xf32>
    %c0_141 = arith.constant 0 : index
    %c6 = arith.constant 6 : index
    %190 = memref.load %arg4[%c0_141, %c6] : memref<2x18xf32, #tpu.memory_space<smem>>
    %191 = arith.mulf %190, %137 : f32
    %192 = vector.broadcast %191 : f32 to vector<8x8xf32>
    %193 = arith.mulf %192, %189 : vector<8x8xf32>
    %194 = arith.addf %126, %193 : vector<8x8xf32>
    %c1_142 = arith.constant 1 : index
    %c6_143 = arith.constant 6 : index
    %195 = memref.load %arg4[%c1_142, %c6_143] : memref<2x18xf32, #tpu.memory_space<smem>>
    %196 = arith.mulf %195, %137 : f32
    %197 = vector.broadcast %196 : f32 to vector<8x8xf32>
    %198 = arith.mulf %197, %189 : vector<8x8xf32>
    %199 = arith.addf %131, %198 : vector<8x8xf32>
    %c1_144 = arith.constant 1 : index
    %c0_145 = arith.constant 0 : index
    %c0_146 = arith.constant 0 : index
    %200 = vector.load %arg23[%c1_144, %c0_145, %c0_146] : memref<2x10x8xf32, #tpu.memory_space<vmem>>, vector<1x8x8xf32>
    %201 = vector.shape_cast %200 : vector<1x8x8xf32> to vector<8x8xf32>
    %c0_147 = arith.constant 0 : index
    %c7 = arith.constant 7 : index
    %202 = memref.load %arg4[%c0_147, %c7] : memref<2x18xf32, #tpu.memory_space<smem>>
    %203 = arith.mulf %202, %137 : f32
    %204 = vector.broadcast %203 : f32 to vector<8x8xf32>
    %205 = arith.mulf %204, %201 : vector<8x8xf32>
    %206 = arith.addf %194, %205 : vector<8x8xf32>
    %c1_148 = arith.constant 1 : index
    %c7_149 = arith.constant 7 : index
    %207 = memref.load %arg4[%c1_148, %c7_149] : memref<2x18xf32, #tpu.memory_space<smem>>
    %208 = arith.mulf %207, %137 : f32
    %209 = vector.broadcast %208 : f32 to vector<8x8xf32>
    %210 = arith.mulf %209, %201 : vector<8x8xf32>
    %211 = arith.addf %199, %210 : vector<8x8xf32>
    %c0_150 = arith.constant 0 : index
    %c1_151 = arith.constant 1 : index
    %c0_152 = arith.constant 0 : index
    %212 = vector.load %arg23[%c0_150, %c1_151, %c0_152] : memref<2x10x8xf32, #tpu.memory_space<vmem>>, vector<1x8x8xf32>
    %213 = vector.shape_cast %212 : vector<1x8x8xf32> to vector<8x8xf32>
    %c0_153 = arith.constant 0 : index
    %c8 = arith.constant 8 : index
    %214 = memref.load %arg4[%c0_153, %c8] : memref<2x18xf32, #tpu.memory_space<smem>>
    %215 = arith.mulf %214, %137 : f32
    %216 = vector.broadcast %215 : f32 to vector<8x8xf32>
    %217 = arith.mulf %216, %213 : vector<8x8xf32>
    %218 = arith.addf %206, %217 : vector<8x8xf32>
    %c1_154 = arith.constant 1 : index
    %c8_155 = arith.constant 8 : index
    %219 = memref.load %arg4[%c1_154, %c8_155] : memref<2x18xf32, #tpu.memory_space<smem>>
    %220 = arith.mulf %219, %137 : f32
    %221 = vector.broadcast %220 : f32 to vector<8x8xf32>
    %222 = arith.mulf %221, %213 : vector<8x8xf32>
    %223 = arith.addf %211, %222 : vector<8x8xf32>
    %c1_156 = arith.constant 1 : index
    %c1_157 = arith.constant 1 : index
    %c0_158 = arith.constant 0 : index
    %224 = vector.load %arg23[%c1_156, %c1_157, %c0_158] : memref<2x10x8xf32, #tpu.memory_space<vmem>>, vector<1x8x8xf32>
    %225 = vector.shape_cast %224 : vector<1x8x8xf32> to vector<8x8xf32>
    %c0_159 = arith.constant 0 : index
    %c9 = arith.constant 9 : index
    %226 = memref.load %arg4[%c0_159, %c9] : memref<2x18xf32, #tpu.memory_space<smem>>
    %227 = arith.mulf %226, %137 : f32
    %228 = vector.broadcast %227 : f32 to vector<8x8xf32>
    %229 = arith.mulf %228, %225 : vector<8x8xf32>
    %230 = arith.addf %218, %229 : vector<8x8xf32>
    %c1_160 = arith.constant 1 : index
    %c9_161 = arith.constant 9 : index
    %231 = memref.load %arg4[%c1_160, %c9_161] : memref<2x18xf32, #tpu.memory_space<smem>>
    %232 = arith.mulf %231, %137 : f32
    %233 = vector.broadcast %232 : f32 to vector<8x8xf32>
    %234 = arith.mulf %233, %225 : vector<8x8xf32>
    %235 = arith.addf %223, %234 : vector<8x8xf32>
    %c0_162 = arith.constant 0 : index
    %c2_163 = arith.constant 2 : index
    %c0_164 = arith.constant 0 : index
    %236 = vector.load %arg23[%c0_162, %c2_163, %c0_164] : memref<2x10x8xf32, #tpu.memory_space<vmem>>, vector<1x8x8xf32>
    %237 = vector.shape_cast %236 : vector<1x8x8xf32> to vector<8x8xf32>
    %c0_165 = arith.constant 0 : index
    %c10 = arith.constant 10 : index
    %238 = memref.load %arg4[%c0_165, %c10] : memref<2x18xf32, #tpu.memory_space<smem>>
    %239 = arith.mulf %238, %137 : f32
    %240 = vector.broadcast %239 : f32 to vector<8x8xf32>
    %241 = arith.mulf %240, %237 : vector<8x8xf32>
    %242 = arith.addf %230, %241 : vector<8x8xf32>
    %c1_166 = arith.constant 1 : index
    %c10_167 = arith.constant 10 : index
    %243 = memref.load %arg4[%c1_166, %c10_167] : memref<2x18xf32, #tpu.memory_space<smem>>
    %244 = arith.mulf %243, %137 : f32
    %245 = vector.broadcast %244 : f32 to vector<8x8xf32>
    %246 = arith.mulf %245, %237 : vector<8x8xf32>
    %247 = arith.addf %235, %246 : vector<8x8xf32>
    %c1_168 = arith.constant 1 : index
    %c2_169 = arith.constant 2 : index
    %c0_170 = arith.constant 0 : index
    %248 = vector.load %arg23[%c1_168, %c2_169, %c0_170] : memref<2x10x8xf32, #tpu.memory_space<vmem>>, vector<1x8x8xf32>
    %249 = vector.shape_cast %248 : vector<1x8x8xf32> to vector<8x8xf32>
    %c0_171 = arith.constant 0 : index
    %c11 = arith.constant 11 : index
    %250 = memref.load %arg4[%c0_171, %c11] : memref<2x18xf32, #tpu.memory_space<smem>>
    %251 = arith.mulf %250, %137 : f32
    %252 = vector.broadcast %251 : f32 to vector<8x8xf32>
    %253 = arith.mulf %252, %249 : vector<8x8xf32>
    %254 = arith.addf %242, %253 : vector<8x8xf32>
    %c1_172 = arith.constant 1 : index
    %c11_173 = arith.constant 11 : index
    %255 = memref.load %arg4[%c1_172, %c11_173] : memref<2x18xf32, #tpu.memory_space<smem>>
    %256 = arith.mulf %255, %137 : f32
    %257 = vector.broadcast %256 : f32 to vector<8x8xf32>
    %258 = arith.mulf %257, %249 : vector<8x8xf32>
    %259 = arith.addf %247, %258 : vector<8x8xf32>
    %c1_i32 = arith.constant 1 : i32
    %260 = arith.addi %arg1, %c1_i32 : i32
    %c0_i32_174 = arith.constant 0 : i32
    %261 = arith.cmpi sge, %260, %c0_i32_174 : i32
    %c1_i32_175 = arith.constant 1 : i32
    %262 = arith.addi %arg1, %c1_i32_175 : i32
    %c7_i32_176 = arith.constant 7 : i32
    %263 = arith.cmpi sle, %262, %c7_i32_176 : i32
    %264 = arith.andi %261, %263 : i1
    %cst_177 = arith.constant 1.000000e+00 : f32
    %cst_178 = arith.constant 0.000000e+00 : f32
    %265 = arith.select %264, %cst_177, %cst_178 : f32
    %c0_179 = arith.constant 0 : index
    %c0_180 = arith.constant 0 : index
    %c0_181 = arith.constant 0 : index
    %c0_182 = arith.constant 0 : index
    %c0_183 = arith.constant 0 : index
    %266 = vector.load %arg18[%c0_179, %c0_180, %c0_181, %c0_182, %c0_183] : memref<1x4x1x8x8xf32, #tpu.memory_space<vmem>>, vector<1x1x1x8x8xf32>
    %267 = vector.shape_cast %266 : vector<1x1x1x8x8xf32> to vector<8x8xf32>
    %c0_184 = arith.constant 0 : index
    %c1_185 = arith.constant 1 : index
    %c0_186 = arith.constant 0 : index
    %c0_187 = arith.constant 0 : index
    %c0_188 = arith.constant 0 : index
    %268 = vector.load %arg18[%c0_184, %c1_185, %c0_186, %c0_187, %c0_188] : memref<1x4x1x8x8xf32, #tpu.memory_space<vmem>>, vector<1x1x1x8x8xf32>
    %269 = vector.shape_cast %268 : vector<1x1x1x8x8xf32> to vector<8x8xf32>
    %c0_189 = arith.constant 0 : index
    %c2_190 = arith.constant 2 : index
    %c0_191 = arith.constant 0 : index
    %c0_192 = arith.constant 0 : index
    %c0_193 = arith.constant 0 : index
    %270 = vector.load %arg18[%c0_189, %c2_190, %c0_191, %c0_192, %c0_193] : memref<1x4x1x8x8xf32, #tpu.memory_space<vmem>>, vector<1x1x1x8x8xf32>
    %271 = vector.shape_cast %270 : vector<1x1x1x8x8xf32> to vector<8x8xf32>
    %c0_194 = arith.constant 0 : index
    %c3_195 = arith.constant 3 : index
    %c0_196 = arith.constant 0 : index
    %c0_197 = arith.constant 0 : index
    %c0_198 = arith.constant 0 : index
    %272 = vector.load %arg18[%c0_194, %c3_195, %c0_196, %c0_197, %c0_198] : memref<1x4x1x8x8xf32, #tpu.memory_space<vmem>>, vector<1x1x1x8x8xf32>
    %273 = vector.shape_cast %272 : vector<1x1x1x8x8xf32> to vector<8x8xf32>
    %c0_199 = arith.constant 0 : index
    %c0_200 = arith.constant 0 : index
    %274 = memref.load %arg2[%c0_199, %c0_200] : memref<2x4xf32, #tpu.memory_space<smem>>
    %275 = vector.broadcast %274 : f32 to vector<8x8xf32>
    %276 = arith.mulf %275, %267 : vector<8x8xf32>
    %c0_201 = arith.constant 0 : index
    %c1_202 = arith.constant 1 : index
    %277 = memref.load %arg2[%c0_201, %c1_202] : memref<2x4xf32, #tpu.memory_space<smem>>
    %278 = vector.broadcast %277 : f32 to vector<8x8xf32>
    %279 = arith.mulf %278, %269 : vector<8x8xf32>
    %280 = arith.addf %276, %279 : vector<8x8xf32>
    %c0_203 = arith.constant 0 : index
    %c2_204 = arith.constant 2 : index
    %281 = memref.load %arg2[%c0_203, %c2_204] : memref<2x4xf32, #tpu.memory_space<smem>>
    %282 = vector.broadcast %281 : f32 to vector<8x8xf32>
    %283 = arith.mulf %282, %271 : vector<8x8xf32>
    %284 = arith.addf %280, %283 : vector<8x8xf32>
    %c0_205 = arith.constant 0 : index
    %c3_206 = arith.constant 3 : index
    %285 = memref.load %arg2[%c0_205, %c3_206] : memref<2x4xf32, #tpu.memory_space<smem>>
    %286 = vector.broadcast %285 : f32 to vector<8x8xf32>
    %287 = arith.mulf %286, %273 : vector<8x8xf32>
    %288 = arith.addf %284, %287 : vector<8x8xf32>
    %c0_207 = arith.constant 0 : index
    %289 = memref.load %arg3[%c0_207] : memref<2xf32, #tpu.memory_space<smem>>
    %290 = vector.broadcast %289 : f32 to vector<8x8xf32>
    %291 = arith.addf %288, %290 : vector<8x8xf32>
    %c0_208 = arith.constant 0 : index
    %c1_209 = arith.constant 1 : index
    %c0_210 = arith.constant 0 : index
    %292 = vector.load %arg23[%c0_208, %c1_209, %c0_210] : memref<2x10x8xf32, #tpu.memory_space<vmem>>, vector<1x8x8xf32>
    %293 = vector.shape_cast %292 : vector<1x8x8xf32> to vector<8x8xf32>
    %294 = vector.shape_cast %291 : vector<8x8xf32> to vector<1x8x8xf32>
    tpu.vector_store %arg23[%c0_208, %c1_209, %c0_210], %294 {strides = array<i32>} : memref<2x10x8xf32, #tpu.memory_space<vmem>>, vector<1x8x8xf32>,
    %c1_211 = arith.constant 1 : index
    %c0_212 = arith.constant 0 : index
    %295 = memref.load %arg2[%c1_211, %c0_212] : memref<2x4xf32, #tpu.memory_space<smem>>
    %296 = vector.broadcast %295 : f32 to vector<8x8xf32>
    %297 = arith.mulf %296, %267 : vector<8x8xf32>
    %c1_213 = arith.constant 1 : index
    %c1_214 = arith.constant 1 : index
    %298 = memref.load %arg2[%c1_213, %c1_214] : memref<2x4xf32, #tpu.memory_space<smem>>
    %299 = vector.broadcast %298 : f32 to vector<8x8xf32>
    %300 = arith.mulf %299, %269 : vector<8x8xf32>
    %301 = arith.addf %297, %300 : vector<8x8xf32>
    %c1_215 = arith.constant 1 : index
    %c2_216 = arith.constant 2 : index
    %302 = memref.load %arg2[%c1_215, %c2_216] : memref<2x4xf32, #tpu.memory_space<smem>>
    %303 = vector.broadcast %302 : f32 to vector<8x8xf32>
    %304 = arith.mulf %303, %271 : vector<8x8xf32>
    %305 = arith.addf %301, %304 : vector<8x8xf32>
    %c1_217 = arith.constant 1 : index
    %c3_218 = arith.constant 3 : index
    %306 = memref.load %arg2[%c1_217, %c3_218] : memref<2x4xf32, #tpu.memory_space<smem>>
    %307 = vector.broadcast %306 : f32 to vector<8x8xf32>
    %308 = arith.mulf %307, %273 : vector<8x8xf32>
    %309 = arith.addf %305, %308 : vector<8x8xf32>
    %c1_219 = arith.constant 1 : index
    %310 = memref.load %arg3[%c1_219] : memref<2xf32, #tpu.memory_space<smem>>
    %311 = vector.broadcast %310 : f32 to vector<8x8xf32>
    %312 = arith.addf %309, %311 : vector<8x8xf32>
    %c1_220 = arith.constant 1 : index
    %c1_221 = arith.constant 1 : index
    %c0_222 = arith.constant 0 : index
    %313 = vector.load %arg23[%c1_220, %c1_221, %c0_222] : memref<2x10x8xf32, #tpu.memory_space<vmem>>, vector<1x8x8xf32>
    %314 = vector.shape_cast %313 : vector<1x8x8xf32> to vector<8x8xf32>
    %315 = vector.shape_cast %312 : vector<8x8xf32> to vector<1x8x8xf32>
    tpu.vector_store %arg23[%c1_220, %c1_221, %c0_222], %315 {strides = array<i32>} : memref<2x10x8xf32, #tpu.memory_space<vmem>>, vector<1x8x8xf32>,
    %c0_223 = arith.constant 0 : index
    %c0_224 = arith.constant 0 : index
    %c0_225 = arith.constant 0 : index
    %316 = vector.load %arg23[%c0_223, %c0_224, %c0_225] : memref<2x10x8xf32, #tpu.memory_space<vmem>>, vector<1x8x8xf32>
    %317 = vector.shape_cast %316 : vector<1x8x8xf32> to vector<8x8xf32>
    %c0_226 = arith.constant 0 : index
    %c12 = arith.constant 12 : index
    %318 = memref.load %arg4[%c0_226, %c12] : memref<2x18xf32, #tpu.memory_space<smem>>
    %319 = arith.mulf %318, %265 : f32
    %320 = vector.broadcast %319 : f32 to vector<8x8xf32>
    %321 = arith.mulf %320, %317 : vector<8x8xf32>
    %322 = arith.addf %254, %321 : vector<8x8xf32>
    %c1_227 = arith.constant 1 : index
    %c12_228 = arith.constant 12 : index
    %323 = memref.load %arg4[%c1_227, %c12_228] : memref<2x18xf32, #tpu.memory_space<smem>>
    %324 = arith.mulf %323, %265 : f32
    %325 = vector.broadcast %324 : f32 to vector<8x8xf32>
    %326 = arith.mulf %325, %317 : vector<8x8xf32>
    %327 = arith.addf %259, %326 : vector<8x8xf32>
    %c1_229 = arith.constant 1 : index
    %c0_230 = arith.constant 0 : index
    %c0_231 = arith.constant 0 : index
    %328 = vector.load %arg23[%c1_229, %c0_230, %c0_231] : memref<2x10x8xf32, #tpu.memory_space<vmem>>, vector<1x8x8xf32>
    %329 = vector.shape_cast %328 : vector<1x8x8xf32> to vector<8x8xf32>
    %c0_232 = arith.constant 0 : index
    %c13 = arith.constant 13 : index
    %330 = memref.load %arg4[%c0_232, %c13] : memref<2x18xf32, #tpu.memory_space<smem>>
    %331 = arith.mulf %330, %265 : f32
    %332 = vector.broadcast %331 : f32 to vector<8x8xf32>
    %333 = arith.mulf %332, %329 : vector<8x8xf32>
    %334 = arith.addf %322, %333 : vector<8x8xf32>
    %c1_233 = arith.constant 1 : index
    %c13_234 = arith.constant 13 : index
    %335 = memref.load %arg4[%c1_233, %c13_234] : memref<2x18xf32, #tpu.memory_space<smem>>
    %336 = arith.mulf %335, %265 : f32
    %337 = vector.broadcast %336 : f32 to vector<8x8xf32>
    %338 = arith.mulf %337, %329 : vector<8x8xf32>
    %339 = arith.addf %327, %338 : vector<8x8xf32>
    %c0_235 = arith.constant 0 : index
    %c1_236 = arith.constant 1 : index
    %c0_237 = arith.constant 0 : index
    %340 = vector.load %arg23[%c0_235, %c1_236, %c0_237] : memref<2x10x8xf32, #tpu.memory_space<vmem>>, vector<1x8x8xf32>
    %341 = vector.shape_cast %340 : vector<1x8x8xf32> to vector<8x8xf32>
    %c0_238 = arith.constant 0 : index
    %c14 = arith.constant 14 : index
    %342 = memref.load %arg4[%c0_238, %c14] : memref<2x18xf32, #tpu.memory_space<smem>>
    %343 = arith.mulf %342, %265 : f32
    %344 = vector.broadcast %343 : f32 to vector<8x8xf32>
    %345 = arith.mulf %344, %341 : vector<8x8xf32>
    %346 = arith.addf %334, %345 : vector<8x8xf32>
    %c1_239 = arith.constant 1 : index
    %c14_240 = arith.constant 14 : index
    %347 = memref.load %arg4[%c1_239, %c14_240] : memref<2x18xf32, #tpu.memory_space<smem>>
    %348 = arith.mulf %347, %265 : f32
    %349 = vector.broadcast %348 : f32 to vector<8x8xf32>
    %350 = arith.mulf %349, %341 : vector<8x8xf32>
    %351 = arith.addf %339, %350 : vector<8x8xf32>
    %c1_241 = arith.constant 1 : index
    %c1_242 = arith.constant 1 : index
    %c0_243 = arith.constant 0 : index
    %352 = vector.load %arg23[%c1_241, %c1_242, %c0_243] : memref<2x10x8xf32, #tpu.memory_space<vmem>>, vector<1x8x8xf32>
    %353 = vector.shape_cast %352 : vector<1x8x8xf32> to vector<8x8xf32>
    %c0_244 = arith.constant 0 : index
    %c15 = arith.constant 15 : index
    %354 = memref.load %arg4[%c0_244, %c15] : memref<2x18xf32, #tpu.memory_space<smem>>
    %355 = arith.mulf %354, %265 : f32
    %356 = vector.broadcast %355 : f32 to vector<8x8xf32>
    %357 = arith.mulf %356, %353 : vector<8x8xf32>
    %358 = arith.addf %346, %357 : vector<8x8xf32>
    %c1_245 = arith.constant 1 : index
    %c15_246 = arith.constant 15 : index
    %359 = memref.load %arg4[%c1_245, %c15_246] : memref<2x18xf32, #tpu.memory_space<smem>>
    %360 = arith.mulf %359, %265 : f32
    %361 = vector.broadcast %360 : f32 to vector<8x8xf32>
    %362 = arith.mulf %361, %353 : vector<8x8xf32>
    %363 = arith.addf %351, %362 : vector<8x8xf32>
    %c0_247 = arith.constant 0 : index
    %c2_248 = arith.constant 2 : index
    %c0_249 = arith.constant 0 : index
    %364 = vector.load %arg23[%c0_247, %c2_248, %c0_249] : memref<2x10x8xf32, #tpu.memory_space<vmem>>, vector<1x8x8xf32>
    %365 = vector.shape_cast %364 : vector<1x8x8xf32> to vector<8x8xf32>
    %c0_250 = arith.constant 0 : index
    %c16 = arith.constant 16 : index
    %366 = memref.load %arg4[%c0_250, %c16] : memref<2x18xf32, #tpu.memory_space<smem>>
    %367 = arith.mulf %366, %265 : f32
    %368 = vector.broadcast %367 : f32 to vector<8x8xf32>
    %369 = arith.mulf %368, %365 : vector<8x8xf32>
    %370 = arith.addf %358, %369 : vector<8x8xf32>
    %c1_251 = arith.constant 1 : index
    %c16_252 = arith.constant 16 : index
    %371 = memref.load %arg4[%c1_251, %c16_252] : memref<2x18xf32, #tpu.memory_space<smem>>
    %372 = arith.mulf %371, %265 : f32
    %373 = vector.broadcast %372 : f32 to vector<8x8xf32>
    %374 = arith.mulf %373, %365 : vector<8x8xf32>
    %375 = arith.addf %363, %374 : vector<8x8xf32>
    %c1_253 = arith.constant 1 : index
    %c2_254 = arith.constant 2 : index
    %c0_255 = arith.constant 0 : index
    %376 = vector.load %arg23[%c1_253, %c2_254, %c0_255] : memref<2x10x8xf32, #tpu.memory_space<vmem>>, vector<1x8x8xf32>
    %377 = vector.shape_cast %376 : vector<1x8x8xf32> to vector<8x8xf32>
    %c0_256 = arith.constant 0 : index
    %c17 = arith.constant 17 : index
    %378 = memref.load %arg4[%c0_256, %c17] : memref<2x18xf32, #tpu.memory_space<smem>>
    %379 = arith.mulf %378, %265 : f32
    %380 = vector.broadcast %379 : f32 to vector<8x8xf32>
    %381 = arith.mulf %380, %377 : vector<8x8xf32>
    %382 = arith.addf %370, %381 : vector<8x8xf32>
    %c1_257 = arith.constant 1 : index
    %c17_258 = arith.constant 17 : index
    %383 = memref.load %arg4[%c1_257, %c17_258] : memref<2x18xf32, #tpu.memory_space<smem>>
    %384 = arith.mulf %383, %265 : f32
    %385 = vector.broadcast %384 : f32 to vector<8x8xf32>
    %386 = arith.mulf %385, %377 : vector<8x8xf32>
    %387 = arith.addf %375, %386 : vector<8x8xf32>
    %c0_259 = arith.constant 0 : index
    %388 = memref.load %arg5[%c0_259] : memref<2xf32, #tpu.memory_space<smem>>
    %389 = vector.broadcast %388 : f32 to vector<8x8xf32>
    %390 = arith.addf %382, %389 : vector<8x8xf32>
    %cst_260 = arith.constant 0.000000e+00 : f32
    %391 = vector.broadcast %cst_260 : f32 to vector<8x8xf32>
    %392 = arith.maximumf %390, %391 : vector<8x8xf32>
    %c1_261 = arith.constant 1 : index
    %393 = memref.load %arg5[%c1_261] : memref<2xf32, #tpu.memory_space<smem>>
    %394 = vector.broadcast %393 : f32 to vector<8x8xf32>
    %395 = arith.addf %387, %394 : vector<8x8xf32>
    %cst_262 = arith.constant 0.000000e+00 : f32
    %396 = vector.broadcast %cst_262 : f32 to vector<8x8xf32>
    %397 = arith.maximumf %395, %396 : vector<8x8xf32>
    %c0_263 = arith.constant 0 : index
    %c0_264 = arith.constant 0 : index
    %c0_265 = arith.constant 0 : index
    %c0_266 = arith.constant 0 : index
    %c0_267 = arith.constant 0 : index
    %398 = vector.load %arg19[%c0_263, %c0_264, %c0_265, %c0_266, %c0_267] : memref<1x2x1x8x8xf32, #tpu.memory_space<vmem>>, vector<1x1x1x8x8xf32>
    %399 = vector.shape_cast %398 : vector<1x1x1x8x8xf32> to vector<8x8xf32>
    %400 = vector.shape_cast %392 : vector<8x8xf32> to vector<1x1x1x8x8xf32>
    tpu.vector_store %arg19[%c0_263, %c0_264, %c0_265, %c0_266, %c0_267], %400 {strides = array<i32>} : memref<1x2x1x8x8xf32, #tpu.memory_space<vmem>>, vector<1x1x1x8x8xf32>,
    %c0_268 = arith.constant 0 : index
    %c1_269 = arith.constant 1 : index
    %c0_270 = arith.constant 0 : index
    %c0_271 = arith.constant 0 : index
    %c0_272 = arith.constant 0 : index
    %401 = vector.load %arg19[%c0_268, %c1_269, %c0_270, %c0_271, %c0_272] : memref<1x2x1x8x8xf32, #tpu.memory_space<vmem>>, vector<1x1x1x8x8xf32>
    %402 = vector.shape_cast %401 : vector<1x1x1x8x8xf32> to vector<8x8xf32>
    %403 = vector.shape_cast %397 : vector<8x8xf32> to vector<1x1x1x8x8xf32>
    tpu.vector_store %arg19[%c0_268, %c1_269, %c0_270, %c0_271, %c0_272], %403 {strides = array<i32>} : memref<1x2x1x8x8xf32, #tpu.memory_space<vmem>>, vector<1x1x1x8x8xf32>,
    %c0_273 = arith.constant 0 : index
    %c0_274 = arith.constant 0 : index
    %404 = memref.load %arg6[%c0_273, %c0_274] : memref<2x2xf32, #tpu.memory_space<smem>>
    %405 = vector.broadcast %404 : f32 to vector<8x8xf32>
    %406 = arith.mulf %405, %392 : vector<8x8xf32>
    %c0_275 = arith.constant 0 : index
    %c1_276 = arith.constant 1 : index
    %407 = memref.load %arg6[%c0_275, %c1_276] : memref<2x2xf32, #tpu.memory_space<smem>>
    %408 = vector.broadcast %407 : f32 to vector<8x8xf32>
    %409 = arith.mulf %408, %397 : vector<8x8xf32>
    %410 = arith.addf %406, %409 : vector<8x8xf32>
    %c0_277 = arith.constant 0 : index
    %411 = memref.load %arg7[%c0_277] : memref<2xf32, #tpu.memory_space<smem>>
    %412 = vector.broadcast %411 : f32 to vector<8x8xf32>
    %413 = arith.addf %410, %412 : vector<8x8xf32>
    %cst_278 = arith.constant 0.000000e+00 : f32
    %414 = vector.broadcast %cst_278 : f32 to vector<8x8xf32>
    %415 = arith.maximumf %413, %414 : vector<8x8xf32>
    %c0_279 = arith.constant 0 : index
    %c0_280 = arith.constant 0 : index
    %c0_281 = arith.constant 0 : index
    %c0_282 = arith.constant 0 : index
    %c0_283 = arith.constant 0 : index
    %416 = vector.load %arg20[%c0_279, %c0_280, %c0_281, %c0_282, %c0_283] : memref<1x2x1x8x8xf32, #tpu.memory_space<vmem>>, vector<1x1x1x8x8xf32>
    %417 = vector.shape_cast %416 : vector<1x1x1x8x8xf32> to vector<8x8xf32>
    %418 = vector.shape_cast %415 : vector<8x8xf32> to vector<1x1x1x8x8xf32>
    tpu.vector_store %arg20[%c0_279, %c0_280, %c0_281, %c0_282, %c0_283], %418 {strides = array<i32>} : memref<1x2x1x8x8xf32, #tpu.memory_space<vmem>>, vector<1x1x1x8x8xf32>,
    %c1_284 = arith.constant 1 : index
    %c0_285 = arith.constant 0 : index
    %419 = memref.load %arg6[%c1_284, %c0_285] : memref<2x2xf32, #tpu.memory_space<smem>>
    %420 = vector.broadcast %419 : f32 to vector<8x8xf32>
    %421 = arith.mulf %420, %392 : vector<8x8xf32>
    %c1_286 = arith.constant 1 : index
    %c1_287 = arith.constant 1 : index
    %422 = memref.load %arg6[%c1_286, %c1_287] : memref<2x2xf32, #tpu.memory_space<smem>>
    %423 = vector.broadcast %422 : f32 to vector<8x8xf32>
    %424 = arith.mulf %423, %397 : vector<8x8xf32>
    %425 = arith.addf %421, %424 : vector<8x8xf32>
    %c1_288 = arith.constant 1 : index
    %426 = memref.load %arg7[%c1_288] : memref<2xf32, #tpu.memory_space<smem>>
    %427 = vector.broadcast %426 : f32 to vector<8x8xf32>
    %428 = arith.addf %425, %427 : vector<8x8xf32>
    %cst_289 = arith.constant 0.000000e+00 : f32
    %429 = vector.broadcast %cst_289 : f32 to vector<8x8xf32>
    %430 = arith.maximumf %428, %429 : vector<8x8xf32>
    %c0_290 = arith.constant 0 : index
    %c1_291 = arith.constant 1 : index
    %c0_292 = arith.constant 0 : index
    %c0_293 = arith.constant 0 : index
    %c0_294 = arith.constant 0 : index
    %431 = vector.load %arg20[%c0_290, %c1_291, %c0_292, %c0_293, %c0_294] : memref<1x2x1x8x8xf32, #tpu.memory_space<vmem>>, vector<1x1x1x8x8xf32>
    %432 = vector.shape_cast %431 : vector<1x1x1x8x8xf32> to vector<8x8xf32>
    %433 = vector.shape_cast %430 : vector<8x8xf32> to vector<1x1x1x8x8xf32>
    tpu.vector_store %arg20[%c0_290, %c1_291, %c0_292, %c0_293, %c0_294], %433 {strides = array<i32>} : memref<1x2x1x8x8xf32, #tpu.memory_space<vmem>>, vector<1x1x1x8x8xf32>,
    %cst_295 = arith.constant 0.000000e+00 : f32
    %434 = vector.broadcast %cst_295 : f32 to vector<2x10x10xf32>
    %c0_296 = arith.constant 0 : index
    %c0_297 = arith.constant 0 : index
    %c0_298 = arith.constant 0 : index
    %435 = vector.load %arg24[%c0_296, %c0_297, %c0_298] : memref<2x10x10xf32, #tpu.memory_space<vmem>>, vector<2x10x10xf32>
    tpu.vector_store %arg24[%c0_296, %c0_297, %c0_298], %434 {strides = array<i32>} : memref<2x10x10xf32, #tpu.memory_space<vmem>>, vector<2x10x10xf32>,
    %cst_299 = arith.constant 0.000000e+00 : f32
    %436 = vector.broadcast %cst_299 : f32 to vector<8x8xf32>
    %cst_300 = arith.constant 0.000000e+00 : f32
    %437 = vector.broadcast %cst_300 : f32 to vector<8x8xf32>
    %c-1_i32_301 = arith.constant -1 : i32
    %438 = arith.addi %arg1, %c-1_i32_301 : i32
    %c0_i32_302 = arith.constant 0 : i32
    %439 = arith.cmpi sge, %438, %c0_i32_302 : i32
    %c-1_i32_303 = arith.constant -1 : i32
    %440 = arith.addi %arg1, %c-1_i32_303 : i32
    %c7_i32_304 = arith.constant 7 : i32
    %441 = arith.cmpi sle, %440, %c7_i32_304 : i32
    %442 = arith.andi %439, %441 : i1
    %cst_305 = arith.constant 1.000000e+00 : f32
    %cst_306 = arith.constant 0.000000e+00 : f32
    %443 = arith.select %442, %cst_305, %cst_306 : f32
    %c0_307 = arith.constant 0 : index
    %c0_308 = arith.constant 0 : index
    %c0_309 = arith.constant 0 : index
    %c0_310 = arith.constant 0 : index
    %c0_311 = arith.constant 0 : index
    %444 = vector.load %arg16[%c0_307, %c0_308, %c0_309, %c0_310, %c0_311] : memref<1x4x1x8x8xf32, #tpu.memory_space<vmem>>, vector<1x1x1x8x8xf32>
    %445 = vector.shape_cast %444 : vector<1x1x1x8x8xf32> to vector<8x8xf32>
    %c0_312 = arith.constant 0 : index
    %c1_313 = arith.constant 1 : index
    %c0_314 = arith.constant 0 : index
    %c0_315 = arith.constant 0 : index
    %c0_316 = arith.constant 0 : index
    %446 = vector.load %arg16[%c0_312, %c1_313, %c0_314, %c0_315, %c0_316] : memref<1x4x1x8x8xf32, #tpu.memory_space<vmem>>, vector<1x1x1x8x8xf32>
    %447 = vector.shape_cast %446 : vector<1x1x1x8x8xf32> to vector<8x8xf32>
    %c0_317 = arith.constant 0 : index
    %c2_318 = arith.constant 2 : index
    %c0_319 = arith.constant 0 : index
    %c0_320 = arith.constant 0 : index
    %c0_321 = arith.constant 0 : index
    %448 = vector.load %arg16[%c0_317, %c2_318, %c0_319, %c0_320, %c0_321] : memref<1x4x1x8x8xf32, #tpu.memory_space<vmem>>, vector<1x1x1x8x8xf32>
    %449 = vector.shape_cast %448 : vector<1x1x1x8x8xf32> to vector<8x8xf32>
    %c0_322 = arith.constant 0 : index
    %c3_323 = arith.constant 3 : index
    %c0_324 = arith.constant 0 : index
    %c0_325 = arith.constant 0 : index
    %c0_326 = arith.constant 0 : index
    %450 = vector.load %arg16[%c0_322, %c3_323, %c0_324, %c0_325, %c0_326] : memref<1x4x1x8x8xf32, #tpu.memory_space<vmem>>, vector<1x1x1x8x8xf32>
    %451 = vector.shape_cast %450 : vector<1x1x1x8x8xf32> to vector<8x8xf32>
    %c0_327 = arith.constant 0 : index
    %c0_328 = arith.constant 0 : index
    %452 = memref.load %arg8[%c0_327, %c0_328] : memref<2x4xf32, #tpu.memory_space<smem>>
    %453 = vector.broadcast %452 : f32 to vector<8x8xf32>
    %454 = arith.mulf %453, %445 : vector<8x8xf32>
    %c0_329 = arith.constant 0 : index
    %c1_330 = arith.constant 1 : index
    %455 = memref.load %arg8[%c0_329, %c1_330] : memref<2x4xf32, #tpu.memory_space<smem>>
    %456 = vector.broadcast %455 : f32 to vector<8x8xf32>
    %457 = arith.mulf %456, %447 : vector<8x8xf32>
    %458 = arith.addf %454, %457 : vector<8x8xf32>
    %c0_331 = arith.constant 0 : index
    %c2_332 = arith.constant 2 : index
    %459 = memref.load %arg8[%c0_331, %c2_332] : memref<2x4xf32, #tpu.memory_space<smem>>
    %460 = vector.broadcast %459 : f32 to vector<8x8xf32>
    %461 = arith.mulf %460, %449 : vector<8x8xf32>
    %462 = arith.addf %458, %461 : vector<8x8xf32>
    %c0_333 = arith.constant 0 : index
    %c3_334 = arith.constant 3 : index
    %463 = memref.load %arg8[%c0_333, %c3_334] : memref<2x4xf32, #tpu.memory_space<smem>>
    %464 = vector.broadcast %463 : f32 to vector<8x8xf32>
    %465 = arith.mulf %464, %451 : vector<8x8xf32>
    %466 = arith.addf %462, %465 : vector<8x8xf32>
    %c0_335 = arith.constant 0 : index
    %467 = memref.load %arg9[%c0_335] : memref<2xf32, #tpu.memory_space<smem>>
    %468 = vector.broadcast %467 : f32 to vector<8x8xf32>
    %469 = arith.addf %466, %468 : vector<8x8xf32>
    %c0_336 = arith.constant 0 : index
    %c1_337 = arith.constant 1 : index
    %c1_338 = arith.constant 1 : index
    %470 = vector.load %arg24[%c0_336, %c1_337, %c1_338] : memref<2x10x10xf32, #tpu.memory_space<vmem>>, vector<1x8x8xf32>
    %471 = vector.shape_cast %470 : vector<1x8x8xf32> to vector<8x8xf32>
    %472 = vector.shape_cast %469 : vector<8x8xf32> to vector<1x8x8xf32>
    tpu.vector_store %arg24[%c0_336, %c1_337, %c1_338], %472 {strides = array<i32>} : memref<2x10x10xf32, #tpu.memory_space<vmem>>, vector<1x8x8xf32>,
    %c1_339 = arith.constant 1 : index
    %c0_340 = arith.constant 0 : index
    %473 = memref.load %arg8[%c1_339, %c0_340] : memref<2x4xf32, #tpu.memory_space<smem>>
    %474 = vector.broadcast %473 : f32 to vector<8x8xf32>
    %475 = arith.mulf %474, %445 : vector<8x8xf32>
    %c1_341 = arith.constant 1 : index
    %c1_342 = arith.constant 1 : index
    %476 = memref.load %arg8[%c1_341, %c1_342] : memref<2x4xf32, #tpu.memory_space<smem>>
    %477 = vector.broadcast %476 : f32 to vector<8x8xf32>
    %478 = arith.mulf %477, %447 : vector<8x8xf32>
    %479 = arith.addf %475, %478 : vector<8x8xf32>
    %c1_343 = arith.constant 1 : index
    %c2_344 = arith.constant 2 : index
    %480 = memref.load %arg8[%c1_343, %c2_344] : memref<2x4xf32, #tpu.memory_space<smem>>
    %481 = vector.broadcast %480 : f32 to vector<8x8xf32>
    %482 = arith.mulf %481, %449 : vector<8x8xf32>
    %483 = arith.addf %479, %482 : vector<8x8xf32>
    %c1_345 = arith.constant 1 : index
    %c3_346 = arith.constant 3 : index
    %484 = memref.load %arg8[%c1_345, %c3_346] : memref<2x4xf32, #tpu.memory_space<smem>>
    %485 = vector.broadcast %484 : f32 to vector<8x8xf32>
    %486 = arith.mulf %485, %451 : vector<8x8xf32>
    %487 = arith.addf %483, %486 : vector<8x8xf32>
    %c1_347 = arith.constant 1 : index
    %488 = memref.load %arg9[%c1_347] : memref<2xf32, #tpu.memory_space<smem>>
    %489 = vector.broadcast %488 : f32 to vector<8x8xf32>
    %490 = arith.addf %487, %489 : vector<8x8xf32>
    %c1_348 = arith.constant 1 : index
    %c1_349 = arith.constant 1 : index
    %c1_350 = arith.constant 1 : index
    %491 = vector.load %arg24[%c1_348, %c1_349, %c1_350] : memref<2x10x10xf32, #tpu.memory_space<vmem>>, vector<1x8x8xf32>
    %492 = vector.shape_cast %491 : vector<1x8x8xf32> to vector<8x8xf32>
    %493 = vector.shape_cast %490 : vector<8x8xf32> to vector<1x8x8xf32>
    tpu.vector_store %arg24[%c1_348, %c1_349, %c1_350], %493 {strides = array<i32>} : memref<2x10x10xf32, #tpu.memory_space<vmem>>, vector<1x8x8xf32>,
    %c0_351 = arith.constant 0 : index
    %c0_352 = arith.constant 0 : index
    %c0_353 = arith.constant 0 : index
    %494 = vector.load %arg24[%c0_351, %c0_352, %c0_353] : memref<2x10x10xf32, #tpu.memory_space<vmem>>, vector<1x8x8xf32>
    %495 = vector.shape_cast %494 : vector<1x8x8xf32> to vector<8x8xf32>
    %c0_354 = arith.constant 0 : index
    %c0_355 = arith.constant 0 : index
    %496 = memref.load %arg10[%c0_354, %c0_355] : memref<2x54xf32, #tpu.memory_space<smem>>
    %497 = arith.mulf %496, %443 : f32
    %498 = vector.broadcast %497 : f32 to vector<8x8xf32>
    %499 = arith.mulf %498, %495 : vector<8x8xf32>
    %500 = arith.addf %436, %499 : vector<8x8xf32>
    %c1_356 = arith.constant 1 : index
    %c0_357 = arith.constant 0 : index
    %501 = memref.load %arg10[%c1_356, %c0_357] : memref<2x54xf32, #tpu.memory_space<smem>>
    %502 = arith.mulf %501, %443 : f32
    %503 = vector.broadcast %502 : f32 to vector<8x8xf32>
    %504 = arith.mulf %503, %495 : vector<8x8xf32>
    %505 = arith.addf %437, %504 : vector<8x8xf32>
    %c1_358 = arith.constant 1 : index
    %c0_359 = arith.constant 0 : index
    %c0_360 = arith.constant 0 : index
    %506 = vector.load %arg24[%c1_358, %c0_359, %c0_360] : memref<2x10x10xf32, #tpu.memory_space<vmem>>, vector<1x8x8xf32>
    %507 = vector.shape_cast %506 : vector<1x8x8xf32> to vector<8x8xf32>
    %c0_361 = arith.constant 0 : index
    %c1_362 = arith.constant 1 : index
    %508 = memref.load %arg10[%c0_361, %c1_362] : memref<2x54xf32, #tpu.memory_space<smem>>
    %509 = arith.mulf %508, %443 : f32
    %510 = vector.broadcast %509 : f32 to vector<8x8xf32>
    %511 = arith.mulf %510, %507 : vector<8x8xf32>
    %512 = arith.addf %500, %511 : vector<8x8xf32>
    %c1_363 = arith.constant 1 : index
    %c1_364 = arith.constant 1 : index
    %513 = memref.load %arg10[%c1_363, %c1_364] : memref<2x54xf32, #tpu.memory_space<smem>>
    %514 = arith.mulf %513, %443 : f32
    %515 = vector.broadcast %514 : f32 to vector<8x8xf32>
    %516 = arith.mulf %515, %507 : vector<8x8xf32>
    %517 = arith.addf %505, %516 : vector<8x8xf32>
    %c0_365 = arith.constant 0 : index
    %c0_366 = arith.constant 0 : index
    %c1_367 = arith.constant 1 : index
    %518 = vector.load %arg24[%c0_365, %c0_366, %c1_367] : memref<2x10x10xf32, #tpu.memory_space<vmem>>, vector<1x8x8xf32>
    %519 = vector.shape_cast %518 : vector<1x8x8xf32> to vector<8x8xf32>
    %c0_368 = arith.constant 0 : index
    %c2_369 = arith.constant 2 : index
    %520 = memref.load %arg10[%c0_368, %c2_369] : memref<2x54xf32, #tpu.memory_space<smem>>
    %521 = arith.mulf %520, %443 : f32
    %522 = vector.broadcast %521 : f32 to vector<8x8xf32>
    %523 = arith.mulf %522, %519 : vector<8x8xf32>
    %524 = arith.addf %512, %523 : vector<8x8xf32>
    %c1_370 = arith.constant 1 : index
    %c2_371 = arith.constant 2 : index
    %525 = memref.load %arg10[%c1_370, %c2_371] : memref<2x54xf32, #tpu.memory_space<smem>>
    %526 = arith.mulf %525, %443 : f32
    %527 = vector.broadcast %526 : f32 to vector<8x8xf32>
    %528 = arith.mulf %527, %519 : vector<8x8xf32>
    %529 = arith.addf %517, %528 : vector<8x8xf32>
    %c1_372 = arith.constant 1 : index
    %c0_373 = arith.constant 0 : index
    %c1_374 = arith.constant 1 : index
    %530 = vector.load %arg24[%c1_372, %c0_373, %c1_374] : memref<2x10x10xf32, #tpu.memory_space<vmem>>, vector<1x8x8xf32>
    %531 = vector.shape_cast %530 : vector<1x8x8xf32> to vector<8x8xf32>
    %c0_375 = arith.constant 0 : index
    %c3_376 = arith.constant 3 : index
    %532 = memref.load %arg10[%c0_375, %c3_376] : memref<2x54xf32, #tpu.memory_space<smem>>
    %533 = arith.mulf %532, %443 : f32
    %534 = vector.broadcast %533 : f32 to vector<8x8xf32>
    %535 = arith.mulf %534, %531 : vector<8x8xf32>
    %536 = arith.addf %524, %535 : vector<8x8xf32>
    %c1_377 = arith.constant 1 : index
    %c3_378 = arith.constant 3 : index
    %537 = memref.load %arg10[%c1_377, %c3_378] : memref<2x54xf32, #tpu.memory_space<smem>>
    %538 = arith.mulf %537, %443 : f32
    %539 = vector.broadcast %538 : f32 to vector<8x8xf32>
    %540 = arith.mulf %539, %531 : vector<8x8xf32>
    %541 = arith.addf %529, %540 : vector<8x8xf32>
    %c0_379 = arith.constant 0 : index
    %c0_380 = arith.constant 0 : index
    %c2_381 = arith.constant 2 : index
    %542 = vector.load %arg24[%c0_379, %c0_380, %c2_381] : memref<2x10x10xf32, #tpu.memory_space<vmem>>, vector<1x8x8xf32>
    %543 = vector.shape_cast %542 : vector<1x8x8xf32> to vector<8x8xf32>
    %c0_382 = arith.constant 0 : index
    %c4_383 = arith.constant 4 : index
    %544 = memref.load %arg10[%c0_382, %c4_383] : memref<2x54xf32, #tpu.memory_space<smem>>
    %545 = arith.mulf %544, %443 : f32
    %546 = vector.broadcast %545 : f32 to vector<8x8xf32>
    %547 = arith.mulf %546, %543 : vector<8x8xf32>
    %548 = arith.addf %536, %547 : vector<8x8xf32>
    %c1_384 = arith.constant 1 : index
    %c4_385 = arith.constant 4 : index
    %549 = memref.load %arg10[%c1_384, %c4_385] : memref<2x54xf32, #tpu.memory_space<smem>>
    %550 = arith.mulf %549, %443 : f32
    %551 = vector.broadcast %550 : f32 to vector<8x8xf32>
    %552 = arith.mulf %551, %543 : vector<8x8xf32>
    %553 = arith.addf %541, %552 : vector<8x8xf32>
    %c1_386 = arith.constant 1 : index
    %c0_387 = arith.constant 0 : index
    %c2_388 = arith.constant 2 : index
    %554 = vector.load %arg24[%c1_386, %c0_387, %c2_388] : memref<2x10x10xf32, #tpu.memory_space<vmem>>, vector<1x8x8xf32>
    %555 = vector.shape_cast %554 : vector<1x8x8xf32> to vector<8x8xf32>
    %c0_389 = arith.constant 0 : index
    %c5_390 = arith.constant 5 : index
    %556 = memref.load %arg10[%c0_389, %c5_390] : memref<2x54xf32, #tpu.memory_space<smem>>
    %557 = arith.mulf %556, %443 : f32
    %558 = vector.broadcast %557 : f32 to vector<8x8xf32>
    %559 = arith.mulf %558, %555 : vector<8x8xf32>
    %560 = arith.addf %548, %559 : vector<8x8xf32>
    %c1_391 = arith.constant 1 : index
    %c5_392 = arith.constant 5 : index
    %561 = memref.load %arg10[%c1_391, %c5_392] : memref<2x54xf32, #tpu.memory_space<smem>>
    %562 = arith.mulf %561, %443 : f32
    %563 = vector.broadcast %562 : f32 to vector<8x8xf32>
    %564 = arith.mulf %563, %555 : vector<8x8xf32>
    %565 = arith.addf %553, %564 : vector<8x8xf32>
    %c0_393 = arith.constant 0 : index
    %c1_394 = arith.constant 1 : index
    %c0_395 = arith.constant 0 : index
    %566 = vector.load %arg24[%c0_393, %c1_394, %c0_395] : memref<2x10x10xf32, #tpu.memory_space<vmem>>, vector<1x8x8xf32>
    %567 = vector.shape_cast %566 : vector<1x8x8xf32> to vector<8x8xf32>
    %c0_396 = arith.constant 0 : index
    %c6_397 = arith.constant 6 : index
    %568 = memref.load %arg10[%c0_396, %c6_397] : memref<2x54xf32, #tpu.memory_space<smem>>
    %569 = arith.mulf %568, %443 : f32
    %570 = vector.broadcast %569 : f32 to vector<8x8xf32>
    %571 = arith.mulf %570, %567 : vector<8x8xf32>
    %572 = arith.addf %560, %571 : vector<8x8xf32>
    %c1_398 = arith.constant 1 : index
    %c6_399 = arith.constant 6 : index
    %573 = memref.load %arg10[%c1_398, %c6_399] : memref<2x54xf32, #tpu.memory_space<smem>>
    %574 = arith.mulf %573, %443 : f32
    %575 = vector.broadcast %574 : f32 to vector<8x8xf32>
    %576 = arith.mulf %575, %567 : vector<8x8xf32>
    %577 = arith.addf %565, %576 : vector<8x8xf32>
    %c1_400 = arith.constant 1 : index
    %c1_401 = arith.constant 1 : index
    %c0_402 = arith.constant 0 : index
    %578 = vector.load %arg24[%c1_400, %c1_401, %c0_402] : memref<2x10x10xf32, #tpu.memory_space<vmem>>, vector<1x8x8xf32>
    %579 = vector.shape_cast %578 : vector<1x8x8xf32> to vector<8x8xf32>
    %c0_403 = arith.constant 0 : index
    %c7_404 = arith.constant 7 : index
    %580 = memref.load %arg10[%c0_403, %c7_404] : memref<2x54xf32, #tpu.memory_space<smem>>
    %581 = arith.mulf %580, %443 : f32
    %582 = vector.broadcast %581 : f32 to vector<8x8xf32>
    %583 = arith.mulf %582, %579 : vector<8x8xf32>
    %584 = arith.addf %572, %583 : vector<8x8xf32>
    %c1_405 = arith.constant 1 : index
    %c7_406 = arith.constant 7 : index
    %585 = memref.load %arg10[%c1_405, %c7_406] : memref<2x54xf32, #tpu.memory_space<smem>>
    %586 = arith.mulf %585, %443 : f32
    %587 = vector.broadcast %586 : f32 to vector<8x8xf32>
    %588 = arith.mulf %587, %579 : vector<8x8xf32>
    %589 = arith.addf %577, %588 : vector<8x8xf32>
    %c0_407 = arith.constant 0 : index
    %c1_408 = arith.constant 1 : index
    %c1_409 = arith.constant 1 : index
    %590 = vector.load %arg24[%c0_407, %c1_408, %c1_409] : memref<2x10x10xf32, #tpu.memory_space<vmem>>, vector<1x8x8xf32>
    %591 = vector.shape_cast %590 : vector<1x8x8xf32> to vector<8x8xf32>
    %c0_410 = arith.constant 0 : index
    %c8_411 = arith.constant 8 : index
    %592 = memref.load %arg10[%c0_410, %c8_411] : memref<2x54xf32, #tpu.memory_space<smem>>
    %593 = arith.mulf %592, %443 : f32
    %594 = vector.broadcast %593 : f32 to vector<8x8xf32>
    %595 = arith.mulf %594, %591 : vector<8x8xf32>
    %596 = arith.addf %584, %595 : vector<8x8xf32>
    %c1_412 = arith.constant 1 : index
    %c8_413 = arith.constant 8 : index
    %597 = memref.load %arg10[%c1_412, %c8_413] : memref<2x54xf32, #tpu.memory_space<smem>>
    %598 = arith.mulf %597, %443 : f32
    %599 = vector.broadcast %598 : f32 to vector<8x8xf32>
    %600 = arith.mulf %599, %591 : vector<8x8xf32>
    %601 = arith.addf %589, %600 : vector<8x8xf32>
    %c1_414 = arith.constant 1 : index
    %c1_415 = arith.constant 1 : index
    %c1_416 = arith.constant 1 : index
    %602 = vector.load %arg24[%c1_414, %c1_415, %c1_416] : memref<2x10x10xf32, #tpu.memory_space<vmem>>, vector<1x8x8xf32>
    %603 = vector.shape_cast %602 : vector<1x8x8xf32> to vector<8x8xf32>
    %c0_417 = arith.constant 0 : index
    %c9_418 = arith.constant 9 : index
    %604 = memref.load %arg10[%c0_417, %c9_418] : memref<2x54xf32, #tpu.memory_space<smem>>
    %605 = arith.mulf %604, %443 : f32
    %606 = vector.broadcast %605 : f32 to vector<8x8xf32>
    %607 = arith.mulf %606, %603 : vector<8x8xf32>
    %608 = arith.addf %596, %607 : vector<8x8xf32>
    %c1_419 = arith.constant 1 : index
    %c9_420 = arith.constant 9 : index
    %609 = memref.load %arg10[%c1_419, %c9_420] : memref<2x54xf32, #tpu.memory_space<smem>>
    %610 = arith.mulf %609, %443 : f32
    %611 = vector.broadcast %610 : f32 to vector<8x8xf32>
    %612 = arith.mulf %611, %603 : vector<8x8xf32>
    %613 = arith.addf %601, %612 : vector<8x8xf32>
    %c0_421 = arith.constant 0 : index
    %c1_422 = arith.constant 1 : index
    %c2_423 = arith.constant 2 : index
    %614 = vector.load %arg24[%c0_421, %c1_422, %c2_423] : memref<2x10x10xf32, #tpu.memory_space<vmem>>, vector<1x8x8xf32>
    %615 = vector.shape_cast %614 : vector<1x8x8xf32> to vector<8x8xf32>
    %c0_424 = arith.constant 0 : index
    %c10_425 = arith.constant 10 : index
    %616 = memref.load %arg10[%c0_424, %c10_425] : memref<2x54xf32, #tpu.memory_space<smem>>
    %617 = arith.mulf %616, %443 : f32
    %618 = vector.broadcast %617 : f32 to vector<8x8xf32>
    %619 = arith.mulf %618, %615 : vector<8x8xf32>
    %620 = arith.addf %608, %619 : vector<8x8xf32>
    %c1_426 = arith.constant 1 : index
    %c10_427 = arith.constant 10 : index
    %621 = memref.load %arg10[%c1_426, %c10_427] : memref<2x54xf32, #tpu.memory_space<smem>>
    %622 = arith.mulf %621, %443 : f32
    %623 = vector.broadcast %622 : f32 to vector<8x8xf32>
    %624 = arith.mulf %623, %615 : vector<8x8xf32>
    %625 = arith.addf %613, %624 : vector<8x8xf32>
    %c1_428 = arith.constant 1 : index
    %c1_429 = arith.constant 1 : index
    %c2_430 = arith.constant 2 : index
    %626 = vector.load %arg24[%c1_428, %c1_429, %c2_430] : memref<2x10x10xf32, #tpu.memory_space<vmem>>, vector<1x8x8xf32>
    %627 = vector.shape_cast %626 : vector<1x8x8xf32> to vector<8x8xf32>
    %c0_431 = arith.constant 0 : index
    %c11_432 = arith.constant 11 : index
    %628 = memref.load %arg10[%c0_431, %c11_432] : memref<2x54xf32, #tpu.memory_space<smem>>
    %629 = arith.mulf %628, %443 : f32
    %630 = vector.broadcast %629 : f32 to vector<8x8xf32>
    %631 = arith.mulf %630, %627 : vector<8x8xf32>
    %632 = arith.addf %620, %631 : vector<8x8xf32>
    %c1_433 = arith.constant 1 : index
    %c11_434 = arith.constant 11 : index
    %633 = memref.load %arg10[%c1_433, %c11_434] : memref<2x54xf32, #tpu.memory_space<smem>>
    %634 = arith.mulf %633, %443 : f32
    %635 = vector.broadcast %634 : f32 to vector<8x8xf32>
    %636 = arith.mulf %635, %627 : vector<8x8xf32>
    %637 = arith.addf %625, %636 : vector<8x8xf32>
    %c0_435 = arith.constant 0 : index
    %c2_436 = arith.constant 2 : index
    %c0_437 = arith.constant 0 : index
    %638 = vector.load %arg24[%c0_435, %c2_436, %c0_437] : memref<2x10x10xf32, #tpu.memory_space<vmem>>, vector<1x8x8xf32>
    %639 = vector.shape_cast %638 : vector<1x8x8xf32> to vector<8x8xf32>
    %c0_438 = arith.constant 0 : index
    %c12_439 = arith.constant 12 : index
    %640 = memref.load %arg10[%c0_438, %c12_439] : memref<2x54xf32, #tpu.memory_space<smem>>
    %641 = arith.mulf %640, %443 : f32
    %642 = vector.broadcast %641 : f32 to vector<8x8xf32>
    %643 = arith.mulf %642, %639 : vector<8x8xf32>
    %644 = arith.addf %632, %643 : vector<8x8xf32>
    %c1_440 = arith.constant 1 : index
    %c12_441 = arith.constant 12 : index
    %645 = memref.load %arg10[%c1_440, %c12_441] : memref<2x54xf32, #tpu.memory_space<smem>>
    %646 = arith.mulf %645, %443 : f32
    %647 = vector.broadcast %646 : f32 to vector<8x8xf32>
    %648 = arith.mulf %647, %639 : vector<8x8xf32>
    %649 = arith.addf %637, %648 : vector<8x8xf32>
    %c1_442 = arith.constant 1 : index
    %c2_443 = arith.constant 2 : index
    %c0_444 = arith.constant 0 : index
    %650 = vector.load %arg24[%c1_442, %c2_443, %c0_444] : memref<2x10x10xf32, #tpu.memory_space<vmem>>, vector<1x8x8xf32>
    %651 = vector.shape_cast %650 : vector<1x8x8xf32> to vector<8x8xf32>
    %c0_445 = arith.constant 0 : index
    %c13_446 = arith.constant 13 : index
    %652 = memref.load %arg10[%c0_445, %c13_446] : memref<2x54xf32, #tpu.memory_space<smem>>
    %653 = arith.mulf %652, %443 : f32
    %654 = vector.broadcast %653 : f32 to vector<8x8xf32>
    %655 = arith.mulf %654, %651 : vector<8x8xf32>
    %656 = arith.addf %644, %655 : vector<8x8xf32>
    %c1_447 = arith.constant 1 : index
    %c13_448 = arith.constant 13 : index
    %657 = memref.load %arg10[%c1_447, %c13_448] : memref<2x54xf32, #tpu.memory_space<smem>>
    %658 = arith.mulf %657, %443 : f32
    %659 = vector.broadcast %658 : f32 to vector<8x8xf32>
    %660 = arith.mulf %659, %651 : vector<8x8xf32>
    %661 = arith.addf %649, %660 : vector<8x8xf32>
    %c0_449 = arith.constant 0 : index
    %c2_450 = arith.constant 2 : index
    %c1_451 = arith.constant 1 : index
    %662 = vector.load %arg24[%c0_449, %c2_450, %c1_451] : memref<2x10x10xf32, #tpu.memory_space<vmem>>, vector<1x8x8xf32>
    %663 = vector.shape_cast %662 : vector<1x8x8xf32> to vector<8x8xf32>
    %c0_452 = arith.constant 0 : index
    %c14_453 = arith.constant 14 : index
    %664 = memref.load %arg10[%c0_452, %c14_453] : memref<2x54xf32, #tpu.memory_space<smem>>
    %665 = arith.mulf %664, %443 : f32
    %666 = vector.broadcast %665 : f32 to vector<8x8xf32>
    %667 = arith.mulf %666, %663 : vector<8x8xf32>
    %668 = arith.addf %656, %667 : vector<8x8xf32>
    %c1_454 = arith.constant 1 : index
    %c14_455 = arith.constant 14 : index
    %669 = memref.load %arg10[%c1_454, %c14_455] : memref<2x54xf32, #tpu.memory_space<smem>>
    %670 = arith.mulf %669, %443 : f32
    %671 = vector.broadcast %670 : f32 to vector<8x8xf32>
    %672 = arith.mulf %671, %663 : vector<8x8xf32>
    %673 = arith.addf %661, %672 : vector<8x8xf32>
    %c1_456 = arith.constant 1 : index
    %c2_457 = arith.constant 2 : index
    %c1_458 = arith.constant 1 : index
    %674 = vector.load %arg24[%c1_456, %c2_457, %c1_458] : memref<2x10x10xf32, #tpu.memory_space<vmem>>, vector<1x8x8xf32>
    %675 = vector.shape_cast %674 : vector<1x8x8xf32> to vector<8x8xf32>
    %c0_459 = arith.constant 0 : index
    %c15_460 = arith.constant 15 : index
    %676 = memref.load %arg10[%c0_459, %c15_460] : memref<2x54xf32, #tpu.memory_space<smem>>
    %677 = arith.mulf %676, %443 : f32
    %678 = vector.broadcast %677 : f32 to vector<8x8xf32>
    %679 = arith.mulf %678, %675 : vector<8x8xf32>
    %680 = arith.addf %668, %679 : vector<8x8xf32>
    %c1_461 = arith.constant 1 : index
    %c15_462 = arith.constant 15 : index
    %681 = memref.load %arg10[%c1_461, %c15_462] : memref<2x54xf32, #tpu.memory_space<smem>>
    %682 = arith.mulf %681, %443 : f32
    %683 = vector.broadcast %682 : f32 to vector<8x8xf32>
    %684 = arith.mulf %683, %675 : vector<8x8xf32>
    %685 = arith.addf %673, %684 : vector<8x8xf32>
    %c0_463 = arith.constant 0 : index
    %c2_464 = arith.constant 2 : index
    %c2_465 = arith.constant 2 : index
    %686 = vector.load %arg24[%c0_463, %c2_464, %c2_465] : memref<2x10x10xf32, #tpu.memory_space<vmem>>, vector<1x8x8xf32>
    %687 = vector.shape_cast %686 : vector<1x8x8xf32> to vector<8x8xf32>
    %c0_466 = arith.constant 0 : index
    %c16_467 = arith.constant 16 : index
    %688 = memref.load %arg10[%c0_466, %c16_467] : memref<2x54xf32, #tpu.memory_space<smem>>
    %689 = arith.mulf %688, %443 : f32
    %690 = vector.broadcast %689 : f32 to vector<8x8xf32>
    %691 = arith.mulf %690, %687 : vector<8x8xf32>
    %692 = arith.addf %680, %691 : vector<8x8xf32>
    %c1_468 = arith.constant 1 : index
    %c16_469 = arith.constant 16 : index
    %693 = memref.load %arg10[%c1_468, %c16_469] : memref<2x54xf32, #tpu.memory_space<smem>>
    %694 = arith.mulf %693, %443 : f32
    %695 = vector.broadcast %694 : f32 to vector<8x8xf32>
    %696 = arith.mulf %695, %687 : vector<8x8xf32>
    %697 = arith.addf %685, %696 : vector<8x8xf32>
    %c1_470 = arith.constant 1 : index
    %c2_471 = arith.constant 2 : index
    %c2_472 = arith.constant 2 : index
    %698 = vector.load %arg24[%c1_470, %c2_471, %c2_472] : memref<2x10x10xf32, #tpu.memory_space<vmem>>, vector<1x8x8xf32>
    %699 = vector.shape_cast %698 : vector<1x8x8xf32> to vector<8x8xf32>
    %c0_473 = arith.constant 0 : index
    %c17_474 = arith.constant 17 : index
    %700 = memref.load %arg10[%c0_473, %c17_474] : memref<2x54xf32, #tpu.memory_space<smem>>
    %701 = arith.mulf %700, %443 : f32
    %702 = vector.broadcast %701 : f32 to vector<8x8xf32>
    %703 = arith.mulf %702, %699 : vector<8x8xf32>
    %704 = arith.addf %692, %703 : vector<8x8xf32>
    %c1_475 = arith.constant 1 : index
    %c17_476 = arith.constant 17 : index
    %705 = memref.load %arg10[%c1_475, %c17_476] : memref<2x54xf32, #tpu.memory_space<smem>>
    %706 = arith.mulf %705, %443 : f32
    %707 = vector.broadcast %706 : f32 to vector<8x8xf32>
    %708 = arith.mulf %707, %699 : vector<8x8xf32>
    %709 = arith.addf %697, %708 : vector<8x8xf32>
    %c0_i32_477 = arith.constant 0 : i32
    %710 = arith.addi %arg1, %c0_i32_477 : i32
    %c0_i32_478 = arith.constant 0 : i32
    %711 = arith.cmpi sge, %710, %c0_i32_478 : i32
    %c0_i32_479 = arith.constant 0 : i32
    %712 = arith.addi %arg1, %c0_i32_479 : i32
    %c7_i32_480 = arith.constant 7 : i32
    %713 = arith.cmpi sle, %712, %c7_i32_480 : i32
    %714 = arith.andi %711, %713 : i1
    %cst_481 = arith.constant 1.000000e+00 : f32
    %cst_482 = arith.constant 0.000000e+00 : f32
    %715 = arith.select %714, %cst_481, %cst_482 : f32
    %c0_483 = arith.constant 0 : index
    %c0_484 = arith.constant 0 : index
    %c0_485 = arith.constant 0 : index
    %c0_486 = arith.constant 0 : index
    %c0_487 = arith.constant 0 : index
    %716 = vector.load %arg17[%c0_483, %c0_484, %c0_485, %c0_486, %c0_487] : memref<1x4x1x8x8xf32, #tpu.memory_space<vmem>>, vector<1x1x1x8x8xf32>
    %717 = vector.shape_cast %716 : vector<1x1x1x8x8xf32> to vector<8x8xf32>
    %c0_488 = arith.constant 0 : index
    %c1_489 = arith.constant 1 : index
    %c0_490 = arith.constant 0 : index
    %c0_491 = arith.constant 0 : index
    %c0_492 = arith.constant 0 : index
    %718 = vector.load %arg17[%c0_488, %c1_489, %c0_490, %c0_491, %c0_492] : memref<1x4x1x8x8xf32, #tpu.memory_space<vmem>>, vector<1x1x1x8x8xf32>
    %719 = vector.shape_cast %718 : vector<1x1x1x8x8xf32> to vector<8x8xf32>
    %c0_493 = arith.constant 0 : index
    %c2_494 = arith.constant 2 : index
    %c0_495 = arith.constant 0 : index
    %c0_496 = arith.constant 0 : index
    %c0_497 = arith.constant 0 : index
    %720 = vector.load %arg17[%c0_493, %c2_494, %c0_495, %c0_496, %c0_497] : memref<1x4x1x8x8xf32, #tpu.memory_space<vmem>>, vector<1x1x1x8x8xf32>
    %721 = vector.shape_cast %720 : vector<1x1x1x8x8xf32> to vector<8x8xf32>
    %c0_498 = arith.constant 0 : index
    %c3_499 = arith.constant 3 : index
    %c0_500 = arith.constant 0 : index
    %c0_501 = arith.constant 0 : index
    %c0_502 = arith.constant 0 : index
    %722 = vector.load %arg17[%c0_498, %c3_499, %c0_500, %c0_501, %c0_502] : memref<1x4x1x8x8xf32, #tpu.memory_space<vmem>>, vector<1x1x1x8x8xf32>
    %723 = vector.shape_cast %722 : vector<1x1x1x8x8xf32> to vector<8x8xf32>
    %c0_503 = arith.constant 0 : index
    %c0_504 = arith.constant 0 : index
    %724 = memref.load %arg8[%c0_503, %c0_504] : memref<2x4xf32, #tpu.memory_space<smem>>
    %725 = vector.broadcast %724 : f32 to vector<8x8xf32>
    %726 = arith.mulf %725, %717 : vector<8x8xf32>
    %c0_505 = arith.constant 0 : index
    %c1_506 = arith.constant 1 : index
    %727 = memref.load %arg8[%c0_505, %c1_506] : memref<2x4xf32, #tpu.memory_space<smem>>
    %728 = vector.broadcast %727 : f32 to vector<8x8xf32>
    %729 = arith.mulf %728, %719 : vector<8x8xf32>
    %730 = arith.addf %726, %729 : vector<8x8xf32>
    %c0_507 = arith.constant 0 : index
    %c2_508 = arith.constant 2 : index
    %731 = memref.load %arg8[%c0_507, %c2_508] : memref<2x4xf32, #tpu.memory_space<smem>>
    %732 = vector.broadcast %731 : f32 to vector<8x8xf32>
    %733 = arith.mulf %732, %721 : vector<8x8xf32>
    %734 = arith.addf %730, %733 : vector<8x8xf32>
    %c0_509 = arith.constant 0 : index
    %c3_510 = arith.constant 3 : index
    %735 = memref.load %arg8[%c0_509, %c3_510] : memref<2x4xf32, #tpu.memory_space<smem>>
    %736 = vector.broadcast %735 : f32 to vector<8x8xf32>
    %737 = arith.mulf %736, %723 : vector<8x8xf32>
    %738 = arith.addf %734, %737 : vector<8x8xf32>
    %c0_511 = arith.constant 0 : index
    %739 = memref.load %arg9[%c0_511] : memref<2xf32, #tpu.memory_space<smem>>
    %740 = vector.broadcast %739 : f32 to vector<8x8xf32>
    %741 = arith.addf %738, %740 : vector<8x8xf32>
    %c0_512 = arith.constant 0 : index
    %c1_513 = arith.constant 1 : index
    %c1_514 = arith.constant 1 : index
    %742 = vector.load %arg24[%c0_512, %c1_513, %c1_514] : memref<2x10x10xf32, #tpu.memory_space<vmem>>, vector<1x8x8xf32>
    %743 = vector.shape_cast %742 : vector<1x8x8xf32> to vector<8x8xf32>
    %744 = vector.shape_cast %741 : vector<8x8xf32> to vector<1x8x8xf32>
    tpu.vector_store %arg24[%c0_512, %c1_513, %c1_514], %744 {strides = array<i32>} : memref<2x10x10xf32, #tpu.memory_space<vmem>>, vector<1x8x8xf32>,
    %c1_515 = arith.constant 1 : index
    %c0_516 = arith.constant 0 : index
    %745 = memref.load %arg8[%c1_515, %c0_516] : memref<2x4xf32, #tpu.memory_space<smem>>
    %746 = vector.broadcast %745 : f32 to vector<8x8xf32>
    %747 = arith.mulf %746, %717 : vector<8x8xf32>
    %c1_517 = arith.constant 1 : index
    %c1_518 = arith.constant 1 : index
    %748 = memref.load %arg8[%c1_517, %c1_518] : memref<2x4xf32, #tpu.memory_space<smem>>
    %749 = vector.broadcast %748 : f32 to vector<8x8xf32>
    %750 = arith.mulf %749, %719 : vector<8x8xf32>
    %751 = arith.addf %747, %750 : vector<8x8xf32>
    %c1_519 = arith.constant 1 : index
    %c2_520 = arith.constant 2 : index
    %752 = memref.load %arg8[%c1_519, %c2_520] : memref<2x4xf32, #tpu.memory_space<smem>>
    %753 = vector.broadcast %752 : f32 to vector<8x8xf32>
    %754 = arith.mulf %753, %721 : vector<8x8xf32>
    %755 = arith.addf %751, %754 : vector<8x8xf32>
    %c1_521 = arith.constant 1 : index
    %c3_522 = arith.constant 3 : index
    %756 = memref.load %arg8[%c1_521, %c3_522] : memref<2x4xf32, #tpu.memory_space<smem>>
    %757 = vector.broadcast %756 : f32 to vector<8x8xf32>
    %758 = arith.mulf %757, %723 : vector<8x8xf32>
    %759 = arith.addf %755, %758 : vector<8x8xf32>
    %c1_523 = arith.constant 1 : index
    %760 = memref.load %arg9[%c1_523] : memref<2xf32, #tpu.memory_space<smem>>
    %761 = vector.broadcast %760 : f32 to vector<8x8xf32>
    %762 = arith.addf %759, %761 : vector<8x8xf32>
    %c1_524 = arith.constant 1 : index
    %c1_525 = arith.constant 1 : index
    %c1_526 = arith.constant 1 : index
    %763 = vector.load %arg24[%c1_524, %c1_525, %c1_526] : memref<2x10x10xf32, #tpu.memory_space<vmem>>, vector<1x8x8xf32>
    %764 = vector.shape_cast %763 : vector<1x8x8xf32> to vector<8x8xf32>
    %765 = vector.shape_cast %762 : vector<8x8xf32> to vector<1x8x8xf32>
    tpu.vector_store %arg24[%c1_524, %c1_525, %c1_526], %765 {strides = array<i32>} : memref<2x10x10xf32, #tpu.memory_space<vmem>>, vector<1x8x8xf32>,
    %c0_527 = arith.constant 0 : index
    %c0_528 = arith.constant 0 : index
    %c0_529 = arith.constant 0 : index
    %766 = vector.load %arg24[%c0_527, %c0_528, %c0_529] : memref<2x10x10xf32, #tpu.memory_space<vmem>>, vector<1x8x8xf32>
    %767 = vector.shape_cast %766 : vector<1x8x8xf32> to vector<8x8xf32>
    %c0_530 = arith.constant 0 : index
    %c18 = arith.constant 18 : index
    %768 = memref.load %arg10[%c0_530, %c18] : memref<2x54xf32, #tpu.memory_space<smem>>
    %769 = arith.mulf %768, %715 : f32
    %770 = vector.broadcast %769 : f32 to vector<8x8xf32>
    %771 = arith.mulf %770, %767 : vector<8x8xf32>
    %772 = arith.addf %704, %771 : vector<8x8xf32>
    %c1_531 = arith.constant 1 : index
    %c18_532 = arith.constant 18 : index
    %773 = memref.load %arg10[%c1_531, %c18_532] : memref<2x54xf32, #tpu.memory_space<smem>>
    %774 = arith.mulf %773, %715 : f32
    %775 = vector.broadcast %774 : f32 to vector<8x8xf32>
    %776 = arith.mulf %775, %767 : vector<8x8xf32>
    %777 = arith.addf %709, %776 : vector<8x8xf32>
    %c1_533 = arith.constant 1 : index
    %c0_534 = arith.constant 0 : index
    %c0_535 = arith.constant 0 : index
    %778 = vector.load %arg24[%c1_533, %c0_534, %c0_535] : memref<2x10x10xf32, #tpu.memory_space<vmem>>, vector<1x8x8xf32>
    %779 = vector.shape_cast %778 : vector<1x8x8xf32> to vector<8x8xf32>
    %c0_536 = arith.constant 0 : index
    %c19 = arith.constant 19 : index
    %780 = memref.load %arg10[%c0_536, %c19] : memref<2x54xf32, #tpu.memory_space<smem>>
    %781 = arith.mulf %780, %715 : f32
    %782 = vector.broadcast %781 : f32 to vector<8x8xf32>
    %783 = arith.mulf %782, %779 : vector<8x8xf32>
    %784 = arith.addf %772, %783 : vector<8x8xf32>
    %c1_537 = arith.constant 1 : index
    %c19_538 = arith.constant 19 : index
    %785 = memref.load %arg10[%c1_537, %c19_538] : memref<2x54xf32, #tpu.memory_space<smem>>
    %786 = arith.mulf %785, %715 : f32
    %787 = vector.broadcast %786 : f32 to vector<8x8xf32>
    %788 = arith.mulf %787, %779 : vector<8x8xf32>
    %789 = arith.addf %777, %788 : vector<8x8xf32>
    %c0_539 = arith.constant 0 : index
    %c0_540 = arith.constant 0 : index
    %c1_541 = arith.constant 1 : index
    %790 = vector.load %arg24[%c0_539, %c0_540, %c1_541] : memref<2x10x10xf32, #tpu.memory_space<vmem>>, vector<1x8x8xf32>
    %791 = vector.shape_cast %790 : vector<1x8x8xf32> to vector<8x8xf32>
    %c0_542 = arith.constant 0 : index
    %c20 = arith.constant 20 : index
    %792 = memref.load %arg10[%c0_542, %c20] : memref<2x54xf32, #tpu.memory_space<smem>>
    %793 = arith.mulf %792, %715 : f32
    %794 = vector.broadcast %793 : f32 to vector<8x8xf32>
    %795 = arith.mulf %794, %791 : vector<8x8xf32>
    %796 = arith.addf %784, %795 : vector<8x8xf32>
    %c1_543 = arith.constant 1 : index
    %c20_544 = arith.constant 20 : index
    %797 = memref.load %arg10[%c1_543, %c20_544] : memref<2x54xf32, #tpu.memory_space<smem>>
    %798 = arith.mulf %797, %715 : f32
    %799 = vector.broadcast %798 : f32 to vector<8x8xf32>
    %800 = arith.mulf %799, %791 : vector<8x8xf32>
    %801 = arith.addf %789, %800 : vector<8x8xf32>
    %c1_545 = arith.constant 1 : index
    %c0_546 = arith.constant 0 : index
    %c1_547 = arith.constant 1 : index
    %802 = vector.load %arg24[%c1_545, %c0_546, %c1_547] : memref<2x10x10xf32, #tpu.memory_space<vmem>>, vector<1x8x8xf32>
    %803 = vector.shape_cast %802 : vector<1x8x8xf32> to vector<8x8xf32>
    %c0_548 = arith.constant 0 : index
    %c21 = arith.constant 21 : index
    %804 = memref.load %arg10[%c0_548, %c21] : memref<2x54xf32, #tpu.memory_space<smem>>
    %805 = arith.mulf %804, %715 : f32
    %806 = vector.broadcast %805 : f32 to vector<8x8xf32>
    %807 = arith.mulf %806, %803 : vector<8x8xf32>
    %808 = arith.addf %796, %807 : vector<8x8xf32>
    %c1_549 = arith.constant 1 : index
    %c21_550 = arith.constant 21 : index
    %809 = memref.load %arg10[%c1_549, %c21_550] : memref<2x54xf32, #tpu.memory_space<smem>>
    %810 = arith.mulf %809, %715 : f32
    %811 = vector.broadcast %810 : f32 to vector<8x8xf32>
    %812 = arith.mulf %811, %803 : vector<8x8xf32>
    %813 = arith.addf %801, %812 : vector<8x8xf32>
    %c0_551 = arith.constant 0 : index
    %c0_552 = arith.constant 0 : index
    %c2_553 = arith.constant 2 : index
    %814 = vector.load %arg24[%c0_551, %c0_552, %c2_553] : memref<2x10x10xf32, #tpu.memory_space<vmem>>, vector<1x8x8xf32>
    %815 = vector.shape_cast %814 : vector<1x8x8xf32> to vector<8x8xf32>
    %c0_554 = arith.constant 0 : index
    %c22 = arith.constant 22 : index
    %816 = memref.load %arg10[%c0_554, %c22] : memref<2x54xf32, #tpu.memory_space<smem>>
    %817 = arith.mulf %816, %715 : f32
    %818 = vector.broadcast %817 : f32 to vector<8x8xf32>
    %819 = arith.mulf %818, %815 : vector<8x8xf32>
    %820 = arith.addf %808, %819 : vector<8x8xf32>
    %c1_555 = arith.constant 1 : index
    %c22_556 = arith.constant 22 : index
    %821 = memref.load %arg10[%c1_555, %c22_556] : memref<2x54xf32, #tpu.memory_space<smem>>
    %822 = arith.mulf %821, %715 : f32
    %823 = vector.broadcast %822 : f32 to vector<8x8xf32>
    %824 = arith.mulf %823, %815 : vector<8x8xf32>
    %825 = arith.addf %813, %824 : vector<8x8xf32>
    %c1_557 = arith.constant 1 : index
    %c0_558 = arith.constant 0 : index
    %c2_559 = arith.constant 2 : index
    %826 = vector.load %arg24[%c1_557, %c0_558, %c2_559] : memref<2x10x10xf32, #tpu.memory_space<vmem>>, vector<1x8x8xf32>
    %827 = vector.shape_cast %826 : vector<1x8x8xf32> to vector<8x8xf32>
    %c0_560 = arith.constant 0 : index
    %c23 = arith.constant 23 : index
    %828 = memref.load %arg10[%c0_560, %c23] : memref<2x54xf32, #tpu.memory_space<smem>>
    %829 = arith.mulf %828, %715 : f32
    %830 = vector.broadcast %829 : f32 to vector<8x8xf32>
    %831 = arith.mulf %830, %827 : vector<8x8xf32>
    %832 = arith.addf %820, %831 : vector<8x8xf32>
    %c1_561 = arith.constant 1 : index
    %c23_562 = arith.constant 23 : index
    %833 = memref.load %arg10[%c1_561, %c23_562] : memref<2x54xf32, #tpu.memory_space<smem>>
    %834 = arith.mulf %833, %715 : f32
    %835 = vector.broadcast %834 : f32 to vector<8x8xf32>
    %836 = arith.mulf %835, %827 : vector<8x8xf32>
    %837 = arith.addf %825, %836 : vector<8x8xf32>
    %c0_563 = arith.constant 0 : index
    %c1_564 = arith.constant 1 : index
    %c0_565 = arith.constant 0 : index
    %838 = vector.load %arg24[%c0_563, %c1_564, %c0_565] : memref<2x10x10xf32, #tpu.memory_space<vmem>>, vector<1x8x8xf32>
    %839 = vector.shape_cast %838 : vector<1x8x8xf32> to vector<8x8xf32>
    %c0_566 = arith.constant 0 : index
    %c24 = arith.constant 24 : index
    %840 = memref.load %arg10[%c0_566, %c24] : memref<2x54xf32, #tpu.memory_space<smem>>
    %841 = arith.mulf %840, %715 : f32
    %842 = vector.broadcast %841 : f32 to vector<8x8xf32>
    %843 = arith.mulf %842, %839 : vector<8x8xf32>
    %844 = arith.addf %832, %843 : vector<8x8xf32>
    %c1_567 = arith.constant 1 : index
    %c24_568 = arith.constant 24 : index
    %845 = memref.load %arg10[%c1_567, %c24_568] : memref<2x54xf32, #tpu.memory_space<smem>>
    %846 = arith.mulf %845, %715 : f32
    %847 = vector.broadcast %846 : f32 to vector<8x8xf32>
    %848 = arith.mulf %847, %839 : vector<8x8xf32>
    %849 = arith.addf %837, %848 : vector<8x8xf32>
    %c1_569 = arith.constant 1 : index
    %c1_570 = arith.constant 1 : index
    %c0_571 = arith.constant 0 : index
    %850 = vector.load %arg24[%c1_569, %c1_570, %c0_571] : memref<2x10x10xf32, #tpu.memory_space<vmem>>, vector<1x8x8xf32>
    %851 = vector.shape_cast %850 : vector<1x8x8xf32> to vector<8x8xf32>
    %c0_572 = arith.constant 0 : index
    %c25 = arith.constant 25 : index
    %852 = memref.load %arg10[%c0_572, %c25] : memref<2x54xf32, #tpu.memory_space<smem>>
    %853 = arith.mulf %852, %715 : f32
    %854 = vector.broadcast %853 : f32 to vector<8x8xf32>
    %855 = arith.mulf %854, %851 : vector<8x8xf32>
    %856 = arith.addf %844, %855 : vector<8x8xf32>
    %c1_573 = arith.constant 1 : index
    %c25_574 = arith.constant 25 : index
    %857 = memref.load %arg10[%c1_573, %c25_574] : memref<2x54xf32, #tpu.memory_space<smem>>
    %858 = arith.mulf %857, %715 : f32
    %859 = vector.broadcast %858 : f32 to vector<8x8xf32>
    %860 = arith.mulf %859, %851 : vector<8x8xf32>
    %861 = arith.addf %849, %860 : vector<8x8xf32>
    %c0_575 = arith.constant 0 : index
    %c1_576 = arith.constant 1 : index
    %c1_577 = arith.constant 1 : index
    %862 = vector.load %arg24[%c0_575, %c1_576, %c1_577] : memref<2x10x10xf32, #tpu.memory_space<vmem>>, vector<1x8x8xf32>
    %863 = vector.shape_cast %862 : vector<1x8x8xf32> to vector<8x8xf32>
    %c0_578 = arith.constant 0 : index
    %c26 = arith.constant 26 : index
    %864 = memref.load %arg10[%c0_578, %c26] : memref<2x54xf32, #tpu.memory_space<smem>>
    %865 = arith.mulf %864, %715 : f32
    %866 = vector.broadcast %865 : f32 to vector<8x8xf32>
    %867 = arith.mulf %866, %863 : vector<8x8xf32>
    %868 = arith.addf %856, %867 : vector<8x8xf32>
    %c1_579 = arith.constant 1 : index
    %c26_580 = arith.constant 26 : index
    %869 = memref.load %arg10[%c1_579, %c26_580] : memref<2x54xf32, #tpu.memory_space<smem>>
    %870 = arith.mulf %869, %715 : f32
    %871 = vector.broadcast %870 : f32 to vector<8x8xf32>
    %872 = arith.mulf %871, %863 : vector<8x8xf32>
    %873 = arith.addf %861, %872 : vector<8x8xf32>
    %c1_581 = arith.constant 1 : index
    %c1_582 = arith.constant 1 : index
    %c1_583 = arith.constant 1 : index
    %874 = vector.load %arg24[%c1_581, %c1_582, %c1_583] : memref<2x10x10xf32, #tpu.memory_space<vmem>>, vector<1x8x8xf32>
    %875 = vector.shape_cast %874 : vector<1x8x8xf32> to vector<8x8xf32>
    %c0_584 = arith.constant 0 : index
    %c27 = arith.constant 27 : index
    %876 = memref.load %arg10[%c0_584, %c27] : memref<2x54xf32, #tpu.memory_space<smem>>
    %877 = arith.mulf %876, %715 : f32
    %878 = vector.broadcast %877 : f32 to vector<8x8xf32>
    %879 = arith.mulf %878, %875 : vector<8x8xf32>
    %880 = arith.addf %868, %879 : vector<8x8xf32>
    %c1_585 = arith.constant 1 : index
    %c27_586 = arith.constant 27 : index
    %881 = memref.load %arg10[%c1_585, %c27_586] : memref<2x54xf32, #tpu.memory_space<smem>>
    %882 = arith.mulf %881, %715 : f32
    %883 = vector.broadcast %882 : f32 to vector<8x8xf32>
    %884 = arith.mulf %883, %875 : vector<8x8xf32>
    %885 = arith.addf %873, %884 : vector<8x8xf32>
    %c0_587 = arith.constant 0 : index
    %c1_588 = arith.constant 1 : index
    %c2_589 = arith.constant 2 : index
    %886 = vector.load %arg24[%c0_587, %c1_588, %c2_589] : memref<2x10x10xf32, #tpu.memory_space<vmem>>, vector<1x8x8xf32>
    %887 = vector.shape_cast %886 : vector<1x8x8xf32> to vector<8x8xf32>
    %c0_590 = arith.constant 0 : index
    %c28 = arith.constant 28 : index
    %888 = memref.load %arg10[%c0_590, %c28] : memref<2x54xf32, #tpu.memory_space<smem>>
    %889 = arith.mulf %888, %715 : f32
    %890 = vector.broadcast %889 : f32 to vector<8x8xf32>
    %891 = arith.mulf %890, %887 : vector<8x8xf32>
    %892 = arith.addf %880, %891 : vector<8x8xf32>
    %c1_591 = arith.constant 1 : index
    %c28_592 = arith.constant 28 : index
    %893 = memref.load %arg10[%c1_591, %c28_592] : memref<2x54xf32, #tpu.memory_space<smem>>
    %894 = arith.mulf %893, %715 : f32
    %895 = vector.broadcast %894 : f32 to vector<8x8xf32>
    %896 = arith.mulf %895, %887 : vector<8x8xf32>
    %897 = arith.addf %885, %896 : vector<8x8xf32>
    %c1_593 = arith.constant 1 : index
    %c1_594 = arith.constant 1 : index
    %c2_595 = arith.constant 2 : index
    %898 = vector.load %arg24[%c1_593, %c1_594, %c2_595] : memref<2x10x10xf32, #tpu.memory_space<vmem>>, vector<1x8x8xf32>
    %899 = vector.shape_cast %898 : vector<1x8x8xf32> to vector<8x8xf32>
    %c0_596 = arith.constant 0 : index
    %c29 = arith.constant 29 : index
    %900 = memref.load %arg10[%c0_596, %c29] : memref<2x54xf32, #tpu.memory_space<smem>>
    %901 = arith.mulf %900, %715 : f32
    %902 = vector.broadcast %901 : f32 to vector<8x8xf32>
    %903 = arith.mulf %902, %899 : vector<8x8xf32>
    %904 = arith.addf %892, %903 : vector<8x8xf32>
    %c1_597 = arith.constant 1 : index
    %c29_598 = arith.constant 29 : index
    %905 = memref.load %arg10[%c1_597, %c29_598] : memref<2x54xf32, #tpu.memory_space<smem>>
    %906 = arith.mulf %905, %715 : f32
    %907 = vector.broadcast %906 : f32 to vector<8x8xf32>
    %908 = arith.mulf %907, %899 : vector<8x8xf32>
    %909 = arith.addf %897, %908 : vector<8x8xf32>
    %c0_599 = arith.constant 0 : index
    %c2_600 = arith.constant 2 : index
    %c0_601 = arith.constant 0 : index
    %910 = vector.load %arg24[%c0_599, %c2_600, %c0_601] : memref<2x10x10xf32, #tpu.memory_space<vmem>>, vector<1x8x8xf32>
    %911 = vector.shape_cast %910 : vector<1x8x8xf32> to vector<8x8xf32>
    %c0_602 = arith.constant 0 : index
    %c30 = arith.constant 30 : index
    %912 = memref.load %arg10[%c0_602, %c30] : memref<2x54xf32, #tpu.memory_space<smem>>
    %913 = arith.mulf %912, %715 : f32
    %914 = vector.broadcast %913 : f32 to vector<8x8xf32>
    %915 = arith.mulf %914, %911 : vector<8x8xf32>
    %916 = arith.addf %904, %915 : vector<8x8xf32>
    %c1_603 = arith.constant 1 : index
    %c30_604 = arith.constant 30 : index
    %917 = memref.load %arg10[%c1_603, %c30_604] : memref<2x54xf32, #tpu.memory_space<smem>>
    %918 = arith.mulf %917, %715 : f32
    %919 = vector.broadcast %918 : f32 to vector<8x8xf32>
    %920 = arith.mulf %919, %911 : vector<8x8xf32>
    %921 = arith.addf %909, %920 : vector<8x8xf32>
    %c1_605 = arith.constant 1 : index
    %c2_606 = arith.constant 2 : index
    %c0_607 = arith.constant 0 : index
    %922 = vector.load %arg24[%c1_605, %c2_606, %c0_607] : memref<2x10x10xf32, #tpu.memory_space<vmem>>, vector<1x8x8xf32>
    %923 = vector.shape_cast %922 : vector<1x8x8xf32> to vector<8x8xf32>
    %c0_608 = arith.constant 0 : index
    %c31 = arith.constant 31 : index
    %924 = memref.load %arg10[%c0_608, %c31] : memref<2x54xf32, #tpu.memory_space<smem>>
    %925 = arith.mulf %924, %715 : f32
    %926 = vector.broadcast %925 : f32 to vector<8x8xf32>
    %927 = arith.mulf %926, %923 : vector<8x8xf32>
    %928 = arith.addf %916, %927 : vector<8x8xf32>
    %c1_609 = arith.constant 1 : index
    %c31_610 = arith.constant 31 : index
    %929 = memref.load %arg10[%c1_609, %c31_610] : memref<2x54xf32, #tpu.memory_space<smem>>
    %930 = arith.mulf %929, %715 : f32
    %931 = vector.broadcast %930 : f32 to vector<8x8xf32>
    %932 = arith.mulf %931, %923 : vector<8x8xf32>
    %933 = arith.addf %921, %932 : vector<8x8xf32>
    %c0_611 = arith.constant 0 : index
    %c2_612 = arith.constant 2 : index
    %c1_613 = arith.constant 1 : index
    %934 = vector.load %arg24[%c0_611, %c2_612, %c1_613] : memref<2x10x10xf32, #tpu.memory_space<vmem>>, vector<1x8x8xf32>
    %935 = vector.shape_cast %934 : vector<1x8x8xf32> to vector<8x8xf32>
    %c0_614 = arith.constant 0 : index
    %c32 = arith.constant 32 : index
    %936 = memref.load %arg10[%c0_614, %c32] : memref<2x54xf32, #tpu.memory_space<smem>>
    %937 = arith.mulf %936, %715 : f32
    %938 = vector.broadcast %937 : f32 to vector<8x8xf32>
    %939 = arith.mulf %938, %935 : vector<8x8xf32>
    %940 = arith.addf %928, %939 : vector<8x8xf32>
    %c1_615 = arith.constant 1 : index
    %c32_616 = arith.constant 32 : index
    %941 = memref.load %arg10[%c1_615, %c32_616] : memref<2x54xf32, #tpu.memory_space<smem>>
    %942 = arith.mulf %941, %715 : f32
    %943 = vector.broadcast %942 : f32 to vector<8x8xf32>
    %944 = arith.mulf %943, %935 : vector<8x8xf32>
    %945 = arith.addf %933, %944 : vector<8x8xf32>
    %c1_617 = arith.constant 1 : index
    %c2_618 = arith.constant 2 : index
    %c1_619 = arith.constant 1 : index
    %946 = vector.load %arg24[%c1_617, %c2_618, %c1_619] : memref<2x10x10xf32, #tpu.memory_space<vmem>>, vector<1x8x8xf32>
    %947 = vector.shape_cast %946 : vector<1x8x8xf32> to vector<8x8xf32>
    %c0_620 = arith.constant 0 : index
    %c33 = arith.constant 33 : index
    %948 = memref.load %arg10[%c0_620, %c33] : memref<2x54xf32, #tpu.memory_space<smem>>
    %949 = arith.mulf %948, %715 : f32
    %950 = vector.broadcast %949 : f32 to vector<8x8xf32>
    %951 = arith.mulf %950, %947 : vector<8x8xf32>
    %952 = arith.addf %940, %951 : vector<8x8xf32>
    %c1_621 = arith.constant 1 : index
    %c33_622 = arith.constant 33 : index
    %953 = memref.load %arg10[%c1_621, %c33_622] : memref<2x54xf32, #tpu.memory_space<smem>>
    %954 = arith.mulf %953, %715 : f32
    %955 = vector.broadcast %954 : f32 to vector<8x8xf32>
    %956 = arith.mulf %955, %947 : vector<8x8xf32>
    %957 = arith.addf %945, %956 : vector<8x8xf32>
    %c0_623 = arith.constant 0 : index
    %c2_624 = arith.constant 2 : index
    %c2_625 = arith.constant 2 : index
    %958 = vector.load %arg24[%c0_623, %c2_624, %c2_625] : memref<2x10x10xf32, #tpu.memory_space<vmem>>, vector<1x8x8xf32>
    %959 = vector.shape_cast %958 : vector<1x8x8xf32> to vector<8x8xf32>
    %c0_626 = arith.constant 0 : index
    %c34 = arith.constant 34 : index
    %960 = memref.load %arg10[%c0_626, %c34] : memref<2x54xf32, #tpu.memory_space<smem>>
    %961 = arith.mulf %960, %715 : f32
    %962 = vector.broadcast %961 : f32 to vector<8x8xf32>
    %963 = arith.mulf %962, %959 : vector<8x8xf32>
    %964 = arith.addf %952, %963 : vector<8x8xf32>
    %c1_627 = arith.constant 1 : index
    %c34_628 = arith.constant 34 : index
    %965 = memref.load %arg10[%c1_627, %c34_628] : memref<2x54xf32, #tpu.memory_space<smem>>
    %966 = arith.mulf %965, %715 : f32
    %967 = vector.broadcast %966 : f32 to vector<8x8xf32>
    %968 = arith.mulf %967, %959 : vector<8x8xf32>
    %969 = arith.addf %957, %968 : vector<8x8xf32>
    %c1_629 = arith.constant 1 : index
    %c2_630 = arith.constant 2 : index
    %c2_631 = arith.constant 2 : index
    %970 = vector.load %arg24[%c1_629, %c2_630, %c2_631] : memref<2x10x10xf32, #tpu.memory_space<vmem>>, vector<1x8x8xf32>
    %971 = vector.shape_cast %970 : vector<1x8x8xf32> to vector<8x8xf32>
    %c0_632 = arith.constant 0 : index
    %c35 = arith.constant 35 : index
    %972 = memref.load %arg10[%c0_632, %c35] : memref<2x54xf32, #tpu.memory_space<smem>>
    %973 = arith.mulf %972, %715 : f32
    %974 = vector.broadcast %973 : f32 to vector<8x8xf32>
    %975 = arith.mulf %974, %971 : vector<8x8xf32>
    %976 = arith.addf %964, %975 : vector<8x8xf32>
    %c1_633 = arith.constant 1 : index
    %c35_634 = arith.constant 35 : index
    %977 = memref.load %arg10[%c1_633, %c35_634] : memref<2x54xf32, #tpu.memory_space<smem>>
    %978 = arith.mulf %977, %715 : f32
    %979 = vector.broadcast %978 : f32 to vector<8x8xf32>
    %980 = arith.mulf %979, %971 : vector<8x8xf32>
    %981 = arith.addf %969, %980 : vector<8x8xf32>
    %c1_i32_635 = arith.constant 1 : i32
    %982 = arith.addi %arg1, %c1_i32_635 : i32
    %c0_i32_636 = arith.constant 0 : i32
    %983 = arith.cmpi sge, %982, %c0_i32_636 : i32
    %c1_i32_637 = arith.constant 1 : i32
    %984 = arith.addi %arg1, %c1_i32_637 : i32
    %c7_i32_638 = arith.constant 7 : i32
    %985 = arith.cmpi sle, %984, %c7_i32_638 : i32
    %986 = arith.andi %983, %985 : i1
    %cst_639 = arith.constant 1.000000e+00 : f32
    %cst_640 = arith.constant 0.000000e+00 : f32
    %987 = arith.select %986, %cst_639, %cst_640 : f32
    %c0_641 = arith.constant 0 : index
    %c0_642 = arith.constant 0 : index
    %c0_643 = arith.constant 0 : index
    %c0_644 = arith.constant 0 : index
    %c0_645 = arith.constant 0 : index
    %988 = vector.load %arg18[%c0_641, %c0_642, %c0_643, %c0_644, %c0_645] : memref<1x4x1x8x8xf32, #tpu.memory_space<vmem>>, vector<1x1x1x8x8xf32>
    %989 = vector.shape_cast %988 : vector<1x1x1x8x8xf32> to vector<8x8xf32>
    %c0_646 = arith.constant 0 : index
    %c1_647 = arith.constant 1 : index
    %c0_648 = arith.constant 0 : index
    %c0_649 = arith.constant 0 : index
    %c0_650 = arith.constant 0 : index
    %990 = vector.load %arg18[%c0_646, %c1_647, %c0_648, %c0_649, %c0_650] : memref<1x4x1x8x8xf32, #tpu.memory_space<vmem>>, vector<1x1x1x8x8xf32>
    %991 = vector.shape_cast %990 : vector<1x1x1x8x8xf32> to vector<8x8xf32>
    %c0_651 = arith.constant 0 : index
    %c2_652 = arith.constant 2 : index
    %c0_653 = arith.constant 0 : index
    %c0_654 = arith.constant 0 : index
    %c0_655 = arith.constant 0 : index
    %992 = vector.load %arg18[%c0_651, %c2_652, %c0_653, %c0_654, %c0_655] : memref<1x4x1x8x8xf32, #tpu.memory_space<vmem>>, vector<1x1x1x8x8xf32>
    %993 = vector.shape_cast %992 : vector<1x1x1x8x8xf32> to vector<8x8xf32>
    %c0_656 = arith.constant 0 : index
    %c3_657 = arith.constant 3 : index
    %c0_658 = arith.constant 0 : index
    %c0_659 = arith.constant 0 : index
    %c0_660 = arith.constant 0 : index
    %994 = vector.load %arg18[%c0_656, %c3_657, %c0_658, %c0_659, %c0_660] : memref<1x4x1x8x8xf32, #tpu.memory_space<vmem>>, vector<1x1x1x8x8xf32>
    %995 = vector.shape_cast %994 : vector<1x1x1x8x8xf32> to vector<8x8xf32>
    %c0_661 = arith.constant 0 : index
    %c0_662 = arith.constant 0 : index
    %996 = memref.load %arg8[%c0_661, %c0_662] : memref<2x4xf32, #tpu.memory_space<smem>>
    %997 = vector.broadcast %996 : f32 to vector<8x8xf32>
    %998 = arith.mulf %997, %989 : vector<8x8xf32>
    %c0_663 = arith.constant 0 : index
    %c1_664 = arith.constant 1 : index
    %999 = memref.load %arg8[%c0_663, %c1_664] : memref<2x4xf32, #tpu.memory_space<smem>>
    %1000 = vector.broadcast %999 : f32 to vector<8x8xf32>
    %1001 = arith.mulf %1000, %991 : vector<8x8xf32>
    %1002 = arith.addf %998, %1001 : vector<8x8xf32>
    %c0_665 = arith.constant 0 : index
    %c2_666 = arith.constant 2 : index
    %1003 = memref.load %arg8[%c0_665, %c2_666] : memref<2x4xf32, #tpu.memory_space<smem>>
    %1004 = vector.broadcast %1003 : f32 to vector<8x8xf32>
    %1005 = arith.mulf %1004, %993 : vector<8x8xf32>
    %1006 = arith.addf %1002, %1005 : vector<8x8xf32>
    %c0_667 = arith.constant 0 : index
    %c3_668 = arith.constant 3 : index
    %1007 = memref.load %arg8[%c0_667, %c3_668] : memref<2x4xf32, #tpu.memory_space<smem>>
    %1008 = vector.broadcast %1007 : f32 to vector<8x8xf32>
    %1009 = arith.mulf %1008, %995 : vector<8x8xf32>
    %1010 = arith.addf %1006, %1009 : vector<8x8xf32>
    %c0_669 = arith.constant 0 : index
    %1011 = memref.load %arg9[%c0_669] : memref<2xf32, #tpu.memory_space<smem>>
    %1012 = vector.broadcast %1011 : f32 to vector<8x8xf32>
    %1013 = arith.addf %1010, %1012 : vector<8x8xf32>
    %c0_670 = arith.constant 0 : index
    %c1_671 = arith.constant 1 : index
    %c1_672 = arith.constant 1 : index
    %1014 = vector.load %arg24[%c0_670, %c1_671, %c1_672] : memref<2x10x10xf32, #tpu.memory_space<vmem>>, vector<1x8x8xf32>
    %1015 = vector.shape_cast %1014 : vector<1x8x8xf32> to vector<8x8xf32>
    %1016 = vector.shape_cast %1013 : vector<8x8xf32> to vector<1x8x8xf32>
    tpu.vector_store %arg24[%c0_670, %c1_671, %c1_672], %1016 {strides = array<i32>} : memref<2x10x10xf32, #tpu.memory_space<vmem>>, vector<1x8x8xf32>,
    %c1_673 = arith.constant 1 : index
    %c0_674 = arith.constant 0 : index
    %1017 = memref.load %arg8[%c1_673, %c0_674] : memref<2x4xf32, #tpu.memory_space<smem>>
    %1018 = vector.broadcast %1017 : f32 to vector<8x8xf32>
    %1019 = arith.mulf %1018, %989 : vector<8x8xf32>
    %c1_675 = arith.constant 1 : index
    %c1_676 = arith.constant 1 : index
    %1020 = memref.load %arg8[%c1_675, %c1_676] : memref<2x4xf32, #tpu.memory_space<smem>>
    %1021 = vector.broadcast %1020 : f32 to vector<8x8xf32>
    %1022 = arith.mulf %1021, %991 : vector<8x8xf32>
    %1023 = arith.addf %1019, %1022 : vector<8x8xf32>
    %c1_677 = arith.constant 1 : index
    %c2_678 = arith.constant 2 : index
    %1024 = memref.load %arg8[%c1_677, %c2_678] : memref<2x4xf32, #tpu.memory_space<smem>>
    %1025 = vector.broadcast %1024 : f32 to vector<8x8xf32>
    %1026 = arith.mulf %1025, %993 : vector<8x8xf32>
    %1027 = arith.addf %1023, %1026 : vector<8x8xf32>
    %c1_679 = arith.constant 1 : index
    %c3_680 = arith.constant 3 : index
    %1028 = memref.load %arg8[%c1_679, %c3_680] : memref<2x4xf32, #tpu.memory_space<smem>>
    %1029 = vector.broadcast %1028 : f32 to vector<8x8xf32>
    %1030 = arith.mulf %1029, %995 : vector<8x8xf32>
    %1031 = arith.addf %1027, %1030 : vector<8x8xf32>
    %c1_681 = arith.constant 1 : index
    %1032 = memref.load %arg9[%c1_681] : memref<2xf32, #tpu.memory_space<smem>>
    %1033 = vector.broadcast %1032 : f32 to vector<8x8xf32>
    %1034 = arith.addf %1031, %1033 : vector<8x8xf32>
    %c1_682 = arith.constant 1 : index
    %c1_683 = arith.constant 1 : index
    %c1_684 = arith.constant 1 : index
    %1035 = vector.load %arg24[%c1_682, %c1_683, %c1_684] : memref<2x10x10xf32, #tpu.memory_space<vmem>>, vector<1x8x8xf32>
    %1036 = vector.shape_cast %1035 : vector<1x8x8xf32> to vector<8x8xf32>
    %1037 = vector.shape_cast %1034 : vector<8x8xf32> to vector<1x8x8xf32>
    tpu.vector_store %arg24[%c1_682, %c1_683, %c1_684], %1037 {strides = array<i32>} : memref<2x10x10xf32, #tpu.memory_space<vmem>>, vector<1x8x8xf32>,
    %c0_685 = arith.constant 0 : index
    %c0_686 = arith.constant 0 : index
    %c0_687 = arith.constant 0 : index
    %1038 = vector.load %arg24[%c0_685, %c0_686, %c0_687] : memref<2x10x10xf32, #tpu.memory_space<vmem>>, vector<1x8x8xf32>
    %1039 = vector.shape_cast %1038 : vector<1x8x8xf32> to vector<8x8xf32>
    %c0_688 = arith.constant 0 : index
    %c36 = arith.constant 36 : index
    %1040 = memref.load %arg10[%c0_688, %c36] : memref<2x54xf32, #tpu.memory_space<smem>>
    %1041 = arith.mulf %1040, %987 : f32
    %1042 = vector.broadcast %1041 : f32 to vector<8x8xf32>
    %1043 = arith.mulf %1042, %1039 : vector<8x8xf32>
    %1044 = arith.addf %976, %1043 : vector<8x8xf32>
    %c1_689 = arith.constant 1 : index
    %c36_690 = arith.constant 36 : index
    %1045 = memref.load %arg10[%c1_689, %c36_690] : memref<2x54xf32, #tpu.memory_space<smem>>
    %1046 = arith.mulf %1045, %987 : f32
    %1047 = vector.broadcast %1046 : f32 to vector<8x8xf32>
    %1048 = arith.mulf %1047, %1039 : vector<8x8xf32>
    %1049 = arith.addf %981, %1048 : vector<8x8xf32>
    %c1_691 = arith.constant 1 : index
    %c0_692 = arith.constant 0 : index
    %c0_693 = arith.constant 0 : index
    %1050 = vector.load %arg24[%c1_691, %c0_692, %c0_693] : memref<2x10x10xf32, #tpu.memory_space<vmem>>, vector<1x8x8xf32>
    %1051 = vector.shape_cast %1050 : vector<1x8x8xf32> to vector<8x8xf32>
    %c0_694 = arith.constant 0 : index
    %c37 = arith.constant 37 : index
    %1052 = memref.load %arg10[%c0_694, %c37] : memref<2x54xf32, #tpu.memory_space<smem>>
    %1053 = arith.mulf %1052, %987 : f32
    %1054 = vector.broadcast %1053 : f32 to vector<8x8xf32>
    %1055 = arith.mulf %1054, %1051 : vector<8x8xf32>
    %1056 = arith.addf %1044, %1055 : vector<8x8xf32>
    %c1_695 = arith.constant 1 : index
    %c37_696 = arith.constant 37 : index
    %1057 = memref.load %arg10[%c1_695, %c37_696] : memref<2x54xf32, #tpu.memory_space<smem>>
    %1058 = arith.mulf %1057, %987 : f32
    %1059 = vector.broadcast %1058 : f32 to vector<8x8xf32>
    %1060 = arith.mulf %1059, %1051 : vector<8x8xf32>
    %1061 = arith.addf %1049, %1060 : vector<8x8xf32>
    %c0_697 = arith.constant 0 : index
    %c0_698 = arith.constant 0 : index
    %c1_699 = arith.constant 1 : index
    %1062 = vector.load %arg24[%c0_697, %c0_698, %c1_699] : memref<2x10x10xf32, #tpu.memory_space<vmem>>, vector<1x8x8xf32>
    %1063 = vector.shape_cast %1062 : vector<1x8x8xf32> to vector<8x8xf32>
    %c0_700 = arith.constant 0 : index
    %c38 = arith.constant 38 : index
    %1064 = memref.load %arg10[%c0_700, %c38] : memref<2x54xf32, #tpu.memory_space<smem>>
    %1065 = arith.mulf %1064, %987 : f32
    %1066 = vector.broadcast %1065 : f32 to vector<8x8xf32>
    %1067 = arith.mulf %1066, %1063 : vector<8x8xf32>
    %1068 = arith.addf %1056, %1067 : vector<8x8xf32>
    %c1_701 = arith.constant 1 : index
    %c38_702 = arith.constant 38 : index
    %1069 = memref.load %arg10[%c1_701, %c38_702] : memref<2x54xf32, #tpu.memory_space<smem>>
    %1070 = arith.mulf %1069, %987 : f32
    %1071 = vector.broadcast %1070 : f32 to vector<8x8xf32>
    %1072 = arith.mulf %1071, %1063 : vector<8x8xf32>
    %1073 = arith.addf %1061, %1072 : vector<8x8xf32>
    %c1_703 = arith.constant 1 : index
    %c0_704 = arith.constant 0 : index
    %c1_705 = arith.constant 1 : index
    %1074 = vector.load %arg24[%c1_703, %c0_704, %c1_705] : memref<2x10x10xf32, #tpu.memory_space<vmem>>, vector<1x8x8xf32>
    %1075 = vector.shape_cast %1074 : vector<1x8x8xf32> to vector<8x8xf32>
    %c0_706 = arith.constant 0 : index
    %c39 = arith.constant 39 : index
    %1076 = memref.load %arg10[%c0_706, %c39] : memref<2x54xf32, #tpu.memory_space<smem>>
    %1077 = arith.mulf %1076, %987 : f32
    %1078 = vector.broadcast %1077 : f32 to vector<8x8xf32>
    %1079 = arith.mulf %1078, %1075 : vector<8x8xf32>
    %1080 = arith.addf %1068, %1079 : vector<8x8xf32>
    %c1_707 = arith.constant 1 : index
    %c39_708 = arith.constant 39 : index
    %1081 = memref.load %arg10[%c1_707, %c39_708] : memref<2x54xf32, #tpu.memory_space<smem>>
    %1082 = arith.mulf %1081, %987 : f32
    %1083 = vector.broadcast %1082 : f32 to vector<8x8xf32>
    %1084 = arith.mulf %1083, %1075 : vector<8x8xf32>
    %1085 = arith.addf %1073, %1084 : vector<8x8xf32>
    %c0_709 = arith.constant 0 : index
    %c0_710 = arith.constant 0 : index
    %c2_711 = arith.constant 2 : index
    %1086 = vector.load %arg24[%c0_709, %c0_710, %c2_711] : memref<2x10x10xf32, #tpu.memory_space<vmem>>, vector<1x8x8xf32>
    %1087 = vector.shape_cast %1086 : vector<1x8x8xf32> to vector<8x8xf32>
    %c0_712 = arith.constant 0 : index
    %c40 = arith.constant 40 : index
    %1088 = memref.load %arg10[%c0_712, %c40] : memref<2x54xf32, #tpu.memory_space<smem>>
    %1089 = arith.mulf %1088, %987 : f32
    %1090 = vector.broadcast %1089 : f32 to vector<8x8xf32>
    %1091 = arith.mulf %1090, %1087 : vector<8x8xf32>
    %1092 = arith.addf %1080, %1091 : vector<8x8xf32>
    %c1_713 = arith.constant 1 : index
    %c40_714 = arith.constant 40 : index
    %1093 = memref.load %arg10[%c1_713, %c40_714] : memref<2x54xf32, #tpu.memory_space<smem>>
    %1094 = arith.mulf %1093, %987 : f32
    %1095 = vector.broadcast %1094 : f32 to vector<8x8xf32>
    %1096 = arith.mulf %1095, %1087 : vector<8x8xf32>
    %1097 = arith.addf %1085, %1096 : vector<8x8xf32>
    %c1_715 = arith.constant 1 : index
    %c0_716 = arith.constant 0 : index
    %c2_717 = arith.constant 2 : index
    %1098 = vector.load %arg24[%c1_715, %c0_716, %c2_717] : memref<2x10x10xf32, #tpu.memory_space<vmem>>, vector<1x8x8xf32>
    %1099 = vector.shape_cast %1098 : vector<1x8x8xf32> to vector<8x8xf32>
    %c0_718 = arith.constant 0 : index
    %c41 = arith.constant 41 : index
    %1100 = memref.load %arg10[%c0_718, %c41] : memref<2x54xf32, #tpu.memory_space<smem>>
    %1101 = arith.mulf %1100, %987 : f32
    %1102 = vector.broadcast %1101 : f32 to vector<8x8xf32>
    %1103 = arith.mulf %1102, %1099 : vector<8x8xf32>
    %1104 = arith.addf %1092, %1103 : vector<8x8xf32>
    %c1_719 = arith.constant 1 : index
    %c41_720 = arith.constant 41 : index
    %1105 = memref.load %arg10[%c1_719, %c41_720] : memref<2x54xf32, #tpu.memory_space<smem>>
    %1106 = arith.mulf %1105, %987 : f32
    %1107 = vector.broadcast %1106 : f32 to vector<8x8xf32>
    %1108 = arith.mulf %1107, %1099 : vector<8x8xf32>
    %1109 = arith.addf %1097, %1108 : vector<8x8xf32>
    %c0_721 = arith.constant 0 : index
    %c1_722 = arith.constant 1 : index
    %c0_723 = arith.constant 0 : index
    %1110 = vector.load %arg24[%c0_721, %c1_722, %c0_723] : memref<2x10x10xf32, #tpu.memory_space<vmem>>, vector<1x8x8xf32>
    %1111 = vector.shape_cast %1110 : vector<1x8x8xf32> to vector<8x8xf32>
    %c0_724 = arith.constant 0 : index
    %c42 = arith.constant 42 : index
    %1112 = memref.load %arg10[%c0_724, %c42] : memref<2x54xf32, #tpu.memory_space<smem>>
    %1113 = arith.mulf %1112, %987 : f32
    %1114 = vector.broadcast %1113 : f32 to vector<8x8xf32>
    %1115 = arith.mulf %1114, %1111 : vector<8x8xf32>
    %1116 = arith.addf %1104, %1115 : vector<8x8xf32>
    %c1_725 = arith.constant 1 : index
    %c42_726 = arith.constant 42 : index
    %1117 = memref.load %arg10[%c1_725, %c42_726] : memref<2x54xf32, #tpu.memory_space<smem>>
    %1118 = arith.mulf %1117, %987 : f32
    %1119 = vector.broadcast %1118 : f32 to vector<8x8xf32>
    %1120 = arith.mulf %1119, %1111 : vector<8x8xf32>
    %1121 = arith.addf %1109, %1120 : vector<8x8xf32>
    %c1_727 = arith.constant 1 : index
    %c1_728 = arith.constant 1 : index
    %c0_729 = arith.constant 0 : index
    %1122 = vector.load %arg24[%c1_727, %c1_728, %c0_729] : memref<2x10x10xf32, #tpu.memory_space<vmem>>, vector<1x8x8xf32>
    %1123 = vector.shape_cast %1122 : vector<1x8x8xf32> to vector<8x8xf32>
    %c0_730 = arith.constant 0 : index
    %c43 = arith.constant 43 : index
    %1124 = memref.load %arg10[%c0_730, %c43] : memref<2x54xf32, #tpu.memory_space<smem>>
    %1125 = arith.mulf %1124, %987 : f32
    %1126 = vector.broadcast %1125 : f32 to vector<8x8xf32>
    %1127 = arith.mulf %1126, %1123 : vector<8x8xf32>
    %1128 = arith.addf %1116, %1127 : vector<8x8xf32>
    %c1_731 = arith.constant 1 : index
    %c43_732 = arith.constant 43 : index
    %1129 = memref.load %arg10[%c1_731, %c43_732] : memref<2x54xf32, #tpu.memory_space<smem>>
    %1130 = arith.mulf %1129, %987 : f32
    %1131 = vector.broadcast %1130 : f32 to vector<8x8xf32>
    %1132 = arith.mulf %1131, %1123 : vector<8x8xf32>
    %1133 = arith.addf %1121, %1132 : vector<8x8xf32>
    %c0_733 = arith.constant 0 : index
    %c1_734 = arith.constant 1 : index
    %c1_735 = arith.constant 1 : index
    %1134 = vector.load %arg24[%c0_733, %c1_734, %c1_735] : memref<2x10x10xf32, #tpu.memory_space<vmem>>, vector<1x8x8xf32>
    %1135 = vector.shape_cast %1134 : vector<1x8x8xf32> to vector<8x8xf32>
    %c0_736 = arith.constant 0 : index
    %c44 = arith.constant 44 : index
    %1136 = memref.load %arg10[%c0_736, %c44] : memref<2x54xf32, #tpu.memory_space<smem>>
    %1137 = arith.mulf %1136, %987 : f32
    %1138 = vector.broadcast %1137 : f32 to vector<8x8xf32>
    %1139 = arith.mulf %1138, %1135 : vector<8x8xf32>
    %1140 = arith.addf %1128, %1139 : vector<8x8xf32>
    %c1_737 = arith.constant 1 : index
    %c44_738 = arith.constant 44 : index
    %1141 = memref.load %arg10[%c1_737, %c44_738] : memref<2x54xf32, #tpu.memory_space<smem>>
    %1142 = arith.mulf %1141, %987 : f32
    %1143 = vector.broadcast %1142 : f32 to vector<8x8xf32>
    %1144 = arith.mulf %1143, %1135 : vector<8x8xf32>
    %1145 = arith.addf %1133, %1144 : vector<8x8xf32>
    %c1_739 = arith.constant 1 : index
    %c1_740 = arith.constant 1 : index
    %c1_741 = arith.constant 1 : index
    %1146 = vector.load %arg24[%c1_739, %c1_740, %c1_741] : memref<2x10x10xf32, #tpu.memory_space<vmem>>, vector<1x8x8xf32>
    %1147 = vector.shape_cast %1146 : vector<1x8x8xf32> to vector<8x8xf32>
    %c0_742 = arith.constant 0 : index
    %c45 = arith.constant 45 : index
    %1148 = memref.load %arg10[%c0_742, %c45] : memref<2x54xf32, #tpu.memory_space<smem>>
    %1149 = arith.mulf %1148, %987 : f32
    %1150 = vector.broadcast %1149 : f32 to vector<8x8xf32>
    %1151 = arith.mulf %1150, %1147 : vector<8x8xf32>
    %1152 = arith.addf %1140, %1151 : vector<8x8xf32>
    %c1_743 = arith.constant 1 : index
    %c45_744 = arith.constant 45 : index
    %1153 = memref.load %arg10[%c1_743, %c45_744] : memref<2x54xf32, #tpu.memory_space<smem>>
    %1154 = arith.mulf %1153, %987 : f32
    %1155 = vector.broadcast %1154 : f32 to vector<8x8xf32>
    %1156 = arith.mulf %1155, %1147 : vector<8x8xf32>
    %1157 = arith.addf %1145, %1156 : vector<8x8xf32>
    %c0_745 = arith.constant 0 : index
    %c1_746 = arith.constant 1 : index
    %c2_747 = arith.constant 2 : index
    %1158 = vector.load %arg24[%c0_745, %c1_746, %c2_747] : memref<2x10x10xf32, #tpu.memory_space<vmem>>, vector<1x8x8xf32>
    %1159 = vector.shape_cast %1158 : vector<1x8x8xf32> to vector<8x8xf32>
    %c0_748 = arith.constant 0 : index
    %c46 = arith.constant 46 : index
    %1160 = memref.load %arg10[%c0_748, %c46] : memref<2x54xf32, #tpu.memory_space<smem>>
    %1161 = arith.mulf %1160, %987 : f32
    %1162 = vector.broadcast %1161 : f32 to vector<8x8xf32>
    %1163 = arith.mulf %1162, %1159 : vector<8x8xf32>
    %1164 = arith.addf %1152, %1163 : vector<8x8xf32>
    %c1_749 = arith.constant 1 : index
    %c46_750 = arith.constant 46 : index
    %1165 = memref.load %arg10[%c1_749, %c46_750] : memref<2x54xf32, #tpu.memory_space<smem>>
    %1166 = arith.mulf %1165, %987 : f32
    %1167 = vector.broadcast %1166 : f32 to vector<8x8xf32>
    %1168 = arith.mulf %1167, %1159 : vector<8x8xf32>
    %1169 = arith.addf %1157, %1168 : vector<8x8xf32>
    %c1_751 = arith.constant 1 : index
    %c1_752 = arith.constant 1 : index
    %c2_753 = arith.constant 2 : index
    %1170 = vector.load %arg24[%c1_751, %c1_752, %c2_753] : memref<2x10x10xf32, #tpu.memory_space<vmem>>, vector<1x8x8xf32>
    %1171 = vector.shape_cast %1170 : vector<1x8x8xf32> to vector<8x8xf32>
    %c0_754 = arith.constant 0 : index
    %c47 = arith.constant 47 : index
    %1172 = memref.load %arg10[%c0_754, %c47] : memref<2x54xf32, #tpu.memory_space<smem>>
    %1173 = arith.mulf %1172, %987 : f32
    %1174 = vector.broadcast %1173 : f32 to vector<8x8xf32>
    %1175 = arith.mulf %1174, %1171 : vector<8x8xf32>
    %1176 = arith.addf %1164, %1175 : vector<8x8xf32>
    %c1_755 = arith.constant 1 : index
    %c47_756 = arith.constant 47 : index
    %1177 = memref.load %arg10[%c1_755, %c47_756] : memref<2x54xf32, #tpu.memory_space<smem>>
    %1178 = arith.mulf %1177, %987 : f32
    %1179 = vector.broadcast %1178 : f32 to vector<8x8xf32>
    %1180 = arith.mulf %1179, %1171 : vector<8x8xf32>
    %1181 = arith.addf %1169, %1180 : vector<8x8xf32>
    %c0_757 = arith.constant 0 : index
    %c2_758 = arith.constant 2 : index
    %c0_759 = arith.constant 0 : index
    %1182 = vector.load %arg24[%c0_757, %c2_758, %c0_759] : memref<2x10x10xf32, #tpu.memory_space<vmem>>, vector<1x8x8xf32>
    %1183 = vector.shape_cast %1182 : vector<1x8x8xf32> to vector<8x8xf32>
    %c0_760 = arith.constant 0 : index
    %c48 = arith.constant 48 : index
    %1184 = memref.load %arg10[%c0_760, %c48] : memref<2x54xf32, #tpu.memory_space<smem>>
    %1185 = arith.mulf %1184, %987 : f32
    %1186 = vector.broadcast %1185 : f32 to vector<8x8xf32>
    %1187 = arith.mulf %1186, %1183 : vector<8x8xf32>
    %1188 = arith.addf %1176, %1187 : vector<8x8xf32>
    %c1_761 = arith.constant 1 : index
    %c48_762 = arith.constant 48 : index
    %1189 = memref.load %arg10[%c1_761, %c48_762] : memref<2x54xf32, #tpu.memory_space<smem>>
    %1190 = arith.mulf %1189, %987 : f32
    %1191 = vector.broadcast %1190 : f32 to vector<8x8xf32>
    %1192 = arith.mulf %1191, %1183 : vector<8x8xf32>
    %1193 = arith.addf %1181, %1192 : vector<8x8xf32>
    %c1_763 = arith.constant 1 : index
    %c2_764 = arith.constant 2 : index
    %c0_765 = arith.constant 0 : index
    %1194 = vector.load %arg24[%c1_763, %c2_764, %c0_765] : memref<2x10x10xf32, #tpu.memory_space<vmem>>, vector<1x8x8xf32>
    %1195 = vector.shape_cast %1194 : vector<1x8x8xf32> to vector<8x8xf32>
    %c0_766 = arith.constant 0 : index
    %c49 = arith.constant 49 : index
    %1196 = memref.load %arg10[%c0_766, %c49] : memref<2x54xf32, #tpu.memory_space<smem>>
    %1197 = arith.mulf %1196, %987 : f32
    %1198 = vector.broadcast %1197 : f32 to vector<8x8xf32>
    %1199 = arith.mulf %1198, %1195 : vector<8x8xf32>
    %1200 = arith.addf %1188, %1199 : vector<8x8xf32>
    %c1_767 = arith.constant 1 : index
    %c49_768 = arith.constant 49 : index
    %1201 = memref.load %arg10[%c1_767, %c49_768] : memref<2x54xf32, #tpu.memory_space<smem>>
    %1202 = arith.mulf %1201, %987 : f32
    %1203 = vector.broadcast %1202 : f32 to vector<8x8xf32>
    %1204 = arith.mulf %1203, %1195 : vector<8x8xf32>
    %1205 = arith.addf %1193, %1204 : vector<8x8xf32>
    %c0_769 = arith.constant 0 : index
    %c2_770 = arith.constant 2 : index
    %c1_771 = arith.constant 1 : index
    %1206 = vector.load %arg24[%c0_769, %c2_770, %c1_771] : memref<2x10x10xf32, #tpu.memory_space<vmem>>, vector<1x8x8xf32>
    %1207 = vector.shape_cast %1206 : vector<1x8x8xf32> to vector<8x8xf32>
    %c0_772 = arith.constant 0 : index
    %c50 = arith.constant 50 : index
    %1208 = memref.load %arg10[%c0_772, %c50] : memref<2x54xf32, #tpu.memory_space<smem>>
    %1209 = arith.mulf %1208, %987 : f32
    %1210 = vector.broadcast %1209 : f32 to vector<8x8xf32>
    %1211 = arith.mulf %1210, %1207 : vector<8x8xf32>
    %1212 = arith.addf %1200, %1211 : vector<8x8xf32>
    %c1_773 = arith.constant 1 : index
    %c50_774 = arith.constant 50 : index
    %1213 = memref.load %arg10[%c1_773, %c50_774] : memref<2x54xf32, #tpu.memory_space<smem>>
    %1214 = arith.mulf %1213, %987 : f32
    %1215 = vector.broadcast %1214 : f32 to vector<8x8xf32>
    %1216 = arith.mulf %1215, %1207 : vector<8x8xf32>
    %1217 = arith.addf %1205, %1216 : vector<8x8xf32>
    %c1_775 = arith.constant 1 : index
    %c2_776 = arith.constant 2 : index
    %c1_777 = arith.constant 1 : index
    %1218 = vector.load %arg24[%c1_775, %c2_776, %c1_777] : memref<2x10x10xf32, #tpu.memory_space<vmem>>, vector<1x8x8xf32>
    %1219 = vector.shape_cast %1218 : vector<1x8x8xf32> to vector<8x8xf32>
    %c0_778 = arith.constant 0 : index
    %c51 = arith.constant 51 : index
    %1220 = memref.load %arg10[%c0_778, %c51] : memref<2x54xf32, #tpu.memory_space<smem>>
    %1221 = arith.mulf %1220, %987 : f32
    %1222 = vector.broadcast %1221 : f32 to vector<8x8xf32>
    %1223 = arith.mulf %1222, %1219 : vector<8x8xf32>
    %1224 = arith.addf %1212, %1223 : vector<8x8xf32>
    %c1_779 = arith.constant 1 : index
    %c51_780 = arith.constant 51 : index
    %1225 = memref.load %arg10[%c1_779, %c51_780] : memref<2x54xf32, #tpu.memory_space<smem>>
    %1226 = arith.mulf %1225, %987 : f32
    %1227 = vector.broadcast %1226 : f32 to vector<8x8xf32>
    %1228 = arith.mulf %1227, %1219 : vector<8x8xf32>
    %1229 = arith.addf %1217, %1228 : vector<8x8xf32>
    %c0_781 = arith.constant 0 : index
    %c2_782 = arith.constant 2 : index
    %c2_783 = arith.constant 2 : index
    %1230 = vector.load %arg24[%c0_781, %c2_782, %c2_783] : memref<2x10x10xf32, #tpu.memory_space<vmem>>, vector<1x8x8xf32>
    %1231 = vector.shape_cast %1230 : vector<1x8x8xf32> to vector<8x8xf32>
    %c0_784 = arith.constant 0 : index
    %c52 = arith.constant 52 : index
    %1232 = memref.load %arg10[%c0_784, %c52] : memref<2x54xf32, #tpu.memory_space<smem>>
    %1233 = arith.mulf %1232, %987 : f32
    %1234 = vector.broadcast %1233 : f32 to vector<8x8xf32>
    %1235 = arith.mulf %1234, %1231 : vector<8x8xf32>
    %1236 = arith.addf %1224, %1235 : vector<8x8xf32>
    %c1_785 = arith.constant 1 : index
    %c52_786 = arith.constant 52 : index
    %1237 = memref.load %arg10[%c1_785, %c52_786] : memref<2x54xf32, #tpu.memory_space<smem>>
    %1238 = arith.mulf %1237, %987 : f32
    %1239 = vector.broadcast %1238 : f32 to vector<8x8xf32>
    %1240 = arith.mulf %1239, %1231 : vector<8x8xf32>
    %1241 = arith.addf %1229, %1240 : vector<8x8xf32>
    %c1_787 = arith.constant 1 : index
    %c2_788 = arith.constant 2 : index
    %c2_789 = arith.constant 2 : index
    %1242 = vector.load %arg24[%c1_787, %c2_788, %c2_789] : memref<2x10x10xf32, #tpu.memory_space<vmem>>, vector<1x8x8xf32>
    %1243 = vector.shape_cast %1242 : vector<1x8x8xf32> to vector<8x8xf32>
    %c0_790 = arith.constant 0 : index
    %c53 = arith.constant 53 : index
    %1244 = memref.load %arg10[%c0_790, %c53] : memref<2x54xf32, #tpu.memory_space<smem>>
    %1245 = arith.mulf %1244, %987 : f32
    %1246 = vector.broadcast %1245 : f32 to vector<8x8xf32>
    %1247 = arith.mulf %1246, %1243 : vector<8x8xf32>
    %1248 = arith.addf %1236, %1247 : vector<8x8xf32>
    %c1_791 = arith.constant 1 : index
    %c53_792 = arith.constant 53 : index
    %1249 = memref.load %arg10[%c1_791, %c53_792] : memref<2x54xf32, #tpu.memory_space<smem>>
    %1250 = arith.mulf %1249, %987 : f32
    %1251 = vector.broadcast %1250 : f32 to vector<8x8xf32>
    %1252 = arith.mulf %1251, %1243 : vector<8x8xf32>
    %1253 = arith.addf %1241, %1252 : vector<8x8xf32>
    %c0_793 = arith.constant 0 : index
    %1254 = memref.load %arg11[%c0_793] : memref<2xf32, #tpu.memory_space<smem>>
    %1255 = vector.broadcast %1254 : f32 to vector<8x8xf32>
    %1256 = arith.addf %1248, %1255 : vector<8x8xf32>
    %cst_794 = arith.constant 0.000000e+00 : f32
    %1257 = vector.broadcast %cst_794 : f32 to vector<8x8xf32>
    %1258 = arith.maximumf %1256, %1257 : vector<8x8xf32>
    %c1_795 = arith.constant 1 : index
    %1259 = memref.load %arg11[%c1_795] : memref<2xf32, #tpu.memory_space<smem>>
    %1260 = vector.broadcast %1259 : f32 to vector<8x8xf32>
    %1261 = arith.addf %1253, %1260 : vector<8x8xf32>
    %cst_796 = arith.constant 0.000000e+00 : f32
    %1262 = vector.broadcast %cst_796 : f32 to vector<8x8xf32>
    %1263 = arith.maximumf %1261, %1262 : vector<8x8xf32>
    %c0_797 = arith.constant 0 : index
    %c0_798 = arith.constant 0 : index
    %c0_799 = arith.constant 0 : index
    %c0_800 = arith.constant 0 : index
    %c0_801 = arith.constant 0 : index
    %1264 = vector.load %arg21[%c0_797, %c0_798, %c0_799, %c0_800, %c0_801] : memref<1x2x1x8x8xf32, #tpu.memory_space<vmem>>, vector<1x1x1x8x8xf32>
    %1265 = vector.shape_cast %1264 : vector<1x1x1x8x8xf32> to vector<8x8xf32>
    %1266 = vector.shape_cast %1258 : vector<8x8xf32> to vector<1x1x1x8x8xf32>
    tpu.vector_store %arg21[%c0_797, %c0_798, %c0_799, %c0_800, %c0_801], %1266 {strides = array<i32>} : memref<1x2x1x8x8xf32, #tpu.memory_space<vmem>>, vector<1x1x1x8x8xf32>,
    %c0_802 = arith.constant 0 : index
    %c1_803 = arith.constant 1 : index
    %c0_804 = arith.constant 0 : index
    %c0_805 = arith.constant 0 : index
    %c0_806 = arith.constant 0 : index
    %1267 = vector.load %arg21[%c0_802, %c1_803, %c0_804, %c0_805, %c0_806] : memref<1x2x1x8x8xf32, #tpu.memory_space<vmem>>, vector<1x1x1x8x8xf32>
    %1268 = vector.shape_cast %1267 : vector<1x1x1x8x8xf32> to vector<8x8xf32>
    %1269 = vector.shape_cast %1263 : vector<8x8xf32> to vector<1x1x1x8x8xf32>
    tpu.vector_store %arg21[%c0_802, %c1_803, %c0_804, %c0_805, %c0_806], %1269 {strides = array<i32>} : memref<1x2x1x8x8xf32, #tpu.memory_space<vmem>>, vector<1x1x1x8x8xf32>,
    %cst_807 = arith.constant 0.000000e+00 : f32
    %1270 = vector.broadcast %cst_807 : f32 to vector<2x10x8xf32>
    %c0_808 = arith.constant 0 : index
    %c0_809 = arith.constant 0 : index
    %c0_810 = arith.constant 0 : index
    %1271 = vector.load %arg25[%c0_808, %c0_809, %c0_810] : memref<2x10x8xf32, #tpu.memory_space<vmem>>, vector<2x10x8xf32>
    tpu.vector_store %arg25[%c0_808, %c0_809, %c0_810], %1270 {strides = array<i32>} : memref<2x10x8xf32, #tpu.memory_space<vmem>>, vector<2x10x8xf32>,
    %cst_811 = arith.constant 0.000000e+00 : f32
    %1272 = vector.broadcast %cst_811 : f32 to vector<8x8xf32>
    %cst_812 = arith.constant 0.000000e+00 : f32
    %1273 = vector.broadcast %cst_812 : f32 to vector<8x8xf32>
    %c-1_i32_813 = arith.constant -1 : i32
    %1274 = arith.addi %arg1, %c-1_i32_813 : i32
    %c0_i32_814 = arith.constant 0 : i32
    %1275 = arith.cmpi sge, %1274, %c0_i32_814 : i32
    %c-1_i32_815 = arith.constant -1 : i32
    %1276 = arith.addi %arg1, %c-1_i32_815 : i32
    %c7_i32_816 = arith.constant 7 : i32
    %1277 = arith.cmpi sle, %1276, %c7_i32_816 : i32
    %1278 = arith.andi %1275, %1277 : i1
    %cst_817 = arith.constant 1.000000e+00 : f32
    %cst_818 = arith.constant 0.000000e+00 : f32
    %1279 = arith.select %1278, %cst_817, %cst_818 : f32
    %c0_819 = arith.constant 0 : index
    %c0_820 = arith.constant 0 : index
    %c0_821 = arith.constant 0 : index
    %c0_822 = arith.constant 0 : index
    %c0_823 = arith.constant 0 : index
    %1280 = vector.load %arg16[%c0_819, %c0_820, %c0_821, %c0_822, %c0_823] : memref<1x4x1x8x8xf32, #tpu.memory_space<vmem>>, vector<1x1x1x8x8xf32>
    %1281 = vector.shape_cast %1280 : vector<1x1x1x8x8xf32> to vector<8x8xf32>
    %c0_824 = arith.constant 0 : index
    %c1_825 = arith.constant 1 : index
    %c0_826 = arith.constant 0 : index
    %c0_827 = arith.constant 0 : index
    %c0_828 = arith.constant 0 : index
    %1282 = vector.load %arg16[%c0_824, %c1_825, %c0_826, %c0_827, %c0_828] : memref<1x4x1x8x8xf32, #tpu.memory_space<vmem>>, vector<1x1x1x8x8xf32>
    %1283 = vector.shape_cast %1282 : vector<1x1x1x8x8xf32> to vector<8x8xf32>
    %c0_829 = arith.constant 0 : index
    %c2_830 = arith.constant 2 : index
    %c0_831 = arith.constant 0 : index
    %c0_832 = arith.constant 0 : index
    %c0_833 = arith.constant 0 : index
    %1284 = vector.load %arg16[%c0_829, %c2_830, %c0_831, %c0_832, %c0_833] : memref<1x4x1x8x8xf32, #tpu.memory_space<vmem>>, vector<1x1x1x8x8xf32>
    %1285 = vector.shape_cast %1284 : vector<1x1x1x8x8xf32> to vector<8x8xf32>
    %c0_834 = arith.constant 0 : index
    %c3_835 = arith.constant 3 : index
    %c0_836 = arith.constant 0 : index
    %c0_837 = arith.constant 0 : index
    %c0_838 = arith.constant 0 : index
    %1286 = vector.load %arg16[%c0_834, %c3_835, %c0_836, %c0_837, %c0_838] : memref<1x4x1x8x8xf32, #tpu.memory_space<vmem>>, vector<1x1x1x8x8xf32>
    %1287 = vector.shape_cast %1286 : vector<1x1x1x8x8xf32> to vector<8x8xf32>
    %c0_839 = arith.constant 0 : index
    %c0_840 = arith.constant 0 : index
    %1288 = memref.load %arg12[%c0_839, %c0_840] : memref<2x4xf32, #tpu.memory_space<smem>>
    %1289 = vector.broadcast %1288 : f32 to vector<8x8xf32>
    %1290 = arith.mulf %1289, %1281 : vector<8x8xf32>
    %c0_841 = arith.constant 0 : index
    %c1_842 = arith.constant 1 : index
    %1291 = memref.load %arg12[%c0_841, %c1_842] : memref<2x4xf32, #tpu.memory_space<smem>>
    %1292 = vector.broadcast %1291 : f32 to vector<8x8xf32>
    %1293 = arith.mulf %1292, %1283 : vector<8x8xf32>
    %1294 = arith.addf %1290, %1293 : vector<8x8xf32>
    %c0_843 = arith.constant 0 : index
    %c2_844 = arith.constant 2 : index
    %1295 = memref.load %arg12[%c0_843, %c2_844] : memref<2x4xf32, #tpu.memory_space<smem>>
    %1296 = vector.broadcast %1295 : f32 to vector<8x8xf32>
    %1297 = arith.mulf %1296, %1285 : vector<8x8xf32>
    %1298 = arith.addf %1294, %1297 : vector<8x8xf32>
    %c0_845 = arith.constant 0 : index
    %c3_846 = arith.constant 3 : index
    %1299 = memref.load %arg12[%c0_845, %c3_846] : memref<2x4xf32, #tpu.memory_space<smem>>
    %1300 = vector.broadcast %1299 : f32 to vector<8x8xf32>
    %1301 = arith.mulf %1300, %1287 : vector<8x8xf32>
    %1302 = arith.addf %1298, %1301 : vector<8x8xf32>
    %c0_847 = arith.constant 0 : index
    %1303 = memref.load %arg13[%c0_847] : memref<2xf32, #tpu.memory_space<smem>>
    %1304 = vector.broadcast %1303 : f32 to vector<8x8xf32>
    %1305 = arith.addf %1302, %1304 : vector<8x8xf32>
    %c0_848 = arith.constant 0 : index
    %c1_849 = arith.constant 1 : index
    %c0_850 = arith.constant 0 : index
    %1306 = vector.load %arg25[%c0_848, %c1_849, %c0_850] : memref<2x10x8xf32, #tpu.memory_space<vmem>>, vector<1x8x8xf32>
    %1307 = vector.shape_cast %1306 : vector<1x8x8xf32> to vector<8x8xf32>
    %1308 = vector.shape_cast %1305 : vector<8x8xf32> to vector<1x8x8xf32>
    tpu.vector_store %arg25[%c0_848, %c1_849, %c0_850], %1308 {strides = array<i32>} : memref<2x10x8xf32, #tpu.memory_space<vmem>>, vector<1x8x8xf32>,
    %c1_851 = arith.constant 1 : index
    %c0_852 = arith.constant 0 : index
    %1309 = memref.load %arg12[%c1_851, %c0_852] : memref<2x4xf32, #tpu.memory_space<smem>>
    %1310 = vector.broadcast %1309 : f32 to vector<8x8xf32>
    %1311 = arith.mulf %1310, %1281 : vector<8x8xf32>
    %c1_853 = arith.constant 1 : index
    %c1_854 = arith.constant 1 : index
    %1312 = memref.load %arg12[%c1_853, %c1_854] : memref<2x4xf32, #tpu.memory_space<smem>>
    %1313 = vector.broadcast %1312 : f32 to vector<8x8xf32>
    %1314 = arith.mulf %1313, %1283 : vector<8x8xf32>
    %1315 = arith.addf %1311, %1314 : vector<8x8xf32>
    %c1_855 = arith.constant 1 : index
    %c2_856 = arith.constant 2 : index
    %1316 = memref.load %arg12[%c1_855, %c2_856] : memref<2x4xf32, #tpu.memory_space<smem>>
    %1317 = vector.broadcast %1316 : f32 to vector<8x8xf32>
    %1318 = arith.mulf %1317, %1285 : vector<8x8xf32>
    %1319 = arith.addf %1315, %1318 : vector<8x8xf32>
    %c1_857 = arith.constant 1 : index
    %c3_858 = arith.constant 3 : index
    %1320 = memref.load %arg12[%c1_857, %c3_858] : memref<2x4xf32, #tpu.memory_space<smem>>
    %1321 = vector.broadcast %1320 : f32 to vector<8x8xf32>
    %1322 = arith.mulf %1321, %1287 : vector<8x8xf32>
    %1323 = arith.addf %1319, %1322 : vector<8x8xf32>
    %c1_859 = arith.constant 1 : index
    %1324 = memref.load %arg13[%c1_859] : memref<2xf32, #tpu.memory_space<smem>>
    %1325 = vector.broadcast %1324 : f32 to vector<8x8xf32>
    %1326 = arith.addf %1323, %1325 : vector<8x8xf32>
    %c1_860 = arith.constant 1 : index
    %c1_861 = arith.constant 1 : index
    %c0_862 = arith.constant 0 : index
    %1327 = vector.load %arg25[%c1_860, %c1_861, %c0_862] : memref<2x10x8xf32, #tpu.memory_space<vmem>>, vector<1x8x8xf32>
    %1328 = vector.shape_cast %1327 : vector<1x8x8xf32> to vector<8x8xf32>
    %1329 = vector.shape_cast %1326 : vector<8x8xf32> to vector<1x8x8xf32>
    tpu.vector_store %arg25[%c1_860, %c1_861, %c0_862], %1329 {strides = array<i32>} : memref<2x10x8xf32, #tpu.memory_space<vmem>>, vector<1x8x8xf32>,
    %c0_863 = arith.constant 0 : index
    %c0_864 = arith.constant 0 : index
    %c0_865 = arith.constant 0 : index
    %1330 = vector.load %arg25[%c0_863, %c0_864, %c0_865] : memref<2x10x8xf32, #tpu.memory_space<vmem>>, vector<1x8x8xf32>
    %1331 = vector.shape_cast %1330 : vector<1x8x8xf32> to vector<8x8xf32>
    %c0_866 = arith.constant 0 : index
    %c0_867 = arith.constant 0 : index
    %1332 = memref.load %arg14[%c0_866, %c0_867] : memref<2x18xf32, #tpu.memory_space<smem>>
    %1333 = arith.mulf %1332, %1279 : f32
    %1334 = vector.broadcast %1333 : f32 to vector<8x8xf32>
    %1335 = arith.mulf %1334, %1331 : vector<8x8xf32>
    %1336 = arith.addf %1272, %1335 : vector<8x8xf32>
    %c1_868 = arith.constant 1 : index
    %c0_869 = arith.constant 0 : index
    %1337 = memref.load %arg14[%c1_868, %c0_869] : memref<2x18xf32, #tpu.memory_space<smem>>
    %1338 = arith.mulf %1337, %1279 : f32
    %1339 = vector.broadcast %1338 : f32 to vector<8x8xf32>
    %1340 = arith.mulf %1339, %1331 : vector<8x8xf32>
    %1341 = arith.addf %1273, %1340 : vector<8x8xf32>
    %c1_870 = arith.constant 1 : index
    %c0_871 = arith.constant 0 : index
    %c0_872 = arith.constant 0 : index
    %1342 = vector.load %arg25[%c1_870, %c0_871, %c0_872] : memref<2x10x8xf32, #tpu.memory_space<vmem>>, vector<1x8x8xf32>
    %1343 = vector.shape_cast %1342 : vector<1x8x8xf32> to vector<8x8xf32>
    %c0_873 = arith.constant 0 : index
    %c1_874 = arith.constant 1 : index
    %1344 = memref.load %arg14[%c0_873, %c1_874] : memref<2x18xf32, #tpu.memory_space<smem>>
    %1345 = arith.mulf %1344, %1279 : f32
    %1346 = vector.broadcast %1345 : f32 to vector<8x8xf32>
    %1347 = arith.mulf %1346, %1343 : vector<8x8xf32>
    %1348 = arith.addf %1336, %1347 : vector<8x8xf32>
    %c1_875 = arith.constant 1 : index
    %c1_876 = arith.constant 1 : index
    %1349 = memref.load %arg14[%c1_875, %c1_876] : memref<2x18xf32, #tpu.memory_space<smem>>
    %1350 = arith.mulf %1349, %1279 : f32
    %1351 = vector.broadcast %1350 : f32 to vector<8x8xf32>
    %1352 = arith.mulf %1351, %1343 : vector<8x8xf32>
    %1353 = arith.addf %1341, %1352 : vector<8x8xf32>
    %c0_877 = arith.constant 0 : index
    %c1_878 = arith.constant 1 : index
    %c0_879 = arith.constant 0 : index
    %1354 = vector.load %arg25[%c0_877, %c1_878, %c0_879] : memref<2x10x8xf32, #tpu.memory_space<vmem>>, vector<1x8x8xf32>
    %1355 = vector.shape_cast %1354 : vector<1x8x8xf32> to vector<8x8xf32>
    %c0_880 = arith.constant 0 : index
    %c2_881 = arith.constant 2 : index
    %1356 = memref.load %arg14[%c0_880, %c2_881] : memref<2x18xf32, #tpu.memory_space<smem>>
    %1357 = arith.mulf %1356, %1279 : f32
    %1358 = vector.broadcast %1357 : f32 to vector<8x8xf32>
    %1359 = arith.mulf %1358, %1355 : vector<8x8xf32>
    %1360 = arith.addf %1348, %1359 : vector<8x8xf32>
    %c1_882 = arith.constant 1 : index
    %c2_883 = arith.constant 2 : index
    %1361 = memref.load %arg14[%c1_882, %c2_883] : memref<2x18xf32, #tpu.memory_space<smem>>
    %1362 = arith.mulf %1361, %1279 : f32
    %1363 = vector.broadcast %1362 : f32 to vector<8x8xf32>
    %1364 = arith.mulf %1363, %1355 : vector<8x8xf32>
    %1365 = arith.addf %1353, %1364 : vector<8x8xf32>
    %c1_884 = arith.constant 1 : index
    %c1_885 = arith.constant 1 : index
    %c0_886 = arith.constant 0 : index
    %1366 = vector.load %arg25[%c1_884, %c1_885, %c0_886] : memref<2x10x8xf32, #tpu.memory_space<vmem>>, vector<1x8x8xf32>
    %1367 = vector.shape_cast %1366 : vector<1x8x8xf32> to vector<8x8xf32>
    %c0_887 = arith.constant 0 : index
    %c3_888 = arith.constant 3 : index
    %1368 = memref.load %arg14[%c0_887, %c3_888] : memref<2x18xf32, #tpu.memory_space<smem>>
    %1369 = arith.mulf %1368, %1279 : f32
    %1370 = vector.broadcast %1369 : f32 to vector<8x8xf32>
    %1371 = arith.mulf %1370, %1367 : vector<8x8xf32>
    %1372 = arith.addf %1360, %1371 : vector<8x8xf32>
    %c1_889 = arith.constant 1 : index
    %c3_890 = arith.constant 3 : index
    %1373 = memref.load %arg14[%c1_889, %c3_890] : memref<2x18xf32, #tpu.memory_space<smem>>
    %1374 = arith.mulf %1373, %1279 : f32
    %1375 = vector.broadcast %1374 : f32 to vector<8x8xf32>
    %1376 = arith.mulf %1375, %1367 : vector<8x8xf32>
    %1377 = arith.addf %1365, %1376 : vector<8x8xf32>
    %c0_891 = arith.constant 0 : index
    %c2_892 = arith.constant 2 : index
    %c0_893 = arith.constant 0 : index
    %1378 = vector.load %arg25[%c0_891, %c2_892, %c0_893] : memref<2x10x8xf32, #tpu.memory_space<vmem>>, vector<1x8x8xf32>
    %1379 = vector.shape_cast %1378 : vector<1x8x8xf32> to vector<8x8xf32>
    %c0_894 = arith.constant 0 : index
    %c4_895 = arith.constant 4 : index
    %1380 = memref.load %arg14[%c0_894, %c4_895] : memref<2x18xf32, #tpu.memory_space<smem>>
    %1381 = arith.mulf %1380, %1279 : f32
    %1382 = vector.broadcast %1381 : f32 to vector<8x8xf32>
    %1383 = arith.mulf %1382, %1379 : vector<8x8xf32>
    %1384 = arith.addf %1372, %1383 : vector<8x8xf32>
    %c1_896 = arith.constant 1 : index
    %c4_897 = arith.constant 4 : index
    %1385 = memref.load %arg14[%c1_896, %c4_897] : memref<2x18xf32, #tpu.memory_space<smem>>
    %1386 = arith.mulf %1385, %1279 : f32
    %1387 = vector.broadcast %1386 : f32 to vector<8x8xf32>
    %1388 = arith.mulf %1387, %1379 : vector<8x8xf32>
    %1389 = arith.addf %1377, %1388 : vector<8x8xf32>
    %c1_898 = arith.constant 1 : index
    %c2_899 = arith.constant 2 : index
    %c0_900 = arith.constant 0 : index
    %1390 = vector.load %arg25[%c1_898, %c2_899, %c0_900] : memref<2x10x8xf32, #tpu.memory_space<vmem>>, vector<1x8x8xf32>
    %1391 = vector.shape_cast %1390 : vector<1x8x8xf32> to vector<8x8xf32>
    %c0_901 = arith.constant 0 : index
    %c5_902 = arith.constant 5 : index
    %1392 = memref.load %arg14[%c0_901, %c5_902] : memref<2x18xf32, #tpu.memory_space<smem>>
    %1393 = arith.mulf %1392, %1279 : f32
    %1394 = vector.broadcast %1393 : f32 to vector<8x8xf32>
    %1395 = arith.mulf %1394, %1391 : vector<8x8xf32>
    %1396 = arith.addf %1384, %1395 : vector<8x8xf32>
    %c1_903 = arith.constant 1 : index
    %c5_904 = arith.constant 5 : index
    %1397 = memref.load %arg14[%c1_903, %c5_904] : memref<2x18xf32, #tpu.memory_space<smem>>
    %1398 = arith.mulf %1397, %1279 : f32
    %1399 = vector.broadcast %1398 : f32 to vector<8x8xf32>
    %1400 = arith.mulf %1399, %1391 : vector<8x8xf32>
    %1401 = arith.addf %1389, %1400 : vector<8x8xf32>
    %c0_i32_905 = arith.constant 0 : i32
    %1402 = arith.addi %arg1, %c0_i32_905 : i32
    %c0_i32_906 = arith.constant 0 : i32
    %1403 = arith.cmpi sge, %1402, %c0_i32_906 : i32
    %c0_i32_907 = arith.constant 0 : i32
    %1404 = arith.addi %arg1, %c0_i32_907 : i32
    %c7_i32_908 = arith.constant 7 : i32
    %1405 = arith.cmpi sle, %1404, %c7_i32_908 : i32
    %1406 = arith.andi %1403, %1405 : i1
    %cst_909 = arith.constant 1.000000e+00 : f32
    %cst_910 = arith.constant 0.000000e+00 : f32
    %1407 = arith.select %1406, %cst_909, %cst_910 : f32
    %c0_911 = arith.constant 0 : index
    %c0_912 = arith.constant 0 : index
    %c0_913 = arith.constant 0 : index
    %c0_914 = arith.constant 0 : index
    %c0_915 = arith.constant 0 : index
    %1408 = vector.load %arg17[%c0_911, %c0_912, %c0_913, %c0_914, %c0_915] : memref<1x4x1x8x8xf32, #tpu.memory_space<vmem>>, vector<1x1x1x8x8xf32>
    %1409 = vector.shape_cast %1408 : vector<1x1x1x8x8xf32> to vector<8x8xf32>
    %c0_916 = arith.constant 0 : index
    %c1_917 = arith.constant 1 : index
    %c0_918 = arith.constant 0 : index
    %c0_919 = arith.constant 0 : index
    %c0_920 = arith.constant 0 : index
    %1410 = vector.load %arg17[%c0_916, %c1_917, %c0_918, %c0_919, %c0_920] : memref<1x4x1x8x8xf32, #tpu.memory_space<vmem>>, vector<1x1x1x8x8xf32>
    %1411 = vector.shape_cast %1410 : vector<1x1x1x8x8xf32> to vector<8x8xf32>
    %c0_921 = arith.constant 0 : index
    %c2_922 = arith.constant 2 : index
    %c0_923 = arith.constant 0 : index
    %c0_924 = arith.constant 0 : index
    %c0_925 = arith.constant 0 : index
    %1412 = vector.load %arg17[%c0_921, %c2_922, %c0_923, %c0_924, %c0_925] : memref<1x4x1x8x8xf32, #tpu.memory_space<vmem>>, vector<1x1x1x8x8xf32>
    %1413 = vector.shape_cast %1412 : vector<1x1x1x8x8xf32> to vector<8x8xf32>
    %c0_926 = arith.constant 0 : index
    %c3_927 = arith.constant 3 : index
    %c0_928 = arith.constant 0 : index
    %c0_929 = arith.constant 0 : index
    %c0_930 = arith.constant 0 : index
    %1414 = vector.load %arg17[%c0_926, %c3_927, %c0_928, %c0_929, %c0_930] : memref<1x4x1x8x8xf32, #tpu.memory_space<vmem>>, vector<1x1x1x8x8xf32>
    %1415 = vector.shape_cast %1414 : vector<1x1x1x8x8xf32> to vector<8x8xf32>
    %c0_931 = arith.constant 0 : index
    %c0_932 = arith.constant 0 : index
    %1416 = memref.load %arg12[%c0_931, %c0_932] : memref<2x4xf32, #tpu.memory_space<smem>>
    %1417 = vector.broadcast %1416 : f32 to vector<8x8xf32>
    %1418 = arith.mulf %1417, %1409 : vector<8x8xf32>
    %c0_933 = arith.constant 0 : index
    %c1_934 = arith.constant 1 : index
    %1419 = memref.load %arg12[%c0_933, %c1_934] : memref<2x4xf32, #tpu.memory_space<smem>>
    %1420 = vector.broadcast %1419 : f32 to vector<8x8xf32>
    %1421 = arith.mulf %1420, %1411 : vector<8x8xf32>
    %1422 = arith.addf %1418, %1421 : vector<8x8xf32>
    %c0_935 = arith.constant 0 : index
    %c2_936 = arith.constant 2 : index
    %1423 = memref.load %arg12[%c0_935, %c2_936] : memref<2x4xf32, #tpu.memory_space<smem>>
    %1424 = vector.broadcast %1423 : f32 to vector<8x8xf32>
    %1425 = arith.mulf %1424, %1413 : vector<8x8xf32>
    %1426 = arith.addf %1422, %1425 : vector<8x8xf32>
    %c0_937 = arith.constant 0 : index
    %c3_938 = arith.constant 3 : index
    %1427 = memref.load %arg12[%c0_937, %c3_938] : memref<2x4xf32, #tpu.memory_space<smem>>
    %1428 = vector.broadcast %1427 : f32 to vector<8x8xf32>
    %1429 = arith.mulf %1428, %1415 : vector<8x8xf32>
    %1430 = arith.addf %1426, %1429 : vector<8x8xf32>
    %c0_939 = arith.constant 0 : index
    %1431 = memref.load %arg13[%c0_939] : memref<2xf32, #tpu.memory_space<smem>>
    %1432 = vector.broadcast %1431 : f32 to vector<8x8xf32>
    %1433 = arith.addf %1430, %1432 : vector<8x8xf32>
    %c0_940 = arith.constant 0 : index
    %c1_941 = arith.constant 1 : index
    %c0_942 = arith.constant 0 : index
    %1434 = vector.load %arg25[%c0_940, %c1_941, %c0_942] : memref<2x10x8xf32, #tpu.memory_space<vmem>>, vector<1x8x8xf32>
    %1435 = vector.shape_cast %1434 : vector<1x8x8xf32> to vector<8x8xf32>
    %1436 = vector.shape_cast %1433 : vector<8x8xf32> to vector<1x8x8xf32>
    tpu.vector_store %arg25[%c0_940, %c1_941, %c0_942], %1436 {strides = array<i32>} : memref<2x10x8xf32, #tpu.memory_space<vmem>>, vector<1x8x8xf32>,
    %c1_943 = arith.constant 1 : index
    %c0_944 = arith.constant 0 : index
    %1437 = memref.load %arg12[%c1_943, %c0_944] : memref<2x4xf32, #tpu.memory_space<smem>>
    %1438 = vector.broadcast %1437 : f32 to vector<8x8xf32>
    %1439 = arith.mulf %1438, %1409 : vector<8x8xf32>
    %c1_945 = arith.constant 1 : index
    %c1_946 = arith.constant 1 : index
    %1440 = memref.load %arg12[%c1_945, %c1_946] : memref<2x4xf32, #tpu.memory_space<smem>>
    %1441 = vector.broadcast %1440 : f32 to vector<8x8xf32>
    %1442 = arith.mulf %1441, %1411 : vector<8x8xf32>
    %1443 = arith.addf %1439, %1442 : vector<8x8xf32>
    %c1_947 = arith.constant 1 : index
    %c2_948 = arith.constant 2 : index
    %1444 = memref.load %arg12[%c1_947, %c2_948] : memref<2x4xf32, #tpu.memory_space<smem>>
    %1445 = vector.broadcast %1444 : f32 to vector<8x8xf32>
    %1446 = arith.mulf %1445, %1413 : vector<8x8xf32>
    %1447 = arith.addf %1443, %1446 : vector<8x8xf32>
    %c1_949 = arith.constant 1 : index
    %c3_950 = arith.constant 3 : index
    %1448 = memref.load %arg12[%c1_949, %c3_950] : memref<2x4xf32, #tpu.memory_space<smem>>
    %1449 = vector.broadcast %1448 : f32 to vector<8x8xf32>
    %1450 = arith.mulf %1449, %1415 : vector<8x8xf32>
    %1451 = arith.addf %1447, %1450 : vector<8x8xf32>
    %c1_951 = arith.constant 1 : index
    %1452 = memref.load %arg13[%c1_951] : memref<2xf32, #tpu.memory_space<smem>>
    %1453 = vector.broadcast %1452 : f32 to vector<8x8xf32>
    %1454 = arith.addf %1451, %1453 : vector<8x8xf32>
    %c1_952 = arith.constant 1 : index
    %c1_953 = arith.constant 1 : index
    %c0_954 = arith.constant 0 : index
    %1455 = vector.load %arg25[%c1_952, %c1_953, %c0_954] : memref<2x10x8xf32, #tpu.memory_space<vmem>>, vector<1x8x8xf32>
    %1456 = vector.shape_cast %1455 : vector<1x8x8xf32> to vector<8x8xf32>
    %1457 = vector.shape_cast %1454 : vector<8x8xf32> to vector<1x8x8xf32>
    tpu.vector_store %arg25[%c1_952, %c1_953, %c0_954], %1457 {strides = array<i32>} : memref<2x10x8xf32, #tpu.memory_space<vmem>>, vector<1x8x8xf32>,
    %c0_955 = arith.constant 0 : index
    %c0_956 = arith.constant 0 : index
    %c0_957 = arith.constant 0 : index
    %1458 = vector.load %arg25[%c0_955, %c0_956, %c0_957] : memref<2x10x8xf32, #tpu.memory_space<vmem>>, vector<1x8x8xf32>
    %1459 = vector.shape_cast %1458 : vector<1x8x8xf32> to vector<8x8xf32>
    %c0_958 = arith.constant 0 : index
    %c6_959 = arith.constant 6 : index
    %1460 = memref.load %arg14[%c0_958, %c6_959] : memref<2x18xf32, #tpu.memory_space<smem>>
    %1461 = arith.mulf %1460, %1407 : f32
    %1462 = vector.broadcast %1461 : f32 to vector<8x8xf32>
    %1463 = arith.mulf %1462, %1459 : vector<8x8xf32>
    %1464 = arith.addf %1396, %1463 : vector<8x8xf32>
    %c1_960 = arith.constant 1 : index
    %c6_961 = arith.constant 6 : index
    %1465 = memref.load %arg14[%c1_960, %c6_961] : memref<2x18xf32, #tpu.memory_space<smem>>
    %1466 = arith.mulf %1465, %1407 : f32
    %1467 = vector.broadcast %1466 : f32 to vector<8x8xf32>
    %1468 = arith.mulf %1467, %1459 : vector<8x8xf32>
    %1469 = arith.addf %1401, %1468 : vector<8x8xf32>
    %c1_962 = arith.constant 1 : index
    %c0_963 = arith.constant 0 : index
    %c0_964 = arith.constant 0 : index
    %1470 = vector.load %arg25[%c1_962, %c0_963, %c0_964] : memref<2x10x8xf32, #tpu.memory_space<vmem>>, vector<1x8x8xf32>
    %1471 = vector.shape_cast %1470 : vector<1x8x8xf32> to vector<8x8xf32>
    %c0_965 = arith.constant 0 : index
    %c7_966 = arith.constant 7 : index
    %1472 = memref.load %arg14[%c0_965, %c7_966] : memref<2x18xf32, #tpu.memory_space<smem>>
    %1473 = arith.mulf %1472, %1407 : f32
    %1474 = vector.broadcast %1473 : f32 to vector<8x8xf32>
    %1475 = arith.mulf %1474, %1471 : vector<8x8xf32>
    %1476 = arith.addf %1464, %1475 : vector<8x8xf32>
    %c1_967 = arith.constant 1 : index
    %c7_968 = arith.constant 7 : index
    %1477 = memref.load %arg14[%c1_967, %c7_968] : memref<2x18xf32, #tpu.memory_space<smem>>
    %1478 = arith.mulf %1477, %1407 : f32
    %1479 = vector.broadcast %1478 : f32 to vector<8x8xf32>
    %1480 = arith.mulf %1479, %1471 : vector<8x8xf32>
    %1481 = arith.addf %1469, %1480 : vector<8x8xf32>
    %c0_969 = arith.constant 0 : index
    %c1_970 = arith.constant 1 : index
    %c0_971 = arith.constant 0 : index
    %1482 = vector.load %arg25[%c0_969, %c1_970, %c0_971] : memref<2x10x8xf32, #tpu.memory_space<vmem>>, vector<1x8x8xf32>
    %1483 = vector.shape_cast %1482 : vector<1x8x8xf32> to vector<8x8xf32>
    %c0_972 = arith.constant 0 : index
    %c8_973 = arith.constant 8 : index
    %1484 = memref.load %arg14[%c0_972, %c8_973] : memref<2x18xf32, #tpu.memory_space<smem>>
    %1485 = arith.mulf %1484, %1407 : f32
    %1486 = vector.broadcast %1485 : f32 to vector<8x8xf32>
    %1487 = arith.mulf %1486, %1483 : vector<8x8xf32>
    %1488 = arith.addf %1476, %1487 : vector<8x8xf32>
    %c1_974 = arith.constant 1 : index
    %c8_975 = arith.constant 8 : index
    %1489 = memref.load %arg14[%c1_974, %c8_975] : memref<2x18xf32, #tpu.memory_space<smem>>
    %1490 = arith.mulf %1489, %1407 : f32
    %1491 = vector.broadcast %1490 : f32 to vector<8x8xf32>
    %1492 = arith.mulf %1491, %1483 : vector<8x8xf32>
    %1493 = arith.addf %1481, %1492 : vector<8x8xf32>
    %c1_976 = arith.constant 1 : index
    %c1_977 = arith.constant 1 : index
    %c0_978 = arith.constant 0 : index
    %1494 = vector.load %arg25[%c1_976, %c1_977, %c0_978] : memref<2x10x8xf32, #tpu.memory_space<vmem>>, vector<1x8x8xf32>
    %1495 = vector.shape_cast %1494 : vector<1x8x8xf32> to vector<8x8xf32>
    %c0_979 = arith.constant 0 : index
    %c9_980 = arith.constant 9 : index
    %1496 = memref.load %arg14[%c0_979, %c9_980] : memref<2x18xf32, #tpu.memory_space<smem>>
    %1497 = arith.mulf %1496, %1407 : f32
    %1498 = vector.broadcast %1497 : f32 to vector<8x8xf32>
    %1499 = arith.mulf %1498, %1495 : vector<8x8xf32>
    %1500 = arith.addf %1488, %1499 : vector<8x8xf32>
    %c1_981 = arith.constant 1 : index
    %c9_982 = arith.constant 9 : index
    %1501 = memref.load %arg14[%c1_981, %c9_982] : memref<2x18xf32, #tpu.memory_space<smem>>
    %1502 = arith.mulf %1501, %1407 : f32
    %1503 = vector.broadcast %1502 : f32 to vector<8x8xf32>
    %1504 = arith.mulf %1503, %1495 : vector<8x8xf32>
    %1505 = arith.addf %1493, %1504 : vector<8x8xf32>
    %c0_983 = arith.constant 0 : index
    %c2_984 = arith.constant 2 : index
    %c0_985 = arith.constant 0 : index
    %1506 = vector.load %arg25[%c0_983, %c2_984, %c0_985] : memref<2x10x8xf32, #tpu.memory_space<vmem>>, vector<1x8x8xf32>
    %1507 = vector.shape_cast %1506 : vector<1x8x8xf32> to vector<8x8xf32>
    %c0_986 = arith.constant 0 : index
    %c10_987 = arith.constant 10 : index
    %1508 = memref.load %arg14[%c0_986, %c10_987] : memref<2x18xf32, #tpu.memory_space<smem>>
    %1509 = arith.mulf %1508, %1407 : f32
    %1510 = vector.broadcast %1509 : f32 to vector<8x8xf32>
    %1511 = arith.mulf %1510, %1507 : vector<8x8xf32>
    %1512 = arith.addf %1500, %1511 : vector<8x8xf32>
    %c1_988 = arith.constant 1 : index
    %c10_989 = arith.constant 10 : index
    %1513 = memref.load %arg14[%c1_988, %c10_989] : memref<2x18xf32, #tpu.memory_space<smem>>
    %1514 = arith.mulf %1513, %1407 : f32
    %1515 = vector.broadcast %1514 : f32 to vector<8x8xf32>
    %1516 = arith.mulf %1515, %1507 : vector<8x8xf32>
    %1517 = arith.addf %1505, %1516 : vector<8x8xf32>
    %c1_990 = arith.constant 1 : index
    %c2_991 = arith.constant 2 : index
    %c0_992 = arith.constant 0 : index
    %1518 = vector.load %arg25[%c1_990, %c2_991, %c0_992] : memref<2x10x8xf32, #tpu.memory_space<vmem>>, vector<1x8x8xf32>
    %1519 = vector.shape_cast %1518 : vector<1x8x8xf32> to vector<8x8xf32>
    %c0_993 = arith.constant 0 : index
    %c11_994 = arith.constant 11 : index
    %1520 = memref.load %arg14[%c0_993, %c11_994] : memref<2x18xf32, #tpu.memory_space<smem>>
    %1521 = arith.mulf %1520, %1407 : f32
    %1522 = vector.broadcast %1521 : f32 to vector<8x8xf32>
    %1523 = arith.mulf %1522, %1519 : vector<8x8xf32>
    %1524 = arith.addf %1512, %1523 : vector<8x8xf32>
    %c1_995 = arith.constant 1 : index
    %c11_996 = arith.constant 11 : index
    %1525 = memref.load %arg14[%c1_995, %c11_996] : memref<2x18xf32, #tpu.memory_space<smem>>
    %1526 = arith.mulf %1525, %1407 : f32
    %1527 = vector.broadcast %1526 : f32 to vector<8x8xf32>
    %1528 = arith.mulf %1527, %1519 : vector<8x8xf32>
    %1529 = arith.addf %1517, %1528 : vector<8x8xf32>
    %c1_i32_997 = arith.constant 1 : i32
    %1530 = arith.addi %arg1, %c1_i32_997 : i32
    %c0_i32_998 = arith.constant 0 : i32
    %1531 = arith.cmpi sge, %1530, %c0_i32_998 : i32
    %c1_i32_999 = arith.constant 1 : i32
    %1532 = arith.addi %arg1, %c1_i32_999 : i32
    %c7_i32_1000 = arith.constant 7 : i32
    %1533 = arith.cmpi sle, %1532, %c7_i32_1000 : i32
    %1534 = arith.andi %1531, %1533 : i1
    %cst_1001 = arith.constant 1.000000e+00 : f32
    %cst_1002 = arith.constant 0.000000e+00 : f32
    %1535 = arith.select %1534, %cst_1001, %cst_1002 : f32
    %c0_1003 = arith.constant 0 : index
    %c0_1004 = arith.constant 0 : index
    %c0_1005 = arith.constant 0 : index
    %c0_1006 = arith.constant 0 : index
    %c0_1007 = arith.constant 0 : index
    %1536 = vector.load %arg18[%c0_1003, %c0_1004, %c0_1005, %c0_1006, %c0_1007] : memref<1x4x1x8x8xf32, #tpu.memory_space<vmem>>, vector<1x1x1x8x8xf32>
    %1537 = vector.shape_cast %1536 : vector<1x1x1x8x8xf32> to vector<8x8xf32>
    %c0_1008 = arith.constant 0 : index
    %c1_1009 = arith.constant 1 : index
    %c0_1010 = arith.constant 0 : index
    %c0_1011 = arith.constant 0 : index
    %c0_1012 = arith.constant 0 : index
    %1538 = vector.load %arg18[%c0_1008, %c1_1009, %c0_1010, %c0_1011, %c0_1012] : memref<1x4x1x8x8xf32, #tpu.memory_space<vmem>>, vector<1x1x1x8x8xf32>
    %1539 = vector.shape_cast %1538 : vector<1x1x1x8x8xf32> to vector<8x8xf32>
    %c0_1013 = arith.constant 0 : index
    %c2_1014 = arith.constant 2 : index
    %c0_1015 = arith.constant 0 : index
    %c0_1016 = arith.constant 0 : index
    %c0_1017 = arith.constant 0 : index
    %1540 = vector.load %arg18[%c0_1013, %c2_1014, %c0_1015, %c0_1016, %c0_1017] : memref<1x4x1x8x8xf32, #tpu.memory_space<vmem>>, vector<1x1x1x8x8xf32>
    %1541 = vector.shape_cast %1540 : vector<1x1x1x8x8xf32> to vector<8x8xf32>
    %c0_1018 = arith.constant 0 : index
    %c3_1019 = arith.constant 3 : index
    %c0_1020 = arith.constant 0 : index
    %c0_1021 = arith.constant 0 : index
    %c0_1022 = arith.constant 0 : index
    %1542 = vector.load %arg18[%c0_1018, %c3_1019, %c0_1020, %c0_1021, %c0_1022] : memref<1x4x1x8x8xf32, #tpu.memory_space<vmem>>, vector<1x1x1x8x8xf32>
    %1543 = vector.shape_cast %1542 : vector<1x1x1x8x8xf32> to vector<8x8xf32>
    %c0_1023 = arith.constant 0 : index
    %c0_1024 = arith.constant 0 : index
    %1544 = memref.load %arg12[%c0_1023, %c0_1024] : memref<2x4xf32, #tpu.memory_space<smem>>
    %1545 = vector.broadcast %1544 : f32 to vector<8x8xf32>
    %1546 = arith.mulf %1545, %1537 : vector<8x8xf32>
    %c0_1025 = arith.constant 0 : index
    %c1_1026 = arith.constant 1 : index
    %1547 = memref.load %arg12[%c0_1025, %c1_1026] : memref<2x4xf32, #tpu.memory_space<smem>>
    %1548 = vector.broadcast %1547 : f32 to vector<8x8xf32>
    %1549 = arith.mulf %1548, %1539 : vector<8x8xf32>
    %1550 = arith.addf %1546, %1549 : vector<8x8xf32>
    %c0_1027 = arith.constant 0 : index
    %c2_1028 = arith.constant 2 : index
    %1551 = memref.load %arg12[%c0_1027, %c2_1028] : memref<2x4xf32, #tpu.memory_space<smem>>
    %1552 = vector.broadcast %1551 : f32 to vector<8x8xf32>
    %1553 = arith.mulf %1552, %1541 : vector<8x8xf32>
    %1554 = arith.addf %1550, %1553 : vector<8x8xf32>
    %c0_1029 = arith.constant 0 : index
    %c3_1030 = arith.constant 3 : index
    %1555 = memref.load %arg12[%c0_1029, %c3_1030] : memref<2x4xf32, #tpu.memory_space<smem>>
    %1556 = vector.broadcast %1555 : f32 to vector<8x8xf32>
    %1557 = arith.mulf %1556, %1543 : vector<8x8xf32>
    %1558 = arith.addf %1554, %1557 : vector<8x8xf32>
    %c0_1031 = arith.constant 0 : index
    %1559 = memref.load %arg13[%c0_1031] : memref<2xf32, #tpu.memory_space<smem>>
    %1560 = vector.broadcast %1559 : f32 to vector<8x8xf32>
    %1561 = arith.addf %1558, %1560 : vector<8x8xf32>
    %c0_1032 = arith.constant 0 : index
    %c1_1033 = arith.constant 1 : index
    %c0_1034 = arith.constant 0 : index
    %1562 = vector.load %arg25[%c0_1032, %c1_1033, %c0_1034] : memref<2x10x8xf32, #tpu.memory_space<vmem>>, vector<1x8x8xf32>
    %1563 = vector.shape_cast %1562 : vector<1x8x8xf32> to vector<8x8xf32>
    %1564 = vector.shape_cast %1561 : vector<8x8xf32> to vector<1x8x8xf32>
    tpu.vector_store %arg25[%c0_1032, %c1_1033, %c0_1034], %1564 {strides = array<i32>} : memref<2x10x8xf32, #tpu.memory_space<vmem>>, vector<1x8x8xf32>,
    %c1_1035 = arith.constant 1 : index
    %c0_1036 = arith.constant 0 : index
    %1565 = memref.load %arg12[%c1_1035, %c0_1036] : memref<2x4xf32, #tpu.memory_space<smem>>
    %1566 = vector.broadcast %1565 : f32 to vector<8x8xf32>
    %1567 = arith.mulf %1566, %1537 : vector<8x8xf32>
    %c1_1037 = arith.constant 1 : index
    %c1_1038 = arith.constant 1 : index
    %1568 = memref.load %arg12[%c1_1037, %c1_1038] : memref<2x4xf32, #tpu.memory_space<smem>>
    %1569 = vector.broadcast %1568 : f32 to vector<8x8xf32>
    %1570 = arith.mulf %1569, %1539 : vector<8x8xf32>
    %1571 = arith.addf %1567, %1570 : vector<8x8xf32>
    %c1_1039 = arith.constant 1 : index
    %c2_1040 = arith.constant 2 : index
    %1572 = memref.load %arg12[%c1_1039, %c2_1040] : memref<2x4xf32, #tpu.memory_space<smem>>
    %1573 = vector.broadcast %1572 : f32 to vector<8x8xf32>
    %1574 = arith.mulf %1573, %1541 : vector<8x8xf32>
    %1575 = arith.addf %1571, %1574 : vector<8x8xf32>
    %c1_1041 = arith.constant 1 : index
    %c3_1042 = arith.constant 3 : index
    %1576 = memref.load %arg12[%c1_1041, %c3_1042] : memref<2x4xf32, #tpu.memory_space<smem>>
    %1577 = vector.broadcast %1576 : f32 to vector<8x8xf32>
    %1578 = arith.mulf %1577, %1543 : vector<8x8xf32>
    %1579 = arith.addf %1575, %1578 : vector<8x8xf32>
    %c1_1043 = arith.constant 1 : index
    %1580 = memref.load %arg13[%c1_1043] : memref<2xf32, #tpu.memory_space<smem>>
    %1581 = vector.broadcast %1580 : f32 to vector<8x8xf32>
    %1582 = arith.addf %1579, %1581 : vector<8x8xf32>
    %c1_1044 = arith.constant 1 : index
    %c1_1045 = arith.constant 1 : index
    %c0_1046 = arith.constant 0 : index
    %1583 = vector.load %arg25[%c1_1044, %c1_1045, %c0_1046] : memref<2x10x8xf32, #tpu.memory_space<vmem>>, vector<1x8x8xf32>
    %1584 = vector.shape_cast %1583 : vector<1x8x8xf32> to vector<8x8xf32>
    %1585 = vector.shape_cast %1582 : vector<8x8xf32> to vector<1x8x8xf32>
    tpu.vector_store %arg25[%c1_1044, %c1_1045, %c0_1046], %1585 {strides = array<i32>} : memref<2x10x8xf32, #tpu.memory_space<vmem>>, vector<1x8x8xf32>,
    %c0_1047 = arith.constant 0 : index
    %c0_1048 = arith.constant 0 : index
    %c0_1049 = arith.constant 0 : index
    %1586 = vector.load %arg25[%c0_1047, %c0_1048, %c0_1049] : memref<2x10x8xf32, #tpu.memory_space<vmem>>, vector<1x8x8xf32>
    %1587 = vector.shape_cast %1586 : vector<1x8x8xf32> to vector<8x8xf32>
    %c0_1050 = arith.constant 0 : index
    %c12_1051 = arith.constant 12 : index
    %1588 = memref.load %arg14[%c0_1050, %c12_1051] : memref<2x18xf32, #tpu.memory_space<smem>>
    %1589 = arith.mulf %1588, %1535 : f32
    %1590 = vector.broadcast %1589 : f32 to vector<8x8xf32>
    %1591 = arith.mulf %1590, %1587 : vector<8x8xf32>
    %1592 = arith.addf %1524, %1591 : vector<8x8xf32>
    %c1_1052 = arith.constant 1 : index
    %c12_1053 = arith.constant 12 : index
    %1593 = memref.load %arg14[%c1_1052, %c12_1053] : memref<2x18xf32, #tpu.memory_space<smem>>
    %1594 = arith.mulf %1593, %1535 : f32
    %1595 = vector.broadcast %1594 : f32 to vector<8x8xf32>
    %1596 = arith.mulf %1595, %1587 : vector<8x8xf32>
    %1597 = arith.addf %1529, %1596 : vector<8x8xf32>
    %c1_1054 = arith.constant 1 : index
    %c0_1055 = arith.constant 0 : index
    %c0_1056 = arith.constant 0 : index
    %1598 = vector.load %arg25[%c1_1054, %c0_1055, %c0_1056] : memref<2x10x8xf32, #tpu.memory_space<vmem>>, vector<1x8x8xf32>
    %1599 = vector.shape_cast %1598 : vector<1x8x8xf32> to vector<8x8xf32>
    %c0_1057 = arith.constant 0 : index
    %c13_1058 = arith.constant 13 : index
    %1600 = memref.load %arg14[%c0_1057, %c13_1058] : memref<2x18xf32, #tpu.memory_space<smem>>
    %1601 = arith.mulf %1600, %1535 : f32
    %1602 = vector.broadcast %1601 : f32 to vector<8x8xf32>
    %1603 = arith.mulf %1602, %1599 : vector<8x8xf32>
    %1604 = arith.addf %1592, %1603 : vector<8x8xf32>
    %c1_1059 = arith.constant 1 : index
    %c13_1060 = arith.constant 13 : index
    %1605 = memref.load %arg14[%c1_1059, %c13_1060] : memref<2x18xf32, #tpu.memory_space<smem>>
    %1606 = arith.mulf %1605, %1535 : f32
    %1607 = vector.broadcast %1606 : f32 to vector<8x8xf32>
    %1608 = arith.mulf %1607, %1599 : vector<8x8xf32>
    %1609 = arith.addf %1597, %1608 : vector<8x8xf32>
    %c0_1061 = arith.constant 0 : index
    %c1_1062 = arith.constant 1 : index
    %c0_1063 = arith.constant 0 : index
    %1610 = vector.load %arg25[%c0_1061, %c1_1062, %c0_1063] : memref<2x10x8xf32, #tpu.memory_space<vmem>>, vector<1x8x8xf32>
    %1611 = vector.shape_cast %1610 : vector<1x8x8xf32> to vector<8x8xf32>
    %c0_1064 = arith.constant 0 : index
    %c14_1065 = arith.constant 14 : index
    %1612 = memref.load %arg14[%c0_1064, %c14_1065] : memref<2x18xf32, #tpu.memory_space<smem>>
    %1613 = arith.mulf %1612, %1535 : f32
    %1614 = vector.broadcast %1613 : f32 to vector<8x8xf32>
    %1615 = arith.mulf %1614, %1611 : vector<8x8xf32>
    %1616 = arith.addf %1604, %1615 : vector<8x8xf32>
    %c1_1066 = arith.constant 1 : index
    %c14_1067 = arith.constant 14 : index
    %1617 = memref.load %arg14[%c1_1066, %c14_1067] : memref<2x18xf32, #tpu.memory_space<smem>>
    %1618 = arith.mulf %1617, %1535 : f32
    %1619 = vector.broadcast %1618 : f32 to vector<8x8xf32>
    %1620 = arith.mulf %1619, %1611 : vector<8x8xf32>
    %1621 = arith.addf %1609, %1620 : vector<8x8xf32>
    %c1_1068 = arith.constant 1 : index
    %c1_1069 = arith.constant 1 : index
    %c0_1070 = arith.constant 0 : index
    %1622 = vector.load %arg25[%c1_1068, %c1_1069, %c0_1070] : memref<2x10x8xf32, #tpu.memory_space<vmem>>, vector<1x8x8xf32>
    %1623 = vector.shape_cast %1622 : vector<1x8x8xf32> to vector<8x8xf32>
    %c0_1071 = arith.constant 0 : index
    %c15_1072 = arith.constant 15 : index
    %1624 = memref.load %arg14[%c0_1071, %c15_1072] : memref<2x18xf32, #tpu.memory_space<smem>>
    %1625 = arith.mulf %1624, %1535 : f32
    %1626 = vector.broadcast %1625 : f32 to vector<8x8xf32>
    %1627 = arith.mulf %1626, %1623 : vector<8x8xf32>
    %1628 = arith.addf %1616, %1627 : vector<8x8xf32>
    %c1_1073 = arith.constant 1 : index
    %c15_1074 = arith.constant 15 : index
    %1629 = memref.load %arg14[%c1_1073, %c15_1074] : memref<2x18xf32, #tpu.memory_space<smem>>
    %1630 = arith.mulf %1629, %1535 : f32
    %1631 = vector.broadcast %1630 : f32 to vector<8x8xf32>
    %1632 = arith.mulf %1631, %1623 : vector<8x8xf32>
    %1633 = arith.addf %1621, %1632 : vector<8x8xf32>
    %c0_1075 = arith.constant 0 : index
    %c2_1076 = arith.constant 2 : index
    %c0_1077 = arith.constant 0 : index
    %1634 = vector.load %arg25[%c0_1075, %c2_1076, %c0_1077] : memref<2x10x8xf32, #tpu.memory_space<vmem>>, vector<1x8x8xf32>
    %1635 = vector.shape_cast %1634 : vector<1x8x8xf32> to vector<8x8xf32>
    %c0_1078 = arith.constant 0 : index
    %c16_1079 = arith.constant 16 : index
    %1636 = memref.load %arg14[%c0_1078, %c16_1079] : memref<2x18xf32, #tpu.memory_space<smem>>
    %1637 = arith.mulf %1636, %1535 : f32
    %1638 = vector.broadcast %1637 : f32 to vector<8x8xf32>
    %1639 = arith.mulf %1638, %1635 : vector<8x8xf32>
    %1640 = arith.addf %1628, %1639 : vector<8x8xf32>
    %c1_1080 = arith.constant 1 : index
    %c16_1081 = arith.constant 16 : index
    %1641 = memref.load %arg14[%c1_1080, %c16_1081] : memref<2x18xf32, #tpu.memory_space<smem>>
    %1642 = arith.mulf %1641, %1535 : f32
    %1643 = vector.broadcast %1642 : f32 to vector<8x8xf32>
    %1644 = arith.mulf %1643, %1635 : vector<8x8xf32>
    %1645 = arith.addf %1633, %1644 : vector<8x8xf32>
    %c1_1082 = arith.constant 1 : index
    %c2_1083 = arith.constant 2 : index
    %c0_1084 = arith.constant 0 : index
    %1646 = vector.load %arg25[%c1_1082, %c2_1083, %c0_1084] : memref<2x10x8xf32, #tpu.memory_space<vmem>>, vector<1x8x8xf32>
    %1647 = vector.shape_cast %1646 : vector<1x8x8xf32> to vector<8x8xf32>
    %c0_1085 = arith.constant 0 : index
    %c17_1086 = arith.constant 17 : index
    %1648 = memref.load %arg14[%c0_1085, %c17_1086] : memref<2x18xf32, #tpu.memory_space<smem>>
    %1649 = arith.mulf %1648, %1535 : f32
    %1650 = vector.broadcast %1649 : f32 to vector<8x8xf32>
    %1651 = arith.mulf %1650, %1647 : vector<8x8xf32>
    %1652 = arith.addf %1640, %1651 : vector<8x8xf32>
    %c1_1087 = arith.constant 1 : index
    %c17_1088 = arith.constant 17 : index
    %1653 = memref.load %arg14[%c1_1087, %c17_1088] : memref<2x18xf32, #tpu.memory_space<smem>>
    %1654 = arith.mulf %1653, %1535 : f32
    %1655 = vector.broadcast %1654 : f32 to vector<8x8xf32>
    %1656 = arith.mulf %1655, %1647 : vector<8x8xf32>
    %1657 = arith.addf %1645, %1656 : vector<8x8xf32>
    %c0_1089 = arith.constant 0 : index
    %1658 = memref.load %arg15[%c0_1089] : memref<2xf32, #tpu.memory_space<smem>>
    %1659 = vector.broadcast %1658 : f32 to vector<8x8xf32>
    %1660 = arith.addf %1652, %1659 : vector<8x8xf32>
    %cst_1090 = arith.constant 0.000000e+00 : f32
    %1661 = vector.broadcast %cst_1090 : f32 to vector<8x8xf32>
    %1662 = arith.maximumf %1660, %1661 : vector<8x8xf32>
    %c1_1091 = arith.constant 1 : index
    %1663 = memref.load %arg15[%c1_1091] : memref<2xf32, #tpu.memory_space<smem>>
    %1664 = vector.broadcast %1663 : f32 to vector<8x8xf32>
    %1665 = arith.addf %1657, %1664 : vector<8x8xf32>
    %cst_1092 = arith.constant 0.000000e+00 : f32
    %1666 = vector.broadcast %cst_1092 : f32 to vector<8x8xf32>
    %1667 = arith.maximumf %1665, %1666 : vector<8x8xf32>
    %c0_1093 = arith.constant 0 : index
    %c0_1094 = arith.constant 0 : index
    %c0_1095 = arith.constant 0 : index
    %c0_1096 = arith.constant 0 : index
    %c0_1097 = arith.constant 0 : index
    %1668 = vector.load %arg22[%c0_1093, %c0_1094, %c0_1095, %c0_1096, %c0_1097] : memref<1x2x1x8x8xf32, #tpu.memory_space<vmem>>, vector<1x1x1x8x8xf32>
    %1669 = vector.shape_cast %1668 : vector<1x1x1x8x8xf32> to vector<8x8xf32>
    %1670 = vector.shape_cast %1662 : vector<8x8xf32> to vector<1x1x1x8x8xf32>
    tpu.vector_store %arg22[%c0_1093, %c0_1094, %c0_1095, %c0_1096, %c0_1097], %1670 {strides = array<i32>} : memref<1x2x1x8x8xf32, #tpu.memory_space<vmem>>, vector<1x1x1x8x8xf32>,
    %c0_1098 = arith.constant 0 : index
    %c1_1099 = arith.constant 1 : index
    %c0_1100 = arith.constant 0 : index
    %c0_1101 = arith.constant 0 : index
    %c0_1102 = arith.constant 0 : index
    %1671 = vector.load %arg22[%c0_1098, %c1_1099, %c0_1100, %c0_1101, %c0_1102] : memref<1x2x1x8x8xf32, #tpu.memory_space<vmem>>, vector<1x1x1x8x8xf32>
    %1672 = vector.shape_cast %1671 : vector<1x1x1x8x8xf32> to vector<8x8xf32>
    %1673 = vector.shape_cast %1667 : vector<8x8xf32> to vector<1x1x1x8x8xf32>
    tpu.vector_store %arg22[%c0_1098, %c1_1099, %c0_1100, %c0_1101, %c0_1102], %1673 {strides = array<i32>} : memref<1x2x1x8x8xf32, #tpu.memory_space<vmem>>, vector<1x1x1x8x8xf32>,
    return
  }
  func.func @transform_0(%arg0: i32, %arg1: i32) -> (i32, i32) {
    %c0_i32 = arith.constant 0 : i32
    %c0_i32_0 = arith.constant 0 : i32
    %c0_i32_1 = arith.constant 0 : i32
    return %c0_i32, %c0_i32_0 : i32, i32
  }
  func.func @transform_1(%arg0: i32, %arg1: i32) -> i32 {
    %c0_i32 = arith.constant 0 : i32
    %c0_i32_0 = arith.constant 0 : i32
    return %c0_i32 : i32
  }
  func.func @transform_2(%arg0: i32, %arg1: i32) -> (i32, i32) {
    %c0_i32 = arith.constant 0 : i32
    %c0_i32_0 = arith.constant 0 : i32
    %c0_i32_1 = arith.constant 0 : i32
    return %c0_i32, %c0_i32_0 : i32, i32
  }
  func.func @transform_3(%arg0: i32, %arg1: i32) -> i32 {
    %c0_i32 = arith.constant 0 : i32
    %c0_i32_0 = arith.constant 0 : i32
    return %c0_i32 : i32
  }
  func.func @transform_4(%arg0: i32, %arg1: i32) -> (i32, i32) {
    %c0_i32 = arith.constant 0 : i32
    %c0_i32_0 = arith.constant 0 : i32
    %c0_i32_1 = arith.constant 0 : i32
    return %c0_i32, %c0_i32_0 : i32, i32
  }
  func.func @transform_5(%arg0: i32, %arg1: i32) -> i32 {
    %c0_i32 = arith.constant 0 : i32
    %c0_i32_0 = arith.constant 0 : i32
    return %c0_i32 : i32
  }
  func.func @transform_6(%arg0: i32, %arg1: i32) -> (i32, i32) {
    %c0_i32 = arith.constant 0 : i32
    %c0_i32_0 = arith.constant 0 : i32
    %c0_i32_1 = arith.constant 0 : i32
    return %c0_i32, %c0_i32_0 : i32, i32
  }
  func.func @transform_7(%arg0: i32, %arg1: i32) -> i32 {
    %c0_i32 = arith.constant 0 : i32
    %c0_i32_0 = arith.constant 0 : i32
    return %c0_i32 : i32
  }
  func.func @transform_8(%arg0: i32, %arg1: i32) -> (i32, i32) {
    %c0_i32 = arith.constant 0 : i32
    %c0_i32_0 = arith.constant 0 : i32
    %c0_i32_1 = arith.constant 0 : i32
    return %c0_i32, %c0_i32_0 : i32, i32
  }
  func.func @transform_9(%arg0: i32, %arg1: i32) -> i32 {
    %c0_i32 = arith.constant 0 : i32
    %c0_i32_0 = arith.constant 0 : i32
    return %c0_i32 : i32
  }
  func.func @transform_10(%arg0: i32, %arg1: i32) -> (i32, i32) {
    %c0_i32 = arith.constant 0 : i32
    %c0_i32_0 = arith.constant 0 : i32
    %c0_i32_1 = arith.constant 0 : i32
    return %c0_i32, %c0_i32_0 : i32, i32
  }
  func.func @transform_11(%arg0: i32, %arg1: i32) -> i32 {
    %c0_i32 = arith.constant 0 : i32
    %c0_i32_0 = arith.constant 0 : i32
    return %c0_i32 : i32
  }
  func.func @transform_12(%arg0: i32, %arg1: i32) -> (i32, i32) {
    %c0_i32 = arith.constant 0 : i32
    %c0_i32_0 = arith.constant 0 : i32
    %c0_i32_1 = arith.constant 0 : i32
    return %c0_i32, %c0_i32_0 : i32, i32
  }
  func.func @transform_13(%arg0: i32, %arg1: i32) -> i32 {
    %c0_i32 = arith.constant 0 : i32
    %c0_i32_0 = arith.constant 0 : i32
    return %c0_i32 : i32
  }
  func.func @transform_14(%arg0: i32, %arg1: i32) -> (i32, i32, i32, i32, i32) {
    %c-1_i32 = arith.constant -1 : i32
    %0 = arith.addi %arg1, %c-1_i32 : i32
    %c0_i32 = arith.constant 0 : i32
    %1 = arith.maxsi %0, %c0_i32 : i32
    %c7_i32 = arith.constant 7 : i32
    %2 = arith.minsi %1, %c7_i32 : i32
    %c0_i32_0 = arith.constant 0 : i32
    %c0_i32_1 = arith.constant 0 : i32
    %c0_i32_2 = arith.constant 0 : i32
    %c0_i32_3 = arith.constant 0 : i32
    return %arg0, %c0_i32_0, %2, %c0_i32_1, %c0_i32_2 : i32, i32, i32, i32, i32
  }
  func.func @transform_15(%arg0: i32, %arg1: i32) -> (i32, i32, i32, i32, i32) {
    %c0_i32 = arith.constant 0 : i32
    %0 = arith.addi %arg1, %c0_i32 : i32
    %c0_i32_0 = arith.constant 0 : i32
    %1 = arith.maxsi %0, %c0_i32_0 : i32
    %c7_i32 = arith.constant 7 : i32
    %2 = arith.minsi %1, %c7_i32 : i32
    %c0_i32_1 = arith.constant 0 : i32
    %c0_i32_2 = arith.constant 0 : i32
    %c0_i32_3 = arith.constant 0 : i32
    %c0_i32_4 = arith.constant 0 : i32
    return %arg0, %c0_i32_1, %2, %c0_i32_2, %c0_i32_3 : i32, i32, i32, i32, i32
  }
  func.func @transform_16(%arg0: i32, %arg1: i32) -> (i32, i32, i32, i32, i32) {
    %c1_i32 = arith.constant 1 : i32
    %0 = arith.addi %arg1, %c1_i32 : i32
    %c0_i32 = arith.constant 0 : i32
    %1 = arith.maxsi %0, %c0_i32 : i32
    %c7_i32 = arith.constant 7 : i32
    %2 = arith.minsi %1, %c7_i32 : i32
    %c0_i32_0 = arith.constant 0 : i32
    %c0_i32_1 = arith.constant 0 : i32
    %c0_i32_2 = arith.constant 0 : i32
    %c0_i32_3 = arith.constant 0 : i32
    return %arg0, %c0_i32_0, %2, %c0_i32_1, %c0_i32_2 : i32, i32, i32, i32, i32
  }
  func.func @transform_17(%arg0: i32, %arg1: i32) -> (i32, i32, i32, i32, i32) {
    %c0_i32 = arith.constant 0 : i32
    %c0_i32_0 = arith.constant 0 : i32
    %c0_i32_1 = arith.constant 0 : i32
    %c0_i32_2 = arith.constant 0 : i32
    return %arg0, %c0_i32, %arg1, %c0_i32_0, %c0_i32_1 : i32, i32, i32, i32, i32
  }
  func.func @transform_18(%arg0: i32, %arg1: i32) -> (i32, i32, i32, i32, i32) {
    %c0_i32 = arith.constant 0 : i32
    %c0_i32_0 = arith.constant 0 : i32
    %c0_i32_1 = arith.constant 0 : i32
    %c0_i32_2 = arith.constant 0 : i32
    return %arg0, %c0_i32, %arg1, %c0_i32_0, %c0_i32_1 : i32, i32, i32, i32, i32
  }
  func.func @transform_19(%arg0: i32, %arg1: i32) -> (i32, i32, i32, i32, i32) {
    %c0_i32 = arith.constant 0 : i32
    %c0_i32_0 = arith.constant 0 : i32
    %c0_i32_1 = arith.constant 0 : i32
    %c0_i32_2 = arith.constant 0 : i32
    return %arg0, %c0_i32, %arg1, %c0_i32_0, %c0_i32_1 : i32, i32, i32, i32, i32
  }
  func.func @transform_20(%arg0: i32, %arg1: i32) -> (i32, i32, i32, i32, i32) {
    %c0_i32 = arith.constant 0 : i32
    %c0_i32_0 = arith.constant 0 : i32
    %c0_i32_1 = arith.constant 0 : i32
    %c0_i32_2 = arith.constant 0 : i32
    return %arg0, %c0_i32, %arg1, %c0_i32_0, %c0_i32_1 : i32, i32, i32, i32, i32
  }
}

</mosaic_0001>

<llo_original>
// kernel: tpu_custom_call.1
$region0: #{tpu_custom_call.1}
  #allocation0 [shape = 'u32[]', space=smem, size = 0x4, offset = 0x4, fixed_abs, tag = 'smem constant byte address 0x4 - core index']
  #allocation1 [shape = 'u32[72,128]{1,0:T(1,128)}', space=vmem, size = 0x9000, scoped, tag = 'internal scratch']
  #allocation2 [shape = 'f32[2,10,8]{2,1,0:T(8,128)}', space=vmem, size = 0x4000, scoped, tag = 'scratch operand']
  #allocation3 [shape = 'f32[2,10,10]{2,1,0:T(8,128)}', space=vmem, size = 0x4000, scoped, tag = 'scratch operand']
  #allocation4 [shape = 'f32[2,10,8]{2,1,0:T(8,128)}', space=vmem, size = 0x4000, scoped, tag = 'scratch operand']
  %s0 = inlined_call_operand.hbm [shape: f32[2,4], index: 0, kind: input, shape index: {}]
  %s1 = inlined_call_operand.hbm [shape: f32[2], index: 1, kind: input, shape index: {}]
  %s2 = inlined_call_operand.hbm [shape: f32[2,18], index: 2, kind: input, shape index: {}]
  %s3 = inlined_call_operand.hbm [shape: f32[2], index: 3, kind: input, shape index: {}]
  %s4 = inlined_call_operand.vmem [shape: f32[2,2], index: 4, kind: input, shape index: {}]
  %s5 = inlined_call_operand.hbm [shape: f32[2], index: 5, kind: input, shape index: {}]
  %s6 = inlined_call_operand.vmem [shape: f32[2,4], index: 6, kind: input, shape index: {}]
  %s7 = inlined_call_operand.hbm [shape: f32[2], index: 7, kind: input, shape index: {}]
  %s8 = inlined_call_operand.vmem [shape: f32[2,54], index: 8, kind: input, shape index: {}]
  %s9 = inlined_call_operand.hbm [shape: f32[2], index: 9, kind: input, shape index: {}]
  %s10 = inlined_call_operand.vmem [shape: f32[2,4], index: 10, kind: input, shape index: {}]
  %s11 = inlined_call_operand.hbm [shape: f32[2], index: 11, kind: input, shape index: {}]
  %s12 = inlined_call_operand.vmem [shape: f32[2,18], index: 12, kind: input, shape index: {}]
  %s13 = inlined_call_operand.vmem [shape: f32[2], index: 13, kind: input, shape index: {}]
  %s14 = inlined_call_operand.hbm [shape: f32[2,4,8,8,8], index: 14, kind: input, shape index: {}]
  %s15 = inlined_call_operand.hbm [shape: f32[2,4,8,8,8], index: 15, kind: input, shape index: {}]
  %s16 = inlined_call_operand.hbm [shape: f32[2,4,8,8,8], index: 16, kind: input, shape index: {}]
  %s17 = inlined_call_operand.hbm [shape: f32[2,2,8,8,8], index: 17, kind: output, shape index: {0}]
  %s18 = inlined_call_operand.hbm [shape: f32[2,2,8,8,8], index: 18, kind: output, shape index: {1}]
  %s19 = inlined_call_operand.hbm [shape: f32[2,2,8,8,8], index: 19, kind: output, shape index: {2}]
  %s20 = inlined_call_operand.hbm [shape: f32[2,2,8,8,8], index: 20, kind: output, shape index: {3}]
  %21 = xla_tuple %s17, %s18, %s19, %s20
  %s22 = sld [smem:[#allocation0]]
  $region193: #{tpu_custom_call.1} parent=0
    _
  %s24 = ssub.s32 1, %s22
  %s25 = scalar_select 0, %s24, %s22
  $region1: #{tpu_custom_call.1} parent=0
    #allocation5 [shape = 'u8[1024]{0}', space=smem, size = 0x400, scoped, tag = 'input window, operand 0, single buffered']
    #allocation6 [shape = 's32[2]{0}', space=sflag, size = 0x8, scoped, tag = 'scoped memory for tpu_custom_call.1']
    #allocation7 [shape = 's32[2]{0}', space=sflag, size = 0x8, scoped, tag = 'scoped memory for tpu_custom_call.1']
    #allocation8 [shape = 's32[2]{0}', space=sflag, size = 0x8, scoped, tag = 'scoped memory for tpu_custom_call.1']
    #allocation9 [shape = 's32[2]{0}', space=sflag, size = 0x8, scoped, tag = 'scoped memory for tpu_custom_call.1']
    #allocation10 [shape = 'u8[512]{0}', space=smem, size = 0x200, scoped, tag = 'input window, operand 1, single buffered']
    #allocation11 [shape = 's32[1]{0}', space=sflag, size = 0x4, scoped, tag = 'scoped memory for tpu_custom_call.1']
    #allocation12 [shape = 'u8[1024]{0}', space=smem, size = 0x400, scoped, tag = 'input window, operand 2, single buffered']
    #allocation13 [shape = 'u8[512]{0}', space=smem, size = 0x200, scoped, tag = 'input window, operand 3, single buffered']
    #allocation14 [shape = 's32[1]{0}', space=sflag, size = 0x4, scoped, tag = 'scoped memory for tpu_custom_call.1']
    #allocation15 [shape = 'u8[1024]{0}', space=smem, size = 0x400, scoped, tag = 'input window, operand 4, single buffered']
    #allocation16 [shape = 'u8[512]{0}', space=smem, size = 0x200, scoped, tag = 'input window, operand 5, single buffered']
    #allocation17 [shape = 'u8[1024]{0}', space=smem, size = 0x400, scoped, tag = 'input window, operand 6, single buffered']
    #allocation18 [shape = 's32[1]{0}', space=sflag, size = 0x4, scoped, tag = 'scoped memory for tpu_custom_call.1']
    #allocation19 [shape = 'u8[512]{0}', space=smem, size = 0x200, scoped, tag = 'input window, operand 7, single buffered']
    #allocation20 [shape = 's32[1]{0}', space=sflag, size = 0x4, scoped, tag = 'scoped memory for tpu_custom_call.1']
    #allocation21 [shape = 'u8[1024]{0}', space=smem, size = 0x400, scoped, tag = 'input window, operand 8, single buffered']
    #allocation22 [shape = 'u8[512]{0}', space=smem, size = 0x200, scoped, tag = 'input window, operand 9, single buffered']
    #allocation23 [shape = 'u8[1024]{0}', space=smem, size = 0x400, scoped, tag = 'input window, operand 10, single buffered']
    #allocation24 [shape = 's32[1]{0}', space=sflag, size = 0x4, scoped, tag = 'scoped memory for tpu_custom_call.1']
    #allocation25 [shape = 'u8[512]{0}', space=smem, size = 0x200, scoped, tag = 'input window, operand 11, single buffered']
    #allocation26 [shape = 's32[1]{0}', space=sflag, size = 0x4, scoped, tag = 'scoped memory for tpu_custom_call.1']
    #allocation27 [shape = 'u8[1024]{0}', space=smem, size = 0x400, scoped, tag = 'input window, operand 12, single buffered']
    #allocation28 [shape = 'u8[512]{0}', space=smem, size = 0x200, scoped, tag = 'input window, operand 13, single buffered']
    #allocation29 [shape = 's32[1]{0}', space=sflag, size = 0x4, scoped, tag = 'scoped memory for tpu_custom_call.1']
    #allocation30 [shape = 'u8[32768]{0}', space=vmem, size = 0x8000, scoped, tag = 'input window, operand 14']
    #allocation31 [shape = 'u8[32768]{0}', space=vmem, size = 0x8000, scoped, tag = 'input window, operand 15']
    #allocation32 [shape = 's32[2]{0}', space=sflag, size = 0x8, scoped, tag = 'scoped memory for tpu_custom_call.1']
    #allocation33 [shape = 'u8[32768]{0}', space=vmem, size = 0x8000, scoped, tag = 'input window, operand 16']
    #allocation34 [shape = 'u8[16384]{0}', space=vmem, size = 0x4000, scoped, tag = 'output window, operand 0']
    #allocation35 [shape = 'u8[16384]{0}', space=vmem, size = 0x4000, scoped, tag = 'output window, operand 1']
    #allocation36 [shape = 's32[2]{0}', space=sflag, size = 0x8, scoped, tag = 'scoped memory for tpu_custom_call.1']
    #allocation37 [shape = 'u8[16384]{0}', space=vmem, size = 0x4000, scoped, tag = 'output window, operand 2']
    #allocation38 [shape = 'u8[16384]{0}', space=vmem, size = 0x4000, scoped, tag = 'output window, operand 3']
    #allocation39 [shape = 's32[2]{0}', space=sflag, size = 0x8, scoped, tag = 'scoped memory for tpu_custom_call.1']
    %26 = vsyncpa [#allocation8], 0
    %27 = vsyncpa [#allocation11], 0
    %28 = vsyncpa [#allocation14], 0
    %29 = vsyncpa [#allocation9], 0
    %30 = vsyncpa [#allocation18], 0
    %31 = vsyncpa [#allocation20], 0
    %32 = vsyncpa [#allocation24], 0
    %33 = vsyncpa [#allocation26], 0
    %34 = vsyncpa [#allocation29], 0
    %35 = vsyncpa [#allocation6], 0
    %s36 = scalar_lea.sflag [#allocation6], 1
    %37 = vsyncpa %s36, 0
    %38 = vsyncpa [#allocation32], 0
    %s39 = scalar_lea.sflag [#allocation32], 1
    %40 = vsyncpa %s39, 0
    %41 = vsyncpa [#allocation7], 0
    %s42 = scalar_lea.sflag [#allocation7], 1
    %43 = vsyncpa %s42, 0
    %44 = vsyncpa [#allocation36], 0
    %s45 = scalar_lea.sflag [#allocation36], 1
    %46 = vsyncpa %s45, 0
    %47 = vsyncpa [#allocation39], 0
    %s48 = scalar_lea.sflag [#allocation39], 1
    %49 = vsyncpa %s48, 0
    loop: start=0, step=1, limit=18
    $region2: #{tpu_custom_call.1} parent=1 // loop_pre_header
      _
    $region3: #{tpu_custom_call.1} parent=1 // loop_header
      %s51 = sphi 0, %s55
      %p52 = scmp.ge.s32.totalorder %s51, 18
      %s58 = sphi 0, %s70
      %s59 = sphi 0, %s66
      %s60 = sphi 0, %s58
      %s61 = sphi 0, %s59
      %s62 = sphi 0, %s60
      %s63 = sphi 0, %s61
      %s71 = sphi 0, %s71
      %s73 = sphi 0, %s71
      %s74 = sphi 0, %s73
      %s88 = sphi 0, %s74
      %s92 = sphi 0, %s92
      %s94 = sphi 0, %s92
      %s95 = sphi 0, %s94
      %s109 = sphi 0, %s95
      %s113 = sphi 0, %s113
      %s115 = sphi 0, %s113
      %s116 = sphi 0, %s115
      %s130 = sphi 0, %s116
      %s134 = sphi 0, %s134
      %s136 = sphi 0, %s134
      %s137 = sphi 0, %s136
      %s151 = sphi 0, %s137
      %s155 = sphi 0, %s155
      %s157 = sphi 0, %s155
      %s158 = sphi 0, %s157
      %s172 = sphi 0, %s158
      %s176 = sphi 0, %s176
      %s178 = sphi 0, %s176
      %s179 = sphi 0, %s178
      %s193 = sphi 0, %s179
      %s197 = sphi 0, %s197
      %s199 = sphi 0, %s197
      %s200 = sphi 0, %s199
      %s214 = sphi 0, %s200
      %s218 = sphi 0, %s218
      %s220 = sphi 0, %s218
      %s221 = sphi 0, %s220
      %s235 = sphi 0, %s221
      %s239 = sphi 0, %s239
      %s241 = sphi 0, %s239
      %s242 = sphi 0, %s241
      %s256 = sphi 0, %s242
      %s260 = sphi 0, %s260
      %s262 = sphi 0, %s260
      %s263 = sphi 0, %s262
      %s277 = sphi 0, %s263
      %s281 = sphi 0, %s281
      %s283 = sphi 0, %s281
      %s284 = sphi 0, %s283
      %s298 = sphi 0, %s284
      %s302 = sphi 0, %s302
      %s304 = sphi 0, %s302
      %s305 = sphi 0, %s304
      %s319 = sphi 0, %s305
      %s323 = sphi 0, %s323
      %s325 = sphi 0, %s323
      %s326 = sphi 0, %s325
      %s340 = sphi 0, %s326
      %s344 = sphi 0, %s344
      %s346 = sphi 0, %s344
      %s347 = sphi 0, %s346
      %s361 = sphi 0, %s347
      %s379 = sphi 0, %s381
      %s382 = sphi 0, %s379
      %s383 = sphi 0, %s382
      %s399 = sphi 0, %s383
      %s415 = sphi 0, %s417
      %s418 = sphi 0, %s415
      %s419 = sphi 0, %s418
      %s435 = sphi 0, %s419
      %s453 = sphi 0, %s455
      %s456 = sphi 0, %s453
      %s457 = sphi 0, %s456
      %s473 = sphi 0, %s457
      %s481 = sphi 0, %s483
      %s484 = sphi 0, %s481
      %s485 = sphi 0, %s484
      %s501 = sphi 0, %s485
      %s509 = sphi 0, %s511
      %s512 = sphi 0, %s509
      %s513 = sphi 0, %s512
      %s529 = sphi 0, %s513
      %s537 = sphi 0, %s539
      %s540 = sphi 0, %s537
      %s541 = sphi 0, %s540
      %s557 = sphi 0, %s541
      %s565 = sphi 0, %s567
      %s568 = sphi 0, %s565
      %s569 = sphi 0, %s568
      %s585 = sphi 0, %s569
    $region4: #{tpu_custom_call.1} parent=1 // loop_header_branch
      %54 = sbr.rel (%p52) target = $region8
    $region5: #{tpu_custom_call.1} parent=1 // loop_body
      %s56 = ssub.s32 %s51, 1
      %s57 = ssub.s32 %s51, 2
      %s64 = sadd.s32 1, %s59
      %p65 = scmp.ge.s32.totalorder %s64, 8
      %s66 = scalar_select %p65, 0, %s64
      %s67 = sadd.s32 1, %s58
      %s68 = scalar_select %p65, %s67, %s58
      %p69 = scmp.ge.s32.totalorder %s68, 2
      %s70 = scalar_select %p69, 0, %s68
      %s72 = sadd.s32 %s71, 1
      %p75 = scmp.eq.s32.totalorder %s51, 15
      %p76 = scmp.ne.s32.totalorder %s71, %s73
      %p77 = scmp.eq.s32.totalorder %s51, 0
      %p78 = por %p76, %p77
      %p79 = scmp.ne.s32.totalorder %s71, %s73
      %p80 = scmp.eq.s32.totalorder %s56, 15
      %p81 = por %p79, %p80
      %p82 = scmp.ne.s32.totalorder %s73, %s74
      %p83 = scmp.eq.s32.totalorder %s56, 0
      %p84 = por %p82, %p83
      %p85 = scmp.ne.s32.totalorder %s73, %s74
      %p86 = scmp.eq.s32.totalorder %s57, 15
      %p87 = por %p85, %p86
      %p89 = scmp.ne.s32.totalorder %s74, %s88
      %p90 = scmp.eq.s32.totalorder %s57, 0
      %p91 = por %p89, %p90
      %s93 = sadd.s32 %s92, 1
      %p96 = scmp.eq.s32.totalorder %s51, 15
      %p97 = scmp.ne.s32.totalorder %s92, %s94
      %p98 = scmp.eq.s32.totalorder %s51, 0
      %p99 = por %p97, %p98
      %p100 = scmp.ne.s32.totalorder %s92, %s94
      %p101 = scmp.eq.s32.totalorder %s56, 15
      %p102 = por %p100, %p101
      %p103 = scmp.ne.s32.totalorder %s94, %s95
      %p104 = scmp.eq.s32.totalorder %s56, 0
      %p105 = por %p103, %p104
      %p106 = scmp.ne.s32.totalorder %s94, %s95
      %p107 = scmp.eq.s32.totalorder %s57, 15
      %p108 = por %p106, %p107
      %p110 = scmp.ne.s32.totalorder %s95, %s109
      %p111 = scmp.eq.s32.totalorder %s57, 0
      %p112 = por %p110, %p111
      %s114 = sadd.s32 %s113, 1
      %p117 = scmp.eq.s32.totalorder %s51, 15
      %p118 = scmp.ne.s32.totalorder %s113, %s115
      %p119 = scmp.eq.s32.totalorder %s51, 0
      %p120 = por %p118, %p119
      %p121 = scmp.ne.s32.totalorder %s113, %s115
      %p122 = scmp.eq.s32.totalorder %s56, 15
      %p123 = por %p121, %p122
      %p124 = scmp.ne.s32.totalorder %s115, %s116
      %p125 = scmp.eq.s32.totalorder %s56, 0
      %p126 = por %p124, %p125
      %p127 = scmp.ne.s32.totalorder %s115, %s116
      %p128 = scmp.eq.s32.totalorder %s57, 15
      %p129 = por %p127, %p128
      %p131 = scmp.ne.s32.totalorder %s116, %s130
      %p132 = scmp.eq.s32.totalorder %s57, 0
      %p133 = por %p131, %p132
      %s135 = sadd.s32 %s134, 1
      %p138 = scmp.eq.s32.totalorder %s51, 15
      %p139 = scmp.ne.s32.totalorder %s134, %s136
      %p140 = scmp.eq.s32.totalorder %s51, 0
      %p141 = por %p139, %p140
      %p142 = scmp.ne.s32.totalorder %s134, %s136
      %p143 = scmp.eq.s32.totalorder %s56, 15
      %p144 = por %p142, %p143
      %p145 = scmp.ne.s32.totalorder %s136, %s137
      %p146 = scmp.eq.s32.totalorder %s56, 0
      %p147 = por %p145, %p146
      %p148 = scmp.ne.s32.totalorder %s136, %s137
      %p149 = scmp.eq.s32.totalorder %s57, 15
      %p150 = por %p148, %p149
      %p152 = scmp.ne.s32.totalorder %s137, %s151
      %p153 = scmp.eq.s32.totalorder %s57, 0
      %p154 = por %p152, %p153
      %s156 = sadd.s32 %s155, 1
      %p159 = scmp.eq.s32.totalorder %s51, 15
      %p160 = scmp.ne.s32.totalorder %s155, %s157
      %p161 = scmp.eq.s32.totalorder %s51, 0
      %p162 = por %p160, %p161
      %p163 = scmp.ne.s32.totalorder %s155, %s157
      %p164 = scmp.eq.s32.totalorder %s56, 15
      %p165 = por %p163, %p164
      %p166 = scmp.ne.s32.totalorder %s157, %s158
      %p167 = scmp.eq.s32.totalorder %s56, 0
      %p168 = por %p166, %p167
      %p169 = scmp.ne.s32.totalorder %s157, %s158
      %p170 = scmp.eq.s32.totalorder %s57, 15
      %p171 = por %p169, %p170
      %p173 = scmp.ne.s32.totalorder %s158, %s172
      %p174 = scmp.eq.s32.totalorder %s57, 0
      %p175 = por %p173, %p174
      %s177 = sadd.s32 %s176, 1
      %p180 = scmp.eq.s32.totalorder %s51, 15
      %p181 = scmp.ne.s32.totalorder %s176, %s178
      %p182 = scmp.eq.s32.totalorder %s51, 0
      %p183 = por %p181, %p182
      %p184 = scmp.ne.s32.totalorder %s176, %s178
      %p185 = scmp.eq.s32.totalorder %s56, 15
      %p186 = por %p184, %p185
      %p187 = scmp.ne.s32.totalorder %s178, %s179
      %p188 = scmp.eq.s32.totalorder %s56, 0
      %p189 = por %p187, %p188
      %p190 = scmp.ne.s32.totalorder %s178, %s179
      %p191 = scmp.eq.s32.totalorder %s57, 15
      %p192 = por %p190, %p191
      %p194 = scmp.ne.s32.totalorder %s179, %s193
      %p195 = scmp.eq.s32.totalorder %s57, 0
      %p196 = por %p194, %p195
      %s198 = sadd.s32 %s197, 1
      %p201 = scmp.eq.s32.totalorder %s51, 15
      %p202 = scmp.ne.s32.totalorder %s197, %s199
      %p203 = scmp.eq.s32.totalorder %s51, 0
      %p204 = por %p202, %p203
      %p205 = scmp.ne.s32.totalorder %s197, %s199
      %p206 = scmp.eq.s32.totalorder %s56, 15
      %p207 = por %p205, %p206
      %p208 = scmp.ne.s32.totalorder %s199, %s200
      %p209 = scmp.eq.s32.totalorder %s56, 0
      %p210 = por %p208, %p209
      %p211 = scmp.ne.s32.totalorder %s199, %s200
      %p212 = scmp.eq.s32.totalorder %s57, 15
      %p213 = por %p211, %p212
      %p215 = scmp.ne.s32.totalorder %s200, %s214
      %p216 = scmp.eq.s32.totalorder %s57, 0
      %p217 = por %p215, %p216
      %s219 = sadd.s32 %s218, 1
      %p222 = scmp.eq.s32.totalorder %s51, 15
      %p223 = scmp.ne.s32.totalorder %s218, %s220
      %p224 = scmp.eq.s32.totalorder %s51, 0
      %p225 = por %p223, %p224
      %p226 = scmp.ne.s32.totalorder %s218, %s220
      %p227 = scmp.eq.s32.totalorder %s56, 15
      %p228 = por %p226, %p227
      %p229 = scmp.ne.s32.totalorder %s220, %s221
      %p230 = scmp.eq.s32.totalorder %s56, 0
      %p231 = por %p229, %p230
      %p232 = scmp.ne.s32.totalorder %s220, %s221
      %p233 = scmp.eq.s32.totalorder %s57, 15
      %p234 = por %p232, %p233
      %p236 = scmp.ne.s32.totalorder %s221, %s235
      %p237 = scmp.eq.s32.totalorder %s57, 0
      %p238 = por %p236, %p237
      %s240 = sadd.s32 %s239, 1
      %p243 = scmp.eq.s32.totalorder %s51, 15
      %p244 = scmp.ne.s32.totalorder %s239, %s241
      %p245 = scmp.eq.s32.totalorder %s51, 0
      %p246 = por %p244, %p245
      %p247 = scmp.ne.s32.totalorder %s239, %s241
      %p248 = scmp.eq.s32.totalorder %s56, 15
      %p249 = por %p247, %p248
      %p250 = scmp.ne.s32.totalorder %s241, %s242
      %p251 = scmp.eq.s32.totalorder %s56, 0
      %p252 = por %p250, %p251
      %p253 = scmp.ne.s32.totalorder %s241, %s242
      %p254 = scmp.eq.s32.totalorder %s57, 15
      %p255 = por %p253, %p254
      %p257 = scmp.ne.s32.totalorder %s242, %s256
      %p258 = scmp.eq.s32.totalorder %s57, 0
      %p259 = por %p257, %p258
      %s261 = sadd.s32 %s260, 1
      %p264 = scmp.eq.s32.totalorder %s51, 15
      %p265 = scmp.ne.s32.totalorder %s260, %s262
      %p266 = scmp.eq.s32.totalorder %s51, 0
      %p267 = por %p265, %p266
      %p268 = scmp.ne.s32.totalorder %s260, %s262
      %p269 = scmp.eq.s32.totalorder %s56, 15
      %p270 = por %p268, %p269
      %p271 = scmp.ne.s32.totalorder %s262, %s263
      %p272 = scmp.eq.s32.totalorder %s56, 0
      %p273 = por %p271, %p272
      %p274 = scmp.ne.s32.totalorder %s262, %s263
      %p275 = scmp.eq.s32.totalorder %s57, 15
      %p276 = por %p274, %p275
      %p278 = scmp.ne.s32.totalorder %s263, %s277
      %p279 = scmp.eq.s32.totalorder %s57, 0
      %p280 = por %p278, %p279
      %s282 = sadd.s32 %s281, 1
      %p285 = scmp.eq.s32.totalorder %s51, 15
      %p286 = scmp.ne.s32.totalorder %s281, %s283
      %p287 = scmp.eq.s32.totalorder %s51, 0
      %p288 = por %p286, %p287
      %p289 = scmp.ne.s32.totalorder %s281, %s283
      %p290 = scmp.eq.s32.totalorder %s56, 15
      %p291 = por %p289, %p290
      %p292 = scmp.ne.s32.totalorder %s283, %s284
      %p293 = scmp.eq.s32.totalorder %s56, 0
      %p294 = por %p292, %p293
      %p295 = scmp.ne.s32.totalorder %s283, %s284
      %p296 = scmp.eq.s32.totalorder %s57, 15
      %p297 = por %p295, %p296
      %p299 = scmp.ne.s32.totalorder %s284, %s298
      %p300 = scmp.eq.s32.totalorder %s57, 0
      %p301 = por %p299, %p300
      %s303 = sadd.s32 %s302, 1
      %p306 = scmp.eq.s32.totalorder %s51, 15
      %p307 = scmp.ne.s32.totalorder %s302, %s304
      %p308 = scmp.eq.s32.totalorder %s51, 0
      %p309 = por %p307, %p308
      %p310 = scmp.ne.s32.totalorder %s302, %s304
      %p311 = scmp.eq.s32.totalorder %s56, 15
      %p312 = por %p310, %p311
      %p313 = scmp.ne.s32.totalorder %s304, %s305
      %p314 = scmp.eq.s32.totalorder %s56, 0
      %p315 = por %p313, %p314
      %p316 = scmp.ne.s32.totalorder %s304, %s305
      %p317 = scmp.eq.s32.totalorder %s57, 15
      %p318 = por %p316, %p317
      %p320 = scmp.ne.s32.totalorder %s305, %s319
      %p321 = scmp.eq.s32.totalorder %s57, 0
      %p322 = por %p320, %p321
      %s324 = sadd.s32 %s323, 1
      %p327 = scmp.eq.s32.totalorder %s51, 15
      %p328 = scmp.ne.s32.totalorder %s323, %s325
      %p329 = scmp.eq.s32.totalorder %s51, 0
      %p330 = por %p328, %p329
      %p331 = scmp.ne.s32.totalorder %s323, %s325
      %p332 = scmp.eq.s32.totalorder %s56, 15
      %p333 = por %p331, %p332
      %p334 = scmp.ne.s32.totalorder %s325, %s326
      %p335 = scmp.eq.s32.totalorder %s56, 0
      %p336 = por %p334, %p335
      %p337 = scmp.ne.s32.totalorder %s325, %s326
      %p338 = scmp.eq.s32.totalorder %s57, 15
      %p339 = por %p337, %p338
      %p341 = scmp.ne.s32.totalorder %s326, %s340
      %p342 = scmp.eq.s32.totalorder %s57, 0
      %p343 = por %p341, %p342
      %s345 = sadd.s32 %s344, 1
      %p348 = scmp.eq.s32.totalorder %s51, 15
      %p349 = scmp.ne.s32.totalorder %s344, %s346
      %p350 = scmp.eq.s32.totalorder %s51, 0
      %p351 = por %p349, %p350
      %p352 = scmp.ne.s32.totalorder %s344, %s346
      %p353 = scmp.eq.s32.totalorder %s56, 15
      %p354 = por %p352, %p353
      %p355 = scmp.ne.s32.totalorder %s346, %s347
      %p356 = scmp.eq.s32.totalorder %s56, 0
      %p357 = por %p355, %p356
      %p358 = scmp.ne.s32.totalorder %s346, %s347
      %p359 = scmp.eq.s32.totalorder %s57, 15
      %p360 = por %p358, %p359
      %p362 = scmp.ne.s32.totalorder %s347, %s361
      %p363 = scmp.eq.s32.totalorder %s57, 0
      %p364 = por %p362, %p363
      %s365 = sadd.s32 %s59, 4294967295
      %p366 = scmp.gt.s32.totalorder %s365, 0
      %s367 = scalar_select %p366, %s365, 0
      %p368 = scmp.lt.s32.totalorder %s367, 7
      %s369 = scalar_select %p368, %s367, 7
      %s370 = sadd.s32 %s66, 4294967295
      %p371 = scmp.gt.s32.totalorder %s370, 0
      %s372 = scalar_select %p371, %s370, 0
      %p373 = scmp.lt.s32.totalorder %s372, 7
      %s374 = scalar_select %p373, %s372, 7
      %s375 = ssub.s32 %s58, %s70
      %s376 = ssub.s32 %s369, %s374
      %s377 = sor.u32 %s375, %s376
      %p378 = scmp.eq.s32.totalorder %s377, 0
      %s380 = sadd.s32 %s379, 1
      %s381 = scalar_select %p378, %s379, %s380
      %p384 = pneg %p378
      %p385 = scmp.eq.s32.totalorder %s51, 15
      %p386 = por %p384, %p385
      %p387 = scmp.ne.s32.totalorder %s379, %s382
      %p388 = scmp.eq.s32.totalorder %s51, 0
      %p389 = por %p387, %p388
      %p390 = scmp.ne.s32.totalorder %s379, %s382
      %p391 = scmp.eq.s32.totalorder %s56, 15
      %p392 = por %p390, %p391
      %p393 = scmp.ne.s32.totalorder %s382, %s383
      %p394 = scmp.eq.s32.totalorder %s56, 0
      %p395 = por %p393, %p394
      %p396 = scmp.ne.s32.totalorder %s382, %s383
      %p397 = scmp.eq.s32.totalorder %s57, 15
      %p398 = por %p396, %p397
      %p400 = scmp.ne.s32.totalorder %s383, %s399
      %p401 = scmp.eq.s32.totalorder %s57, 0
      %p402 = por %p400, %p401
      %p403 = scmp.gt.s32.totalorder %s59, 0
      %s404 = scalar_select %p403, %s59, 0
      %p405 = scmp.lt.s32.totalorder %s404, 7
      %s406 = scalar_select %p405, %s404, 7
      %p407 = scmp.gt.s32.totalorder %s66, 0
      %s408 = scalar_select %p407, %s66, 0
      %p409 = scmp.lt.s32.totalorder %s408, 7
      %s410 = scalar_select %p409, %s408, 7
      %s411 = ssub.s32 %s58, %s70
      %s412 = ssub.s32 %s406, %s410
      %s413 = sor.u32 %s411, %s412
      %p414 = scmp.eq.s32.totalorder %s413, 0
      %s416 = sadd.s32 %s415, 1
      %s417 = scalar_select %p414, %s415, %s416
      %p420 = pneg %p414
      %p421 = scmp.eq.s32.totalorder %s51, 15
      %p422 = por %p420, %p421
      %p423 = scmp.ne.s32.totalorder %s415, %s418
      %p424 = scmp.eq.s32.totalorder %s51, 0
      %p425 = por %p423, %p424
      %p426 = scmp.ne.s32.totalorder %s415, %s418
      %p427 = scmp.eq.s32.totalorder %s56, 15
      %p428 = por %p426, %p427
      %p429 = scmp.ne.s32.totalorder %s418, %s419
      %p430 = scmp.eq.s32.totalorder %s56, 0
      %p431 = por %p429, %p430
      %p432 = scmp.ne.s32.totalorder %s418, %s419
      %p433 = scmp.eq.s32.totalorder %s57, 15
      %p434 = por %p432, %p433
      %p436 = scmp.ne.s32.totalorder %s419, %s435
      %p437 = scmp.eq.s32.totalorder %s57, 0
      %p438 = por %p436, %p437
      %s439 = sadd.s32 %s59, 1
      %p440 = scmp.gt.s32.totalorder %s439, 0
      %s441 = scalar_select %p440, %s439, 0
      %p442 = scmp.lt.s32.totalorder %s441, 7
      %s443 = scalar_select %p442, %s441, 7
      %s444 = sadd.s32 %s66, 1
      %p445 = scmp.gt.s32.totalorder %s444, 0
      %s446 = scalar_select %p445, %s444, 0
      %p447 = scmp.lt.s32.totalorder %s446, 7
      %s448 = scalar_select %p447, %s446, 7
      %s449 = ssub.s32 %s58, %s70
      %s450 = ssub.s32 %s443, %s448
      %s451 = sor.u32 %s449, %s450
      %p452 = scmp.eq.s32.totalorder %s451, 0
      %s454 = sadd.s32 %s453, 1
      %s455 = scalar_select %p452, %s453, %s454
      %p458 = pneg %p452
      %p459 = scmp.eq.s32.totalorder %s51, 15
      %p460 = por %p458, %p459
      %p461 = scmp.ne.s32.totalorder %s453, %s456
      %p462 = scmp.eq.s32.totalorder %s51, 0
      %p463 = por %p461, %p462
      %p464 = scmp.ne.s32.totalorder %s453, %s456
      %p465 = scmp.eq.s32.totalorder %s56, 15
      %p466 = por %p464, %p465
      %p467 = scmp.ne.s32.totalorder %s456, %s457
      %p468 = scmp.eq.s32.totalorder %s56, 0
      %p469 = por %p467, %p468
      %p470 = scmp.ne.s32.totalorder %s456, %s457
      %p471 = scmp.eq.s32.totalorder %s57, 15
      %p472 = por %p470, %p471
      %p474 = scmp.ne.s32.totalorder %s457, %s473
      %p475 = scmp.eq.s32.totalorder %s57, 0
      %p476 = por %p474, %p475
      %s477 = ssub.s32 %s58, %s70
      %s478 = ssub.s32 %s59, %s66
      %s479 = sor.u32 %s477, %s478
      %p480 = scmp.eq.s32.totalorder %s479, 0
      %s482 = sadd.s32 %s481, 1
      %s483 = scalar_select %p480, %s481, %s482
      %p486 = pneg %p480
      %p487 = scmp.eq.s32.totalorder %s51, 15
      %p488 = por %p486, %p487
      %p489 = scmp.ne.s32.totalorder %s481, %s484
      %p490 = scmp.eq.s32.totalorder %s51, 0
      %p491 = por %p489, %p490
      %p492 = scmp.ne.s32.totalorder %s481, %s484
      %p493 = scmp.eq.s32.totalorder %s56, 15
      %p494 = por %p492, %p493
      %p495 = scmp.ne.s32.totalorder %s484, %s485
      %p496 = scmp.eq.s32.totalorder %s56, 0
      %p497 = por %p495, %p496
      %p498 = scmp.ne.s32.totalorder %s484, %s485
      %p499 = scmp.eq.s32.totalorder %s57, 15
      %p500 = por %p498, %p499
      %p502 = scmp.ne.s32.totalorder %s485, %s501
      %p503 = scmp.eq.s32.totalorder %s57, 0
      %p504 = por %p502, %p503
      %s505 = ssub.s32 %s58, %s70
      %s506 = ssub.s32 %s59, %s66
      %s507 = sor.u32 %s505, %s506
      %p508 = scmp.eq.s32.totalorder %s507, 0
      %s510 = sadd.s32 %s509, 1
      %s511 = scalar_select %p508, %s509, %s510
      %p514 = pneg %p508
      %p515 = scmp.eq.s32.totalorder %s51, 15
      %p516 = por %p514, %p515
      %p517 = scmp.ne.s32.totalorder %s509, %s512
      %p518 = scmp.eq.s32.totalorder %s51, 0
      %p519 = por %p517, %p518
      %p520 = scmp.ne.s32.totalorder %s509, %s512
      %p521 = scmp.eq.s32.totalorder %s56, 15
      %p522 = por %p520, %p521
      %p523 = scmp.ne.s32.totalorder %s512, %s513
      %p524 = scmp.eq.s32.totalorder %s56, 0
      %p525 = por %p523, %p524
      %p526 = scmp.ne.s32.totalorder %s512, %s513
      %p527 = scmp.eq.s32.totalorder %s57, 15
      %p528 = por %p526, %p527
      %p530 = scmp.ne.s32.totalorder %s513, %s529
      %p531 = scmp.eq.s32.totalorder %s57, 0
      %p532 = por %p530, %p531
      %s533 = ssub.s32 %s58, %s70
      %s534 = ssub.s32 %s59, %s66
      %s535 = sor.u32 %s533, %s534
      %p536 = scmp.eq.s32.totalorder %s535, 0
      %s538 = sadd.s32 %s537, 1
      %s539 = scalar_select %p536, %s537, %s538
      %p542 = pneg %p536
      %p543 = scmp.eq.s32.totalorder %s51, 15
      %p544 = por %p542, %p543
      %p545 = scmp.ne.s32.totalorder %s537, %s540
      %p546 = scmp.eq.s32.totalorder %s51, 0
      %p547 = por %p545, %p546
      %p548 = scmp.ne.s32.totalorder %s537, %s540
      %p549 = scmp.eq.s32.totalorder %s56, 15
      %p550 = por %p548, %p549
      %p551 = scmp.ne.s32.totalorder %s540, %s541
      %p552 = scmp.eq.s32.totalorder %s56, 0
      %p553 = por %p551, %p552
      %p554 = scmp.ne.s32.totalorder %s540, %s541
      %p555 = scmp.eq.s32.totalorder %s57, 15
      %p556 = por %p554, %p555
      %p558 = scmp.ne.s32.totalorder %s541, %s557
      %p559 = scmp.eq.s32.totalorder %s57, 0
      %p560 = por %p558, %p559
      %s561 = ssub.s32 %s58, %s70
      %s562 = ssub.s32 %s59, %s66
      %s563 = sor.u32 %s561, %s562
      %p564 = scmp.eq.s32.totalorder %s563, 0
      %s566 = sadd.s32 %s565, 1
      %s567 = scalar_select %p564, %s565, %s566
      %p570 = pneg %p564
      %p571 = scmp.eq.s32.totalorder %s51, 15
      %p572 = por %p570, %p571
      %p573 = scmp.ne.s32.totalorder %s565, %s568
      %p574 = scmp.eq.s32.totalorder %s51, 0
      %p575 = por %p573, %p574
      %p576 = scmp.ne.s32.totalorder %s565, %s568
      %p577 = scmp.eq.s32.totalorder %s56, 15
      %p578 = por %p576, %p577
      %p579 = scmp.ne.s32.totalorder %s568, %s569
      %p580 = scmp.eq.s32.totalorder %s56, 0
      %p581 = por %p579, %p580
      %p582 = scmp.ne.s32.totalorder %s568, %s569
      %p583 = scmp.eq.s32.totalorder %s57, 15
      %p584 = por %p582, %p583
      %p586 = scmp.ne.s32.totalorder %s569, %s585
      %p587 = scmp.eq.s32.totalorder %s57, 0
      %p588 = por %p586, %p587
      %p589 = scmp.le.s32.totalorder 1, %s51
      %p590 = scmp.lt.s32.totalorder %s51, 17
      %p591 = pnand %p589, %p590
      %p592 = pneg %p591
      // Predicated region
      $region9: #{tpu_custom_call.1} parent=5 // pred_check
        _
      $region10: #{tpu_custom_call.1} parent=5 // pred_check_branch
        %594 = sbr.rel (%p591) target = $region12
      $region11: #{tpu_custom_call.1} parent=5 // pred_region
        %s595 = ssub.s32 %s51, 1
        // Predicated region
        $region13: #{tpu_custom_call.1} parent=11 // pred_check
          %p596 = pneg %p84
        $region14: #{tpu_custom_call.1} parent=11 // pred_check_branch
          %598 = sbr.rel (%p596) target = $region16
        $region15: #{tpu_custom_call.1} parent=11 // pred_region
          %600 = vsyncadd [#allocation8], 0
          %s602 = sshll.u32 %s0, 4
          %s603 = int_to_ptr.hbm [resolvable:$true] %s602
          %605 = dma.hbm_to_smem %s603, 32, [#allocation5], [#allocation8]
        $region16: #{tpu_custom_call.1} parent=11 // pred_fallthru
          _
        // Predicated region
        $region17: #{tpu_custom_call.1} parent=11 // pred_check
          %p606 = pneg %p105
        $region18: #{tpu_custom_call.1} parent=11 // pred_check_branch
          %608 = sbr.rel (%p606) target = $region20
        $region19: #{tpu_custom_call.1} parent=11 // pred_region
          %610 = vsyncadd [#allocation11], 0
          %s612 = sshll.u32 %s1, 4
          %s613 = int_to_ptr.hbm [resolvable:$true] %s612
          %615 = dma.hbm_to_smem %s613, 16, [#allocation10], [#allocation11]
        $region20: #{tpu_custom_call.1} parent=11 // pred_fallthru
          _
        // Predicated region
        $region21: #{tpu_custom_call.1} parent=11 // pred_check
          %p616 = pneg %p126
        $region22: #{tpu_custom_call.1} parent=11 // pred_check_branch
          %618 = sbr.rel (%p616) target = $region24
        $region23: #{tpu_custom_call.1} parent=11 // pred_region
          %620 = vsyncadd [#allocation11], 0
          %s622 = sshll.u32 %s2, 4
          %s623 = int_to_ptr.hbm [resolvable:$true] %s622
          %625 = dma.hbm_to_smem %s623, 32, [#allocation12], [#allocation11]
        $region24: #{tpu_custom_call.1} parent=11 // pred_fallthru
          _
        // Predicated region
        $region25: #{tpu_custom_call.1} parent=11 // pred_check
          %p626 = pneg %p147
        $region26: #{tpu_custom_call.1} parent=11 // pred_check_branch
          %628 = sbr.rel (%p626) target = $region28
        $region27: #{tpu_custom_call.1} parent=11 // pred_region
          %630 = vsyncadd [#allocation14], 0
          %s632 = sshll.u32 %s3, 4
          %s633 = int_to_ptr.hbm [resolvable:$true] %s632
          %635 = dma.hbm_to_smem %s633, 16, [#allocation13], [#allocation14]
        $region28: #{tpu_custom_call.1} parent=11 // pred_fallthru
          _
        // Predicated region
        $region29: #{tpu_custom_call.1} parent=11 // pred_check
          %p636 = pneg %p168
        $region30: #{tpu_custom_call.1} parent=11 // pred_check_branch
          %638 = sbr.rel (%p636) target = $region32
        $region31: #{tpu_custom_call.1} parent=11 // pred_region
          %640 = vsyncadd [#allocation9], 0
          %s642 = sshll.u32 %s4, 4
          %s643 = int_to_ptr.vmem [resolvable:$true] %s642
          %645 = dma.vmem_to_smem %s643, 32, [#allocation15], [#allocation9]
        $region32: #{tpu_custom_call.1} parent=11 // pred_fallthru
          _
        // Predicated region
        $region33: #{tpu_custom_call.1} parent=11 // pred_check
          %p646 = pneg %p189
        $region34: #{tpu_custom_call.1} parent=11 // pred_check_branch
          %648 = sbr.rel (%p646) target = $region36
        $region35: #{tpu_custom_call.1} parent=11 // pred_region
          %650 = vsyncadd [#allocation14], 0
          %s652 = sshll.u32 %s5, 4
          %s653 = int_to_ptr.hbm [resolvable:$true] %s652
          %655 = dma.hbm_to_smem %s653, 16, [#allocation16], [#allocation14]
        $region36: #{tpu_custom_call.1} parent=11 // pred_fallthru
          _
        // Predicated region
        $region37: #{tpu_custom_call.1} parent=11 // pred_check
          %p656 = pneg %p210
        $region38: #{tpu_custom_call.1} parent=11 // pred_check_branch
          %658 = sbr.rel (%p656) target = $region40
        $region39: #{tpu_custom_call.1} parent=11 // pred_region
          %660 = vsyncadd [#allocation18], 0
          %s662 = sshll.u32 %s6, 4
          %s663 = int_to_ptr.vmem [resolvable:$true] %s662
          %665 = dma.vmem_to_smem %s663, 32, [#allocation17], [#allocation18]
        $region40: #{tpu_custom_call.1} parent=11 // pred_fallthru
          _
        // Predicated region
        $region41: #{tpu_custom_call.1} parent=11 // pred_check
          %p666 = pneg %p231
        $region42: #{tpu_custom_call.1} parent=11 // pred_check_branch
          %668 = sbr.rel (%p666) target = $region44
        $region43: #{tpu_custom_call.1} parent=11 // pred_region
          %670 = vsyncadd [#allocation20], 0
          %s672 = sshll.u32 %s7, 4
          %s673 = int_to_ptr.hbm [resolvable:$true] %s672
          %675 = dma.hbm_to_smem %s673, 16, [#allocation19], [#allocation20]
        $region44: #{tpu_custom_call.1} parent=11 // pred_fallthru
          _
        // Predicated region
        $region45: #{tpu_custom_call.1} parent=11 // pred_check
          %p676 = pneg %p252
        $region46: #{tpu_custom_call.1} parent=11 // pred_check_branch
          %678 = sbr.rel (%p676) target = $region48
        $region47: #{tpu_custom_call.1} parent=11 // pred_region
          %680 = vsyncadd [#allocation18], 0
          %s682 = sshll.u32 %s8, 4
          %s683 = int_to_ptr.vmem [resolvable:$true] %s682
          %685 = dma.vmem_to_smem %s683, 32, [#allocation21], [#allocation18]
        $region48: #{tpu_custom_call.1} parent=11 // pred_fallthru
          _
        // Predicated region
        $region49: #{tpu_custom_call.1} parent=11 // pred_check
          %p686 = pneg %p273
        $region50: #{tpu_custom_call.1} parent=11 // pred_check_branch
          %688 = sbr.rel (%p686) target = $region52
        $region51: #{tpu_custom_call.1} parent=11 // pred_region
          %690 = vsyncadd [#allocation20], 0
          %s692 = sshll.u32 %s9, 4
          %s693 = int_to_ptr.hbm [resolvable:$true] %s692
          %695 = dma.hbm_to_smem %s693, 16, [#allocation22], [#allocation20]
        $region52: #{tpu_custom_call.1} parent=11 // pred_fallthru
          _
        // Predicated region
        $region53: #{tpu_custom_call.1} parent=11 // pred_check
          %p696 = pneg %p294
        $region54: #{tpu_custom_call.1} parent=11 // pred_check_branch
          %698 = sbr.rel (%p696) target = $region56
        $region55: #{tpu_custom_call.1} parent=11 // pred_region
          %700 = vsyncadd [#allocation24], 0
          %s702 = sshll.u32 %s10, 4
          %s703 = int_to_ptr.vmem [resolvable:$true] %s702
          %705 = dma.vmem_to_smem %s703, 32, [#allocation23], [#allocation24]
        $region56: #{tpu_custom_call.1} parent=11 // pred_fallthru
          _
        // Predicated region
        $region57: #{tpu_custom_call.1} parent=11 // pred_check
          %p706 = pneg %p315
        $region58: #{tpu_custom_call.1} parent=11 // pred_check_branch
          %708 = sbr.rel (%p706) target = $region60
        $region59: #{tpu_custom_call.1} parent=11 // pred_region
          %710 = vsyncadd [#allocation26], 0
          %s712 = sshll.u32 %s11, 4
          %s713 = int_to_ptr.hbm [resolvable:$true] %s712
          %715 = dma.hbm_to_smem %s713, 16, [#allocation25], [#allocation26]
        $region60: #{tpu_custom_call.1} parent=11 // pred_fallthru
          _
        // Predicated region
        $region61: #{tpu_custom_call.1} parent=11 // pred_check
          %p716 = pneg %p336
        $region62: #{tpu_custom_call.1} parent=11 // pred_check_branch
          %718 = sbr.rel (%p716) target = $region64
        $region63: #{tpu_custom_call.1} parent=11 // pred_region
          %720 = vsyncadd [#allocation24], 0
          %s722 = sshll.u32 %s12, 4
          %s723 = int_to_ptr.vmem [resolvable:$true] %s722
          %725 = dma.vmem_to_smem %s723, 32, [#allocation27], [#allocation24]
        $region64: #{tpu_custom_call.1} parent=11 // pred_fallthru
          _
        // Predicated region
        $region65: #{tpu_custom_call.1} parent=11 // pred_check
          %p726 = pneg %p357
        $region66: #{tpu_custom_call.1} parent=11 // pred_check_branch
          %728 = sbr.rel (%p726) target = $region68
        $region67: #{tpu_custom_call.1} parent=11 // pred_region
          %730 = vsyncadd [#allocation29], 0
          %s732 = sshll.u32 %s13, 4
          %s733 = int_to_ptr.vmem [resolvable:$true] %s732
          %735 = dma.vmem_to_smem %s733, 16, [#allocation28], [#allocation29]
        $region68: #{tpu_custom_call.1} parent=11 // pred_fallthru
          _
      $region12: #{tpu_custom_call.1} parent=5 // pred_fallthru
        _
      %p736 = scmp.lt.s32.totalorder %s51, 16
      // Predicated region
      $region69: #{tpu_custom_call.1} parent=5 // pred_check
        %p737 = pneg %p736
      $region70: #{tpu_custom_call.1} parent=5 // pred_check_branch
        %739 = sbr.rel (%p737) target = $region72
      $region71: #{tpu_custom_call.1} parent=5 // pred_region
        // Predicated region
        $region73: #{tpu_custom_call.1} parent=71 // pred_check
          %p740 = pneg %p389
        $region74: #{tpu_custom_call.1} parent=71 // pred_check_branch
          %742 = sbr.rel (%p740) target = $region76
        $region75: #{tpu_custom_call.1} parent=71 // pred_region
          %s743 = sand.u32 %s379, 1
          %s744 = scalar_lea.sflag [#allocation6], %s743
          %s745 = sand.u32 %s379, 1
          %s746 = smul.addr %s745, 32
          %s747 = scalar_lea.vmem [#allocation30], %s746
          %s748 = sadd.s32 %s59, 4294967295
          %p749 = scmp.gt.s32.totalorder %s748, 0
          %s750 = scalar_select %p749, %s748, 0
          %p751 = scmp.lt.s32.totalorder %s750, 7
          %s752 = scalar_select %p751, %s750, 7
          %754 = vsyncadd %s744, 0
          %s755 = smul.addr %s58, 32
          %s756 = sadd.s32 %s752, %s755
          %s757 = smul.addr %s756, 8
          %s758 = scalar_lea.hbm %s14, %s757
          %s759 = sshll.u32 %s758, 4
          %s760 = int_to_ptr.hbm [resolvable:$true] %s759
          %s761 = sshll.u32 %s747, 4
          %s762 = int_to_ptr.vmem [resolvable:$true] %s761
          %767 = dma.hbm_to_vmem [thread:$0]  %s760, 512, %s762, %s744, 1024, 128, 8
        $region76: #{tpu_custom_call.1} parent=71 // pred_fallthru
          _
        // Predicated region
        $region77: #{tpu_custom_call.1} parent=71 // pred_check
          %p768 = pneg %p425
        $region78: #{tpu_custom_call.1} parent=71 // pred_check_branch
          %770 = sbr.rel (%p768) target = $region80
        $region79: #{tpu_custom_call.1} parent=71 // pred_region
          %s771 = sand.u32 %s51, 1
          %s772 = scalar_lea.sflag [#allocation32], %s771
          %s773 = sand.u32 %s415, 1
          %s774 = smul.addr %s773, 32
          %s775 = scalar_lea.vmem [#allocation31], %s774
          %p776 = scmp.gt.s32.totalorder %s59, 0
          %s777 = scalar_select %p776, %s59, 0
          %p778 = scmp.lt.s32.totalorder %s777, 7
          %s779 = scalar_select %p778, %s777, 7
          %781 = vsyncadd %s772, 0
          %s782 = smul.addr %s58, 32
          %s783 = sadd.s32 %s779, %s782
          %s784 = smul.addr %s783, 8
          %s785 = scalar_lea.hbm %s15, %s784
          %s786 = sshll.u32 %s785, 4
          %s787 = int_to_ptr.hbm [resolvable:$true] %s786
          %s788 = sshll.u32 %s775, 4
          %s789 = int_to_ptr.vmem [resolvable:$true] %s788
          %794 = dma.hbm_to_vmem [thread:$0]  %s787, 512, %s789, %s772, 1024, 128, 8
        $region80: #{tpu_custom_call.1} parent=71 // pred_fallthru
          _
        // Predicated region
        $region81: #{tpu_custom_call.1} parent=71 // pred_check
          %p795 = pneg %p463
        $region82: #{tpu_custom_call.1} parent=71 // pred_check_branch
          %797 = sbr.rel (%p795) target = $region84
        $region83: #{tpu_custom_call.1} parent=71 // pred_region
          %s798 = sand.u32 %s51, 1
          %s799 = scalar_lea.sflag [#allocation32], %s798
          %s800 = sand.u32 %s453, 1
          %s801 = smul.addr %s800, 32
          %s802 = scalar_lea.vmem [#allocation33], %s801
          %s803 = sadd.s32 %s59, 1
          %p804 = scmp.gt.s32.totalorder %s803, 0
          %s805 = scalar_select %p804, %s803, 0
          %p806 = scmp.lt.s32.totalorder %s805, 7
          %s807 = scalar_select %p806, %s805, 7
          %809 = vsyncadd %s799, 0
          %s810 = smul.addr %s58, 32
          %s811 = sadd.s32 %s807, %s810
          %s812 = smul.addr %s811, 8
          %s813 = scalar_lea.hbm %s16, %s812
          %s814 = sshll.u32 %s813, 4
          %s815 = int_to_ptr.hbm [resolvable:$true] %s814
          %s816 = sshll.u32 %s802, 4
          %s817 = int_to_ptr.vmem [resolvable:$true] %s816
          %822 = dma.hbm_to_vmem [thread:$0]  %s815, 512, %s817, %s799, 1024, 128, 8
        $region84: #{tpu_custom_call.1} parent=71 // pred_fallthru
          _
      $region72: #{tpu_custom_call.1} parent=5 // pred_fallthru
        _
      %p823 = scmp.le.s32.totalorder 1, %s51
      %p824 = scmp.lt.s32.totalorder %s51, 17
      %p825 = pnand %p823, %p824
      %p826 = pneg %p825
      // Predicated region
      $region85: #{tpu_custom_call.1} parent=5 // pred_check
        _
      $region86: #{tpu_custom_call.1} parent=5 // pred_check_branch
        %828 = sbr.rel (%p825) target = $region88
      $region87: #{tpu_custom_call.1} parent=5 // pred_region
        %s829 = ssub.s32 %s51, 1
        // Predicated region
        $region89: #{tpu_custom_call.1} parent=87 // pred_check
          %p830 = pneg %p84
        $region90: #{tpu_custom_call.1} parent=87 // pred_check_branch
          %832 = sbr.rel (%p830) target = $region92
        $region91: #{tpu_custom_call.1} parent=87 // pred_region
          %834 = dma.done [#allocation8], 32
        $region92: #{tpu_custom_call.1} parent=87 // pred_fallthru
          _
        // Predicated region
        $region93: #{tpu_custom_call.1} parent=87 // pred_check
          %p835 = pneg %p105
        $region94: #{tpu_custom_call.1} parent=87 // pred_check_branch
          %837 = sbr.rel (%p835) target = $region96
        $region95: #{tpu_custom_call.1} parent=87 // pred_region
          %839 = dma.done [#allocation11], 16
        $region96: #{tpu_custom_call.1} parent=87 // pred_fallthru
          _
        // Predicated region
        $region97: #{tpu_custom_call.1} parent=87 // pred_check
          %p840 = pneg %p126
        $region98: #{tpu_custom_call.1} parent=87 // pred_check_branch
          %842 = sbr.rel (%p840) target = $region100
        $region99: #{tpu_custom_call.1} parent=87 // pred_region
          %844 = dma.done [#allocation11], 32
        $region100: #{tpu_custom_call.1} parent=87 // pred_fallthru
          _
        // Predicated region
        $region101: #{tpu_custom_call.1} parent=87 // pred_check
          %p845 = pneg %p147
        $region102: #{tpu_custom_call.1} parent=87 // pred_check_branch
          %847 = sbr.rel (%p845) target = $region104
        $region103: #{tpu_custom_call.1} parent=87 // pred_region
          %849 = dma.done [#allocation14], 16
        $region104: #{tpu_custom_call.1} parent=87 // pred_fallthru
          _
        // Predicated region
        $region105: #{tpu_custom_call.1} parent=87 // pred_check
          %p850 = pneg %p168
        $region106: #{tpu_custom_call.1} parent=87 // pred_check_branch
          %852 = sbr.rel (%p850) target = $region108
        $region107: #{tpu_custom_call.1} parent=87 // pred_region
          %854 = dma.done [#allocation9], 32
        $region108: #{tpu_custom_call.1} parent=87 // pred_fallthru
          _
        // Predicated region
        $region109: #{tpu_custom_call.1} parent=87 // pred_check
          %p855 = pneg %p189
        $region110: #{tpu_custom_call.1} parent=87 // pred_check_branch
          %857 = sbr.rel (%p855) target = $region112
        $region111: #{tpu_custom_call.1} parent=87 // pred_region
          %859 = dma.done [#allocation14], 16
        $region112: #{tpu_custom_call.1} parent=87 // pred_fallthru
          _
        // Predicated region
        $region113: #{tpu_custom_call.1} parent=87 // pred_check
          %p860 = pneg %p210
        $region114: #{tpu_custom_call.1} parent=87 // pred_check_branch
          %862 = sbr.rel (%p860) target = $region116
        $region115: #{tpu_custom_call.1} parent=87 // pred_region
          %864 = dma.done [#allocation18], 32
        $region116: #{tpu_custom_call.1} parent=87 // pred_fallthru
          _
        // Predicated region
        $region117: #{tpu_custom_call.1} parent=87 // pred_check
          %p865 = pneg %p231
        $region118: #{tpu_custom_call.1} parent=87 // pred_check_branch
          %867 = sbr.rel (%p865) target = $region120
        $region119: #{tpu_custom_call.1} parent=87 // pred_region
          %869 = dma.done [#allocation20], 16
        $region120: #{tpu_custom_call.1} parent=87 // pred_fallthru
          _
        // Predicated region
        $region121: #{tpu_custom_call.1} parent=87 // pred_check
          %p870 = pneg %p252
        $region122: #{tpu_custom_call.1} parent=87 // pred_check_branch
          %872 = sbr.rel (%p870) target = $region124
        $region123: #{tpu_custom_call.1} parent=87 // pred_region
          %874 = dma.done [#allocation18], 32
        $region124: #{tpu_custom_call.1} parent=87 // pred_fallthru
          _
        // Predicated region
        $region125: #{tpu_custom_call.1} parent=87 // pred_check
          %p875 = pneg %p273
        $region126: #{tpu_custom_call.1} parent=87 // pred_check_branch
          %877 = sbr.rel (%p875) target = $region128
        $region127: #{tpu_custom_call.1} parent=87 // pred_region
          %879 = dma.done [#allocation20], 16
        $region128: #{tpu_custom_call.1} parent=87 // pred_fallthru
          _
        // Predicated region
        $region129: #{tpu_custom_call.1} parent=87 // pred_check
          %p880 = pneg %p294
        $region130: #{tpu_custom_call.1} parent=87 // pred_check_branch
          %882 = sbr.rel (%p880) target = $region132
        $region131: #{tpu_custom_call.1} parent=87 // pred_region
          %884 = dma.done [#allocation24], 32
        $region132: #{tpu_custom_call.1} parent=87 // pred_fallthru
          _
        // Predicated region
        $region133: #{tpu_custom_call.1} parent=87 // pred_check
          %p885 = pneg %p315
        $region134: #{tpu_custom_call.1} parent=87 // pred_check_branch
          %887 = sbr.rel (%p885) target = $region136
        $region135: #{tpu_custom_call.1} parent=87 // pred_region
          %889 = dma.done [#allocation26], 16
        $region136: #{tpu_custom_call.1} parent=87 // pred_fallthru
          _
        // Predicated region
        $region137: #{tpu_custom_call.1} parent=87 // pred_check
          %p890 = pneg %p336
        $region138: #{tpu_custom_call.1} parent=87 // pred_check_branch
          %892 = sbr.rel (%p890) target = $region140
        $region139: #{tpu_custom_call.1} parent=87 // pred_region
          %894 = dma.done [#allocation24], 32
        $region140: #{tpu_custom_call.1} parent=87 // pred_fallthru
          _
        // Predicated region
        $region141: #{tpu_custom_call.1} parent=87 // pred_check
          %p895 = pneg %p357
        $region142: #{tpu_custom_call.1} parent=87 // pred_check_branch
          %897 = sbr.rel (%p895) target = $region144
        $region143: #{tpu_custom_call.1} parent=87 // pred_region
          %899 = dma.done [#allocation29], 16
        $region144: #{tpu_custom_call.1} parent=87 // pred_fallthru
          _
        %s900 = sand.u32 %s382, 1
        %s901 = scalar_lea.sflag [#allocation6], %s900
        %s902 = sand.u32 %s382, 1
        %s903 = smul.addr %s902, 32
        %s904 = scalar_lea.vmem [#allocation30], %s903
        // Predicated region
        $region145: #{tpu_custom_call.1} parent=87 // pred_check
          %p905 = pneg %p395
        $region146: #{tpu_custom_call.1} parent=87 // pred_check_branch
          %907 = sbr.rel (%p905) target = $region148
        $region147: #{tpu_custom_call.1} parent=87 // pred_region
          %909 = dma.done %s901, 512
        $region148: #{tpu_custom_call.1} parent=87 // pred_fallthru
          _
        %s910 = sand.u32 %s56, 1
        %s911 = scalar_lea.sflag [#allocation32], %s910
        %s912 = sand.u32 %s418, 1
        %s913 = smul.addr %s912, 32
        %s914 = scalar_lea.vmem [#allocation31], %s913
        // Predicated region
        $region149: #{tpu_custom_call.1} parent=87 // pred_check
          %p915 = pneg %p431
        $region150: #{tpu_custom_call.1} parent=87 // pred_check_branch
          %917 = sbr.rel (%p915) target = $region152
        $region151: #{tpu_custom_call.1} parent=87 // pred_region
          %919 = dma.done %s911, 512
        $region152: #{tpu_custom_call.1} parent=87 // pred_fallthru
          _
        %s920 = sand.u32 %s56, 1
        %s921 = scalar_lea.sflag [#allocation32], %s920
        %s922 = sand.u32 %s456, 1
        %s923 = smul.addr %s922, 32
        %s924 = scalar_lea.vmem [#allocation33], %s923
        // Predicated region
        $region153: #{tpu_custom_call.1} parent=87 // pred_check
          %p925 = pneg %p469
        $region154: #{tpu_custom_call.1} parent=87 // pred_check_branch
          %927 = sbr.rel (%p925) target = $region156
        $region155: #{tpu_custom_call.1} parent=87 // pred_region
          %929 = dma.done %s921, 512
        $region156: #{tpu_custom_call.1} parent=87 // pred_fallthru
          _
        %930 = sfence
        %p931 = pneg %p84
        %p932 = pneg %p81
        %p933 = pneg %p105
        %p934 = pneg %p102
        %p935 = pneg %p126
        %p936 = pneg %p123
        %p937 = pneg %p147
        %p938 = pneg %p144
        %p939 = pneg %p168
        %p940 = pneg %p165
        %p941 = pneg %p189
        %p942 = pneg %p186
        %p943 = pneg %p210
        %p944 = pneg %p207
        %p945 = pneg %p231
        %p946 = pneg %p228
        %p947 = pneg %p252
        %p948 = pneg %p249
        %p949 = pneg %p273
        %p950 = pneg %p270
        %p951 = pneg %p294
        %p952 = pneg %p291
        %p953 = pneg %p315
        %p954 = pneg %p312
        %p955 = pneg %p336
        %p956 = pneg %p333
        %p957 = pneg %p357
        %p958 = pneg %p354
        %s959 = sand.u32 %s382, 1
        %s960 = scalar_lea.sflag [#allocation6], %s959
        %s961 = sand.u32 %s382, 1
        %s962 = smul.addr %s961, 32
        %s963 = scalar_lea.vmem [#allocation30], %s962
        %p964 = pneg %p395
        %p965 = pneg %p392
        %s966 = sand.u32 %s56, 1
        %s967 = scalar_lea.sflag [#allocation32], %s966
        %s968 = sand.u32 %s418, 1
        %s969 = smul.addr %s968, 32
        %s970 = scalar_lea.vmem [#allocation31], %s969
        %p971 = pneg %p431
        %p972 = pneg %p428
        %s973 = sand.u32 %s56, 1
        %s974 = scalar_lea.sflag [#allocation32], %s973
        %s975 = sand.u32 %s456, 1
        %s976 = smul.addr %s975, 32
        %s977 = scalar_lea.vmem [#allocation33], %s976
        %p978 = pneg %p469
        %p979 = pneg %p466
        %p980 = pneg %p497
        %p981 = pneg %p494
        %s982 = sand.u32 %s484, 1
        %s983 = scalar_lea.sflag [#allocation7], %s982
        %s984 = sand.u32 %s484, 1
        %s985 = smul.addr %s984, 16
        %s986 = scalar_lea.vmem [#allocation34], %s985
        %p987 = pneg %p525
        %p988 = pneg %p522
        %s989 = sand.u32 %s56, 1
        %s990 = scalar_lea.sflag [#allocation36], %s989
        %s991 = sand.u32 %s512, 1
        %s992 = smul.addr %s991, 16
        %s993 = scalar_lea.vmem [#allocation35], %s992
        %p994 = pneg %p553
        %p995 = pneg %p550
        %s996 = sand.u32 %s56, 1
        %s997 = scalar_lea.sflag [#allocation36], %s996
        %s998 = sand.u32 %s540, 1
        %s999 = smul.addr %s998, 16
        %s1000 = scalar_lea.vmem [#allocation37], %s999
        %p1001 = pneg %p581
        %p1002 = pneg %p578
        %s1003 = sand.u32 %s568, 1
        %s1004 = scalar_lea.sflag [#allocation39], %s1003
        %s1005 = sand.u32 %s568, 1
        %s1006 = smul.addr %s1005, 16
        %s1007 = scalar_lea.vmem [#allocation38], %s1006
        %s1008 = sadd.s32 %s61, 4294967295
        %p1009 = scmp.gt.s32.totalorder %s1008, 0
        %s1010 = scalar_select %p1009, %s1008, 0
        %p1011 = scmp.lt.s32.totalorder %s1010, 7
        %s1012 = scalar_select %p1011, %s1010, 7
        %p1013 = scmp.gt.s32.totalorder %s61, 0
        %s1014 = scalar_select %p1013, %s61, 0
        %p1015 = scmp.lt.s32.totalorder %s1014, 7
        %s1016 = scalar_select %p1015, %s1014, 7
        %s1017 = sadd.s32 %s61, 1
        %p1018 = scmp.gt.s32.totalorder %s1017, 0
        %s1019 = scalar_select %p1018, %s1017, 0
        %p1020 = scmp.lt.s32.totalorder %s1019, 7
        %s1021 = scalar_select %p1020, %s1019, 7
        %vm1022 = vcmask 64512
        %1023 = vst.msk [vmem:[#allocation2] sm:$0xff] %vm1022, 0.0
        %vm1024 = vcmask 58368
        %1025 = vst.msk [vmem:[#allocation2 + $0x8] sm:$0x3] %vm1024, 0.0
        %1026 = vst.msk [vmem:[#allocation2 + $0x10] sm:$0xff] %vm1022, 0.0
        %1027 = vst.msk [vmem:[#allocation2 + $0x18] sm:$0x3] %vm1024, 0.0
        %s1028 = sadd.s32 %s61, 4294967295
        %p1029 = scmp.ge.s32.totalorder %s1028, 0
        %p1030 = scmp.le.s32.totalorder %s1028, 7
        %p1031 = pnand %p1029, %p1030
        %p1032 = pneg %p1031
        %s1033 = scalar_select %p1032, 1.0, 0.0
        %v1034 = vld [vmem:[%s904] sm:$0xff]
        %s1035 = scalar_lea.vmem %s904, 8 [#allocation30]
        %v1036 = vld [vmem:[%s1035] sm:$0xff]
        %s1037 = scalar_lea.vmem %s904, 16 [#allocation30]
        %v1038 = vld [vmem:[%s1037] sm:$0xff]
        %s1039 = scalar_lea.vmem %s904, 24 [#allocation30]
        %v1040 = vld [vmem:[%s1039] sm:$0xff]
        %s1041 = sld [smem:[#allocation5]]
        %v1042 = vstv %s1041
        %v1043 = vmul.f32 %v1042, %v1034
        %s1044 = sld [smem:[#allocation5 + $0x1]]
        %v1045 = vstv %s1044
        %v1046 = vmul.f32 %v1045, %v1036
        %v1047 = vadd.f32 %v1043, %v1046
        %s1048 = sld [smem:[#allocation5 + $0x2]]
        %v1049 = vstv %s1048
        %v1050 = vmul.f32 %v1049, %v1038
        %v1051 = vadd.f32 %v1047, %v1050
        %s1052 = sld [smem:[#allocation5 + $0x3]]
        %v1053 = vstv %s1052
        %v1054 = vmul.f32 %v1053, %v1040
        %v1055 = vadd.f32 %v1051, %v1054
        %s1056 = sld [smem:[#allocation10]]
        %v1057 = vstv %s1056
        %v1058 = vadd.f32 %v1055, %v1057
        %1059 = vst.msk [vmem:[#allocation2 + $0x1] sm:$0xff] %vm1022, %v1058
        %s1060 = sld [smem:[#allocation5 + $0x80]]
        %v1061 = vstv %s1060
        %v1062 = vmul.f32 %v1061, %v1034
        %s1063 = sld [smem:[#allocation5 + $0x81]]
        %v1064 = vstv %s1063
        %v1065 = vmul.f32 %v1064, %v1036
        %v1066 = vadd.f32 %v1062, %v1065
        %s1067 = sld [smem:[#allocation5 + $0x82]]
        %v1068 = vstv %s1067
        %v1069 = vmul.f32 %v1068, %v1038
        %v1070 = vadd.f32 %v1066, %v1069
        %s1071 = sld [smem:[#allocation5 + $0x83]]
        %v1072 = vstv %s1071
        %v1073 = vmul.f32 %v1072, %v1040
        %v1074 = vadd.f32 %v1070, %v1073
        %s1075 = sld [smem:[#allocation10 + $0x1]]
        %v1076 = vstv %s1075
        %v1077 = vadd.f32 %v1074, %v1076
        %s1078 = scalar_lea.vmem [#allocation2], 16
        %1079 = vst.msk [vmem:[%s1078 + $0x1] sm:$0xff] %vm1022, %v1077
        %v1080 = vld [vmem:[#allocation2] sm:$0xff]
        %s1081 = sld [smem:[#allocation12]]
        %s1082 = smul.f32 %s1081, %s1033
        %v1083 = vstv %s1082
        %v1084 = vmul.f32 %v1083, %v1080
        %v1085 = vadd.f32 %v1084, 0.0
        %s1086 = sld [smem:[#allocation12 + $0x80]]
        %s1087 = smul.f32 %s1086, %s1033
        %v1088 = vstv %s1087
        %v1089 = vmul.f32 %v1088, %v1080
        %v1090 = vadd.f32 %v1089, 0.0
        %v1091 = vld [vmem:[%s1078] sm:$0xff]
        %s1092 = sld [smem:[#allocation12 + $0x1]]
        %s1093 = smul.f32 %s1092, %s1033
        %v1094 = vstv %s1093
        %v1095 = vmul.f32 %v1094, %v1091
        %v1096 = vadd.f32 %v1085, %v1095
        %s1097 = sld [smem:[#allocation12 + $0x81]]
        %s1098 = smul.f32 %s1097, %s1033
        %v1099 = vstv %s1098
        %v1100 = vmul.f32 %v1099, %v1091
        %v1101 = vadd.f32 %v1090, %v1100
        %v1102 = vld [vmem:[#allocation2 + $0x1] sm:$0xff]
        %s1103 = sld [smem:[#allocation12 + $0x2]]
        %s1104 = smul.f32 %s1103, %s1033
        %v1105 = vstv %s1104
        %v1106 = vmul.f32 %v1105, %v1102
        %v1107 = vadd.f32 %v1096, %v1106
        %s1108 = sld [smem:[#allocation12 + $0x82]]
        %s1109 = smul.f32 %s1108, %s1033
        %v1110 = vstv %s1109
        %v1111 = vmul.f32 %v1110, %v1102
        %v1112 = vadd.f32 %v1101, %v1111
        %v1113 = vld [vmem:[%s1078 + $0x1] sm:$0xff]
        %s1114 = sld [smem:[#allocation12 + $0x3]]
        %s1115 = smul.f32 %s1114, %s1033
        %v1116 = vstv %s1115
        %v1117 = vmul.f32 %v1116, %v1113
        %v1118 = vadd.f32 %v1107, %v1117
        %s1119 = sld [smem:[#allocation12 + $0x83]]
        %s1120 = smul.f32 %s1119, %s1033
        %v1121 = vstv %s1120
        %v1122 = vmul.f32 %v1121, %v1113
        %v1123 = vadd.f32 %v1112, %v1122
        %v1124 = vld [vmem:[#allocation2 + $0x2] sm:$0xff]
        %s1125 = sld [smem:[#allocation12 + $0x4]]
        %s1126 = smul.f32 %s1125, %s1033
        %v1127 = vstv %s1126
        %v1128 = vmul.f32 %v1127, %v1124
        %v1129 = vadd.f32 %v1118, %v1128
        %s1130 = sld [smem:[#allocation12 + $0x84]]
        %s1131 = smul.f32 %s1130, %s1033
        %v1132 = vstv %s1131
        %v1133 = vmul.f32 %v1132, %v1124
        %v1134 = vadd.f32 %v1123, %v1133
        %v1135 = vld [vmem:[%s1078 + $0x2] sm:$0xff]
        %s1136 = sld [smem:[#allocation12 + $0x5]]
        %s1137 = smul.f32 %s1136, %s1033
        %v1138 = vstv %s1137
        %v1139 = vmul.f32 %v1138, %v1135
        %v1140 = vadd.f32 %v1129, %v1139
        %s1141 = sld [smem:[#allocation12 + $0x85]]
        %s1142 = smul.f32 %s1141, %s1033
        %v1143 = vstv %s1142
        %v1144 = vmul.f32 %v1143, %v1135
        %v1145 = vadd.f32 %v1134, %v1144
        %p1146 = scmp.ge.s32.totalorder %s61, 0
        %p1147 = scmp.le.s32.totalorder %s61, 7
        %p1148 = pnand %p1146, %p1147
        %p1149 = pneg %p1148
        %s1150 = scalar_select %p1149, 1.0, 0.0
        %v1151 = vld [vmem:[%s914] sm:$0xff]
        %s1152 = scalar_lea.vmem %s914, 8 [#allocation31]
        %v1153 = vld [vmem:[%s1152] sm:$0xff]
        %s1154 = scalar_lea.vmem %s914, 16 [#allocation31]
        %v1155 = vld [vmem:[%s1154] sm:$0xff]
        %s1156 = scalar_lea.vmem %s914, 24 [#allocation31]
        %v1157 = vld [vmem:[%s1156] sm:$0xff]
        %s1158 = sld [smem:[#allocation5]]
        %v1159 = vstv %s1158
        %v1160 = vmul.f32 %v1159, %v1151
        %s1161 = sld [smem:[#allocation5 + $0x1]]
        %v1162 = vstv %s1161
        %v1163 = vmul.f32 %v1162, %v1153
        %v1164 = vadd.f32 %v1160, %v1163
        %s1165 = sld [smem:[#allocation5 + $0x2]]
        %v1166 = vstv %s1165
        %v1167 = vmul.f32 %v1166, %v1155
        %v1168 = vadd.f32 %v1164, %v1167
        %s1169 = sld [smem:[#allocation5 + $0x3]]
        %v1170 = vstv %s1169
        %v1171 = vmul.f32 %v1170, %v1157
        %v1172 = vadd.f32 %v1168, %v1171
        %s1173 = sld [smem:[#allocation10]]
        %v1174 = vstv %s1173
        %v1175 = vadd.f32 %v1172, %v1174
        %1176 = vst.msk [vmem:[#allocation2 + $0x1] sm:$0xff] %vm1022, %v1175
        %s1177 = sld [smem:[#allocation5 + $0x80]]
        %v1178 = vstv %s1177
        %v1179 = vmul.f32 %v1178, %v1151
        %s1180 = sld [smem:[#allocation5 + $0x81]]
        %v1181 = vstv %s1180
        %v1182 = vmul.f32 %v1181, %v1153
        %v1183 = vadd.f32 %v1179, %v1182
        %s1184 = sld [smem:[#allocation5 + $0x82]]
        %v1185 = vstv %s1184
        %v1186 = vmul.f32 %v1185, %v1155
        %v1187 = vadd.f32 %v1183, %v1186
        %s1188 = sld [smem:[#allocation5 + $0x83]]
        %v1189 = vstv %s1188
        %v1190 = vmul.f32 %v1189, %v1157
        %v1191 = vadd.f32 %v1187, %v1190
        %s1192 = sld [smem:[#allocation10 + $0x1]]
        %v1193 = vstv %s1192
        %v1194 = vadd.f32 %v1191, %v1193
        %1195 = vst.msk [vmem:[%s1078 + $0x1] sm:$0xff] %vm1022, %v1194
        %v1196 = vld [vmem:[#allocation2] sm:$0xff]
        %s1197 = sld [smem:[#allocation12 + $0x6]]
        %s1198 = smul.f32 %s1197, %s1150
        %v1199 = vstv %s1198
        %v1200 = vmul.f32 %v1199, %v1196
        %v1201 = vadd.f32 %v1140, %v1200
        %s1202 = sld [smem:[#allocation12 + $0x86]]
        %s1203 = smul.f32 %s1202, %s1150
        %v1204 = vstv %s1203
        %v1205 = vmul.f32 %v1204, %v1196
        %v1206 = vadd.f32 %v1145, %v1205
        %v1207 = vld [vmem:[%s1078] sm:$0xff]
        %s1208 = sld [smem:[#allocation12 + $0x7]]
        %s1209 = smul.f32 %s1208, %s1150
        %v1210 = vstv %s1209
        %v1211 = vmul.f32 %v1210, %v1207
        %v1212 = vadd.f32 %v1201, %v1211
        %s1213 = sld [smem:[#allocation12 + $0x87]]
        %s1214 = smul.f32 %s1213, %s1150
        %v1215 = vstv %s1214
        %v1216 = vmul.f32 %v1215, %v1207
        %v1217 = vadd.f32 %v1206, %v1216
        %v1218 = vld [vmem:[#allocation2 + $0x1] sm:$0xff]
        %s1219 = sld [smem:[#allocation12 + $0x8]]
        %s1220 = smul.f32 %s1219, %s1150
        %v1221 = vstv %s1220
        %v1222 = vmul.f32 %v1221, %v1218
        %v1223 = vadd.f32 %v1212, %v1222
        %s1224 = sld [smem:[#allocation12 + $0x88]]
        %s1225 = smul.f32 %s1224, %s1150
        %v1226 = vstv %s1225
        %v1227 = vmul.f32 %v1226, %v1218
        %v1228 = vadd.f32 %v1217, %v1227
        %v1229 = vld [vmem:[%s1078 + $0x1] sm:$0xff]
        %s1230 = sld [smem:[#allocation12 + $0x9]]
        %s1231 = smul.f32 %s1230, %s1150
        %v1232 = vstv %s1231
        %v1233 = vmul.f32 %v1232, %v1229
        %v1234 = vadd.f32 %v1223, %v1233
        %s1235 = sld [smem:[#allocation12 + $0x89]]
        %s1236 = smul.f32 %s1235, %s1150
        %v1237 = vstv %s1236
        %v1238 = vmul.f32 %v1237, %v1229
        %v1239 = vadd.f32 %v1228, %v1238
        %v1240 = vld [vmem:[#allocation2 + $0x2] sm:$0xff]
        %s1241 = sld [smem:[#allocation12 + $0xa]]
        %s1242 = smul.f32 %s1241, %s1150
        %v1243 = vstv %s1242
        %v1244 = vmul.f32 %v1243, %v1240
        %v1245 = vadd.f32 %v1234, %v1244
        %s1246 = sld [smem:[#allocation12 + $0x8a]]
        %s1247 = smul.f32 %s1246, %s1150
        %v1248 = vstv %s1247
        %v1249 = vmul.f32 %v1248, %v1240
        %v1250 = vadd.f32 %v1239, %v1249
        %v1251 = vld [vmem:[%s1078 + $0x2] sm:$0xff]
        %s1252 = sld [smem:[#allocation12 + $0xb]]
        %s1253 = smul.f32 %s1252, %s1150
        %v1254 = vstv %s1253
        %v1255 = vmul.f32 %v1254, %v1251
        %v1256 = vadd.f32 %v1245, %v1255
        %s1257 = sld [smem:[#allocation12 + $0x8b]]
        %s1258 = smul.f32 %s1257, %s1150
        %v1259 = vstv %s1258
        %v1260 = vmul.f32 %v1259, %v1251
        %v1261 = vadd.f32 %v1250, %v1260
        %s1262 = sadd.s32 %s61, 1
        %p1263 = scmp.ge.s32.totalorder %s1262, 0
        %p1264 = scmp.le.s32.totalorder %s1262, 7
        %p1265 = pnand %p1263, %p1264
        %p1266 = pneg %p1265
        %s1267 = scalar_select %p1266, 1.0, 0.0
        %v1268 = vld [vmem:[%s924] sm:$0xff]
        %s1269 = scalar_lea.vmem %s924, 8 [#allocation33]
        %v1270 = vld [vmem:[%s1269] sm:$0xff]
        %s1271 = scalar_lea.vmem %s924, 16 [#allocation33]
        %v1272 = vld [vmem:[%s1271] sm:$0xff]
        %s1273 = scalar_lea.vmem %s924, 24 [#allocation33]
        %v1274 = vld [vmem:[%s1273] sm:$0xff]
        %s1275 = sld [smem:[#allocation5]]
        %v1276 = vstv %s1275
        %v1277 = vmul.f32 %v1276, %v1268
        %s1278 = sld [smem:[#allocation5 + $0x1]]
        %v1279 = vstv %s1278
        %v1280 = vmul.f32 %v1279, %v1270
        %v1281 = vadd.f32 %v1277, %v1280
        %s1282 = sld [smem:[#allocation5 + $0x2]]
        %v1283 = vstv %s1282
        %v1284 = vmul.f32 %v1283, %v1272
        %v1285 = vadd.f32 %v1281, %v1284
        %s1286 = sld [smem:[#allocation5 + $0x3]]
        %v1287 = vstv %s1286
        %v1288 = vmul.f32 %v1287, %v1274
        %v1289 = vadd.f32 %v1285, %v1288
        %s1290 = sld [smem:[#allocation10]]
        %v1291 = vstv %s1290
        %v1292 = vadd.f32 %v1289, %v1291
        %1293 = vst.msk [vmem:[#allocation2 + $0x1] sm:$0xff] %vm1022, %v1292
        %s1294 = sld [smem:[#allocation5 + $0x80]]
        %v1295 = vstv %s1294
        %v1296 = vmul.f32 %v1295, %v1268
        %s1297 = sld [smem:[#allocation5 + $0x81]]
        %v1298 = vstv %s1297
        %v1299 = vmul.f32 %v1298, %v1270
        %v1300 = vadd.f32 %v1296, %v1299
        %s1301 = sld [smem:[#allocation5 + $0x82]]
        %v1302 = vstv %s1301
        %v1303 = vmul.f32 %v1302, %v1272
        %v1304 = vadd.f32 %v1300, %v1303
        %s1305 = sld [smem:[#allocation5 + $0x83]]
        %v1306 = vstv %s1305
        %v1307 = vmul.f32 %v1306, %v1274
        %v1308 = vadd.f32 %v1304, %v1307
        %s1309 = sld [smem:[#allocation10 + $0x1]]
        %v1310 = vstv %s1309
        %v1311 = vadd.f32 %v1308, %v1310
        %1312 = vst.msk [vmem:[%s1078 + $0x1] sm:$0xff] %vm1022, %v1311
        %v1313 = vld [vmem:[#allocation2] sm:$0xff]
        %s1314 = sld [smem:[#allocation12 + $0xc]]
        %s1315 = smul.f32 %s1314, %s1267
        %v1316 = vstv %s1315
        %v1317 = vmul.f32 %v1316, %v1313
        %v1318 = vadd.f32 %v1256, %v1317
        %s1319 = sld [smem:[#allocation12 + $0x8c]]
        %s1320 = smul.f32 %s1319, %s1267
        %v1321 = vstv %s1320
        %v1322 = vmul.f32 %v1321, %v1313
        %v1323 = vadd.f32 %v1261, %v1322
        %v1324 = vld [vmem:[%s1078] sm:$0xff]
        %s1325 = sld [smem:[#allocation12 + $0xd]]
        %s1326 = smul.f32 %s1325, %s1267
        %v1327 = vstv %s1326
        %v1328 = vmul.f32 %v1327, %v1324
        %v1329 = vadd.f32 %v1318, %v1328
        %s1330 = sld [smem:[#allocation12 + $0x8d]]
        %s1331 = smul.f32 %s1330, %s1267
        %v1332 = vstv %s1331
        %v1333 = vmul.f32 %v1332, %v1324
        %v1334 = vadd.f32 %v1323, %v1333
        %v1335 = vld [vmem:[#allocation2 + $0x1] sm:$0xff]
        %s1336 = sld [smem:[#allocation12 + $0xe]]
        %s1337 = smul.f32 %s1336, %s1267
        %v1338 = vstv %s1337
        %v1339 = vmul.f32 %v1338, %v1335
        %v1340 = vadd.f32 %v1329, %v1339
        %s1341 = sld [smem:[#allocation12 + $0x8e]]
        %s1342 = smul.f32 %s1341, %s1267
        %v1343 = vstv %s1342
        %v1344 = vmul.f32 %v1343, %v1335
        %v1345 = vadd.f32 %v1334, %v1344
        %v1346 = vld [vmem:[%s1078 + $0x1] sm:$0xff]
        %s1347 = sld [smem:[#allocation12 + $0xf]]
        %s1348 = smul.f32 %s1347, %s1267
        %v1349 = vstv %s1348
        %v1350 = vmul.f32 %v1349, %v1346
        %v1351 = vadd.f32 %v1340, %v1350
        %s1352 = sld [smem:[#allocation12 + $0x8f]]
        %s1353 = smul.f32 %s1352, %s1267
        %v1354 = vstv %s1353
        %v1355 = vmul.f32 %v1354, %v1346
        %v1356 = vadd.f32 %v1345, %v1355
        %v1357 = vld [vmem:[#allocation2 + $0x2] sm:$0xff]
        %s1358 = sld [smem:[#allocation12 + $0x10]]
        %s1359 = smul.f32 %s1358, %s1267
        %v1360 = vstv %s1359
        %v1361 = vmul.f32 %v1360, %v1357
        %v1362 = vadd.f32 %v1351, %v1361
        %s1363 = sld [smem:[#allocation12 + $0x90]]
        %s1364 = smul.f32 %s1363, %s1267
        %v1365 = vstv %s1364
        %v1366 = vmul.f32 %v1365, %v1357
        %v1367 = vadd.f32 %v1356, %v1366
        %v1368 = vld [vmem:[%s1078 + $0x2] sm:$0xff]
        %s1369 = sld [smem:[#allocation12 + $0x11]]
        %s1370 = smul.f32 %s1369, %s1267
        %v1371 = vstv %s1370
        %v1372 = vmul.f32 %v1371, %v1368
        %v1373 = vadd.f32 %v1362, %v1372
        %s1374 = sld [smem:[#allocation12 + $0x91]]
        %s1375 = smul.f32 %s1374, %s1267
        %v1376 = vstv %s1375
        %v1377 = vmul.f32 %v1376, %v1368
        %v1378 = vadd.f32 %v1367, %v1377
        %s1379 = sld [smem:[#allocation13]]
        %v1380 = vstv %s1379
        %v1381 = vadd.f32 %v1373, %v1380
        %v1382 = vmax.f32 %v1381, 0.0
        %s1383 = sld [smem:[#allocation13 + $0x1]]
        %v1384 = vstv %s1383
        %v1385 = vadd.f32 %v1378, %v1384
        %v1386 = vmax.f32 %v1385, 0.0
        %1387 = vst.msk [vmem:[%s986] sm:$0xff] %vm1022, %v1382
        %s1388 = scalar_lea.vmem %s986, 8 [#allocation34]
        %1389 = vst.msk [vmem:[%s1388] sm:$0xff] %vm1022, %v1386
        %s1390 = sld [smem:[#allocation15]]
        %v1391 = vstv %s1390
        %v1392 = vmul.f32 %v1391, %v1382
        %s1393 = sld [smem:[#allocation15 + $0x1]]
        %v1394 = vstv %s1393
        %v1395 = vmul.f32 %v1394, %v1386
        %v1396 = vadd.f32 %v1392, %v1395
        %s1397 = sld [smem:[#allocation16]]
        %v1398 = vstv %s1397
        %v1399 = vadd.f32 %v1396, %v1398
        %v1400 = vmax.f32 %v1399, 0.0
        %1401 = vst.msk [vmem:[%s993] sm:$0xff] %vm1022, %v1400
        %s1402 = sld [smem:[#allocation15 + $0x80]]
        %v1403 = vstv %s1402
        %v1404 = vmul.f32 %v1403, %v1382
        %s1405 = sld [smem:[#allocation15 + $0x81]]
        %v1406 = vstv %s1405
        %v1407 = vmul.f32 %v1406, %v1386
        %v1408 = vadd.f32 %v1404, %v1407
        %s1409 = sld [smem:[#allocation16 + $0x1]]
        %v1410 = vstv %s1409
        %v1411 = vadd.f32 %v1408, %v1410
        %v1412 = vmax.f32 %v1411, 0.0
        %s1413 = scalar_lea.vmem %s993, 8 [#allocation35]
        %1414 = vst.msk [vmem:[%s1413] sm:$0xff] %vm1022, %v1412
        %vm1415 = vcmask 80896
        %1416 = vst.msk [vmem:[#allocation3] sm:$0xff] %vm1415, 0.0
        %vm1417 = vcmask 74752
        %1418 = vst.msk [vmem:[#allocation3 + $0x8] sm:$0x3] %vm1417, 0.0
        %1419 = vst.msk [vmem:[#allocation3 + $0x10] sm:$0xff] %vm1415, 0.0
        %1420 = vst.msk [vmem:[#allocation3 + $0x18] sm:$0x3] %vm1417, 0.0
        %v1421 = vld [vmem:[%s904] sm:$0xff]
        %v1422 = vld [vmem:[%s1035] sm:$0xff]
        %v1423 = vld [vmem:[%s1037] sm:$0xff]
        %v1424 = vld [vmem:[%s1039] sm:$0xff]
        %s1425 = sld [smem:[#allocation17]]
        %v1426 = vstv %s1425
        %v1427 = vmul.f32 %v1426, %v1421
        %s1428 = sld [smem:[#allocation17 + $0x1]]
        %v1429 = vstv %s1428
        %v1430 = vmul.f32 %v1429, %v1422
        %v1431 = vadd.f32 %v1427, %v1430
        %s1432 = sld [smem:[#allocation17 + $0x2]]
        %v1433 = vstv %s1432
        %v1434 = vmul.f32 %v1433, %v1423
        %v1435 = vadd.f32 %v1431, %v1434
        %s1436 = sld [smem:[#allocation17 + $0x3]]
        %v1437 = vstv %s1436
        %v1438 = vmul.f32 %v1437, %v1424
        %v1439 = vadd.f32 %v1435, %v1438
        %s1440 = sld [smem:[#allocation19]]
        %v1441 = vstv %s1440
        %v1442 = vadd.f32 %v1439, %v1441
        %1444 = vrot.lane.b32.xlu0 %v1442, 1
        %v1445 = vpop.permute.xlu0 %1444
        %vm1447 = vcmask 72712
        %1448 = vst.msk [vmem:[#allocation3 + $0x1] sm:$0xff] %vm1447, %v1445
        %s1449 = sld [smem:[#allocation17 + $0x80]]
        %v1450 = vstv %s1449
        %v1451 = vmul.f32 %v1450, %v1421
        %s1452 = sld [smem:[#allocation17 + $0x81]]
        %v1453 = vstv %s1452
        %v1454 = vmul.f32 %v1453, %v1422
        %v1455 = vadd.f32 %v1451, %v1454
        %s1456 = sld [smem:[#allocation17 + $0x82]]
        %v1457 = vstv %s1456
        %v1458 = vmul.f32 %v1457, %v1423
        %v1459 = vadd.f32 %v1455, %v1458
        %s1460 = sld [smem:[#allocation17 + $0x83]]
        %v1461 = vstv %s1460
        %v1462 = vmul.f32 %v1461, %v1424
        %v1463 = vadd.f32 %v1459, %v1462
        %s1464 = sld [smem:[#allocation19 + $0x1]]
        %v1465 = vstv %s1464
        %v1466 = vadd.f32 %v1463, %v1465
        %1468 = vrot.lane.b32.xlu0 %v1466, 1
        %v1469 = vpop.permute.xlu0 %1468
        %s1471 = scalar_lea.vmem [#allocation3], 16
        %1472 = vst.msk [vmem:[%s1471 + $0x1] sm:$0xff] %vm1447, %v1469
        %v1473 = vld [vmem:[#allocation3] sm:$0xff]
        %s1474 = sld [smem:[#allocation21]]
        %s1475 = smul.f32 %s1474, %s1033
        %v1476 = vstv %s1475
        %v1477 = vmul.f32 %v1476, %v1473
        %v1478 = vadd.f32 %v1477, 0.0
        %s1479 = sld [smem:[#allocation21 + $0x80]]
        %s1480 = smul.f32 %s1479, %s1033
        %v1481 = vstv %s1480
        %v1482 = vmul.f32 %v1481, %v1473
        %v1483 = vadd.f32 %v1482, 0.0
        %v1484 = vld [vmem:[%s1471] sm:$0xff]
        %s1485 = sld [smem:[#allocation21 + $0x1]]
        %s1486 = smul.f32 %s1485, %s1033
        %v1487 = vstv %s1486
        %v1488 = vmul.f32 %v1487, %v1484
        %v1489 = vadd.f32 %v1478, %v1488
        %s1490 = sld [smem:[#allocation21 + $0x81]]
        %s1491 = smul.f32 %s1490, %s1033
        %v1492 = vstv %s1491
        %v1493 = vmul.f32 %v1492, %v1484
        %v1494 = vadd.f32 %v1483, %v1493
        %s1495 = sld [smem:[#allocation21 + $0x2]]
        %s1496 = smul.f32 %s1495, %s1033
        %v1497 = vstv %s1496
        %v1498 = vmul.f32 %v1497, %v1473
        %1500 = vrot.lane.b32.xlu0 %v1498, 127
        %v1501 = vpop.permute.xlu0 %1500
        %v1503 = vadd.f32 %v1489, %v1501
        %s1504 = sld [smem:[#allocation21 + $0x82]]
        %s1505 = smul.f32 %s1504, %s1033
        %v1506 = vstv %s1505
        %v1507 = vmul.f32 %v1506, %v1473
        %1509 = vrot.lane.b32.xlu0 %v1507, 127
        %v1510 = vpop.permute.xlu0 %1509
        %v1512 = vadd.f32 %v1494, %v1510
        %s1513 = sld [smem:[#allocation21 + $0x3]]
        %s1514 = smul.f32 %s1513, %s1033
        %v1515 = vstv %s1514
        %v1516 = vmul.f32 %v1515, %v1484
        %1518 = vrot.lane.b32.xlu0 %v1516, 127
        %v1519 = vpop.permute.xlu0 %1518
        %v1521 = vadd.f32 %v1503, %v1519
        %s1522 = sld [smem:[#allocation21 + $0x83]]
        %s1523 = smul.f32 %s1522, %s1033
        %v1524 = vstv %s1523
        %v1525 = vmul.f32 %v1524, %v1484
        %1527 = vrot.lane.b32.xlu0 %v1525, 127
        %v1528 = vpop.permute.xlu0 %1527
        %v1530 = vadd.f32 %v1512, %v1528
        %s1531 = sld [smem:[#allocation21 + $0x4]]
        %s1532 = smul.f32 %s1531, %s1033
        %v1533 = vstv %s1532
        %v1534 = vmul.f32 %v1533, %v1473
        %1536 = vrot.lane.b32.xlu0 %v1534, 126
        %v1537 = vpop.permute.xlu0 %1536
        %v1539 = vadd.f32 %v1521, %v1537
        %s1540 = sld [smem:[#allocation21 + $0x84]]
        %s1541 = smul.f32 %s1540, %s1033
        %v1542 = vstv %s1541
        %v1543 = vmul.f32 %v1542, %v1473
        %1545 = vrot.lane.b32.xlu0 %v1543, 126
        %v1546 = vpop.permute.xlu0 %1545
        %v1548 = vadd.f32 %v1530, %v1546
        %s1549 = sld [smem:[#allocation21 + $0x5]]
        %s1550 = smul.f32 %s1549, %s1033
        %v1551 = vstv %s1550
        %v1552 = vmul.f32 %v1551, %v1484
        %1554 = vrot.lane.b32.xlu0 %v1552, 126
        %v1555 = vpop.permute.xlu0 %1554
        %v1557 = vadd.f32 %v1539, %v1555
        %s1558 = sld [smem:[#allocation21 + $0x85]]
        %s1559 = smul.f32 %s1558, %s1033
        %v1560 = vstv %s1559
        %v1561 = vmul.f32 %v1560, %v1484
        %1563 = vrot.lane.b32.xlu0 %v1561, 126
        %v1564 = vpop.permute.xlu0 %1563
        %v1566 = vadd.f32 %v1548, %v1564
        %v1567 = vld [vmem:[#allocation3 + $0x1] sm:$0xff]
        %s1568 = sld [smem:[#allocation21 + $0x6]]
        %s1569 = smul.f32 %s1568, %s1033
        %v1570 = vstv %s1569
        %v1571 = vmul.f32 %v1570, %v1567
        %v1572 = vadd.f32 %v1557, %v1571
        %s1573 = sld [smem:[#allocation21 + $0x86]]
        %s1574 = smul.f32 %s1573, %s1033
        %v1575 = vstv %s1574
        %v1576 = vmul.f32 %v1575, %v1567
        %v1577 = vadd.f32 %v1566, %v1576
        %v1578 = vld [vmem:[%s1471 + $0x1] sm:$0xff]
        %s1579 = sld [smem:[#allocation21 + $0x7]]
        %s1580 = smul.f32 %s1579, %s1033
        %v1581 = vstv %s1580
        %v1582 = vmul.f32 %v1581, %v1578
        %v1583 = vadd.f32 %v1572, %v1582
        %s1584 = sld [smem:[#allocation21 + $0x87]]
        %s1585 = smul.f32 %s1584, %s1033
        %v1586 = vstv %s1585
        %v1587 = vmul.f32 %v1586, %v1578
        %v1588 = vadd.f32 %v1577, %v1587
        %s1589 = sld [smem:[#allocation21 + $0x8]]
        %s1590 = smul.f32 %s1589, %s1033
        %v1591 = vstv %s1590
        %v1592 = vmul.f32 %v1591, %v1567
        %1594 = vrot.lane.b32.xlu0 %v1592, 127
        %v1595 = vpop.permute.xlu0 %1594
        %v1597 = vadd.f32 %v1583, %v1595
        %s1598 = sld [smem:[#allocation21 + $0x88]]
        %s1599 = smul.f32 %s1598, %s1033
        %v1600 = vstv %s1599
        %v1601 = vmul.f32 %v1600, %v1567
        %1603 = vrot.lane.b32.xlu0 %v1601, 127
        %v1604 = vpop.permute.xlu0 %1603
        %v1606 = vadd.f32 %v1588, %v1604
        %s1607 = sld [smem:[#allocation21 + $0x9]]
        %s1608 = smul.f32 %s1607, %s1033
        %v1609 = vstv %s1608
        %v1610 = vmul.f32 %v1609, %v1578
        %1612 = vrot.lane.b32.xlu0 %v1610, 127
        %v1613 = vpop.permute.xlu0 %1612
        %v1615 = vadd.f32 %v1597, %v1613
        %s1616 = sld [smem:[#allocation21 + $0x89]]
        %s1617 = smul.f32 %s1616, %s1033
        %v1618 = vstv %s1617
        %v1619 = vmul.f32 %v1618, %v1578
        %1621 = vrot.lane.b32.xlu0 %v1619, 127
        %v1622 = vpop.permute.xlu0 %1621
        %v1624 = vadd.f32 %v1606, %v1622
        %s1625 = sld [smem:[#allocation21 + $0xa]]
        %s1626 = smul.f32 %s1625, %s1033
        %v1627 = vstv %s1626
        %v1628 = vmul.f32 %v1627, %v1567
        %1630 = vrot.lane.b32.xlu0 %v1628, 126
        %v1631 = vpop.permute.xlu0 %1630
        %v1633 = vadd.f32 %v1615, %v1631
        %s1634 = sld [smem:[#allocation21 + $0x8a]]
        %s1635 = smul.f32 %s1634, %s1033
        %v1636 = vstv %s1635
        %v1637 = vmul.f32 %v1636, %v1567
        %1639 = vrot.lane.b32.xlu0 %v1637, 126
        %v1640 = vpop.permute.xlu0 %1639
        %v1642 = vadd.f32 %v1624, %v1640
        %s1643 = sld [smem:[#allocation21 + $0xb]]
        %s1644 = smul.f32 %s1643, %s1033
        %v1645 = vstv %s1644
        %v1646 = vmul.f32 %v1645, %v1578
        %1648 = vrot.lane.b32.xlu0 %v1646, 126
        %v1649 = vpop.permute.xlu0 %1648
        %v1651 = vadd.f32 %v1633, %v1649
        %s1652 = sld [smem:[#allocation21 + $0x8b]]
        %s1653 = smul.f32 %s1652, %s1033
        %v1654 = vstv %s1653
        %v1655 = vmul.f32 %v1654, %v1578
        %1657 = vrot.lane.b32.xlu0 %v1655, 126
        %v1658 = vpop.permute.xlu0 %1657
        %v1660 = vadd.f32 %v1642, %v1658
        %v1661 = vld [vmem:[#allocation3 + $0x2] sm:$0xff]
        %s1662 = sld [smem:[#allocation21 + $0xc]]
        %s1663 = smul.f32 %s1662, %s1033
        %v1664 = vstv %s1663
        %v1665 = vmul.f32 %v1664, %v1661
        %v1666 = vadd.f32 %v1651, %v1665
        %s1667 = sld [smem:[#allocation21 + $0x8c]]
        %s1668 = smul.f32 %s1667, %s1033
        %v1669 = vstv %s1668
        %v1670 = vmul.f32 %v1669, %v1661
        %v1671 = vadd.f32 %v1660, %v1670
        %v1672 = vld [vmem:[%s1471 + $0x2] sm:$0xff]
        %s1673 = sld [smem:[#allocation21 + $0xd]]
        %s1674 = smul.f32 %s1673, %s1033
        %v1675 = vstv %s1674
        %v1676 = vmul.f32 %v1675, %v1672
        %v1677 = vadd.f32 %v1666, %v1676
        %s1678 = sld [smem:[#allocation21 + $0x8d]]
        %s1679 = smul.f32 %s1678, %s1033
        %v1680 = vstv %s1679
        %v1681 = vmul.f32 %v1680, %v1672
        %v1682 = vadd.f32 %v1671, %v1681
        %s1683 = sld [smem:[#allocation21 + $0xe]]
        %s1684 = smul.f32 %s1683, %s1033
        %v1685 = vstv %s1684
        %v1686 = vmul.f32 %v1685, %v1661
        %1688 = vrot.lane.b32.xlu0 %v1686, 127
        %v1689 = vpop.permute.xlu0 %1688
        %v1691 = vadd.f32 %v1677, %v1689
        %s1692 = sld [smem:[#allocation21 + $0x8e]]
        %s1693 = smul.f32 %s1692, %s1033
        %v1694 = vstv %s1693
        %v1695 = vmul.f32 %v1694, %v1661
        %1697 = vrot.lane.b32.xlu0 %v1695, 127
        %v1698 = vpop.permute.xlu0 %1697
        %v1700 = vadd.f32 %v1682, %v1698
        %s1701 = sld [smem:[#allocation21 + $0xf]]
        %s1702 = smul.f32 %s1701, %s1033
        %v1703 = vstv %s1702
        %v1704 = vmul.f32 %v1703, %v1672
        %1706 = vrot.lane.b32.xlu0 %v1704, 127
        %v1707 = vpop.permute.xlu0 %1706
        %v1709 = vadd.f32 %v1691, %v1707
        %s1710 = sld [smem:[#allocation21 + $0x8f]]
        %s1711 = smul.f32 %s1710, %s1033
        %v1712 = vstv %s1711
        %v1713 = vmul.f32 %v1712, %v1672
        %1715 = vrot.lane.b32.xlu0 %v1713, 127
        %v1716 = vpop.permute.xlu0 %1715
        %v1718 = vadd.f32 %v1700, %v1716
        %s1719 = sld [smem:[#allocation21 + $0x10]]
        %s1720 = smul.f32 %s1719, %s1033
        %v1721 = vstv %s1720
        %v1722 = vmul.f32 %v1721, %v1661
        %1724 = vrot.lane.b32.xlu0 %v1722, 126
        %v1725 = vpop.permute.xlu0 %1724
        %v1727 = vadd.f32 %v1709, %v1725
        %s1728 = sld [smem:[#allocation21 + $0x90]]
        %s1729 = smul.f32 %s1728, %s1033
        %v1730 = vstv %s1729
        %v1731 = vmul.f32 %v1730, %v1661
        %1733 = vrot.lane.b32.xlu0 %v1731, 126
        %v1734 = vpop.permute.xlu0 %1733
        %v1736 = vadd.f32 %v1718, %v1734
        %s1737 = sld [smem:[#allocation21 + $0x11]]
        %s1738 = smul.f32 %s1737, %s1033
        %v1739 = vstv %s1738
        %v1740 = vmul.f32 %v1739, %v1672
        %1742 = vrot.lane.b32.xlu0 %v1740, 126
        %v1743 = vpop.permute.xlu0 %1742
        %v1745 = vadd.f32 %v1727, %v1743
        %s1746 = sld [smem:[#allocation21 + $0x91]]
        %s1747 = smul.f32 %s1746, %s1033
        %v1748 = vstv %s1747
        %v1749 = vmul.f32 %v1748, %v1672
        %1751 = vrot.lane.b32.xlu0 %v1749, 126
        %v1752 = vpop.permute.xlu0 %1751
        %v1754 = vadd.f32 %v1736, %v1752
        %v1755 = vld [vmem:[%s914] sm:$0xff]
        %v1756 = vld [vmem:[%s1152] sm:$0xff]
        %v1757 = vld [vmem:[%s1154] sm:$0xff]
        %v1758 = vld [vmem:[%s1156] sm:$0xff]
        %s1759 = sld [smem:[#allocation17]]
        %v1760 = vstv %s1759
        %v1761 = vmul.f32 %v1760, %v1755
        %s1762 = sld [smem:[#allocation17 + $0x1]]
        %v1763 = vstv %s1762
        %v1764 = vmul.f32 %v1763, %v1756
        %v1765 = vadd.f32 %v1761, %v1764
        %s1766 = sld [smem:[#allocation17 + $0x2]]
        %v1767 = vstv %s1766
        %v1768 = vmul.f32 %v1767, %v1757
        %v1769 = vadd.f32 %v1765, %v1768
        %s1770 = sld [smem:[#allocation17 + $0x3]]
        %v1771 = vstv %s1770
        %v1772 = vmul.f32 %v1771, %v1758
        %v1773 = vadd.f32 %v1769, %v1772
        %s1774 = sld [smem:[#allocation19]]
        %v1775 = vstv %s1774
        %v1776 = vadd.f32 %v1773, %v1775
        %1778 = vrot.lane.b32.xlu0 %v1776, 1
        %v1779 = vpop.permute.xlu0 %1778
        %1781 = vst.msk [vmem:[#allocation3 + $0x1] sm:$0xff] %vm1447, %v1779
        %s1782 = sld [smem:[#allocation17 + $0x80]]
        %v1783 = vstv %s1782
        %v1784 = vmul.f32 %v1783, %v1755
        %s1785 = sld [smem:[#allocation17 + $0x81]]
        %v1786 = vstv %s1785
        %v1787 = vmul.f32 %v1786, %v1756
        %v1788 = vadd.f32 %v1784, %v1787
        %s1789 = sld [smem:[#allocation17 + $0x82]]
        %v1790 = vstv %s1789
        %v1791 = vmul.f32 %v1790, %v1757
        %v1792 = vadd.f32 %v1788, %v1791
        %s1793 = sld [smem:[#allocation17 + $0x83]]
        %v1794 = vstv %s1793
        %v1795 = vmul.f32 %v1794, %v1758
        %v1796 = vadd.f32 %v1792, %v1795
        %s1797 = sld [smem:[#allocation19 + $0x1]]
        %v1798 = vstv %s1797
        %v1799 = vadd.f32 %v1796, %v1798
        %1801 = vrot.lane.b32.xlu0 %v1799, 1
        %v1802 = vpop.permute.xlu0 %1801
        %1804 = vst.msk [vmem:[%s1471 + $0x1] sm:$0xff] %vm1447, %v1802
        %v1805 = vld [vmem:[#allocation3] sm:$0xff]
        %s1806 = sld [smem:[#allocation21 + $0x12]]
        %s1807 = smul.f32 %s1806, %s1150
        %v1808 = vstv %s1807
        %v1809 = vmul.f32 %v1808, %v1805
        %v1810 = vadd.f32 %v1745, %v1809
        %s1811 = sld [smem:[#allocation21 + $0x92]]
        %s1812 = smul.f32 %s1811, %s1150
        %v1813 = vstv %s1812
        %v1814 = vmul.f32 %v1813, %v1805
        %v1815 = vadd.f32 %v1754, %v1814
        %v1816 = vld [vmem:[%s1471] sm:$0xff]
        %s1817 = sld [smem:[#allocation21 + $0x13]]
        %s1818 = smul.f32 %s1817, %s1150
        %v1819 = vstv %s1818
        %v1820 = vmul.f32 %v1819, %v1816
        %v1821 = vadd.f32 %v1810, %v1820
        %s1822 = sld [smem:[#allocation21 + $0x93]]
        %s1823 = smul.f32 %s1822, %s1150
        %v1824 = vstv %s1823
        %v1825 = vmul.f32 %v1824, %v1816
        %v1826 = vadd.f32 %v1815, %v1825
        %s1827 = sld [smem:[#allocation21 + $0x14]]
        %s1828 = smul.f32 %s1827, %s1150
        %v1829 = vstv %s1828
        %v1830 = vmul.f32 %v1829, %v1805
        %1832 = vrot.lane.b32.xlu0 %v1830, 127
        %v1833 = vpop.permute.xlu0 %1832
        %v1835 = vadd.f32 %v1821, %v1833
        %s1836 = sld [smem:[#allocation21 + $0x94]]
        %s1837 = smul.f32 %s1836, %s1150
        %v1838 = vstv %s1837
        %v1839 = vmul.f32 %v1838, %v1805
        %1841 = vrot.lane.b32.xlu0 %v1839, 127
        %v1842 = vpop.permute.xlu0 %1841
        %v1844 = vadd.f32 %v1826, %v1842
        %s1845 = sld [smem:[#allocation21 + $0x15]]
        %s1846 = smul.f32 %s1845, %s1150
        %v1847 = vstv %s1846
        %v1848 = vmul.f32 %v1847, %v1816
        %1850 = vrot.lane.b32.xlu0 %v1848, 127
        %v1851 = vpop.permute.xlu0 %1850
        %v1853 = vadd.f32 %v1835, %v1851
        %s1854 = sld [smem:[#allocation21 + $0x95]]
        %s1855 = smul.f32 %s1854, %s1150
        %v1856 = vstv %s1855
        %v1857 = vmul.f32 %v1856, %v1816
        %1859 = vrot.lane.b32.xlu0 %v1857, 127
        %v1860 = vpop.permute.xlu0 %1859
        %v1862 = vadd.f32 %v1844, %v1860
        %s1863 = sld [smem:[#allocation21 + $0x16]]
        %s1864 = smul.f32 %s1863, %s1150
        %v1865 = vstv %s1864
        %v1866 = vmul.f32 %v1865, %v1805
        %1868 = vrot.lane.b32.xlu0 %v1866, 126
        %v1869 = vpop.permute.xlu0 %1868
        %v1871 = vadd.f32 %v1853, %v1869
        %s1872 = sld [smem:[#allocation21 + $0x96]]
        %s1873 = smul.f32 %s1872, %s1150
        %v1874 = vstv %s1873
        %v1875 = vmul.f32 %v1874, %v1805
        %1877 = vrot.lane.b32.xlu0 %v1875, 126
        %v1878 = vpop.permute.xlu0 %1877
        %v1880 = vadd.f32 %v1862, %v1878
        %s1881 = sld [smem:[#allocation21 + $0x17]]
        %s1882 = smul.f32 %s1881, %s1150
        %v1883 = vstv %s1882
        %v1884 = vmul.f32 %v1883, %v1816
        %1886 = vrot.lane.b32.xlu0 %v1884, 126
        %v1887 = vpop.permute.xlu0 %1886
        %v1889 = vadd.f32 %v1871, %v1887
        %s1890 = sld [smem:[#allocation21 + $0x97]]
        %s1891 = smul.f32 %s1890, %s1150
        %v1892 = vstv %s1891
        %v1893 = vmul.f32 %v1892, %v1816
        %1895 = vrot.lane.b32.xlu0 %v1893, 126
        %v1896 = vpop.permute.xlu0 %1895
        %v1898 = vadd.f32 %v1880, %v1896
        %v1899 = vld [vmem:[#allocation3 + $0x1] sm:$0xff]
        %s1900 = sld [smem:[#allocation21 + $0x18]]
        %s1901 = smul.f32 %s1900, %s1150
        %v1902 = vstv %s1901
        %v1903 = vmul.f32 %v1902, %v1899
        %v1904 = vadd.f32 %v1889, %v1903
        %s1905 = sld [smem:[#allocation21 + $0x98]]
        %s1906 = smul.f32 %s1905, %s1150
        %v1907 = vstv %s1906
        %v1908 = vmul.f32 %v1907, %v1899
        %v1909 = vadd.f32 %v1898, %v1908
        %v1910 = vld [vmem:[%s1471 + $0x1] sm:$0xff]
        %s1911 = sld [smem:[#allocation21 + $0x19]]
        %s1912 = smul.f32 %s1911, %s1150
        %v1913 = vstv %s1912
        %v1914 = vmul.f32 %v1913, %v1910
        %v1915 = vadd.f32 %v1904, %v1914
        %s1916 = sld [smem:[#allocation21 + $0x99]]
        %s1917 = smul.f32 %s1916, %s1150
        %v1918 = vstv %s1917
        %v1919 = vmul.f32 %v1918, %v1910
        %v1920 = vadd.f32 %v1909, %v1919
        %s1921 = sld [smem:[#allocation21 + $0x1a]]
        %s1922 = smul.f32 %s1921, %s1150
        %v1923 = vstv %s1922
        %v1924 = vmul.f32 %v1923, %v1899
        %1926 = vrot.lane.b32.xlu0 %v1924, 127
        %v1927 = vpop.permute.xlu0 %1926
        %v1929 = vadd.f32 %v1915, %v1927
        %s1930 = sld [smem:[#allocation21 + $0x9a]]
        %s1931 = smul.f32 %s1930, %s1150
        %v1932 = vstv %s1931
        %v1933 = vmul.f32 %v1932, %v1899
        %1935 = vrot.lane.b32.xlu0 %v1933, 127
        %v1936 = vpop.permute.xlu0 %1935
        %v1938 = vadd.f32 %v1920, %v1936
        %s1939 = sld [smem:[#allocation21 + $0x1b]]
        %s1940 = smul.f32 %s1939, %s1150
        %v1941 = vstv %s1940
        %v1942 = vmul.f32 %v1941, %v1910
        %1944 = vrot.lane.b32.xlu0 %v1942, 127
        %v1945 = vpop.permute.xlu0 %1944
        %v1947 = vadd.f32 %v1929, %v1945
        %s1948 = sld [smem:[#allocation21 + $0x9b]]
        %s1949 = smul.f32 %s1948, %s1150
        %v1950 = vstv %s1949
        %v1951 = vmul.f32 %v1950, %v1910
        %1953 = vrot.lane.b32.xlu0 %v1951, 127
        %v1954 = vpop.permute.xlu0 %1953
        %v1956 = vadd.f32 %v1938, %v1954
        %s1957 = sld [smem:[#allocation21 + $0x1c]]
        %s1958 = smul.f32 %s1957, %s1150
        %v1959 = vstv %s1958
        %v1960 = vmul.f32 %v1959, %v1899
        %1962 = vrot.lane.b32.xlu0 %v1960, 126
        %v1963 = vpop.permute.xlu0 %1962
        %v1965 = vadd.f32 %v1947, %v1963
        %s1966 = sld [smem:[#allocation21 + $0x9c]]
        %s1967 = smul.f32 %s1966, %s1150
        %v1968 = vstv %s1967
        %v1969 = vmul.f32 %v1968, %v1899
        %1971 = vrot.lane.b32.xlu0 %v1969, 126
        %v1972 = vpop.permute.xlu0 %1971
        %v1974 = vadd.f32 %v1956, %v1972
        %s1975 = sld [smem:[#allocation21 + $0x1d]]
        %s1976 = smul.f32 %s1975, %s1150
        %v1977 = vstv %s1976
        %v1978 = vmul.f32 %v1977, %v1910
        %1980 = vrot.lane.b32.xlu0 %v1978, 126
        %v1981 = vpop.permute.xlu0 %1980
        %v1983 = vadd.f32 %v1965, %v1981
        %s1984 = sld [smem:[#allocation21 + $0x9d]]
        %s1985 = smul.f32 %s1984, %s1150
        %v1986 = vstv %s1985
        %v1987 = vmul.f32 %v1986, %v1910
        %1989 = vrot.lane.b32.xlu0 %v1987, 126
        %v1990 = vpop.permute.xlu0 %1989
        %v1992 = vadd.f32 %v1974, %v1990
        %v1993 = vld [vmem:[#allocation3 + $0x2] sm:$0xff]
        %s1994 = sld [smem:[#allocation21 + $0x1e]]
        %s1995 = smul.f32 %s1994, %s1150
        %v1996 = vstv %s1995
        %v1997 = vmul.f32 %v1996, %v1993
        %v1998 = vadd.f32 %v1983, %v1997
        %s1999 = sld [smem:[#allocation21 + $0x9e]]
        %s2000 = smul.f32 %s1999, %s1150
        %v2001 = vstv %s2000
        %v2002 = vmul.f32 %v2001, %v1993
        %v2003 = vadd.f32 %v1992, %v2002
        %v2004 = vld [vmem:[%s1471 + $0x2] sm:$0xff]
        %s2005 = sld [smem:[#allocation21 + $0x1f]]
        %s2006 = smul.f32 %s2005, %s1150
        %v2007 = vstv %s2006
        %v2008 = vmul.f32 %v2007, %v2004
        %v2009 = vadd.f32 %v1998, %v2008
        %s2010 = sld [smem:[#allocation21 + $0x9f]]
        %s2011 = smul.f32 %s2010, %s1150
        %v2012 = vstv %s2011
        %v2013 = vmul.f32 %v2012, %v2004
        %v2014 = vadd.f32 %v2003, %v2013
        %s2015 = sld [smem:[#allocation21 + $0x20]]
        %s2016 = smul.f32 %s2015, %s1150
        %v2017 = vstv %s2016
        %v2018 = vmul.f32 %v2017, %v1993
        %2020 = vrot.lane.b32.xlu0 %v2018, 127
        %v2021 = vpop.permute.xlu0 %2020
        %v2023 = vadd.f32 %v2009, %v2021
        %s2024 = sld [smem:[#allocation21 + $0xa0]]
        %s2025 = smul.f32 %s2024, %s1150
        %v2026 = vstv %s2025
        %v2027 = vmul.f32 %v2026, %v1993
        %2029 = vrot.lane.b32.xlu0 %v2027, 127
        %v2030 = vpop.permute.xlu0 %2029
        %v2032 = vadd.f32 %v2014, %v2030
        %s2033 = sld [smem:[#allocation21 + $0x21]]
        %s2034 = smul.f32 %s2033, %s1150
        %v2035 = vstv %s2034
        %v2036 = vmul.f32 %v2035, %v2004
        %2038 = vrot.lane.b32.xlu0 %v2036, 127
        %v2039 = vpop.permute.xlu0 %2038
        %v2041 = vadd.f32 %v2023, %v2039
        %s2042 = sld [smem:[#allocation21 + $0xa1]]
        %s2043 = smul.f32 %s2042, %s1150
        %v2044 = vstv %s2043
        %v2045 = vmul.f32 %v2044, %v2004
        %2047 = vrot.lane.b32.xlu0 %v2045, 127
        %v2048 = vpop.permute.xlu0 %2047
        %v2050 = vadd.f32 %v2032, %v2048
        %s2051 = sld [smem:[#allocation21 + $0x22]]
        %s2052 = smul.f32 %s2051, %s1150
        %v2053 = vstv %s2052
        %v2054 = vmul.f32 %v2053, %v1993
        %2056 = vrot.lane.b32.xlu0 %v2054, 126
        %v2057 = vpop.permute.xlu0 %2056
        %v2059 = vadd.f32 %v2041, %v2057
        %s2060 = sld [smem:[#allocation21 + $0xa2]]
        %s2061 = smul.f32 %s2060, %s1150
        %v2062 = vstv %s2061
        %v2063 = vmul.f32 %v2062, %v1993
        %2065 = vrot.lane.b32.xlu0 %v2063, 126
        %v2066 = vpop.permute.xlu0 %2065
        %v2068 = vadd.f32 %v2050, %v2066
        %s2069 = sld [smem:[#allocation21 + $0x23]]
        %s2070 = smul.f32 %s2069, %s1150
        %v2071 = vstv %s2070
        %v2072 = vmul.f32 %v2071, %v2004
        %2074 = vrot.lane.b32.xlu0 %v2072, 126
        %v2075 = vpop.permute.xlu0 %2074
        %v2077 = vadd.f32 %v2059, %v2075
        %s2078 = sld [smem:[#allocation21 + $0xa3]]
        %s2079 = smul.f32 %s2078, %s1150
        %v2080 = vstv %s2079
        %v2081 = vmul.f32 %v2080, %v2004
        %2083 = vrot.lane.b32.xlu0 %v2081, 126
        %v2084 = vpop.permute.xlu0 %2083
        %v2086 = vadd.f32 %v2068, %v2084
        %v2087 = vld [vmem:[%s924] sm:$0xff]
        %v2088 = vld [vmem:[%s1269] sm:$0xff]
        %v2089 = vld [vmem:[%s1271] sm:$0xff]
        %v2090 = vld [vmem:[%s1273] sm:$0xff]
        %s2091 = sld [smem:[#allocation17]]
        %v2092 = vstv %s2091
        %v2093 = vmul.f32 %v2092, %v2087
        %s2094 = sld [smem:[#allocation17 + $0x1]]
        %v2095 = vstv %s2094
        %v2096 = vmul.f32 %v2095, %v2088
        %v2097 = vadd.f32 %v2093, %v2096
        %s2098 = sld [smem:[#allocation17 + $0x2]]
        %v2099 = vstv %s2098
        %v2100 = vmul.f32 %v2099, %v2089
        %v2101 = vadd.f32 %v2097, %v2100
        %s2102 = sld [smem:[#allocation17 + $0x3]]
        %v2103 = vstv %s2102
        %v2104 = vmul.f32 %v2103, %v2090
        %v2105 = vadd.f32 %v2101, %v2104
        %s2106 = sld [smem:[#allocation19]]
        %v2107 = vstv %s2106
        %v2108 = vadd.f32 %v2105, %v2107
        %2110 = vrot.lane.b32.xlu0 %v2108, 1
        %v2111 = vpop.permute.xlu0 %2110
        %2113 = vst.msk [vmem:[#allocation3 + $0x1] sm:$0xff] %vm1447, %v2111
        %s2114 = sld [smem:[#allocation17 + $0x80]]
        %v2115 = vstv %s2114
        %v2116 = vmul.f32 %v2115, %v2087
        %s2117 = sld [smem:[#allocation17 + $0x81]]
        %v2118 = vstv %s2117
        %v2119 = vmul.f32 %v2118, %v2088
        %v2120 = vadd.f32 %v2116, %v2119
        %s2121 = sld [smem:[#allocation17 + $0x82]]
        %v2122 = vstv %s2121
        %v2123 = vmul.f32 %v2122, %v2089
        %v2124 = vadd.f32 %v2120, %v2123
        %s2125 = sld [smem:[#allocation17 + $0x83]]
        %v2126 = vstv %s2125
        %v2127 = vmul.f32 %v2126, %v2090
        %v2128 = vadd.f32 %v2124, %v2127
        %s2129 = sld [smem:[#allocation19 + $0x1]]
        %v2130 = vstv %s2129
        %v2131 = vadd.f32 %v2128, %v2130
        %2133 = vrot.lane.b32.xlu0 %v2131, 1
        %v2134 = vpop.permute.xlu0 %2133
        %2136 = vst.msk [vmem:[%s1471 + $0x1] sm:$0xff] %vm1447, %v2134
        %v2137 = vld [vmem:[#allocation3] sm:$0xff]
        %s2138 = sld [smem:[#allocation21 + $0x24]]
        %s2139 = smul.f32 %s2138, %s1267
        %v2140 = vstv %s2139
        %v2141 = vmul.f32 %v2140, %v2137
        %v2142 = vadd.f32 %v2077, %v2141
        %s2143 = sld [smem:[#allocation21 + $0xa4]]
        %s2144 = smul.f32 %s2143, %s1267
        %v2145 = vstv %s2144
        %v2146 = vmul.f32 %v2145, %v2137
        %v2147 = vadd.f32 %v2086, %v2146
        %v2148 = vld [vmem:[%s1471] sm:$0xff]
        %s2149 = sld [smem:[#allocation21 + $0x25]]
        %s2150 = smul.f32 %s2149, %s1267
        %v2151 = vstv %s2150
        %v2152 = vmul.f32 %v2151, %v2148
        %v2153 = vadd.f32 %v2142, %v2152
        %s2154 = sld [smem:[#allocation21 + $0xa5]]
        %s2155 = smul.f32 %s2154, %s1267
        %v2156 = vstv %s2155
        %v2157 = vmul.f32 %v2156, %v2148
        %v2158 = vadd.f32 %v2147, %v2157
        %s2159 = sld [smem:[#allocation21 + $0x26]]
        %s2160 = smul.f32 %s2159, %s1267
        %v2161 = vstv %s2160
        %v2162 = vmul.f32 %v2161, %v2137
        %2164 = vrot.lane.b32.xlu0 %v2162, 127
        %v2165 = vpop.permute.xlu0 %2164
        %v2167 = vadd.f32 %v2153, %v2165
        %s2168 = sld [smem:[#allocation21 + $0xa6]]
        %s2169 = smul.f32 %s2168, %s1267
        %v2170 = vstv %s2169
        %v2171 = vmul.f32 %v2170, %v2137
        %2173 = vrot.lane.b32.xlu0 %v2171, 127
        %v2174 = vpop.permute.xlu0 %2173
        %v2176 = vadd.f32 %v2158, %v2174
        %s2177 = sld [smem:[#allocation21 + $0x27]]
        %s2178 = smul.f32 %s2177, %s1267
        %v2179 = vstv %s2178
        %v2180 = vmul.f32 %v2179, %v2148
        %2182 = vrot.lane.b32.xlu0 %v2180, 127
        %v2183 = vpop.permute.xlu0 %2182
        %v2185 = vadd.f32 %v2167, %v2183
        %s2186 = sld [smem:[#allocation21 + $0xa7]]
        %s2187 = smul.f32 %s2186, %s1267
        %v2188 = vstv %s2187
        %v2189 = vmul.f32 %v2188, %v2148
        %2191 = vrot.lane.b32.xlu0 %v2189, 127
        %v2192 = vpop.permute.xlu0 %2191
        %v2194 = vadd.f32 %v2176, %v2192
        %s2195 = sld [smem:[#allocation21 + $0x28]]
        %s2196 = smul.f32 %s2195, %s1267
        %v2197 = vstv %s2196
        %v2198 = vmul.f32 %v2197, %v2137
        %2200 = vrot.lane.b32.xlu0 %v2198, 126
        %v2201 = vpop.permute.xlu0 %2200
        %v2203 = vadd.f32 %v2185, %v2201
        %s2204 = sld [smem:[#allocation21 + $0xa8]]
        %s2205 = smul.f32 %s2204, %s1267
        %v2206 = vstv %s2205
        %v2207 = vmul.f32 %v2206, %v2137
        %2209 = vrot.lane.b32.xlu0 %v2207, 126
        %v2210 = vpop.permute.xlu0 %2209
        %v2212 = vadd.f32 %v2194, %v2210
        %s2213 = sld [smem:[#allocation21 + $0x29]]
        %s2214 = smul.f32 %s2213, %s1267
        %v2215 = vstv %s2214
        %v2216 = vmul.f32 %v2215, %v2148
        %2218 = vrot.lane.b32.xlu0 %v2216, 126
        %v2219 = vpop.permute.xlu0 %2218
        %v2221 = vadd.f32 %v2203, %v2219
        %s2222 = sld [smem:[#allocation21 + $0xa9]]
        %s2223 = smul.f32 %s2222, %s1267
        %v2224 = vstv %s2223
        %v2225 = vmul.f32 %v2224, %v2148
        %2227 = vrot.lane.b32.xlu0 %v2225, 126
        %v2228 = vpop.permute.xlu0 %2227
        %v2230 = vadd.f32 %v2212, %v2228
        %v2231 = vld [vmem:[#allocation3 + $0x1] sm:$0xff]
        %s2232 = sld [smem:[#allocation21 + $0x2a]]
        %s2233 = smul.f32 %s2232, %s1267
        %v2234 = vstv %s2233
        %v2235 = vmul.f32 %v2234, %v2231
        %v2236 = vadd.f32 %v2221, %v2235
        %s2237 = sld [smem:[#allocation21 + $0xaa]]
        %s2238 = smul.f32 %s2237, %s1267
        %v2239 = vstv %s2238
        %v2240 = vmul.f32 %v2239, %v2231
        %v2241 = vadd.f32 %v2230, %v2240
        %v2242 = vld [vmem:[%s1471 + $0x1] sm:$0xff]
        %s2243 = sld [smem:[#allocation21 + $0x2b]]
        %s2244 = smul.f32 %s2243, %s1267
        %v2245 = vstv %s2244
        %v2246 = vmul.f32 %v2245, %v2242
        %v2247 = vadd.f32 %v2236, %v2246
        %s2248 = sld [smem:[#allocation21 + $0xab]]
        %s2249 = smul.f32 %s2248, %s1267
        %v2250 = vstv %s2249
        %v2251 = vmul.f32 %v2250, %v2242
        %v2252 = vadd.f32 %v2241, %v2251
        %s2253 = sld [smem:[#allocation21 + $0x2c]]
        %s2254 = smul.f32 %s2253, %s1267
        %v2255 = vstv %s2254
        %v2256 = vmul.f32 %v2255, %v2231
        %2258 = vrot.lane.b32.xlu0 %v2256, 127
        %v2259 = vpop.permute.xlu0 %2258
        %v2261 = vadd.f32 %v2247, %v2259
        %s2262 = sld [smem:[#allocation21 + $0xac]]
        %s2263 = smul.f32 %s2262, %s1267
        %v2264 = vstv %s2263
        %v2265 = vmul.f32 %v2264, %v2231
        %2267 = vrot.lane.b32.xlu0 %v2265, 127
        %v2268 = vpop.permute.xlu0 %2267
        %v2270 = vadd.f32 %v2252, %v2268
        %s2271 = sld [smem:[#allocation21 + $0x2d]]
        %s2272 = smul.f32 %s2271, %s1267
        %v2273 = vstv %s2272
        %v2274 = vmul.f32 %v2273, %v2242
        %2276 = vrot.lane.b32.xlu0 %v2274, 127
        %v2277 = vpop.permute.xlu0 %2276
        %v2279 = vadd.f32 %v2261, %v2277
        %s2280 = sld [smem:[#allocation21 + $0xad]]
        %s2281 = smul.f32 %s2280, %s1267
        %v2282 = vstv %s2281
        %v2283 = vmul.f32 %v2282, %v2242
        %2285 = vrot.lane.b32.xlu0 %v2283, 127
        %v2286 = vpop.permute.xlu0 %2285
        %v2288 = vadd.f32 %v2270, %v2286
        %s2289 = sld [smem:[#allocation21 + $0x2e]]
        %s2290 = smul.f32 %s2289, %s1267
        %v2291 = vstv %s2290
        %v2292 = vmul.f32 %v2291, %v2231
        %2294 = vrot.lane.b32.xlu0 %v2292, 126
        %v2295 = vpop.permute.xlu0 %2294
        %v2297 = vadd.f32 %v2279, %v2295
        %s2298 = sld [smem:[#allocation21 + $0xae]]
        %s2299 = smul.f32 %s2298, %s1267
        %v2300 = vstv %s2299
        %v2301 = vmul.f32 %v2300, %v2231
        %2303 = vrot.lane.b32.xlu0 %v2301, 126
        %v2304 = vpop.permute.xlu0 %2303
        %v2306 = vadd.f32 %v2288, %v2304
        %s2307 = sld [smem:[#allocation21 + $0x2f]]
        %s2308 = smul.f32 %s2307, %s1267
        %v2309 = vstv %s2308
        %v2310 = vmul.f32 %v2309, %v2242
        %2312 = vrot.lane.b32.xlu0 %v2310, 126
        %v2313 = vpop.permute.xlu0 %2312
        %v2315 = vadd.f32 %v2297, %v2313
        %s2316 = sld [smem:[#allocation21 + $0xaf]]
        %s2317 = smul.f32 %s2316, %s1267
        %v2318 = vstv %s2317
        %v2319 = vmul.f32 %v2318, %v2242
        %2321 = vrot.lane.b32.xlu0 %v2319, 126
        %v2322 = vpop.permute.xlu0 %2321
        %v2324 = vadd.f32 %v2306, %v2322
        %v2325 = vld [vmem:[#allocation3 + $0x2] sm:$0xff]
        %s2326 = sld [smem:[#allocation21 + $0x30]]
        %s2327 = smul.f32 %s2326, %s1267
        %v2328 = vstv %s2327
        %v2329 = vmul.f32 %v2328, %v2325
        %v2330 = vadd.f32 %v2315, %v2329
        %s2331 = sld [smem:[#allocation21 + $0xb0]]
        %s2332 = smul.f32 %s2331, %s1267
        %v2333 = vstv %s2332
        %v2334 = vmul.f32 %v2333, %v2325
        %v2335 = vadd.f32 %v2324, %v2334
        %v2336 = vld [vmem:[%s1471 + $0x2] sm:$0xff]
        %s2337 = sld [smem:[#allocation21 + $0x31]]
        %s2338 = smul.f32 %s2337, %s1267
        %v2339 = vstv %s2338
        %v2340 = vmul.f32 %v2339, %v2336
        %v2341 = vadd.f32 %v2330, %v2340
        %s2342 = sld [smem:[#allocation21 + $0xb1]]
        %s2343 = smul.f32 %s2342, %s1267
        %v2344 = vstv %s2343
        %v2345 = vmul.f32 %v2344, %v2336
        %v2346 = vadd.f32 %v2335, %v2345
        %s2347 = sld [smem:[#allocation21 + $0x32]]
        %s2348 = smul.f32 %s2347, %s1267
        %v2349 = vstv %s2348
        %v2350 = vmul.f32 %v2349, %v2325
        %2352 = vrot.lane.b32.xlu0 %v2350, 127
        %v2353 = vpop.permute.xlu0 %2352
        %v2355 = vadd.f32 %v2341, %v2353
        %s2356 = sld [smem:[#allocation21 + $0xb2]]
        %s2357 = smul.f32 %s2356, %s1267
        %v2358 = vstv %s2357
        %v2359 = vmul.f32 %v2358, %v2325
        %2361 = vrot.lane.b32.xlu0 %v2359, 127
        %v2362 = vpop.permute.xlu0 %2361
        %v2364 = vadd.f32 %v2346, %v2362
        %s2365 = sld [smem:[#allocation21 + $0x33]]
        %s2366 = smul.f32 %s2365, %s1267
        %v2367 = vstv %s2366
        %v2368 = vmul.f32 %v2367, %v2336
        %2370 = vrot.lane.b32.xlu0 %v2368, 127
        %v2371 = vpop.permute.xlu0 %2370
        %v2373 = vadd.f32 %v2355, %v2371
        %s2374 = sld [smem:[#allocation21 + $0xb3]]
        %s2375 = smul.f32 %s2374, %s1267
        %v2376 = vstv %s2375
        %v2377 = vmul.f32 %v2376, %v2336
        %2379 = vrot.lane.b32.xlu0 %v2377, 127
        %v2380 = vpop.permute.xlu0 %2379
        %v2382 = vadd.f32 %v2364, %v2380
        %s2383 = sld [smem:[#allocation21 + $0x34]]
        %s2384 = smul.f32 %s2383, %s1267
        %v2385 = vstv %s2384
        %v2386 = vmul.f32 %v2385, %v2325
        %2388 = vrot.lane.b32.xlu0 %v2386, 126
        %v2389 = vpop.permute.xlu0 %2388
        %v2391 = vadd.f32 %v2373, %v2389
        %s2392 = sld [smem:[#allocation21 + $0xb4]]
        %s2393 = smul.f32 %s2392, %s1267
        %v2394 = vstv %s2393
        %v2395 = vmul.f32 %v2394, %v2325
        %2397 = vrot.lane.b32.xlu0 %v2395, 126
        %v2398 = vpop.permute.xlu0 %2397
        %v2400 = vadd.f32 %v2382, %v2398
        %s2401 = sld [smem:[#allocation21 + $0x35]]
        %s2402 = smul.f32 %s2401, %s1267
        %v2403 = vstv %s2402
        %v2404 = vmul.f32 %v2403, %v2336
        %2406 = vrot.lane.b32.xlu0 %v2404, 126
        %v2407 = vpop.permute.xlu0 %2406
        %v2409 = vadd.f32 %v2391, %v2407
        %s2410 = sld [smem:[#allocation21 + $0xb5]]
        %s2411 = smul.f32 %s2410, %s1267
        %v2412 = vstv %s2411
        %v2413 = vmul.f32 %v2412, %v2336
        %2415 = vrot.lane.b32.xlu0 %v2413, 126
        %v2416 = vpop.permute.xlu0 %2415
        %v2418 = vadd.f32 %v2400, %v2416
        %s2419 = sld [smem:[#allocation22]]
        %v2420 = vstv %s2419
        %v2421 = vadd.f32 %v2409, %v2420
        %v2422 = vmax.f32 %v2421, 0.0
        %s2423 = sld [smem:[#allocation22 + $0x1]]
        %v2424 = vstv %s2423
        %v2425 = vadd.f32 %v2418, %v2424
        %v2426 = vmax.f32 %v2425, 0.0
        %2427 = vst.msk [vmem:[%s1000] sm:$0xff] %vm1022, %v2422
        %s2428 = scalar_lea.vmem %s1000, 8 [#allocation37]
        %2429 = vst.msk [vmem:[%s2428] sm:$0xff] %vm1022, %v2426
        %2430 = vst.msk [vmem:[#allocation4] sm:$0xff] %vm1022, 0.0
        %2431 = vst.msk [vmem:[#allocation4 + $0x8] sm:$0x3] %vm1024, 0.0
        %2432 = vst.msk [vmem:[#allocation4 + $0x10] sm:$0xff] %vm1022, 0.0
        %2433 = vst.msk [vmem:[#allocation4 + $0x18] sm:$0x3] %vm1024, 0.0
        %v2434 = vld [vmem:[%s904] sm:$0xff]
        %v2435 = vld [vmem:[%s1035] sm:$0xff]
        %v2436 = vld [vmem:[%s1037] sm:$0xff]
        %v2437 = vld [vmem:[%s1039] sm:$0xff]
        %s2438 = sld [smem:[#allocation23]]
        %v2439 = vstv %s2438
        %v2440 = vmul.f32 %v2439, %v2434
        %s2441 = sld [smem:[#allocation23 + $0x1]]
        %v2442 = vstv %s2441
        %v2443 = vmul.f32 %v2442, %v2435
        %v2444 = vadd.f32 %v2440, %v2443
        %s2445 = sld [smem:[#allocation23 + $0x2]]
        %v2446 = vstv %s2445
        %v2447 = vmul.f32 %v2446, %v2436
        %v2448 = vadd.f32 %v2444, %v2447
        %s2449 = sld [smem:[#allocation23 + $0x3]]
        %v2450 = vstv %s2449
        %v2451 = vmul.f32 %v2450, %v2437
        %v2452 = vadd.f32 %v2448, %v2451
        %s2453 = sld [smem:[#allocation25]]
        %v2454 = vstv %s2453
        %v2455 = vadd.f32 %v2452, %v2454
        %2456 = vst.msk [vmem:[#allocation4 + $0x1] sm:$0xff] %vm1022, %v2455
        %s2457 = sld [smem:[#allocation23 + $0x80]]
        %v2458 = vstv %s2457
        %v2459 = vmul.f32 %v2458, %v2434
        %s2460 = sld [smem:[#allocation23 + $0x81]]
        %v2461 = vstv %s2460
        %v2462 = vmul.f32 %v2461, %v2435
        %v2463 = vadd.f32 %v2459, %v2462
        %s2464 = sld [smem:[#allocation23 + $0x82]]
        %v2465 = vstv %s2464
        %v2466 = vmul.f32 %v2465, %v2436
        %v2467 = vadd.f32 %v2463, %v2466
        %s2468 = sld [smem:[#allocation23 + $0x83]]
        %v2469 = vstv %s2468
        %v2470 = vmul.f32 %v2469, %v2437
        %v2471 = vadd.f32 %v2467, %v2470
        %s2472 = sld [smem:[#allocation25 + $0x1]]
        %v2473 = vstv %s2472
        %v2474 = vadd.f32 %v2471, %v2473
        %s2475 = scalar_lea.vmem [#allocation4], 16
        %2476 = vst.msk [vmem:[%s2475 + $0x1] sm:$0xff] %vm1022, %v2474
        %v2477 = vld [vmem:[#allocation4] sm:$0xff]
        %s2478 = sld [smem:[#allocation27]]
        %s2479 = smul.f32 %s2478, %s1033
        %v2480 = vstv %s2479
        %v2481 = vmul.f32 %v2480, %v2477
        %v2482 = vadd.f32 %v2481, 0.0
        %s2483 = sld [smem:[#allocation27 + $0x80]]
        %s2484 = smul.f32 %s2483, %s1033
        %v2485 = vstv %s2484
        %v2486 = vmul.f32 %v2485, %v2477
        %v2487 = vadd.f32 %v2486, 0.0
        %v2488 = vld [vmem:[%s2475] sm:$0xff]
        %s2489 = sld [smem:[#allocation27 + $0x1]]
        %s2490 = smul.f32 %s2489, %s1033
        %v2491 = vstv %s2490
        %v2492 = vmul.f32 %v2491, %v2488
        %v2493 = vadd.f32 %v2482, %v2492
        %s2494 = sld [smem:[#allocation27 + $0x81]]
        %s2495 = smul.f32 %s2494, %s1033
        %v2496 = vstv %s2495
        %v2497 = vmul.f32 %v2496, %v2488
        %v2498 = vadd.f32 %v2487, %v2497
        %v2499 = vld [vmem:[#allocation4 + $0x1] sm:$0xff]
        %s2500 = sld [smem:[#allocation27 + $0x2]]
        %s2501 = smul.f32 %s2500, %s1033
        %v2502 = vstv %s2501
        %v2503 = vmul.f32 %v2502, %v2499
        %v2504 = vadd.f32 %v2493, %v2503
        %s2505 = sld [smem:[#allocation27 + $0x82]]
        %s2506 = smul.f32 %s2505, %s1033
        %v2507 = vstv %s2506
        %v2508 = vmul.f32 %v2507, %v2499
        %v2509 = vadd.f32 %v2498, %v2508
        %v2510 = vld [vmem:[%s2475 + $0x1] sm:$0xff]
        %s2511 = sld [smem:[#allocation27 + $0x3]]
        %s2512 = smul.f32 %s2511, %s1033
        %v2513 = vstv %s2512
        %v2514 = vmul.f32 %v2513, %v2510
        %v2515 = vadd.f32 %v2504, %v2514
        %s2516 = sld [smem:[#allocation27 + $0x83]]
        %s2517 = smul.f32 %s2516, %s1033
        %v2518 = vstv %s2517
        %v2519 = vmul.f32 %v2518, %v2510
        %v2520 = vadd.f32 %v2509, %v2519
        %v2521 = vld [vmem:[#allocation4 + $0x2] sm:$0xff]
        %s2522 = sld [smem:[#allocation27 + $0x4]]
        %s2523 = smul.f32 %s2522, %s1033
        %v2524 = vstv %s2523
        %v2525 = vmul.f32 %v2524, %v2521
        %v2526 = vadd.f32 %v2515, %v2525
        %s2527 = sld [smem:[#allocation27 + $0x84]]
        %s2528 = smul.f32 %s2527, %s1033
        %v2529 = vstv %s2528
        %v2530 = vmul.f32 %v2529, %v2521
        %v2531 = vadd.f32 %v2520, %v2530
        %v2532 = vld [vmem:[%s2475 + $0x2] sm:$0xff]
        %s2533 = sld [smem:[#allocation27 + $0x5]]
        %s2534 = smul.f32 %s2533, %s1033
        %v2535 = vstv %s2534
        %v2536 = vmul.f32 %v2535, %v2532
        %v2537 = vadd.f32 %v2526, %v2536
        %s2538 = sld [smem:[#allocation27 + $0x85]]
        %s2539 = smul.f32 %s2538, %s1033
        %v2540 = vstv %s2539
        %v2541 = vmul.f32 %v2540, %v2532
        %v2542 = vadd.f32 %v2531, %v2541
        %v2543 = vld [vmem:[%s914] sm:$0xff]
        %v2544 = vld [vmem:[%s1152] sm:$0xff]
        %v2545 = vld [vmem:[%s1154] sm:$0xff]
        %v2546 = vld [vmem:[%s1156] sm:$0xff]
        %s2547 = sld [smem:[#allocation23]]
        %v2548 = vstv %s2547
        %v2549 = vmul.f32 %v2548, %v2543
        %s2550 = sld [smem:[#allocation23 + $0x1]]
        %v2551 = vstv %s2550
        %v2552 = vmul.f32 %v2551, %v2544
        %v2553 = vadd.f32 %v2549, %v2552
        %s2554 = sld [smem:[#allocation23 + $0x2]]
        %v2555 = vstv %s2554
        %v2556 = vmul.f32 %v2555, %v2545
        %v2557 = vadd.f32 %v2553, %v2556
        %s2558 = sld [smem:[#allocation23 + $0x3]]
        %v2559 = vstv %s2558
        %v2560 = vmul.f32 %v2559, %v2546
        %v2561 = vadd.f32 %v2557, %v2560
        %s2562 = sld [smem:[#allocation25]]
        %v2563 = vstv %s2562
        %v2564 = vadd.f32 %v2561, %v2563
        %2565 = vst.msk [vmem:[#allocation4 + $0x1] sm:$0xff] %vm1022, %v2564
        %s2566 = sld [smem:[#allocation23 + $0x80]]
        %v2567 = vstv %s2566
        %v2568 = vmul.f32 %v2567, %v2543
        %s2569 = sld [smem:[#allocation23 + $0x81]]
        %v2570 = vstv %s2569
        %v2571 = vmul.f32 %v2570, %v2544
        %v2572 = vadd.f32 %v2568, %v2571
        %s2573 = sld [smem:[#allocation23 + $0x82]]
        %v2574 = vstv %s2573
        %v2575 = vmul.f32 %v2574, %v2545
        %v2576 = vadd.f32 %v2572, %v2575
        %s2577 = sld [smem:[#allocation23 + $0x83]]
        %v2578 = vstv %s2577
        %v2579 = vmul.f32 %v2578, %v2546
        %v2580 = vadd.f32 %v2576, %v2579
        %s2581 = sld [smem:[#allocation25 + $0x1]]
        %v2582 = vstv %s2581
        %v2583 = vadd.f32 %v2580, %v2582
        %2584 = vst.msk [vmem:[%s2475 + $0x1] sm:$0xff] %vm1022, %v2583
        %v2585 = vld [vmem:[#allocation4] sm:$0xff]
        %s2586 = sld [smem:[#allocation27 + $0x6]]
        %s2587 = smul.f32 %s2586, %s1150
        %v2588 = vstv %s2587
        %v2589 = vmul.f32 %v2588, %v2585
        %v2590 = vadd.f32 %v2537, %v2589
        %s2591 = sld [smem:[#allocation27 + $0x86]]
        %s2592 = smul.f32 %s2591, %s1150
        %v2593 = vstv %s2592
        %v2594 = vmul.f32 %v2593, %v2585
        %v2595 = vadd.f32 %v2542, %v2594
        %v2596 = vld [vmem:[%s2475] sm:$0xff]
        %s2597 = sld [smem:[#allocation27 + $0x7]]
        %s2598 = smul.f32 %s2597, %s1150
        %v2599 = vstv %s2598
        %v2600 = vmul.f32 %v2599, %v2596
        %v2601 = vadd.f32 %v2590, %v2600
        %s2602 = sld [smem:[#allocation27 + $0x87]]
        %s2603 = smul.f32 %s2602, %s1150
        %v2604 = vstv %s2603
        %v2605 = vmul.f32 %v2604, %v2596
        %v2606 = vadd.f32 %v2595, %v2605
        %v2607 = vld [vmem:[#allocation4 + $0x1] sm:$0xff]
        %s2608 = sld [smem:[#allocation27 + $0x8]]
        %s2609 = smul.f32 %s2608, %s1150
        %v2610 = vstv %s2609
        %v2611 = vmul.f32 %v2610, %v2607
        %v2612 = vadd.f32 %v2601, %v2611
        %s2613 = sld [smem:[#allocation27 + $0x88]]
        %s2614 = smul.f32 %s2613, %s1150
        %v2615 = vstv %s2614
        %v2616 = vmul.f32 %v2615, %v2607
        %v2617 = vadd.f32 %v2606, %v2616
        %v2618 = vld [vmem:[%s2475 + $0x1] sm:$0xff]
        %s2619 = sld [smem:[#allocation27 + $0x9]]
        %s2620 = smul.f32 %s2619, %s1150
        %v2621 = vstv %s2620
        %v2622 = vmul.f32 %v2621, %v2618
        %v2623 = vadd.f32 %v2612, %v2622
        %s2624 = sld [smem:[#allocation27 + $0x89]]
        %s2625 = smul.f32 %s2624, %s1150
        %v2626 = vstv %s2625
        %v2627 = vmul.f32 %v2626, %v2618
        %v2628 = vadd.f32 %v2617, %v2627
        %v2629 = vld [vmem:[#allocation4 + $0x2] sm:$0xff]
        %s2630 = sld [smem:[#allocation27 + $0xa]]
        %s2631 = smul.f32 %s2630, %s1150
        %v2632 = vstv %s2631
        %v2633 = vmul.f32 %v2632, %v2629
        %v2634 = vadd.f32 %v2623, %v2633
        %s2635 = sld [smem:[#allocation27 + $0x8a]]
        %s2636 = smul.f32 %s2635, %s1150
        %v2637 = vstv %s2636
        %v2638 = vmul.f32 %v2637, %v2629
        %v2639 = vadd.f32 %v2628, %v2638
        %v2640 = vld [vmem:[%s2475 + $0x2] sm:$0xff]
        %s2641 = sld [smem:[#allocation27 + $0xb]]
        %s2642 = smul.f32 %s2641, %s1150
        %v2643 = vstv %s2642
        %v2644 = vmul.f32 %v2643, %v2640
        %v2645 = vadd.f32 %v2634, %v2644
        %s2646 = sld [smem:[#allocation27 + $0x8b]]
        %s2647 = smul.f32 %s2646, %s1150
        %v2648 = vstv %s2647
        %v2649 = vmul.f32 %v2648, %v2640
        %v2650 = vadd.f32 %v2639, %v2649
        %v2651 = vld [vmem:[%s924] sm:$0xff]
        %v2652 = vld [vmem:[%s1269] sm:$0xff]
        %v2653 = vld [vmem:[%s1271] sm:$0xff]
        %v2654 = vld [vmem:[%s1273] sm:$0xff]
        %s2655 = sld [smem:[#allocation23]]
        %v2656 = vstv %s2655
        %v2657 = vmul.f32 %v2656, %v2651
        %s2658 = sld [smem:[#allocation23 + $0x1]]
        %v2659 = vstv %s2658
        %v2660 = vmul.f32 %v2659, %v2652
        %v2661 = vadd.f32 %v2657, %v2660
        %s2662 = sld [smem:[#allocation23 + $0x2]]
        %v2663 = vstv %s2662
        %v2664 = vmul.f32 %v2663, %v2653
        %v2665 = vadd.f32 %v2661, %v2664
        %s2666 = sld [smem:[#allocation23 + $0x3]]
        %v2667 = vstv %s2666
        %v2668 = vmul.f32 %v2667, %v2654
        %v2669 = vadd.f32 %v2665, %v2668
        %s2670 = sld [smem:[#allocation25]]
        %v2671 = vstv %s2670
        %v2672 = vadd.f32 %v2669, %v2671
        %2673 = vst.msk [vmem:[#allocation4 + $0x1] sm:$0xff] %vm1022, %v2672
        %s2674 = sld [smem:[#allocation23 + $0x80]]
        %v2675 = vstv %s2674
        %v2676 = vmul.f32 %v2675, %v2651
        %s2677 = sld [smem:[#allocation23 + $0x81]]
        %v2678 = vstv %s2677
        %v2679 = vmul.f32 %v2678, %v2652
        %v2680 = vadd.f32 %v2676, %v2679
        %s2681 = sld [smem:[#allocation23 + $0x82]]
        %v2682 = vstv %s2681
        %v2683 = vmul.f32 %v2682, %v2653
        %v2684 = vadd.f32 %v2680, %v2683
        %s2685 = sld [smem:[#allocation23 + $0x83]]
        %v2686 = vstv %s2685
        %v2687 = vmul.f32 %v2686, %v2654
        %v2688 = vadd.f32 %v2684, %v2687
        %s2689 = sld [smem:[#allocation25 + $0x1]]
        %v2690 = vstv %s2689
        %v2691 = vadd.f32 %v2688, %v2690
        %2692 = vst.msk [vmem:[%s2475 + $0x1] sm:$0xff] %vm1022, %v2691
        %v2693 = vld [vmem:[#allocation4] sm:$0xff]
        %s2694 = sld [smem:[#allocation27 + $0xc]]
        %s2695 = smul.f32 %s2694, %s1267
        %v2696 = vstv %s2695
        %v2697 = vmul.f32 %v2696, %v2693
        %v2698 = vadd.f32 %v2645, %v2697
        %s2699 = sld [smem:[#allocation27 + $0x8c]]
        %s2700 = smul.f32 %s2699, %s1267
        %v2701 = vstv %s2700
        %v2702 = vmul.f32 %v2701, %v2693
        %v2703 = vadd.f32 %v2650, %v2702
        %v2704 = vld [vmem:[%s2475] sm:$0xff]
        %s2705 = sld [smem:[#allocation27 + $0xd]]
        %s2706 = smul.f32 %s2705, %s1267
        %v2707 = vstv %s2706
        %v2708 = vmul.f32 %v2707, %v2704
        %v2709 = vadd.f32 %v2698, %v2708
        %s2710 = sld [smem:[#allocation27 + $0x8d]]
        %s2711 = smul.f32 %s2710, %s1267
        %v2712 = vstv %s2711
        %v2713 = vmul.f32 %v2712, %v2704
        %v2714 = vadd.f32 %v2703, %v2713
        %v2715 = vld [vmem:[#allocation4 + $0x1] sm:$0xff]
        %s2716 = sld [smem:[#allocation27 + $0xe]]
        %s2717 = smul.f32 %s2716, %s1267
        %v2718 = vstv %s2717
        %v2719 = vmul.f32 %v2718, %v2715
        %v2720 = vadd.f32 %v2709, %v2719
        %s2721 = sld [smem:[#allocation27 + $0x8e]]
        %s2722 = smul.f32 %s2721, %s1267
        %v2723 = vstv %s2722
        %v2724 = vmul.f32 %v2723, %v2715
        %v2725 = vadd.f32 %v2714, %v2724
        %v2726 = vld [vmem:[%s2475 + $0x1] sm:$0xff]
        %s2727 = sld [smem:[#allocation27 + $0xf]]
        %s2728 = smul.f32 %s2727, %s1267
        %v2729 = vstv %s2728
        %v2730 = vmul.f32 %v2729, %v2726
        %v2731 = vadd.f32 %v2720, %v2730
        %s2732 = sld [smem:[#allocation27 + $0x8f]]
        %s2733 = smul.f32 %s2732, %s1267
        %v2734 = vstv %s2733
        %v2735 = vmul.f32 %v2734, %v2726
        %v2736 = vadd.f32 %v2725, %v2735
        %v2737 = vld [vmem:[#allocation4 + $0x2] sm:$0xff]
        %s2738 = sld [smem:[#allocation27 + $0x10]]
        %s2739 = smul.f32 %s2738, %s1267
        %v2740 = vstv %s2739
        %v2741 = vmul.f32 %v2740, %v2737
        %v2742 = vadd.f32 %v2731, %v2741
        %s2743 = sld [smem:[#allocation27 + $0x90]]
        %s2744 = smul.f32 %s2743, %s1267
        %v2745 = vstv %s2744
        %v2746 = vmul.f32 %v2745, %v2737
        %v2747 = vadd.f32 %v2736, %v2746
        %v2748 = vld [vmem:[%s2475 + $0x2] sm:$0xff]
        %s2749 = sld [smem:[#allocation27 + $0x11]]
        %s2750 = smul.f32 %s2749, %s1267
        %v2751 = vstv %s2750
        %v2752 = vmul.f32 %v2751, %v2748
        %v2753 = vadd.f32 %v2742, %v2752
        %s2754 = sld [smem:[#allocation27 + $0x91]]
        %s2755 = smul.f32 %s2754, %s1267
        %v2756 = vstv %s2755
        %v2757 = vmul.f32 %v2756, %v2748
        %v2758 = vadd.f32 %v2747, %v2757
        %s2759 = sld [smem:[#allocation28]]
        %v2760 = vstv %s2759
        %v2761 = vadd.f32 %v2753, %v2760
        %v2762 = vmax.f32 %v2761, 0.0
        %s2763 = sld [smem:[#allocation28 + $0x1]]
        %v2764 = vstv %s2763
        %v2765 = vadd.f32 %v2758, %v2764
        %v2766 = vmax.f32 %v2765, 0.0
        %2767 = vst.msk [vmem:[%s1007] sm:$0xff] %vm1022, %v2762
        %s2768 = scalar_lea.vmem %s1007, 8 [#allocation38]
        %2769 = vst.msk [vmem:[%s2768] sm:$0xff] %vm1022, %v2766
        %s2770 = sand.u32 %s484, 1
        %s2771 = scalar_lea.sflag [#allocation7], %s2770
        %s2772 = sand.u32 %s484, 1
        %s2773 = smul.addr %s2772, 16
        %s2774 = scalar_lea.vmem [#allocation34], %s2773
        %s2775 = sand.u32 %s56, 1
        %s2776 = scalar_lea.sflag [#allocation36], %s2775
        %s2777 = sand.u32 %s512, 1
        %s2778 = smul.addr %s2777, 16
        %s2779 = scalar_lea.vmem [#allocation35], %s2778
        %s2780 = sand.u32 %s56, 1
        %s2781 = scalar_lea.sflag [#allocation36], %s2780
        %s2782 = sand.u32 %s540, 1
        %s2783 = smul.addr %s2782, 16
        %s2784 = scalar_lea.vmem [#allocation37], %s2783
        %s2785 = sand.u32 %s568, 1
        %s2786 = scalar_lea.sflag [#allocation39], %s2785
        %s2787 = sand.u32 %s568, 1
        %s2788 = smul.addr %s2787, 16
        %s2789 = scalar_lea.vmem [#allocation38], %s2788
        // Predicated region
        $region157: #{tpu_custom_call.1} parent=87 // pred_check
          %p2790 = pneg %p494
        $region158: #{tpu_custom_call.1} parent=87 // pred_check_branch
          %2792 = sbr.rel (%p2790) target = $region160
        $region159: #{tpu_custom_call.1} parent=87 // pred_region
          %2794 = vsyncadd %s2771, 0
          %s2795 = smul.addr %s60, 16
          %s2796 = sadd.s32 %s61, %s2795
          %s2797 = smul.addr %s2796, 8
          %s2798 = scalar_lea.hbm %s17, %s2797
          %s2799 = sshll.u32 %s2774, 4
          %s2800 = int_to_ptr.vmem [resolvable:$true] %s2799
          %s2801 = sshll.u32 %s2798, 4
          %s2802 = int_to_ptr.hbm [resolvable:$true] %s2801
          %2807 = dma.vmem_to_hbm [thread:$0]  %s2800, 256, %s2802, %s2771, 128, 1024, 8
        $region160: #{tpu_custom_call.1} parent=87 // pred_fallthru
          _
        // Predicated region
        $region161: #{tpu_custom_call.1} parent=87 // pred_check
          %p2808 = pneg %p522
        $region162: #{tpu_custom_call.1} parent=87 // pred_check_branch
          %2810 = sbr.rel (%p2808) target = $region164
        $region163: #{tpu_custom_call.1} parent=87 // pred_region
          %2812 = vsyncadd %s2776, 0
          %s2813 = smul.addr %s60, 16
          %s2814 = sadd.s32 %s61, %s2813
          %s2815 = smul.addr %s2814, 8
          %s2816 = scalar_lea.hbm %s18, %s2815
          %s2817 = sshll.u32 %s2779, 4
          %s2818 = int_to_ptr.vmem [resolvable:$true] %s2817
          %s2819 = sshll.u32 %s2816, 4
          %s2820 = int_to_ptr.hbm [resolvable:$true] %s2819
          %2825 = dma.vmem_to_hbm [thread:$0]  %s2818, 256, %s2820, %s2776, 128, 1024, 8
        $region164: #{tpu_custom_call.1} parent=87 // pred_fallthru
          _
        // Predicated region
        $region165: #{tpu_custom_call.1} parent=87 // pred_check
          %p2826 = pneg %p550
        $region166: #{tpu_custom_call.1} parent=87 // pred_check_branch
          %2828 = sbr.rel (%p2826) target = $region168
        $region167: #{tpu_custom_call.1} parent=87 // pred_region
          %2830 = vsyncadd %s2781, 0
          %s2831 = smul.addr %s60, 16
          %s2832 = sadd.s32 %s61, %s2831
          %s2833 = smul.addr %s2832, 8
          %s2834 = scalar_lea.hbm %s19, %s2833
          %s2835 = sshll.u32 %s2784, 4
          %s2836 = int_to_ptr.vmem [resolvable:$true] %s2835
          %s2837 = sshll.u32 %s2834, 4
          %s2838 = int_to_ptr.hbm [resolvable:$true] %s2837
          %2843 = dma.vmem_to_hbm [thread:$0]  %s2836, 256, %s2838, %s2781, 128, 1024, 8
        $region168: #{tpu_custom_call.1} parent=87 // pred_fallthru
          _
        // Predicated region
        $region169: #{tpu_custom_call.1} parent=87 // pred_check
          %p2844 = pneg %p578
        $region170: #{tpu_custom_call.1} parent=87 // pred_check_branch
          %2846 = sbr.rel (%p2844) target = $region172
        $region171: #{tpu_custom_call.1} parent=87 // pred_region
          %2848 = vsyncadd %s2786, 0
          %s2849 = smul.addr %s60, 16
          %s2850 = sadd.s32 %s61, %s2849
          %s2851 = smul.addr %s2850, 8
          %s2852 = scalar_lea.hbm %s20, %s2851
          %s2853 = sshll.u32 %s2789, 4
          %s2854 = int_to_ptr.vmem [resolvable:$true] %s2853
          %s2855 = sshll.u32 %s2852, 4
          %s2856 = int_to_ptr.hbm [resolvable:$true] %s2855
          %2861 = dma.vmem_to_hbm [thread:$0]  %s2854, 256, %s2856, %s2786, 128, 1024, 8
        $region172: #{tpu_custom_call.1} parent=87 // pred_fallthru
          _
      $region88: #{tpu_custom_call.1} parent=5 // pred_fallthru
        _
      %p2862 = scmp.le.s32.totalorder 2, %s51
      // Predicated region
      $region173: #{tpu_custom_call.1} parent=5 // pred_check
        %p2863 = pneg %p2862
      $region174: #{tpu_custom_call.1} parent=5 // pred_check_branch
        %2865 = sbr.rel (%p2863) target = $region176
      $region175: #{tpu_custom_call.1} parent=5 // pred_region
        %s2866 = ssub.s32 %s51, 2
        // Predicated region
        $region177: #{tpu_custom_call.1} parent=175 // pred_check
          %p2867 = pneg %p500
        $region178: #{tpu_custom_call.1} parent=175 // pred_check_branch
          %2869 = sbr.rel (%p2867) target = $region180
        $region179: #{tpu_custom_call.1} parent=175 // pred_region
          %s2870 = sand.u32 %s485, 1
          %s2871 = scalar_lea.sflag [#allocation7], %s2870
          %s2872 = sand.u32 %s485, 1
          %s2873 = smul.addr %s2872, 16
          %s2874 = scalar_lea.vmem [#allocation34], %s2873
          %2876 = dma.done %s2871, 256
        $region180: #{tpu_custom_call.1} parent=175 // pred_fallthru
          _
        // Predicated region
        $region181: #{tpu_custom_call.1} parent=175 // pred_check
          %p2877 = pneg %p528
        $region182: #{tpu_custom_call.1} parent=175 // pred_check_branch
          %2879 = sbr.rel (%p2877) target = $region184
        $region183: #{tpu_custom_call.1} parent=175 // pred_region
          %s2880 = sand.u32 %s57, 1
          %s2881 = scalar_lea.sflag [#allocation36], %s2880
          %s2882 = sand.u32 %s513, 1
          %s2883 = smul.addr %s2882, 16
          %s2884 = scalar_lea.vmem [#allocation35], %s2883
          %2886 = dma.done %s2881, 256
        $region184: #{tpu_custom_call.1} parent=175 // pred_fallthru
          _
        // Predicated region
        $region185: #{tpu_custom_call.1} parent=175 // pred_check
          %p2887 = pneg %p556
        $region186: #{tpu_custom_call.1} parent=175 // pred_check_branch
          %2889 = sbr.rel (%p2887) target = $region188
        $region187: #{tpu_custom_call.1} parent=175 // pred_region
          %s2890 = sand.u32 %s57, 1
          %s2891 = scalar_lea.sflag [#allocation36], %s2890
          %s2892 = sand.u32 %s541, 1
          %s2893 = smul.addr %s2892, 16
          %s2894 = scalar_lea.vmem [#allocation37], %s2893
          %2896 = dma.done %s2891, 256
        $region188: #{tpu_custom_call.1} parent=175 // pred_fallthru
          _
        // Predicated region
        $region189: #{tpu_custom_call.1} parent=175 // pred_check
          %p2897 = pneg %p584
        $region190: #{tpu_custom_call.1} parent=175 // pred_check_branch
          %2899 = sbr.rel (%p2897) target = $region192
        $region191: #{tpu_custom_call.1} parent=175 // pred_region
          %s2900 = sand.u32 %s569, 1
          %s2901 = scalar_lea.sflag [#allocation39], %s2900
          %s2902 = sand.u32 %s569, 1
          %s2903 = smul.addr %s2902, 16
          %s2904 = scalar_lea.vmem [#allocation38], %s2903
          %2906 = dma.done %s2901, 256
        $region192: #{tpu_custom_call.1} parent=175 // pred_fallthru
          _
      $region176: #{tpu_custom_call.1} parent=5 // pred_fallthru
        _
    $region6: #{tpu_custom_call.1} parent=1 // loop_footer
      %s55 = sadd.s32 1, %s51
    $region7: #{tpu_custom_call.1} parent=1 // loop_footer_branch
      %50 = sbr.rel target = $region3
    $region8: #{tpu_custom_call.1} parent=1 // loop_exit
      _
    %2907 = vsyncpa [#allocation6], 1
    %s2908 = scalar_lea.sflag [#allocation6], 1
    %2909 = vsyncpa %s2908, 1
    %2910 = vsyncpa [#allocation32], 1
    %s2911 = scalar_lea.sflag [#allocation32], 1
    %2912 = vsyncpa %s2911, 1
    %2913 = vsyncpa [#allocation7], 1
    %s2914 = scalar_lea.sflag [#allocation7], 1
    %2915 = vsyncpa %s2914, 1
    %2916 = vsyncpa [#allocation36], 1
    %s2917 = scalar_lea.sflag [#allocation36], 1
    %2918 = vsyncpa %s2917, 1
    %2919 = vsyncpa [#allocation39], 1
    %s2920 = scalar_lea.sflag [#allocation39], 1
    %2921 = vsyncpa %s2920, 1
    %2922 = vsyncpa [#allocation8], 1
    %s2923 = scalar_lea.sflag [#allocation8], 1
    %2924 = vsyncpa %s2923, 1
    %2925 = vsyncpa [#allocation11], 1
    %2926 = vsyncpa [#allocation14], 1
    %2927 = vsyncpa [#allocation20], 1
    %2928 = vsyncpa [#allocation26], 1
    %2929 = vsyncpa [#allocation9], 1
    %s2930 = scalar_lea.sflag [#allocation9], 1
    %2931 = vsyncpa %s2930, 1
    %2932 = vsyncpa [#allocation18], 1
    %2933 = vsyncpa [#allocation24], 1
    %2934 = vsyncpa [#allocation29], 1

</llo_original>
